<compile_context>
chip_gen: v6e
topology: v6e:2x2x1
jax: 0.10.0
libtpu: 0.0.40
codegen_flags: <defaults>
</compile_context>

<pallas_src>
import numpy as np
import jax
import jax.numpy as jnp
from jax import lax
from jax.experimental import pallas as pl
from jax.experimental.pallas import tpu as pltpu


# ------------------------------------------------------------- constants ----

def _gather_matrices(batch, h, w):
    """One-hot row-selection matrices for a 3x3 / stride-2 / pad-1 conv.

    Shape (9, batch*ho*wo, batch*h*w): tap t = kh*3 + kw selects, for each
    output row (b, oh, ow), the NHWC-flattened input row (b, 2*oh+kh-1,
    2*ow+kw-1); taps that land in the zero-padding are all-zero rows, so the
    gathered row is exactly 0 (padding handled for free, no jnp.pad needed).
    """
    ho, wo = h // 2, w // 2
    g = np.zeros((9, batch * ho * wo, batch * h * w), np.float32)
    for b in range(batch):
        for oh in range(ho):
            for ow in range(wo):
                r = b * ho * wo + oh * wo + ow
                for kh in range(3):
                    for kw in range(3):
                        ih, iw = 2 * oh + kh - 1, 2 * ow + kw - 1
                        if 0 <= ih < h and 0 <= iw < w:
                            g[kh * 3 + kw, r, b * h * w + ih * w + iw] = 1.0
    return g


def _vmem_cap_bytes():
    # ~75% of the chip's VMEM (leave compiler headroom, esp. on v7x's 64 MiB).
    try:
        return int(0.75 * pltpu.get_tpu_info().vmem_capacity_bytes)
    except Exception:
        return 48 * 1024 * 1024


# ----------------------------------------------------------------- kernel ---

def _make_fused_kernel(n_blocks, batch, spatial_pos):
    """Fused forward kernel.

    Ref order: x, [g, w, b, scale, shift] * n_blocks, w_head, b_head, out.
    """

    def kernel(*refs):
        x_ref, out_ref = refs[0], refs[-1]
        wh_ref, bh_ref = refs[-3], refs[-2]
        blk_refs = refs[1:-3]

        x = x_ref[...]                                   # (B*H*W, C_in) bf16
        for l in range(n_blocks):
            g_ref, w_ref, b_ref, s_ref, t_ref = blk_refs[5 * l:5 * l + 5]
            rows, cout = g_ref.shape[1], w_ref.shape[2]
            acc = jnp.zeros((rows, cout), jnp.float32)
            for tap in range(9):                         # 3x3 stride-2 conv
                # one-hot row gather (exact in bf16) + per-tap weight matmul
                xt = jnp.dot(g_ref[tap], x,
                             preferred_element_type=jnp.float32)
                acc = acc + jnp.dot(xt.astype(jnp.bfloat16), w_ref[tap],
                                    preferred_element_type=jnp.float32)
            y = acc + b_ref[...]                         # conv bias (f32)
            y = jnp.where(y > 0, y, 0.2 * y)             # LeakyReLU(0.2)
            # Dropout2d(0.25): identity in eval mode.
            y = y * s_ref[...] + t_ref[...]              # folded BatchNorm2d (eval)
            x = y.astype(jnp.bfloat16)                   # bf16 activations

        # Fused heads: one matmul; column 0 = adv logit, columns 1: = aux.
        bh = bh_ref[...]
        if spatial_pos == 1:                             # ds == 1: x is (B, 128)
            z = jnp.dot(x, wh_ref[...], preferred_element_type=jnp.float32) + bh
        else:                                            # general ds (not hit at shipped size)
            cf = x.shape[1]
            zs = []
            for b in range(batch):
                zb = jnp.zeros((1, bh.shape[1]), jnp.float32)
                for p in range(spatial_pos):
                    zb = zb + jnp.dot(
                        x[b * spatial_pos + p:b * spatial_pos + p + 1, :],
                        wh_ref[p * cf:(p + 1) * cf, :],
                        preferred_element_type=jnp.float32)
                zs.append(zb)
            z = jnp.concatenate(zs, axis=0) + bh

        col = lax.broadcasted_iota(jnp.int32, z.shape, 1)
        sig = 0.5 * (jnp.tanh(0.5 * z) + 1.0)            # stable sigmoid
        zm = jnp.where(col >= 1, z, -jnp.inf)            # adv column out of softmax
        m = jnp.max(zm, axis=-1, keepdims=True)
        e = jnp.exp(zm - m)                              # exp(-inf) = 0 for adv col
        soft = e / jnp.sum(e, axis=-1, keepdims=True)
        out_ref[...] = jnp.where(col == 0, sig, soft)

    return kernel


# ----------------------------------------------------------------- model ----

def init_params(key, channels, img_size, n_classes, batch):
    chs = [channels, 16, 32, 64, 128]
    keys = jax.random.split(key, 20)
    ki = 0
    blocks = []
    h = img_size
    for li in range(4):
        cin, cout = chs[li], chs[li + 1]
        w = 0.05 * jax.random.normal(keys[ki], (3, 3, cin, cout), jnp.float32); ki += 1
        b = 0.05 * jax.random.normal(keys[ki], (cout,), jnp.float32); ki += 1
        if li == 0:
            scale = jnp.ones((cout,), jnp.float32)       # no BN in first block
            shift = jnp.zeros((cout,), jnp.float32)
        else:
            # BatchNorm2d(cout, eps=0.8), eval mode: fold into an affine.
            gamma = 1.0 + 0.1 * jax.random.normal(keys[ki], (cout,), jnp.float32); ki += 1
            beta = 0.1 * jax.random.normal(keys[ki], (cout,), jnp.float32); ki += 1
            running_mean = jnp.zeros((cout,), jnp.float32)
            running_var = jnp.ones((cout,), jnp.float32)
            eps = 0.8
            scale = gamma / jnp.sqrt(running_var + eps)
            shift = beta - running_mean * scale
        blocks.append(dict(
            g=jnp.asarray(_gather_matrices(batch, h, h), jnp.bfloat16),
            w=w.reshape(9, cin, cout).astype(jnp.bfloat16),   # tap-major (kh*3+kw)
            b=b.reshape(1, cout),                             # f32 epilogue params
            scale=scale.reshape(1, cout),
            shift=shift.reshape(1, cout)))
        h //= 2

    ds = img_size // (2 ** 4)
    feat_dim = 128 * ds * ds
    w_adv = 0.05 * jax.random.normal(keys[ki], (feat_dim, 1), jnp.float32); ki += 1
    b_adv = 0.05 * jax.random.normal(keys[ki], (1,), jnp.float32); ki += 1
    w_aux = 0.05 * jax.random.normal(keys[ki], (feat_dim, n_classes), jnp.float32); ki += 1
    b_aux = 0.05 * jax.random.normal(keys[ki], (n_classes,), jnp.float32); ki += 1
    # Both heads in one matmul; permute rows once so the kernel's NHWC-ordered
    # features feed them directly (PyTorch flattens NCHW).  Identity when ds=1.
    w_head = jnp.concatenate([w_adv, w_aux], axis=1)          # (F, 1 + n_classes)
    perm = jnp.transpose(jnp.arange(feat_dim).reshape(128, ds, ds), (1, 2, 0)).reshape(-1)
    w_head = w_head[perm].astype(jnp.bfloat16)
    b_head = jnp.concatenate([b_adv, b_aux]).reshape(1, 1 + n_classes)
    return dict(blocks=blocks, w_head=w_head, b_head=b_head)


def discriminator_forward(img_nchw, params):
    B, C, H, W = img_nchw.shape
    # NCHW (PyTorch) -> NHWC flattened rows: the only XLA glue, on the tiny input.
    x = jnp.transpose(img_nchw, (0, 2, 3, 1)).reshape(B * H * W, C).astype(jnp.bfloat16)

    flat = []
    for blk in params["blocks"]:
        flat += [blk["g"], blk["w"], blk["b"], blk["scale"], blk["shift"]]
    flat += [params["w_head"], params["b_head"]]

    n_out = params["w_head"].shape[1]
    feat_ch = params["blocks"][-1]["w"].shape[2]
    spatial_pos = params["w_head"].shape[0] // feat_ch        # ds*ds

    kernel = _make_fused_kernel(len(params["blocks"]), B, spatial_pos)

    operand_bytes = x.size * x.dtype.itemsize + B * n_out * 4
    for a in flat:
        operand_bytes += a.size * a.dtype.itemsize
    vmem_limit = int(min(2 * operand_bytes + 16 * 1024 * 1024, _vmem_cap_bytes()))

    out = pl.pallas_call(
        kernel,
        out_shape=jax.ShapeDtypeStruct((B, n_out), jnp.float32),
        in_specs=[pl.BlockSpec(memory_space=pltpu.MemorySpace.VMEM)] * (1 + len(flat)),
        out_specs=pl.BlockSpec(memory_space=pltpu.MemorySpace.VMEM),
        compiler_params=pltpu.CompilerParams(vmem_limit_bytes=vmem_limit),
    )(x, *flat)
    return out[:, :1], out[:, 1:]


# ------------------------------------------------------------------ main ----

if __name__ == "__main__":
    batch, channels, img_size, n_classes = 2, 4, 16, 10
    key = jax.random.PRNGKey(0)
    k_img, k_par = jax.random.split(key)
    img = jax.random.normal(k_img, (batch, channels, img_size, img_size), jnp.float32)
    params = init_params(k_par, channels, img_size, n_classes, batch)

    forward = jax.jit(discriminator_forward)
    validity, label = forward(img, params)
    jax.block_until_ready((validity, label))

    assert validity.shape == (batch, 1)
    assert label.shape == (batch, n_classes)
    assert float(jnp.max(jnp.abs(jnp.sum(label, axis=-1) - 1.0))) < 1e-3
    assert bool(jnp.all((validity >= 0.0) & (validity <= 1.0)))
    print("KERNEL_OK")
</pallas_src>

<mosaic_0001>
module attributes {stable_mosaic.version = 11 : i64} {
  func.func @kernel(%arg0: memref<512x4xbf16, #tpu.memory_space<vmem>>, %arg1: memref<9x128x512xbf16, #tpu.memory_space<vmem>>, %arg2: memref<9x4x16xbf16, #tpu.memory_space<vmem>>, %arg3: memref<1x16xf32, #tpu.memory_space<vmem>>, %arg4: memref<1x16xf32, #tpu.memory_space<vmem>>, %arg5: memref<1x16xf32, #tpu.memory_space<vmem>>, %arg6: memref<9x32x128xbf16, #tpu.memory_space<vmem>>, %arg7: memref<9x16x32xbf16, #tpu.memory_space<vmem>>, %arg8: memref<1x32xf32, #tpu.memory_space<vmem>>, %arg9: memref<1x32xf32, #tpu.memory_space<vmem>>, %arg10: memref<1x32xf32, #tpu.memory_space<vmem>>, %arg11: memref<9x8x32xbf16, #tpu.memory_space<vmem>>, %arg12: memref<9x32x64xbf16, #tpu.memory_space<vmem>>, %arg13: memref<1x64xf32, #tpu.memory_space<vmem>>, %arg14: memref<1x64xf32, #tpu.memory_space<vmem>>, %arg15: memref<1x64xf32, #tpu.memory_space<vmem>>, %arg16: memref<9x2x8xbf16, #tpu.memory_space<vmem>>, %arg17: memref<9x64x128xbf16, #tpu.memory_space<vmem>>, %arg18: memref<1x128xf32, #tpu.memory_space<vmem>>, %arg19: memref<1x128xf32, #tpu.memory_space<vmem>>, %arg20: memref<1x128xf32, #tpu.memory_space<vmem>>, %arg21: memref<128x11xbf16, #tpu.memory_space<vmem>>, %arg22: memref<1x11xf32, #tpu.memory_space<vmem>>, %arg23: memref<2x11xf32, #tpu.memory_space<vmem>>) attributes {dimension_semantics = [], scalar_prefetch = 0 : i64, scratch_operands = 0 : i64, tpu.core_type = #tpu.core_type<tc>} {
    %c0 = arith.constant 0 : index
    %c0_0 = arith.constant 0 : index
    %0 = vector.load %arg0[%c0, %c0_0] : memref<512x4xbf16, #tpu.memory_space<vmem>>, vector<512x4xbf16>
    %cst = arith.constant 0.000000e+00 : f32
    %1 = vector.broadcast %cst : f32 to vector<128x16xf32>
    %c0_1 = arith.constant 0 : index
    %c0_2 = arith.constant 0 : index
    %c0_3 = arith.constant 0 : index
    %2 = vector.load %arg1[%c0_1, %c0_2, %c0_3] : memref<9x128x512xbf16, #tpu.memory_space<vmem>>, vector<1x128x512xbf16>
    %3 = vector.shape_cast %2 : vector<1x128x512xbf16> to vector<128x512xbf16>
    %cst_4 = arith.constant dense<0.000000e+00> : vector<128x4xf32>
    %4 = tpu.matmul %3, %0, %cst_4 {dimension_numbers = #tpu.dot_dimension_numbers<[1], [0], [0], [1], [0, 0, 1, 1], [], []>} : vector<128x512xbf16>, vector<512x4xbf16>, vector<128x4xf32> -> vector<128x4xf32>
    %5 = arith.truncf %4 : vector<128x4xf32> to vector<128x4xbf16>
    %c0_5 = arith.constant 0 : index
    %c0_6 = arith.constant 0 : index
    %c0_7 = arith.constant 0 : index
    %6 = vector.load %arg2[%c0_5, %c0_6, %c0_7] : memref<9x4x16xbf16, #tpu.memory_space<vmem>>, vector<1x4x16xbf16>
    %7 = vector.shape_cast %6 : vector<1x4x16xbf16> to vector<4x16xbf16>
    %cst_8 = arith.constant dense<0.000000e+00> : vector<128x16xf32>
    %8 = tpu.matmul %5, %7, %cst_8 {dimension_numbers = #tpu.dot_dimension_numbers<[1], [0], [0], [1], [0, 0, 1, 1], [], []>} : vector<128x4xbf16>, vector<4x16xbf16>, vector<128x16xf32> -> vector<128x16xf32>
    %9 = arith.addf %1, %8 : vector<128x16xf32>
    %c1 = arith.constant 1 : index
    %c0_9 = arith.constant 0 : index
    %c0_10 = arith.constant 0 : index
    %10 = vector.load %arg1[%c1, %c0_9, %c0_10] : memref<9x128x512xbf16, #tpu.memory_space<vmem>>, vector<1x128x512xbf16>
    %11 = vector.shape_cast %10 : vector<1x128x512xbf16> to vector<128x512xbf16>
    %cst_11 = arith.constant dense<0.000000e+00> : vector<128x4xf32>
    %12 = tpu.matmul %11, %0, %cst_11 {dimension_numbers = #tpu.dot_dimension_numbers<[1], [0], [0], [1], [0, 0, 1, 1], [], []>} : vector<128x512xbf16>, vector<512x4xbf16>, vector<128x4xf32> -> vector<128x4xf32>
    %13 = arith.truncf %12 : vector<128x4xf32> to vector<128x4xbf16>
    %c1_12 = arith.constant 1 : index
    %c0_13 = arith.constant 0 : index
    %c0_14 = arith.constant 0 : index
    %14 = vector.load %arg2[%c1_12, %c0_13, %c0_14] : memref<9x4x16xbf16, #tpu.memory_space<vmem>>, vector<1x4x16xbf16>
    %15 = vector.shape_cast %14 : vector<1x4x16xbf16> to vector<4x16xbf16>
    %cst_15 = arith.constant dense<0.000000e+00> : vector<128x16xf32>
    %16 = tpu.matmul %13, %15, %cst_15 {dimension_numbers = #tpu.dot_dimension_numbers<[1], [0], [0], [1], [0, 0, 1, 1], [], []>} : vector<128x4xbf16>, vector<4x16xbf16>, vector<128x16xf32> -> vector<128x16xf32>
    %17 = arith.addf %9, %16 : vector<128x16xf32>
    %c2 = arith.constant 2 : index
    %c0_16 = arith.constant 0 : index
    %c0_17 = arith.constant 0 : index
    %18 = vector.load %arg1[%c2, %c0_16, %c0_17] : memref<9x128x512xbf16, #tpu.memory_space<vmem>>, vector<1x128x512xbf16>
    %19 = vector.shape_cast %18 : vector<1x128x512xbf16> to vector<128x512xbf16>
    %cst_18 = arith.constant dense<0.000000e+00> : vector<128x4xf32>
    %20 = tpu.matmul %19, %0, %cst_18 {dimension_numbers = #tpu.dot_dimension_numbers<[1], [0], [0], [1], [0, 0, 1, 1], [], []>} : vector<128x512xbf16>, vector<512x4xbf16>, vector<128x4xf32> -> vector<128x4xf32>
    %21 = arith.truncf %20 : vector<128x4xf32> to vector<128x4xbf16>
    %c2_19 = arith.constant 2 : index
    %c0_20 = arith.constant 0 : index
    %c0_21 = arith.constant 0 : index
    %22 = vector.load %arg2[%c2_19, %c0_20, %c0_21] : memref<9x4x16xbf16, #tpu.memory_space<vmem>>, vector<1x4x16xbf16>
    %23 = vector.shape_cast %22 : vector<1x4x16xbf16> to vector<4x16xbf16>
    %cst_22 = arith.constant dense<0.000000e+00> : vector<128x16xf32>
    %24 = tpu.matmul %21, %23, %cst_22 {dimension_numbers = #tpu.dot_dimension_numbers<[1], [0], [0], [1], [0, 0, 1, 1], [], []>} : vector<128x4xbf16>, vector<4x16xbf16>, vector<128x16xf32> -> vector<128x16xf32>
    %25 = arith.addf %17, %24 : vector<128x16xf32>
    %c3 = arith.constant 3 : index
    %c0_23 = arith.constant 0 : index
    %c0_24 = arith.constant 0 : index
    %26 = vector.load %arg1[%c3, %c0_23, %c0_24] : memref<9x128x512xbf16, #tpu.memory_space<vmem>>, vector<1x128x512xbf16>
    %27 = vector.shape_cast %26 : vector<1x128x512xbf16> to vector<128x512xbf16>
    %cst_25 = arith.constant dense<0.000000e+00> : vector<128x4xf32>
    %28 = tpu.matmul %27, %0, %cst_25 {dimension_numbers = #tpu.dot_dimension_numbers<[1], [0], [0], [1], [0, 0, 1, 1], [], []>} : vector<128x512xbf16>, vector<512x4xbf16>, vector<128x4xf32> -> vector<128x4xf32>
    %29 = arith.truncf %28 : vector<128x4xf32> to vector<128x4xbf16>
    %c3_26 = arith.constant 3 : index
    %c0_27 = arith.constant 0 : index
    %c0_28 = arith.constant 0 : index
    %30 = vector.load %arg2[%c3_26, %c0_27, %c0_28] : memref<9x4x16xbf16, #tpu.memory_space<vmem>>, vector<1x4x16xbf16>
    %31 = vector.shape_cast %30 : vector<1x4x16xbf16> to vector<4x16xbf16>
    %cst_29 = arith.constant dense<0.000000e+00> : vector<128x16xf32>
    %32 = tpu.matmul %29, %31, %cst_29 {dimension_numbers = #tpu.dot_dimension_numbers<[1], [0], [0], [1], [0, 0, 1, 1], [], []>} : vector<128x4xbf16>, vector<4x16xbf16>, vector<128x16xf32> -> vector<128x16xf32>
    %33 = arith.addf %25, %32 : vector<128x16xf32>
    %c4 = arith.constant 4 : index
    %c0_30 = arith.constant 0 : index
    %c0_31 = arith.constant 0 : index
    %34 = vector.load %arg1[%c4, %c0_30, %c0_31] : memref<9x128x512xbf16, #tpu.memory_space<vmem>>, vector<1x128x512xbf16>
    %35 = vector.shape_cast %34 : vector<1x128x512xbf16> to vector<128x512xbf16>
    %cst_32 = arith.constant dense<0.000000e+00> : vector<128x4xf32>
    %36 = tpu.matmul %35, %0, %cst_32 {dimension_numbers = #tpu.dot_dimension_numbers<[1], [0], [0], [1], [0, 0, 1, 1], [], []>} : vector<128x512xbf16>, vector<512x4xbf16>, vector<128x4xf32> -> vector<128x4xf32>
    %37 = arith.truncf %36 : vector<128x4xf32> to vector<128x4xbf16>
    %c4_33 = arith.constant 4 : index
    %c0_34 = arith.constant 0 : index
    %c0_35 = arith.constant 0 : index
    %38 = vector.load %arg2[%c4_33, %c0_34, %c0_35] : memref<9x4x16xbf16, #tpu.memory_space<vmem>>, vector<1x4x16xbf16>
    %39 = vector.shape_cast %38 : vector<1x4x16xbf16> to vector<4x16xbf16>
    %cst_36 = arith.constant dense<0.000000e+00> : vector<128x16xf32>
    %40 = tpu.matmul %37, %39, %cst_36 {dimension_numbers = #tpu.dot_dimension_numbers<[1], [0], [0], [1], [0, 0, 1, 1], [], []>} : vector<128x4xbf16>, vector<4x16xbf16>, vector<128x16xf32> -> vector<128x16xf32>
    %41 = arith.addf %33, %40 : vector<128x16xf32>
    %c5 = arith.constant 5 : index
    %c0_37 = arith.constant 0 : index
    %c0_38 = arith.constant 0 : index
    %42 = vector.load %arg1[%c5, %c0_37, %c0_38] : memref<9x128x512xbf16, #tpu.memory_space<vmem>>, vector<1x128x512xbf16>
    %43 = vector.shape_cast %42 : vector<1x128x512xbf16> to vector<128x512xbf16>
    %cst_39 = arith.constant dense<0.000000e+00> : vector<128x4xf32>
    %44 = tpu.matmul %43, %0, %cst_39 {dimension_numbers = #tpu.dot_dimension_numbers<[1], [0], [0], [1], [0, 0, 1, 1], [], []>} : vector<128x512xbf16>, vector<512x4xbf16>, vector<128x4xf32> -> vector<128x4xf32>
    %45 = arith.truncf %44 : vector<128x4xf32> to vector<128x4xbf16>
    %c5_40 = arith.constant 5 : index
    %c0_41 = arith.constant 0 : index
    %c0_42 = arith.constant 0 : index
    %46 = vector.load %arg2[%c5_40, %c0_41, %c0_42] : memref<9x4x16xbf16, #tpu.memory_space<vmem>>, vector<1x4x16xbf16>
    %47 = vector.shape_cast %46 : vector<1x4x16xbf16> to vector<4x16xbf16>
    %cst_43 = arith.constant dense<0.000000e+00> : vector<128x16xf32>
    %48 = tpu.matmul %45, %47, %cst_43 {dimension_numbers = #tpu.dot_dimension_numbers<[1], [0], [0], [1], [0, 0, 1, 1], [], []>} : vector<128x4xbf16>, vector<4x16xbf16>, vector<128x16xf32> -> vector<128x16xf32>
    %49 = arith.addf %41, %48 : vector<128x16xf32>
    %c6 = arith.constant 6 : index
    %c0_44 = arith.constant 0 : index
    %c0_45 = arith.constant 0 : index
    %50 = vector.load %arg1[%c6, %c0_44, %c0_45] : memref<9x128x512xbf16, #tpu.memory_space<vmem>>, vector<1x128x512xbf16>
    %51 = vector.shape_cast %50 : vector<1x128x512xbf16> to vector<128x512xbf16>
    %cst_46 = arith.constant dense<0.000000e+00> : vector<128x4xf32>
    %52 = tpu.matmul %51, %0, %cst_46 {dimension_numbers = #tpu.dot_dimension_numbers<[1], [0], [0], [1], [0, 0, 1, 1], [], []>} : vector<128x512xbf16>, vector<512x4xbf16>, vector<128x4xf32> -> vector<128x4xf32>
    %53 = arith.truncf %52 : vector<128x4xf32> to vector<128x4xbf16>
    %c6_47 = arith.constant 6 : index
    %c0_48 = arith.constant 0 : index
    %c0_49 = arith.constant 0 : index
    %54 = vector.load %arg2[%c6_47, %c0_48, %c0_49] : memref<9x4x16xbf16, #tpu.memory_space<vmem>>, vector<1x4x16xbf16>
    %55 = vector.shape_cast %54 : vector<1x4x16xbf16> to vector<4x16xbf16>
    %cst_50 = arith.constant dense<0.000000e+00> : vector<128x16xf32>
    %56 = tpu.matmul %53, %55, %cst_50 {dimension_numbers = #tpu.dot_dimension_numbers<[1], [0], [0], [1], [0, 0, 1, 1], [], []>} : vector<128x4xbf16>, vector<4x16xbf16>, vector<128x16xf32> -> vector<128x16xf32>
    %57 = arith.addf %49, %56 : vector<128x16xf32>
    %c7 = arith.constant 7 : index
    %c0_51 = arith.constant 0 : index
    %c0_52 = arith.constant 0 : index
    %58 = vector.load %arg1[%c7, %c0_51, %c0_52] : memref<9x128x512xbf16, #tpu.memory_space<vmem>>, vector<1x128x512xbf16>
    %59 = vector.shape_cast %58 : vector<1x128x512xbf16> to vector<128x512xbf16>
    %cst_53 = arith.constant dense<0.000000e+00> : vector<128x4xf32>
    %60 = tpu.matmul %59, %0, %cst_53 {dimension_numbers = #tpu.dot_dimension_numbers<[1], [0], [0], [1], [0, 0, 1, 1], [], []>} : vector<128x512xbf16>, vector<512x4xbf16>, vector<128x4xf32> -> vector<128x4xf32>
    %61 = arith.truncf %60 : vector<128x4xf32> to vector<128x4xbf16>
    %c7_54 = arith.constant 7 : index
    %c0_55 = arith.constant 0 : index
    %c0_56 = arith.constant 0 : index
    %62 = vector.load %arg2[%c7_54, %c0_55, %c0_56] : memref<9x4x16xbf16, #tpu.memory_space<vmem>>, vector<1x4x16xbf16>
    %63 = vector.shape_cast %62 : vector<1x4x16xbf16> to vector<4x16xbf16>
    %cst_57 = arith.constant dense<0.000000e+00> : vector<128x16xf32>
    %64 = tpu.matmul %61, %63, %cst_57 {dimension_numbers = #tpu.dot_dimension_numbers<[1], [0], [0], [1], [0, 0, 1, 1], [], []>} : vector<128x4xbf16>, vector<4x16xbf16>, vector<128x16xf32> -> vector<128x16xf32>
    %65 = arith.addf %57, %64 : vector<128x16xf32>
    %c8 = arith.constant 8 : index
    %c0_58 = arith.constant 0 : index
    %c0_59 = arith.constant 0 : index
    %66 = vector.load %arg1[%c8, %c0_58, %c0_59] : memref<9x128x512xbf16, #tpu.memory_space<vmem>>, vector<1x128x512xbf16>
    %67 = vector.shape_cast %66 : vector<1x128x512xbf16> to vector<128x512xbf16>
    %cst_60 = arith.constant dense<0.000000e+00> : vector<128x4xf32>
    %68 = tpu.matmul %67, %0, %cst_60 {dimension_numbers = #tpu.dot_dimension_numbers<[1], [0], [0], [1], [0, 0, 1, 1], [], []>} : vector<128x512xbf16>, vector<512x4xbf16>, vector<128x4xf32> -> vector<128x4xf32>
    %69 = arith.truncf %68 : vector<128x4xf32> to vector<128x4xbf16>
    %c8_61 = arith.constant 8 : index
    %c0_62 = arith.constant 0 : index
    %c0_63 = arith.constant 0 : index
    %70 = vector.load %arg2[%c8_61, %c0_62, %c0_63] : memref<9x4x16xbf16, #tpu.memory_space<vmem>>, vector<1x4x16xbf16>
    %71 = vector.shape_cast %70 : vector<1x4x16xbf16> to vector<4x16xbf16>
    %cst_64 = arith.constant dense<0.000000e+00> : vector<128x16xf32>
    %72 = tpu.matmul %69, %71, %cst_64 {dimension_numbers = #tpu.dot_dimension_numbers<[1], [0], [0], [1], [0, 0, 1, 1], [], []>} : vector<128x4xbf16>, vector<4x16xbf16>, vector<128x16xf32> -> vector<128x16xf32>
    %73 = arith.addf %65, %72 : vector<128x16xf32>
    %c0_65 = arith.constant 0 : index
    %c0_66 = arith.constant 0 : index
    %74 = vector.load %arg3[%c0_65, %c0_66] : memref<1x16xf32, #tpu.memory_space<vmem>>, vector<1x16xf32>
    %75 = vector.broadcast %74 : vector<1x16xf32> to vector<128x16xf32>
    %76 = arith.addf %73, %75 : vector<128x16xf32>
    %cst_67 = arith.constant 0.000000e+00 : f32
    %77 = vector.broadcast %cst_67 : f32 to vector<128x16xf32>
    %78 = arith.cmpf ogt, %76, %77 : vector<128x16xf32>
    %cst_68 = arith.constant 2.000000e-01 : f32
    %79 = vector.broadcast %cst_68 : f32 to vector<128x16xf32>
    %80 = arith.mulf %79, %76 : vector<128x16xf32>
    %81 = arith.select %78, %76, %80 : vector<128x16xi1>, vector<128x16xf32>
    %c0_69 = arith.constant 0 : index
    %c0_70 = arith.constant 0 : index
    %82 = vector.load %arg4[%c0_69, %c0_70] : memref<1x16xf32, #tpu.memory_space<vmem>>, vector<1x16xf32>
    %83 = vector.broadcast %82 : vector<1x16xf32> to vector<128x16xf32>
    %84 = arith.mulf %81, %83 : vector<128x16xf32>
    %c0_71 = arith.constant 0 : index
    %c0_72 = arith.constant 0 : index
    %85 = vector.load %arg5[%c0_71, %c0_72] : memref<1x16xf32, #tpu.memory_space<vmem>>, vector<1x16xf32>
    %86 = vector.broadcast %85 : vector<1x16xf32> to vector<128x16xf32>
    %87 = arith.addf %84, %86 : vector<128x16xf32>
    %88 = arith.truncf %87 : vector<128x16xf32> to vector<128x16xbf16>
    %cst_73 = arith.constant 0.000000e+00 : f32
    %89 = vector.broadcast %cst_73 : f32 to vector<32x32xf32>
    %c0_74 = arith.constant 0 : index
    %c0_75 = arith.constant 0 : index
    %c0_76 = arith.constant 0 : index
    %90 = vector.load %arg6[%c0_74, %c0_75, %c0_76] : memref<9x32x128xbf16, #tpu.memory_space<vmem>>, vector<1x32x128xbf16>
    %91 = vector.shape_cast %90 : vector<1x32x128xbf16> to vector<32x128xbf16>
    %cst_77 = arith.constant dense<0.000000e+00> : vector<32x16xf32>
    %92 = tpu.matmul %91, %88, %cst_77 {dimension_numbers = #tpu.dot_dimension_numbers<[1], [0], [0], [1], [0, 0, 1, 1], [], []>} : vector<32x128xbf16>, vector<128x16xbf16>, vector<32x16xf32> -> vector<32x16xf32>
    %93 = arith.truncf %92 : vector<32x16xf32> to vector<32x16xbf16>
    %c0_78 = arith.constant 0 : index
    %c0_79 = arith.constant 0 : index
    %c0_80 = arith.constant 0 : index
    %94 = vector.load %arg7[%c0_78, %c0_79, %c0_80] : memref<9x16x32xbf16, #tpu.memory_space<vmem>>, vector<1x16x32xbf16>
    %95 = vector.shape_cast %94 : vector<1x16x32xbf16> to vector<16x32xbf16>
    %cst_81 = arith.constant dense<0.000000e+00> : vector<32x32xf32>
    %96 = tpu.matmul %93, %95, %cst_81 {dimension_numbers = #tpu.dot_dimension_numbers<[1], [0], [0], [1], [0, 0, 1, 1], [], []>} : vector<32x16xbf16>, vector<16x32xbf16>, vector<32x32xf32> -> vector<32x32xf32>
    %97 = arith.addf %89, %96 : vector<32x32xf32>
    %c1_82 = arith.constant 1 : index
    %c0_83 = arith.constant 0 : index
    %c0_84 = arith.constant 0 : index
    %98 = vector.load %arg6[%c1_82, %c0_83, %c0_84] : memref<9x32x128xbf16, #tpu.memory_space<vmem>>, vector<1x32x128xbf16>
    %99 = vector.shape_cast %98 : vector<1x32x128xbf16> to vector<32x128xbf16>
    %cst_85 = arith.constant dense<0.000000e+00> : vector<32x16xf32>
    %100 = tpu.matmul %99, %88, %cst_85 {dimension_numbers = #tpu.dot_dimension_numbers<[1], [0], [0], [1], [0, 0, 1, 1], [], []>} : vector<32x128xbf16>, vector<128x16xbf16>, vector<32x16xf32> -> vector<32x16xf32>
    %101 = arith.truncf %100 : vector<32x16xf32> to vector<32x16xbf16>
    %c1_86 = arith.constant 1 : index
    %c0_87 = arith.constant 0 : index
    %c0_88 = arith.constant 0 : index
    %102 = vector.load %arg7[%c1_86, %c0_87, %c0_88] : memref<9x16x32xbf16, #tpu.memory_space<vmem>>, vector<1x16x32xbf16>
    %103 = vector.shape_cast %102 : vector<1x16x32xbf16> to vector<16x32xbf16>
    %cst_89 = arith.constant dense<0.000000e+00> : vector<32x32xf32>
    %104 = tpu.matmul %101, %103, %cst_89 {dimension_numbers = #tpu.dot_dimension_numbers<[1], [0], [0], [1], [0, 0, 1, 1], [], []>} : vector<32x16xbf16>, vector<16x32xbf16>, vector<32x32xf32> -> vector<32x32xf32>
    %105 = arith.addf %97, %104 : vector<32x32xf32>
    %c2_90 = arith.constant 2 : index
    %c0_91 = arith.constant 0 : index
    %c0_92 = arith.constant 0 : index
    %106 = vector.load %arg6[%c2_90, %c0_91, %c0_92] : memref<9x32x128xbf16, #tpu.memory_space<vmem>>, vector<1x32x128xbf16>
    %107 = vector.shape_cast %106 : vector<1x32x128xbf16> to vector<32x128xbf16>
    %cst_93 = arith.constant dense<0.000000e+00> : vector<32x16xf32>
    %108 = tpu.matmul %107, %88, %cst_93 {dimension_numbers = #tpu.dot_dimension_numbers<[1], [0], [0], [1], [0, 0, 1, 1], [], []>} : vector<32x128xbf16>, vector<128x16xbf16>, vector<32x16xf32> -> vector<32x16xf32>
    %109 = arith.truncf %108 : vector<32x16xf32> to vector<32x16xbf16>
    %c2_94 = arith.constant 2 : index
    %c0_95 = arith.constant 0 : index
    %c0_96 = arith.constant 0 : index
    %110 = vector.load %arg7[%c2_94, %c0_95, %c0_96] : memref<9x16x32xbf16, #tpu.memory_space<vmem>>, vector<1x16x32xbf16>
    %111 = vector.shape_cast %110 : vector<1x16x32xbf16> to vector<16x32xbf16>
    %cst_97 = arith.constant dense<0.000000e+00> : vector<32x32xf32>
    %112 = tpu.matmul %109, %111, %cst_97 {dimension_numbers = #tpu.dot_dimension_numbers<[1], [0], [0], [1], [0, 0, 1, 1], [], []>} : vector<32x16xbf16>, vector<16x32xbf16>, vector<32x32xf32> -> vector<32x32xf32>
    %113 = arith.addf %105, %112 : vector<32x32xf32>
    %c3_98 = arith.constant 3 : index
    %c0_99 = arith.constant 0 : index
    %c0_100 = arith.constant 0 : index
    %114 = vector.load %arg6[%c3_98, %c0_99, %c0_100] : memref<9x32x128xbf16, #tpu.memory_space<vmem>>, vector<1x32x128xbf16>
    %115 = vector.shape_cast %114 : vector<1x32x128xbf16> to vector<32x128xbf16>
    %cst_101 = arith.constant dense<0.000000e+00> : vector<32x16xf32>
    %116 = tpu.matmul %115, %88, %cst_101 {dimension_numbers = #tpu.dot_dimension_numbers<[1], [0], [0], [1], [0, 0, 1, 1], [], []>} : vector<32x128xbf16>, vector<128x16xbf16>, vector<32x16xf32> -> vector<32x16xf32>
    %117 = arith.truncf %116 : vector<32x16xf32> to vector<32x16xbf16>
    %c3_102 = arith.constant 3 : index
    %c0_103 = arith.constant 0 : index
    %c0_104 = arith.constant 0 : index
    %118 = vector.load %arg7[%c3_102, %c0_103, %c0_104] : memref<9x16x32xbf16, #tpu.memory_space<vmem>>, vector<1x16x32xbf16>
    %119 = vector.shape_cast %118 : vector<1x16x32xbf16> to vector<16x32xbf16>
    %cst_105 = arith.constant dense<0.000000e+00> : vector<32x32xf32>
    %120 = tpu.matmul %117, %119, %cst_105 {dimension_numbers = #tpu.dot_dimension_numbers<[1], [0], [0], [1], [0, 0, 1, 1], [], []>} : vector<32x16xbf16>, vector<16x32xbf16>, vector<32x32xf32> -> vector<32x32xf32>
    %121 = arith.addf %113, %120 : vector<32x32xf32>
    %c4_106 = arith.constant 4 : index
    %c0_107 = arith.constant 0 : index
    %c0_108 = arith.constant 0 : index
    %122 = vector.load %arg6[%c4_106, %c0_107, %c0_108] : memref<9x32x128xbf16, #tpu.memory_space<vmem>>, vector<1x32x128xbf16>
    %123 = vector.shape_cast %122 : vector<1x32x128xbf16> to vector<32x128xbf16>
    %cst_109 = arith.constant dense<0.000000e+00> : vector<32x16xf32>
    %124 = tpu.matmul %123, %88, %cst_109 {dimension_numbers = #tpu.dot_dimension_numbers<[1], [0], [0], [1], [0, 0, 1, 1], [], []>} : vector<32x128xbf16>, vector<128x16xbf16>, vector<32x16xf32> -> vector<32x16xf32>
    %125 = arith.truncf %124 : vector<32x16xf32> to vector<32x16xbf16>
    %c4_110 = arith.constant 4 : index
    %c0_111 = arith.constant 0 : index
    %c0_112 = arith.constant 0 : index
    %126 = vector.load %arg7[%c4_110, %c0_111, %c0_112] : memref<9x16x32xbf16, #tpu.memory_space<vmem>>, vector<1x16x32xbf16>
    %127 = vector.shape_cast %126 : vector<1x16x32xbf16> to vector<16x32xbf16>
    %cst_113 = arith.constant dense<0.000000e+00> : vector<32x32xf32>
    %128 = tpu.matmul %125, %127, %cst_113 {dimension_numbers = #tpu.dot_dimension_numbers<[1], [0], [0], [1], [0, 0, 1, 1], [], []>} : vector<32x16xbf16>, vector<16x32xbf16>, vector<32x32xf32> -> vector<32x32xf32>
    %129 = arith.addf %121, %128 : vector<32x32xf32>
    %c5_114 = arith.constant 5 : index
    %c0_115 = arith.constant 0 : index
    %c0_116 = arith.constant 0 : index
    %130 = vector.load %arg6[%c5_114, %c0_115, %c0_116] : memref<9x32x128xbf16, #tpu.memory_space<vmem>>, vector<1x32x128xbf16>
    %131 = vector.shape_cast %130 : vector<1x32x128xbf16> to vector<32x128xbf16>
    %cst_117 = arith.constant dense<0.000000e+00> : vector<32x16xf32>
    %132 = tpu.matmul %131, %88, %cst_117 {dimension_numbers = #tpu.dot_dimension_numbers<[1], [0], [0], [1], [0, 0, 1, 1], [], []>} : vector<32x128xbf16>, vector<128x16xbf16>, vector<32x16xf32> -> vector<32x16xf32>
    %133 = arith.truncf %132 : vector<32x16xf32> to vector<32x16xbf16>
    %c5_118 = arith.constant 5 : index
    %c0_119 = arith.constant 0 : index
    %c0_120 = arith.constant 0 : index
    %134 = vector.load %arg7[%c5_118, %c0_119, %c0_120] : memref<9x16x32xbf16, #tpu.memory_space<vmem>>, vector<1x16x32xbf16>
    %135 = vector.shape_cast %134 : vector<1x16x32xbf16> to vector<16x32xbf16>
    %cst_121 = arith.constant dense<0.000000e+00> : vector<32x32xf32>
    %136 = tpu.matmul %133, %135, %cst_121 {dimension_numbers = #tpu.dot_dimension_numbers<[1], [0], [0], [1], [0, 0, 1, 1], [], []>} : vector<32x16xbf16>, vector<16x32xbf16>, vector<32x32xf32> -> vector<32x32xf32>
    %137 = arith.addf %129, %136 : vector<32x32xf32>
    %c6_122 = arith.constant 6 : index
    %c0_123 = arith.constant 0 : index
    %c0_124 = arith.constant 0 : index
    %138 = vector.load %arg6[%c6_122, %c0_123, %c0_124] : memref<9x32x128xbf16, #tpu.memory_space<vmem>>, vector<1x32x128xbf16>
    %139 = vector.shape_cast %138 : vector<1x32x128xbf16> to vector<32x128xbf16>
    %cst_125 = arith.constant dense<0.000000e+00> : vector<32x16xf32>
    %140 = tpu.matmul %139, %88, %cst_125 {dimension_numbers = #tpu.dot_dimension_numbers<[1], [0], [0], [1], [0, 0, 1, 1], [], []>} : vector<32x128xbf16>, vector<128x16xbf16>, vector<32x16xf32> -> vector<32x16xf32>
    %141 = arith.truncf %140 : vector<32x16xf32> to vector<32x16xbf16>
    %c6_126 = arith.constant 6 : index
    %c0_127 = arith.constant 0 : index
    %c0_128 = arith.constant 0 : index
    %142 = vector.load %arg7[%c6_126, %c0_127, %c0_128] : memref<9x16x32xbf16, #tpu.memory_space<vmem>>, vector<1x16x32xbf16>
    %143 = vector.shape_cast %142 : vector<1x16x32xbf16> to vector<16x32xbf16>
    %cst_129 = arith.constant dense<0.000000e+00> : vector<32x32xf32>
    %144 = tpu.matmul %141, %143, %cst_129 {dimension_numbers = #tpu.dot_dimension_numbers<[1], [0], [0], [1], [0, 0, 1, 1], [], []>} : vector<32x16xbf16>, vector<16x32xbf16>, vector<32x32xf32> -> vector<32x32xf32>
    %145 = arith.addf %137, %144 : vector<32x32xf32>
    %c7_130 = arith.constant 7 : index
    %c0_131 = arith.constant 0 : index
    %c0_132 = arith.constant 0 : index
    %146 = vector.load %arg6[%c7_130, %c0_131, %c0_132] : memref<9x32x128xbf16, #tpu.memory_space<vmem>>, vector<1x32x128xbf16>
    %147 = vector.shape_cast %146 : vector<1x32x128xbf16> to vector<32x128xbf16>
    %cst_133 = arith.constant dense<0.000000e+00> : vector<32x16xf32>
    %148 = tpu.matmul %147, %88, %cst_133 {dimension_numbers = #tpu.dot_dimension_numbers<[1], [0], [0], [1], [0, 0, 1, 1], [], []>} : vector<32x128xbf16>, vector<128x16xbf16>, vector<32x16xf32> -> vector<32x16xf32>
    %149 = arith.truncf %148 : vector<32x16xf32> to vector<32x16xbf16>
    %c7_134 = arith.constant 7 : index
    %c0_135 = arith.constant 0 : index
    %c0_136 = arith.constant 0 : index
    %150 = vector.load %arg7[%c7_134, %c0_135, %c0_136] : memref<9x16x32xbf16, #tpu.memory_space<vmem>>, vector<1x16x32xbf16>
    %151 = vector.shape_cast %150 : vector<1x16x32xbf16> to vector<16x32xbf16>
    %cst_137 = arith.constant dense<0.000000e+00> : vector<32x32xf32>
    %152 = tpu.matmul %149, %151, %cst_137 {dimension_numbers = #tpu.dot_dimension_numbers<[1], [0], [0], [1], [0, 0, 1, 1], [], []>} : vector<32x16xbf16>, vector<16x32xbf16>, vector<32x32xf32> -> vector<32x32xf32>
    %153 = arith.addf %145, %152 : vector<32x32xf32>
    %c8_138 = arith.constant 8 : index
    %c0_139 = arith.constant 0 : index
    %c0_140 = arith.constant 0 : index
    %154 = vector.load %arg6[%c8_138, %c0_139, %c0_140] : memref<9x32x128xbf16, #tpu.memory_space<vmem>>, vector<1x32x128xbf16>
    %155 = vector.shape_cast %154 : vector<1x32x128xbf16> to vector<32x128xbf16>
    %cst_141 = arith.constant dense<0.000000e+00> : vector<32x16xf32>
    %156 = tpu.matmul %155, %88, %cst_141 {dimension_numbers = #tpu.dot_dimension_numbers<[1], [0], [0], [1], [0, 0, 1, 1], [], []>} : vector<32x128xbf16>, vector<128x16xbf16>, vector<32x16xf32> -> vector<32x16xf32>
    %157 = arith.truncf %156 : vector<32x16xf32> to vector<32x16xbf16>
    %c8_142 = arith.constant 8 : index
    %c0_143 = arith.constant 0 : index
    %c0_144 = arith.constant 0 : index
    %158 = vector.load %arg7[%c8_142, %c0_143, %c0_144] : memref<9x16x32xbf16, #tpu.memory_space<vmem>>, vector<1x16x32xbf16>
    %159 = vector.shape_cast %158 : vector<1x16x32xbf16> to vector<16x32xbf16>
    %cst_145 = arith.constant dense<0.000000e+00> : vector<32x32xf32>
    %160 = tpu.matmul %157, %159, %cst_145 {dimension_numbers = #tpu.dot_dimension_numbers<[1], [0], [0], [1], [0, 0, 1, 1], [], []>} : vector<32x16xbf16>, vector<16x32xbf16>, vector<32x32xf32> -> vector<32x32xf32>
    %161 = arith.addf %153, %160 : vector<32x32xf32>
    %c0_146 = arith.constant 0 : index
    %c0_147 = arith.constant 0 : index
    %162 = vector.load %arg8[%c0_146, %c0_147] : memref<1x32xf32, #tpu.memory_space<vmem>>, vector<1x32xf32>
    %163 = vector.broadcast %162 : vector<1x32xf32> to vector<32x32xf32>
    %164 = arith.addf %161, %163 : vector<32x32xf32>
    %cst_148 = arith.constant 0.000000e+00 : f32
    %165 = vector.broadcast %cst_148 : f32 to vector<32x32xf32>
    %166 = arith.cmpf ogt, %164, %165 : vector<32x32xf32>
    %cst_149 = arith.constant 2.000000e-01 : f32
    %167 = vector.broadcast %cst_149 : f32 to vector<32x32xf32>
    %168 = arith.mulf %167, %164 : vector<32x32xf32>
    %169 = arith.select %166, %164, %168 : vector<32x32xi1>, vector<32x32xf32>
    %c0_150 = arith.constant 0 : index
    %c0_151 = arith.constant 0 : index
    %170 = vector.load %arg9[%c0_150, %c0_151] : memref<1x32xf32, #tpu.memory_space<vmem>>, vector<1x32xf32>
    %171 = vector.broadcast %170 : vector<1x32xf32> to vector<32x32xf32>
    %172 = arith.mulf %169, %171 : vector<32x32xf32>
    %c0_152 = arith.constant 0 : index
    %c0_153 = arith.constant 0 : index
    %173 = vector.load %arg10[%c0_152, %c0_153] : memref<1x32xf32, #tpu.memory_space<vmem>>, vector<1x32xf32>
    %174 = vector.broadcast %173 : vector<1x32xf32> to vector<32x32xf32>
    %175 = arith.addf %172, %174 : vector<32x32xf32>
    %176 = arith.truncf %175 : vector<32x32xf32> to vector<32x32xbf16>
    %cst_154 = arith.constant 0.000000e+00 : f32
    %177 = vector.broadcast %cst_154 : f32 to vector<8x64xf32>
    %c0_155 = arith.constant 0 : index
    %c0_156 = arith.constant 0 : index
    %c0_157 = arith.constant 0 : index
    %178 = vector.load %arg11[%c0_155, %c0_156, %c0_157] : memref<9x8x32xbf16, #tpu.memory_space<vmem>>, vector<1x8x32xbf16>
    %179 = vector.shape_cast %178 : vector<1x8x32xbf16> to vector<8x32xbf16>
    %cst_158 = arith.constant dense<0.000000e+00> : vector<8x32xf32>
    %180 = tpu.matmul %179, %176, %cst_158 {dimension_numbers = #tpu.dot_dimension_numbers<[1], [0], [0], [1], [0, 0, 1, 1], [], []>} : vector<8x32xbf16>, vector<32x32xbf16>, vector<8x32xf32> -> vector<8x32xf32>
    %181 = arith.truncf %180 : vector<8x32xf32> to vector<8x32xbf16>
    %c0_159 = arith.constant 0 : index
    %c0_160 = arith.constant 0 : index
    %c0_161 = arith.constant 0 : index
    %182 = vector.load %arg12[%c0_159, %c0_160, %c0_161] : memref<9x32x64xbf16, #tpu.memory_space<vmem>>, vector<1x32x64xbf16>
    %183 = vector.shape_cast %182 : vector<1x32x64xbf16> to vector<32x64xbf16>
    %cst_162 = arith.constant dense<0.000000e+00> : vector<8x64xf32>
    %184 = tpu.matmul %181, %183, %cst_162 {dimension_numbers = #tpu.dot_dimension_numbers<[1], [0], [0], [1], [0, 0, 1, 1], [], []>} : vector<8x32xbf16>, vector<32x64xbf16>, vector<8x64xf32> -> vector<8x64xf32>
    %185 = arith.addf %177, %184 : vector<8x64xf32>
    %c1_163 = arith.constant 1 : index
    %c0_164 = arith.constant 0 : index
    %c0_165 = arith.constant 0 : index
    %186 = vector.load %arg11[%c1_163, %c0_164, %c0_165] : memref<9x8x32xbf16, #tpu.memory_space<vmem>>, vector<1x8x32xbf16>
    %187 = vector.shape_cast %186 : vector<1x8x32xbf16> to vector<8x32xbf16>
    %cst_166 = arith.constant dense<0.000000e+00> : vector<8x32xf32>
    %188 = tpu.matmul %187, %176, %cst_166 {dimension_numbers = #tpu.dot_dimension_numbers<[1], [0], [0], [1], [0, 0, 1, 1], [], []>} : vector<8x32xbf16>, vector<32x32xbf16>, vector<8x32xf32> -> vector<8x32xf32>
    %189 = arith.truncf %188 : vector<8x32xf32> to vector<8x32xbf16>
    %c1_167 = arith.constant 1 : index
    %c0_168 = arith.constant 0 : index
    %c0_169 = arith.constant 0 : index
    %190 = vector.load %arg12[%c1_167, %c0_168, %c0_169] : memref<9x32x64xbf16, #tpu.memory_space<vmem>>, vector<1x32x64xbf16>
    %191 = vector.shape_cast %190 : vector<1x32x64xbf16> to vector<32x64xbf16>
    %cst_170 = arith.constant dense<0.000000e+00> : vector<8x64xf32>
    %192 = tpu.matmul %189, %191, %cst_170 {dimension_numbers = #tpu.dot_dimension_numbers<[1], [0], [0], [1], [0, 0, 1, 1], [], []>} : vector<8x32xbf16>, vector<32x64xbf16>, vector<8x64xf32> -> vector<8x64xf32>
    %193 = arith.addf %185, %192 : vector<8x64xf32>
    %c2_171 = arith.constant 2 : index
    %c0_172 = arith.constant 0 : index
    %c0_173 = arith.constant 0 : index
    %194 = vector.load %arg11[%c2_171, %c0_172, %c0_173] : memref<9x8x32xbf16, #tpu.memory_space<vmem>>, vector<1x8x32xbf16>
    %195 = vector.shape_cast %194 : vector<1x8x32xbf16> to vector<8x32xbf16>
    %cst_174 = arith.constant dense<0.000000e+00> : vector<8x32xf32>
    %196 = tpu.matmul %195, %176, %cst_174 {dimension_numbers = #tpu.dot_dimension_numbers<[1], [0], [0], [1], [0, 0, 1, 1], [], []>} : vector<8x32xbf16>, vector<32x32xbf16>, vector<8x32xf32> -> vector<8x32xf32>
    %197 = arith.truncf %196 : vector<8x32xf32> to vector<8x32xbf16>
    %c2_175 = arith.constant 2 : index
    %c0_176 = arith.constant 0 : index
    %c0_177 = arith.constant 0 : index
    %198 = vector.load %arg12[%c2_175, %c0_176, %c0_177] : memref<9x32x64xbf16, #tpu.memory_space<vmem>>, vector<1x32x64xbf16>
    %199 = vector.shape_cast %198 : vector<1x32x64xbf16> to vector<32x64xbf16>
    %cst_178 = arith.constant dense<0.000000e+00> : vector<8x64xf32>
    %200 = tpu.matmul %197, %199, %cst_178 {dimension_numbers = #tpu.dot_dimension_numbers<[1], [0], [0], [1], [0, 0, 1, 1], [], []>} : vector<8x32xbf16>, vector<32x64xbf16>, vector<8x64xf32> -> vector<8x64xf32>
    %201 = arith.addf %193, %200 : vector<8x64xf32>
    %c3_179 = arith.constant 3 : index
    %c0_180 = arith.constant 0 : index
    %c0_181 = arith.constant 0 : index
    %202 = vector.load %arg11[%c3_179, %c0_180, %c0_181] : memref<9x8x32xbf16, #tpu.memory_space<vmem>>, vector<1x8x32xbf16>
    %203 = vector.shape_cast %202 : vector<1x8x32xbf16> to vector<8x32xbf16>
    %cst_182 = arith.constant dense<0.000000e+00> : vector<8x32xf32>
    %204 = tpu.matmul %203, %176, %cst_182 {dimension_numbers = #tpu.dot_dimension_numbers<[1], [0], [0], [1], [0, 0, 1, 1], [], []>} : vector<8x32xbf16>, vector<32x32xbf16>, vector<8x32xf32> -> vector<8x32xf32>
    %205 = arith.truncf %204 : vector<8x32xf32> to vector<8x32xbf16>
    %c3_183 = arith.constant 3 : index
    %c0_184 = arith.constant 0 : index
    %c0_185 = arith.constant 0 : index
    %206 = vector.load %arg12[%c3_183, %c0_184, %c0_185] : memref<9x32x64xbf16, #tpu.memory_space<vmem>>, vector<1x32x64xbf16>
    %207 = vector.shape_cast %206 : vector<1x32x64xbf16> to vector<32x64xbf16>
    %cst_186 = arith.constant dense<0.000000e+00> : vector<8x64xf32>
    %208 = tpu.matmul %205, %207, %cst_186 {dimension_numbers = #tpu.dot_dimension_numbers<[1], [0], [0], [1], [0, 0, 1, 1], [], []>} : vector<8x32xbf16>, vector<32x64xbf16>, vector<8x64xf32> -> vector<8x64xf32>
    %209 = arith.addf %201, %208 : vector<8x64xf32>
    %c4_187 = arith.constant 4 : index
    %c0_188 = arith.constant 0 : index
    %c0_189 = arith.constant 0 : index
    %210 = vector.load %arg11[%c4_187, %c0_188, %c0_189] : memref<9x8x32xbf16, #tpu.memory_space<vmem>>, vector<1x8x32xbf16>
    %211 = vector.shape_cast %210 : vector<1x8x32xbf16> to vector<8x32xbf16>
    %cst_190 = arith.constant dense<0.000000e+00> : vector<8x32xf32>
    %212 = tpu.matmul %211, %176, %cst_190 {dimension_numbers = #tpu.dot_dimension_numbers<[1], [0], [0], [1], [0, 0, 1, 1], [], []>} : vector<8x32xbf16>, vector<32x32xbf16>, vector<8x32xf32> -> vector<8x32xf32>
    %213 = arith.truncf %212 : vector<8x32xf32> to vector<8x32xbf16>
    %c4_191 = arith.constant 4 : index
    %c0_192 = arith.constant 0 : index
    %c0_193 = arith.constant 0 : index
    %214 = vector.load %arg12[%c4_191, %c0_192, %c0_193] : memref<9x32x64xbf16, #tpu.memory_space<vmem>>, vector<1x32x64xbf16>
    %215 = vector.shape_cast %214 : vector<1x32x64xbf16> to vector<32x64xbf16>
    %cst_194 = arith.constant dense<0.000000e+00> : vector<8x64xf32>
    %216 = tpu.matmul %213, %215, %cst_194 {dimension_numbers = #tpu.dot_dimension_numbers<[1], [0], [0], [1], [0, 0, 1, 1], [], []>} : vector<8x32xbf16>, vector<32x64xbf16>, vector<8x64xf32> -> vector<8x64xf32>
    %217 = arith.addf %209, %216 : vector<8x64xf32>
    %c5_195 = arith.constant 5 : index
    %c0_196 = arith.constant 0 : index
    %c0_197 = arith.constant 0 : index
    %218 = vector.load %arg11[%c5_195, %c0_196, %c0_197] : memref<9x8x32xbf16, #tpu.memory_space<vmem>>, vector<1x8x32xbf16>
    %219 = vector.shape_cast %218 : vector<1x8x32xbf16> to vector<8x32xbf16>
    %cst_198 = arith.constant dense<0.000000e+00> : vector<8x32xf32>
    %220 = tpu.matmul %219, %176, %cst_198 {dimension_numbers = #tpu.dot_dimension_numbers<[1], [0], [0], [1], [0, 0, 1, 1], [], []>} : vector<8x32xbf16>, vector<32x32xbf16>, vector<8x32xf32> -> vector<8x32xf32>
    %221 = arith.truncf %220 : vector<8x32xf32> to vector<8x32xbf16>
    %c5_199 = arith.constant 5 : index
    %c0_200 = arith.constant 0 : index
    %c0_201 = arith.constant 0 : index
    %222 = vector.load %arg12[%c5_199, %c0_200, %c0_201] : memref<9x32x64xbf16, #tpu.memory_space<vmem>>, vector<1x32x64xbf16>
    %223 = vector.shape_cast %222 : vector<1x32x64xbf16> to vector<32x64xbf16>
    %cst_202 = arith.constant dense<0.000000e+00> : vector<8x64xf32>
    %224 = tpu.matmul %221, %223, %cst_202 {dimension_numbers = #tpu.dot_dimension_numbers<[1], [0], [0], [1], [0, 0, 1, 1], [], []>} : vector<8x32xbf16>, vector<32x64xbf16>, vector<8x64xf32> -> vector<8x64xf32>
    %225 = arith.addf %217, %224 : vector<8x64xf32>
    %c6_203 = arith.constant 6 : index
    %c0_204 = arith.constant 0 : index
    %c0_205 = arith.constant 0 : index
    %226 = vector.load %arg11[%c6_203, %c0_204, %c0_205] : memref<9x8x32xbf16, #tpu.memory_space<vmem>>, vector<1x8x32xbf16>
    %227 = vector.shape_cast %226 : vector<1x8x32xbf16> to vector<8x32xbf16>
    %cst_206 = arith.constant dense<0.000000e+00> : vector<8x32xf32>
    %228 = tpu.matmul %227, %176, %cst_206 {dimension_numbers = #tpu.dot_dimension_numbers<[1], [0], [0], [1], [0, 0, 1, 1], [], []>} : vector<8x32xbf16>, vector<32x32xbf16>, vector<8x32xf32> -> vector<8x32xf32>
    %229 = arith.truncf %228 : vector<8x32xf32> to vector<8x32xbf16>
    %c6_207 = arith.constant 6 : index
    %c0_208 = arith.constant 0 : index
    %c0_209 = arith.constant 0 : index
    %230 = vector.load %arg12[%c6_207, %c0_208, %c0_209] : memref<9x32x64xbf16, #tpu.memory_space<vmem>>, vector<1x32x64xbf16>
    %231 = vector.shape_cast %230 : vector<1x32x64xbf16> to vector<32x64xbf16>
    %cst_210 = arith.constant dense<0.000000e+00> : vector<8x64xf32>
    %232 = tpu.matmul %229, %231, %cst_210 {dimension_numbers = #tpu.dot_dimension_numbers<[1], [0], [0], [1], [0, 0, 1, 1], [], []>} : vector<8x32xbf16>, vector<32x64xbf16>, vector<8x64xf32> -> vector<8x64xf32>
    %233 = arith.addf %225, %232 : vector<8x64xf32>
    %c7_211 = arith.constant 7 : index
    %c0_212 = arith.constant 0 : index
    %c0_213 = arith.constant 0 : index
    %234 = vector.load %arg11[%c7_211, %c0_212, %c0_213] : memref<9x8x32xbf16, #tpu.memory_space<vmem>>, vector<1x8x32xbf16>
    %235 = vector.shape_cast %234 : vector<1x8x32xbf16> to vector<8x32xbf16>
    %cst_214 = arith.constant dense<0.000000e+00> : vector<8x32xf32>
    %236 = tpu.matmul %235, %176, %cst_214 {dimension_numbers = #tpu.dot_dimension_numbers<[1], [0], [0], [1], [0, 0, 1, 1], [], []>} : vector<8x32xbf16>, vector<32x32xbf16>, vector<8x32xf32> -> vector<8x32xf32>
    %237 = arith.truncf %236 : vector<8x32xf32> to vector<8x32xbf16>
    %c7_215 = arith.constant 7 : index
    %c0_216 = arith.constant 0 : index
    %c0_217 = arith.constant 0 : index
    %238 = vector.load %arg12[%c7_215, %c0_216, %c0_217] : memref<9x32x64xbf16, #tpu.memory_space<vmem>>, vector<1x32x64xbf16>
    %239 = vector.shape_cast %238 : vector<1x32x64xbf16> to vector<32x64xbf16>
    %cst_218 = arith.constant dense<0.000000e+00> : vector<8x64xf32>
    %240 = tpu.matmul %237, %239, %cst_218 {dimension_numbers = #tpu.dot_dimension_numbers<[1], [0], [0], [1], [0, 0, 1, 1], [], []>} : vector<8x32xbf16>, vector<32x64xbf16>, vector<8x64xf32> -> vector<8x64xf32>
    %241 = arith.addf %233, %240 : vector<8x64xf32>
    %c8_219 = arith.constant 8 : index
    %c0_220 = arith.constant 0 : index
    %c0_221 = arith.constant 0 : index
    %242 = vector.load %arg11[%c8_219, %c0_220, %c0_221] : memref<9x8x32xbf16, #tpu.memory_space<vmem>>, vector<1x8x32xbf16>
    %243 = vector.shape_cast %242 : vector<1x8x32xbf16> to vector<8x32xbf16>
    %cst_222 = arith.constant dense<0.000000e+00> : vector<8x32xf32>
    %244 = tpu.matmul %243, %176, %cst_222 {dimension_numbers = #tpu.dot_dimension_numbers<[1], [0], [0], [1], [0, 0, 1, 1], [], []>} : vector<8x32xbf16>, vector<32x32xbf16>, vector<8x32xf32> -> vector<8x32xf32>
    %245 = arith.truncf %244 : vector<8x32xf32> to vector<8x32xbf16>
    %c8_223 = arith.constant 8 : index
    %c0_224 = arith.constant 0 : index
    %c0_225 = arith.constant 0 : index
    %246 = vector.load %arg12[%c8_223, %c0_224, %c0_225] : memref<9x32x64xbf16, #tpu.memory_space<vmem>>, vector<1x32x64xbf16>
    %247 = vector.shape_cast %246 : vector<1x32x64xbf16> to vector<32x64xbf16>
    %cst_226 = arith.constant dense<0.000000e+00> : vector<8x64xf32>
    %248 = tpu.matmul %245, %247, %cst_226 {dimension_numbers = #tpu.dot_dimension_numbers<[1], [0], [0], [1], [0, 0, 1, 1], [], []>} : vector<8x32xbf16>, vector<32x64xbf16>, vector<8x64xf32> -> vector<8x64xf32>
    %249 = arith.addf %241, %248 : vector<8x64xf32>
    %c0_227 = arith.constant 0 : index
    %c0_228 = arith.constant 0 : index
    %250 = vector.load %arg13[%c0_227, %c0_228] : memref<1x64xf32, #tpu.memory_space<vmem>>, vector<1x64xf32>
    %251 = vector.broadcast %250 : vector<1x64xf32> to vector<8x64xf32>
    %252 = arith.addf %249, %251 : vector<8x64xf32>
    %cst_229 = arith.constant 0.000000e+00 : f32
    %253 = vector.broadcast %cst_229 : f32 to vector<8x64xf32>
    %254 = arith.cmpf ogt, %252, %253 : vector<8x64xf32>
    %cst_230 = arith.constant 2.000000e-01 : f32
    %255 = vector.broadcast %cst_230 : f32 to vector<8x64xf32>
    %256 = arith.mulf %255, %252 : vector<8x64xf32>
    %257 = arith.select %254, %252, %256 : vector<8x64xi1>, vector<8x64xf32>
    %c0_231 = arith.constant 0 : index
    %c0_232 = arith.constant 0 : index
    %258 = vector.load %arg14[%c0_231, %c0_232] : memref<1x64xf32, #tpu.memory_space<vmem>>, vector<1x64xf32>
    %259 = vector.broadcast %258 : vector<1x64xf32> to vector<8x64xf32>
    %260 = arith.mulf %257, %259 : vector<8x64xf32>
    %c0_233 = arith.constant 0 : index
    %c0_234 = arith.constant 0 : index
    %261 = vector.load %arg15[%c0_233, %c0_234] : memref<1x64xf32, #tpu.memory_space<vmem>>, vector<1x64xf32>
    %262 = vector.broadcast %261 : vector<1x64xf32> to vector<8x64xf32>
    %263 = arith.addf %260, %262 : vector<8x64xf32>
    %264 = arith.truncf %263 : vector<8x64xf32> to vector<8x64xbf16>
    %cst_235 = arith.constant 0.000000e+00 : f32
    %265 = vector.broadcast %cst_235 : f32 to vector<2x128xf32>
    %c0_236 = arith.constant 0 : index
    %c0_237 = arith.constant 0 : index
    %c0_238 = arith.constant 0 : index
    %266 = vector.load %arg16[%c0_236, %c0_237, %c0_238] : memref<9x2x8xbf16, #tpu.memory_space<vmem>>, vector<1x2x8xbf16>
    %267 = vector.shape_cast %266 : vector<1x2x8xbf16> to vector<2x8xbf16>
    %cst_239 = arith.constant dense<0.000000e+00> : vector<2x64xf32>
    %268 = tpu.matmul %267, %264, %cst_239 {dimension_numbers = #tpu.dot_dimension_numbers<[1], [0], [0], [1], [0, 0, 1, 1], [], []>} : vector<2x8xbf16>, vector<8x64xbf16>, vector<2x64xf32> -> vector<2x64xf32>
    %269 = arith.truncf %268 : vector<2x64xf32> to vector<2x64xbf16>
    %c0_240 = arith.constant 0 : index
    %c0_241 = arith.constant 0 : index
    %c0_242 = arith.constant 0 : index
    %270 = vector.load %arg17[%c0_240, %c0_241, %c0_242] : memref<9x64x128xbf16, #tpu.memory_space<vmem>>, vector<1x64x128xbf16>
    %271 = vector.shape_cast %270 : vector<1x64x128xbf16> to vector<64x128xbf16>
    %cst_243 = arith.constant dense<0.000000e+00> : vector<2x128xf32>
    %272 = tpu.matmul %269, %271, %cst_243 {dimension_numbers = #tpu.dot_dimension_numbers<[1], [0], [0], [1], [0, 0, 1, 1], [], []>} : vector<2x64xbf16>, vector<64x128xbf16>, vector<2x128xf32> -> vector<2x128xf32>
    %273 = arith.addf %265, %272 : vector<2x128xf32>
    %c1_244 = arith.constant 1 : index
    %c0_245 = arith.constant 0 : index
    %c0_246 = arith.constant 0 : index
    %274 = vector.load %arg16[%c1_244, %c0_245, %c0_246] : memref<9x2x8xbf16, #tpu.memory_space<vmem>>, vector<1x2x8xbf16>
    %275 = vector.shape_cast %274 : vector<1x2x8xbf16> to vector<2x8xbf16>
    %cst_247 = arith.constant dense<0.000000e+00> : vector<2x64xf32>
    %276 = tpu.matmul %275, %264, %cst_247 {dimension_numbers = #tpu.dot_dimension_numbers<[1], [0], [0], [1], [0, 0, 1, 1], [], []>} : vector<2x8xbf16>, vector<8x64xbf16>, vector<2x64xf32> -> vector<2x64xf32>
    %277 = arith.truncf %276 : vector<2x64xf32> to vector<2x64xbf16>
    %c1_248 = arith.constant 1 : index
    %c0_249 = arith.constant 0 : index
    %c0_250 = arith.constant 0 : index
    %278 = vector.load %arg17[%c1_248, %c0_249, %c0_250] : memref<9x64x128xbf16, #tpu.memory_space<vmem>>, vector<1x64x128xbf16>
    %279 = vector.shape_cast %278 : vector<1x64x128xbf16> to vector<64x128xbf16>
    %cst_251 = arith.constant dense<0.000000e+00> : vector<2x128xf32>
    %280 = tpu.matmul %277, %279, %cst_251 {dimension_numbers = #tpu.dot_dimension_numbers<[1], [0], [0], [1], [0, 0, 1, 1], [], []>} : vector<2x64xbf16>, vector<64x128xbf16>, vector<2x128xf32> -> vector<2x128xf32>
    %281 = arith.addf %273, %280 : vector<2x128xf32>
    %c2_252 = arith.constant 2 : index
    %c0_253 = arith.constant 0 : index
    %c0_254 = arith.constant 0 : index
    %282 = vector.load %arg16[%c2_252, %c0_253, %c0_254] : memref<9x2x8xbf16, #tpu.memory_space<vmem>>, vector<1x2x8xbf16>
    %283 = vector.shape_cast %282 : vector<1x2x8xbf16> to vector<2x8xbf16>
    %cst_255 = arith.constant dense<0.000000e+00> : vector<2x64xf32>
    %284 = tpu.matmul %283, %264, %cst_255 {dimension_numbers = #tpu.dot_dimension_numbers<[1], [0], [0], [1], [0, 0, 1, 1], [], []>} : vector<2x8xbf16>, vector<8x64xbf16>, vector<2x64xf32> -> vector<2x64xf32>
    %285 = arith.truncf %284 : vector<2x64xf32> to vector<2x64xbf16>
    %c2_256 = arith.constant 2 : index
    %c0_257 = arith.constant 0 : index
    %c0_258 = arith.constant 0 : index
    %286 = vector.load %arg17[%c2_256, %c0_257, %c0_258] : memref<9x64x128xbf16, #tpu.memory_space<vmem>>, vector<1x64x128xbf16>
    %287 = vector.shape_cast %286 : vector<1x64x128xbf16> to vector<64x128xbf16>
    %cst_259 = arith.constant dense<0.000000e+00> : vector<2x128xf32>
    %288 = tpu.matmul %285, %287, %cst_259 {dimension_numbers = #tpu.dot_dimension_numbers<[1], [0], [0], [1], [0, 0, 1, 1], [], []>} : vector<2x64xbf16>, vector<64x128xbf16>, vector<2x128xf32> -> vector<2x128xf32>
    %289 = arith.addf %281, %288 : vector<2x128xf32>
    %c3_260 = arith.constant 3 : index
    %c0_261 = arith.constant 0 : index
    %c0_262 = arith.constant 0 : index
    %290 = vector.load %arg16[%c3_260, %c0_261, %c0_262] : memref<9x2x8xbf16, #tpu.memory_space<vmem>>, vector<1x2x8xbf16>
    %291 = vector.shape_cast %290 : vector<1x2x8xbf16> to vector<2x8xbf16>
    %cst_263 = arith.constant dense<0.000000e+00> : vector<2x64xf32>
    %292 = tpu.matmul %291, %264, %cst_263 {dimension_numbers = #tpu.dot_dimension_numbers<[1], [0], [0], [1], [0, 0, 1, 1], [], []>} : vector<2x8xbf16>, vector<8x64xbf16>, vector<2x64xf32> -> vector<2x64xf32>
    %293 = arith.truncf %292 : vector<2x64xf32> to vector<2x64xbf16>
    %c3_264 = arith.constant 3 : index
    %c0_265 = arith.constant 0 : index
    %c0_266 = arith.constant 0 : index
    %294 = vector.load %arg17[%c3_264, %c0_265, %c0_266] : memref<9x64x128xbf16, #tpu.memory_space<vmem>>, vector<1x64x128xbf16>
    %295 = vector.shape_cast %294 : vector<1x64x128xbf16> to vector<64x128xbf16>
    %cst_267 = arith.constant dense<0.000000e+00> : vector<2x128xf32>
    %296 = tpu.matmul %293, %295, %cst_267 {dimension_numbers = #tpu.dot_dimension_numbers<[1], [0], [0], [1], [0, 0, 1, 1], [], []>} : vector<2x64xbf16>, vector<64x128xbf16>, vector<2x128xf32> -> vector<2x128xf32>
    %297 = arith.addf %289, %296 : vector<2x128xf32>
    %c4_268 = arith.constant 4 : index
    %c0_269 = arith.constant 0 : index
    %c0_270 = arith.constant 0 : index
    %298 = vector.load %arg16[%c4_268, %c0_269, %c0_270] : memref<9x2x8xbf16, #tpu.memory_space<vmem>>, vector<1x2x8xbf16>
    %299 = vector.shape_cast %298 : vector<1x2x8xbf16> to vector<2x8xbf16>
    %cst_271 = arith.constant dense<0.000000e+00> : vector<2x64xf32>
    %300 = tpu.matmul %299, %264, %cst_271 {dimension_numbers = #tpu.dot_dimension_numbers<[1], [0], [0], [1], [0, 0, 1, 1], [], []>} : vector<2x8xbf16>, vector<8x64xbf16>, vector<2x64xf32> -> vector<2x64xf32>
    %301 = arith.truncf %300 : vector<2x64xf32> to vector<2x64xbf16>
    %c4_272 = arith.constant 4 : index
    %c0_273 = arith.constant 0 : index
    %c0_274 = arith.constant 0 : index
    %302 = vector.load %arg17[%c4_272, %c0_273, %c0_274] : memref<9x64x128xbf16, #tpu.memory_space<vmem>>, vector<1x64x128xbf16>
    %303 = vector.shape_cast %302 : vector<1x64x128xbf16> to vector<64x128xbf16>
    %cst_275 = arith.constant dense<0.000000e+00> : vector<2x128xf32>
    %304 = tpu.matmul %301, %303, %cst_275 {dimension_numbers = #tpu.dot_dimension_numbers<[1], [0], [0], [1], [0, 0, 1, 1], [], []>} : vector<2x64xbf16>, vector<64x128xbf16>, vector<2x128xf32> -> vector<2x128xf32>
    %305 = arith.addf %297, %304 : vector<2x128xf32>
    %c5_276 = arith.constant 5 : index
    %c0_277 = arith.constant 0 : index
    %c0_278 = arith.constant 0 : index
    %306 = vector.load %arg16[%c5_276, %c0_277, %c0_278] : memref<9x2x8xbf16, #tpu.memory_space<vmem>>, vector<1x2x8xbf16>
    %307 = vector.shape_cast %306 : vector<1x2x8xbf16> to vector<2x8xbf16>
    %cst_279 = arith.constant dense<0.000000e+00> : vector<2x64xf32>
    %308 = tpu.matmul %307, %264, %cst_279 {dimension_numbers = #tpu.dot_dimension_numbers<[1], [0], [0], [1], [0, 0, 1, 1], [], []>} : vector<2x8xbf16>, vector<8x64xbf16>, vector<2x64xf32> -> vector<2x64xf32>
    %309 = arith.truncf %308 : vector<2x64xf32> to vector<2x64xbf16>
    %c5_280 = arith.constant 5 : index
    %c0_281 = arith.constant 0 : index
    %c0_282 = arith.constant 0 : index
    %310 = vector.load %arg17[%c5_280, %c0_281, %c0_282] : memref<9x64x128xbf16, #tpu.memory_space<vmem>>, vector<1x64x128xbf16>
    %311 = vector.shape_cast %310 : vector<1x64x128xbf16> to vector<64x128xbf16>
    %cst_283 = arith.constant dense<0.000000e+00> : vector<2x128xf32>
    %312 = tpu.matmul %309, %311, %cst_283 {dimension_numbers = #tpu.dot_dimension_numbers<[1], [0], [0], [1], [0, 0, 1, 1], [], []>} : vector<2x64xbf16>, vector<64x128xbf16>, vector<2x128xf32> -> vector<2x128xf32>
    %313 = arith.addf %305, %312 : vector<2x128xf32>
    %c6_284 = arith.constant 6 : index
    %c0_285 = arith.constant 0 : index
    %c0_286 = arith.constant 0 : index
    %314 = vector.load %arg16[%c6_284, %c0_285, %c0_286] : memref<9x2x8xbf16, #tpu.memory_space<vmem>>, vector<1x2x8xbf16>
    %315 = vector.shape_cast %314 : vector<1x2x8xbf16> to vector<2x8xbf16>
    %cst_287 = arith.constant dense<0.000000e+00> : vector<2x64xf32>
    %316 = tpu.matmul %315, %264, %cst_287 {dimension_numbers = #tpu.dot_dimension_numbers<[1], [0], [0], [1], [0, 0, 1, 1], [], []>} : vector<2x8xbf16>, vector<8x64xbf16>, vector<2x64xf32> -> vector<2x64xf32>
    %317 = arith.truncf %316 : vector<2x64xf32> to vector<2x64xbf16>
    %c6_288 = arith.constant 6 : index
    %c0_289 = arith.constant 0 : index
    %c0_290 = arith.constant 0 : index
    %318 = vector.load %arg17[%c6_288, %c0_289, %c0_290] : memref<9x64x128xbf16, #tpu.memory_space<vmem>>, vector<1x64x128xbf16>
    %319 = vector.shape_cast %318 : vector<1x64x128xbf16> to vector<64x128xbf16>
    %cst_291 = arith.constant dense<0.000000e+00> : vector<2x128xf32>
    %320 = tpu.matmul %317, %319, %cst_291 {dimension_numbers = #tpu.dot_dimension_numbers<[1], [0], [0], [1], [0, 0, 1, 1], [], []>} : vector<2x64xbf16>, vector<64x128xbf16>, vector<2x128xf32> -> vector<2x128xf32>
    %321 = arith.addf %313, %320 : vector<2x128xf32>
    %c7_292 = arith.constant 7 : index
    %c0_293 = arith.constant 0 : index
    %c0_294 = arith.constant 0 : index
    %322 = vector.load %arg16[%c7_292, %c0_293, %c0_294] : memref<9x2x8xbf16, #tpu.memory_space<vmem>>, vector<1x2x8xbf16>
    %323 = vector.shape_cast %322 : vector<1x2x8xbf16> to vector<2x8xbf16>
    %cst_295 = arith.constant dense<0.000000e+00> : vector<2x64xf32>
    %324 = tpu.matmul %323, %264, %cst_295 {dimension_numbers = #tpu.dot_dimension_numbers<[1], [0], [0], [1], [0, 0, 1, 1], [], []>} : vector<2x8xbf16>, vector<8x64xbf16>, vector<2x64xf32> -> vector<2x64xf32>
    %325 = arith.truncf %324 : vector<2x64xf32> to vector<2x64xbf16>
    %c7_296 = arith.constant 7 : index
    %c0_297 = arith.constant 0 : index
    %c0_298 = arith.constant 0 : index
    %326 = vector.load %arg17[%c7_296, %c0_297, %c0_298] : memref<9x64x128xbf16, #tpu.memory_space<vmem>>, vector<1x64x128xbf16>
    %327 = vector.shape_cast %326 : vector<1x64x128xbf16> to vector<64x128xbf16>
    %cst_299 = arith.constant dense<0.000000e+00> : vector<2x128xf32>
    %328 = tpu.matmul %325, %327, %cst_299 {dimension_numbers = #tpu.dot_dimension_numbers<[1], [0], [0], [1], [0, 0, 1, 1], [], []>} : vector<2x64xbf16>, vector<64x128xbf16>, vector<2x128xf32> -> vector<2x128xf32>
    %329 = arith.addf %321, %328 : vector<2x128xf32>
    %c8_300 = arith.constant 8 : index
    %c0_301 = arith.constant 0 : index
    %c0_302 = arith.constant 0 : index
    %330 = vector.load %arg16[%c8_300, %c0_301, %c0_302] : memref<9x2x8xbf16, #tpu.memory_space<vmem>>, vector<1x2x8xbf16>
    %331 = vector.shape_cast %330 : vector<1x2x8xbf16> to vector<2x8xbf16>
    %cst_303 = arith.constant dense<0.000000e+00> : vector<2x64xf32>
    %332 = tpu.matmul %331, %264, %cst_303 {dimension_numbers = #tpu.dot_dimension_numbers<[1], [0], [0], [1], [0, 0, 1, 1], [], []>} : vector<2x8xbf16>, vector<8x64xbf16>, vector<2x64xf32> -> vector<2x64xf32>
    %333 = arith.truncf %332 : vector<2x64xf32> to vector<2x64xbf16>
    %c8_304 = arith.constant 8 : index
    %c0_305 = arith.constant 0 : index
    %c0_306 = arith.constant 0 : index
    %334 = vector.load %arg17[%c8_304, %c0_305, %c0_306] : memref<9x64x128xbf16, #tpu.memory_space<vmem>>, vector<1x64x128xbf16>
    %335 = vector.shape_cast %334 : vector<1x64x128xbf16> to vector<64x128xbf16>
    %cst_307 = arith.constant dense<0.000000e+00> : vector<2x128xf32>
    %336 = tpu.matmul %333, %335, %cst_307 {dimension_numbers = #tpu.dot_dimension_numbers<[1], [0], [0], [1], [0, 0, 1, 1], [], []>} : vector<2x64xbf16>, vector<64x128xbf16>, vector<2x128xf32> -> vector<2x128xf32>
    %337 = arith.addf %329, %336 : vector<2x128xf32>
    %c0_308 = arith.constant 0 : index
    %c0_309 = arith.constant 0 : index
    %338 = vector.load %arg18[%c0_308, %c0_309] : memref<1x128xf32, #tpu.memory_space<vmem>>, vector<1x128xf32>
    %339 = vector.broadcast %338 : vector<1x128xf32> to vector<2x128xf32>
    %340 = arith.addf %337, %339 : vector<2x128xf32>
    %cst_310 = arith.constant 0.000000e+00 : f32
    %341 = vector.broadcast %cst_310 : f32 to vector<2x128xf32>
    %342 = arith.cmpf ogt, %340, %341 : vector<2x128xf32>
    %cst_311 = arith.constant 2.000000e-01 : f32
    %343 = vector.broadcast %cst_311 : f32 to vector<2x128xf32>
    %344 = arith.mulf %343, %340 : vector<2x128xf32>
    %345 = arith.select %342, %340, %344 : vector<2x128xi1>, vector<2x128xf32>
    %c0_312 = arith.constant 0 : index
    %c0_313 = arith.constant 0 : index
    %346 = vector.load %arg19[%c0_312, %c0_313] : memref<1x128xf32, #tpu.memory_space<vmem>>, vector<1x128xf32>
    %347 = vector.broadcast %346 : vector<1x128xf32> to vector<2x128xf32>
    %348 = arith.mulf %345, %347 : vector<2x128xf32>
    %c0_314 = arith.constant 0 : index
    %c0_315 = arith.constant 0 : index
    %349 = vector.load %arg20[%c0_314, %c0_315] : memref<1x128xf32, #tpu.memory_space<vmem>>, vector<1x128xf32>
    %350 = vector.broadcast %349 : vector<1x128xf32> to vector<2x128xf32>
    %351 = arith.addf %348, %350 : vector<2x128xf32>
    %352 = arith.truncf %351 : vector<2x128xf32> to vector<2x128xbf16>
    %c0_316 = arith.constant 0 : index
    %c0_317 = arith.constant 0 : index
    %353 = vector.load %arg22[%c0_316, %c0_317] : memref<1x11xf32, #tpu.memory_space<vmem>>, vector<1x11xf32>
    %c0_318 = arith.constant 0 : index
    %c0_319 = arith.constant 0 : index
    %354 = vector.load %arg21[%c0_318, %c0_319] : memref<128x11xbf16, #tpu.memory_space<vmem>>, vector<128x11xbf16>
    %cst_320 = arith.constant dense<0.000000e+00> : vector<2x11xf32>
    %355 = tpu.matmul %352, %354, %cst_320 {dimension_numbers = #tpu.dot_dimension_numbers<[1], [0], [0], [1], [0, 0, 1, 1], [], []>} : vector<2x128xbf16>, vector<128x11xbf16>, vector<2x11xf32> -> vector<2x11xf32>
    %356 = vector.broadcast %353 : vector<1x11xf32> to vector<2x11xf32>
    %357 = arith.addf %355, %356 : vector<2x11xf32>
    %358 = tpu.iota {dimensions = array<i32: 1>} : vector<2x11xi32>
    %cst_321 = arith.constant 5.000000e-01 : f32
    %359 = vector.broadcast %cst_321 : f32 to vector<2x11xf32>
    %360 = arith.mulf %359, %357 : vector<2x11xf32>
    %361 = math.tanh %360 : vector<2x11xf32>
    %cst_322 = arith.constant 1.000000e+00 : f32
    %362 = vector.broadcast %cst_322 : f32 to vector<2x11xf32>
    %363 = arith.addf %361, %362 : vector<2x11xf32>
    %cst_323 = arith.constant 5.000000e-01 : f32
    %364 = vector.broadcast %cst_323 : f32 to vector<2x11xf32>
    %365 = arith.mulf %364, %363 : vector<2x11xf32>
    %c1_i32 = arith.constant 1 : i32
    %366 = vector.broadcast %c1_i32 : i32 to vector<2x11xi32>
    %367 = arith.cmpi sge, %358, %366 : vector<2x11xi32>
    %cst_324 = arith.constant 0xFF800000 : f32
    %368 = vector.broadcast %cst_324 : f32 to vector<2x11xf32>
    %369 = arith.select %367, %357, %368 : vector<2x11xi1>, vector<2x11xf32>
    %cst_325 = arith.constant dense<0xFF800000> : vector<2xf32>
    %370 = vector.multi_reduction <maximumf>, %369, %cst_325 [1] : vector<2x11xf32> to vector<2xf32>
    %371 = vector.shape_cast %370 : vector<2xf32> to vector<2x1xf32>
    %372 = vector.broadcast %371 : vector<2x1xf32> to vector<2x11xf32>
    %373 = arith.subf %369, %372 : vector<2x11xf32>
    %374 = math.exp %373 : vector<2x11xf32>
    %cst_326 = arith.constant dense<0.000000e+00> : vector<2xf32>
    %375 = vector.multi_reduction <add>, %374, %cst_326 [1] : vector<2x11xf32> to vector<2xf32>
    %376 = vector.shape_cast %375 : vector<2xf32> to vector<2x1xf32>
    %377 = vector.broadcast %376 : vector<2x1xf32> to vector<2x11xf32>
    %378 = arith.divf %374, %377 : vector<2x11xf32>
    %c0_i32 = arith.constant 0 : i32
    %379 = vector.broadcast %c0_i32 : i32 to vector<2x11xi32>
    %380 = arith.cmpi eq, %358, %379 : vector<2x11xi32>
    %381 = arith.select %380, %365, %378 : vector<2x11xi1>, vector<2x11xf32>
    %c0_327 = arith.constant 0 : index
    %c0_328 = arith.constant 0 : index
    %382 = vector.load %arg23[%c0_327, %c0_328] : memref<2x11xf32, #tpu.memory_space<vmem>>, vector<2x11xf32>
    tpu.vector_store %arg23[%c0_327, %c0_328], %381 {strides = array<i32>} : memref<2x11xf32, #tpu.memory_space<vmem>>, vector<2x11xf32>,
    return
  }
}

</mosaic_0001>

<llo_original>
// kernel: discriminator_forward.1
$region0: #{discriminator_forward.1}
  #allocation0 [shape = 'u32[]', space=smem, size = 0x4, offset = 0x4, fixed_abs, tag = 'smem constant byte address 0x4 - core index']
  #allocation1 [shape = 'u32[144,128]{1,0:T(1,128)}', space=vmem, size = 0x12000, scoped, tag = 'internal scratch']
  %s0 = inlined_call_operand.vmem [shape: bf16[512,4], index: 0, kind: input, shape index: {}]
  %s1 = inlined_call_operand.hbm [shape: bf16[9,128,512], index: 1, kind: input, shape index: {}]
  %s2 = inlined_call_operand.hbm [shape: bf16[9,4,16], index: 2, kind: input, shape index: {}]
  %s3 = inlined_call_operand.hbm [shape: f32[1,16], index: 3, kind: input, shape index: {}]
  %s4 = inlined_call_operand.hbm [shape: f32[1,16], index: 4, kind: input, shape index: {}]
  %s5 = inlined_call_operand.hbm [shape: f32[1,16], index: 5, kind: input, shape index: {}]
  %s6 = inlined_call_operand.hbm [shape: bf16[9,32,128], index: 6, kind: input, shape index: {}]
  %s7 = inlined_call_operand.hbm [shape: bf16[9,16,32], index: 7, kind: input, shape index: {}]
  %s8 = inlined_call_operand.hbm [shape: f32[1,32], index: 8, kind: input, shape index: {}]
  %s9 = inlined_call_operand.hbm [shape: f32[1,32], index: 9, kind: input, shape index: {}]
  %s10 = inlined_call_operand.hbm [shape: f32[1,32], index: 10, kind: input, shape index: {}]
  %s11 = inlined_call_operand.hbm [shape: bf16[9,8,32], index: 11, kind: input, shape index: {}]
  %s12 = inlined_call_operand.hbm [shape: bf16[9,32,64], index: 12, kind: input, shape index: {}]
  %s13 = inlined_call_operand.hbm [shape: f32[1,64], index: 13, kind: input, shape index: {}]
  %s14 = inlined_call_operand.hbm [shape: f32[1,64], index: 14, kind: input, shape index: {}]
  %s15 = inlined_call_operand.hbm [shape: f32[1,64], index: 15, kind: input, shape index: {}]
  %s16 = inlined_call_operand.vmem [shape: bf16[9,2,8], index: 16, kind: input, shape index: {}]
  %s17 = inlined_call_operand.hbm [shape: bf16[9,64,128], index: 17, kind: input, shape index: {}]
  %s18 = inlined_call_operand.hbm [shape: f32[1,128], index: 18, kind: input, shape index: {}]
  %s19 = inlined_call_operand.hbm [shape: f32[1,128], index: 19, kind: input, shape index: {}]
  %s20 = inlined_call_operand.hbm [shape: f32[1,128], index: 20, kind: input, shape index: {}]
  %s21 = inlined_call_operand.vmem [shape: bf16[128,11], index: 21, kind: input, shape index: {}]
  %s22 = inlined_call_operand.hbm [shape: f32[1,11], index: 22, kind: input, shape index: {}]
  %s23 = inlined_call_operand.vmem [shape: f32[2,11], index: 23, kind: output, shape index: {}]
  %s24 = sld [smem:[#allocation0]]
  $region182: #{discriminator_forward.1} parent=0
    _
  %s26 = ssub.s32 1, %s24
  %s27 = scalar_select 0, %s26, %s24
  $region1: #{discriminator_forward.1} parent=0
    #allocation2 [shape = 'u8[1179648]{0}', space=vmem, size = 0x120000, scoped, tag = 'input window, operand 1, single buffered']
    #allocation3 [shape = 's32[1]{0}', space=sflag, size = 0x4, scoped, tag = 'scoped memory for discriminator_forward.1']
    #allocation4 [shape = 'u8[9216]{0}', space=vmem, size = 0x2400, scoped, tag = 'input window, operand 2, single buffered']
    #allocation5 [shape = 's32[1]{0}', space=sflag, size = 0x4, scoped, tag = 'scoped memory for discriminator_forward.1']
    #allocation6 [shape = 'u8[512]{0}', space=vmem, size = 0x400, scoped, tag = 'input window, operand 3, single buffered']
    #allocation7 [shape = 'u8[512]{0}', space=vmem, size = 0x400, scoped, tag = 'input window, operand 4, single buffered']
    #allocation8 [shape = 's32[1]{0}', space=sflag, size = 0x4, scoped, tag = 'scoped memory for discriminator_forward.1']
    #allocation9 [shape = 'u8[512]{0}', space=vmem, size = 0x400, scoped, tag = 'input window, operand 5, single buffered']
    #allocation10 [shape = 'u8[73728]{0}', space=vmem, size = 0x12000, scoped, tag = 'input window, operand 6, single buffered']
    #allocation11 [shape = 's32[1]{0}', space=sflag, size = 0x4, scoped, tag = 'scoped memory for discriminator_forward.1']
    #allocation12 [shape = 'u8[36864]{0}', space=vmem, size = 0x9000, scoped, tag = 'input window, operand 7, single buffered']
    #allocation13 [shape = 'u8[512]{0}', space=vmem, size = 0x400, scoped, tag = 'input window, operand 8, single buffered']
    #allocation14 [shape = 's32[1]{0}', space=sflag, size = 0x4, scoped, tag = 'scoped memory for discriminator_forward.1']
    #allocation15 [shape = 'u8[512]{0}', space=vmem, size = 0x400, scoped, tag = 'input window, operand 9, single buffered']
    #allocation16 [shape = 'u8[512]{0}', space=vmem, size = 0x400, scoped, tag = 'input window, operand 10, single buffered']
    #allocation17 [shape = 's32[1]{0}', space=sflag, size = 0x4, scoped, tag = 'scoped memory for discriminator_forward.1']
    #allocation18 [shape = 'u8[18432]{0}', space=vmem, size = 0x4800, scoped, tag = 'input window, operand 11, single buffered']
    #allocation19 [shape = 'u8[73728]{0}', space=vmem, size = 0x12000, scoped, tag = 'input window, operand 12, single buffered']
    #allocation20 [shape = 's32[1]{0}', space=sflag, size = 0x4, scoped, tag = 'scoped memory for discriminator_forward.1']
    #allocation21 [shape = 'u8[512]{0}', space=vmem, size = 0x400, scoped, tag = 'input window, operand 13, single buffered']
    #allocation22 [shape = 'u8[512]{0}', space=vmem, size = 0x400, scoped, tag = 'input window, operand 14, single buffered']
    #allocation23 [shape = 's32[1]{0}', space=sflag, size = 0x4, scoped, tag = 'scoped memory for discriminator_forward.1']
    #allocation24 [shape = 'u8[512]{0}', space=vmem, size = 0x400, scoped, tag = 'input window, operand 15, single buffered']
    #allocation25 [shape = 'u8[147456]{0}', space=vmem, size = 0x24000, scoped, tag = 'input window, operand 17, single buffered']
    #allocation26 [shape = 's32[1]{0}', space=sflag, size = 0x4, scoped, tag = 'scoped memory for discriminator_forward.1']
    #allocation27 [shape = 'u8[512]{0}', space=vmem, size = 0x400, scoped, tag = 'input window, operand 18, single buffered']
    #allocation28 [shape = 'u8[512]{0}', space=vmem, size = 0x400, scoped, tag = 'input window, operand 19, single buffered']
    #allocation29 [shape = 's32[1]{0}', space=sflag, size = 0x4, scoped, tag = 'scoped memory for discriminator_forward.1']
    #allocation30 [shape = 'u8[512]{0}', space=vmem, size = 0x400, scoped, tag = 'input window, operand 20, single buffered']
    #allocation31 [shape = 'u8[512]{0}', space=vmem, size = 0x400, scoped, tag = 'input window, operand 22, single buffered']
    #allocation32 [shape = 's32[1]{0}', space=sflag, size = 0x4, scoped, tag = 'scoped memory for discriminator_forward.1']
    %28 = vsyncpa [#allocation3], 0
    %29 = vsyncpa [#allocation5], 0
    %30 = vsyncpa [#allocation8], 0
    %31 = vsyncpa [#allocation11], 0
    %32 = vsyncpa [#allocation14], 0
    %33 = vsyncpa [#allocation17], 0
    %34 = vsyncpa [#allocation20], 0
    %35 = vsyncpa [#allocation23], 0
    %36 = vsyncpa [#allocation26], 0
    %37 = vsyncpa [#allocation29], 0
    %38 = vsyncpa [#allocation32], 0
    // Predicated region
    $region2: #{discriminator_forward.1} parent=1 // pred_check
      _
    $region3: #{discriminator_forward.1} parent=1 // pred_check_branch
      %40 = sbr.rel (0) target = $region5
    $region4: #{discriminator_forward.1} parent=1 // pred_region
      _
    $region5: #{discriminator_forward.1} parent=1 // pred_fallthru
      _
    // Predicated region
    $region6: #{discriminator_forward.1} parent=1 // pred_check
      _
    $region7: #{discriminator_forward.1} parent=1 // pred_check_branch
      %42 = sbr.rel (0) target = $region9
    $region8: #{discriminator_forward.1} parent=1 // pred_region
      %s44 = ssub.s32 36864, 36864
      %45 = vsyncadd [#allocation3], %s44
      %s46 = sshll.u32 [#allocation2], 4
      %s47 = int_to_ptr.vmem [resolvable:$true] %s46
      %52 = dma.hbm_to_vmem [thread:$0]  %s1, 36864, %s47, [#allocation3], 256, 256, 16
    $region9: #{discriminator_forward.1} parent=1 // pred_fallthru
      _
    // Predicated region
    $region10: #{discriminator_forward.1} parent=1 // pred_check
      _
    $region11: #{discriminator_forward.1} parent=1 // pred_check_branch
      %54 = sbr.rel (0) target = $region13
    $region12: #{discriminator_forward.1} parent=1 // pred_region
      %s56 = ssub.s32 288, 288
      %57 = vsyncadd [#allocation5], %s56
      %s58 = sshll.u32 [#allocation4], 4
      %s59 = int_to_ptr.vmem [resolvable:$true] %s58
      %64 = dma.hbm_to_vmem [thread:$0]  %s2, 288, %s59, [#allocation5], 32, 32, 2
    $region13: #{discriminator_forward.1} parent=1 // pred_fallthru
      _
    // Predicated region
    $region14: #{discriminator_forward.1} parent=1 // pred_check
      _
    $region15: #{discriminator_forward.1} parent=1 // pred_check_branch
      %66 = sbr.rel (0) target = $region17
    $region16: #{discriminator_forward.1} parent=1 // pred_region
      %s68 = ssub.s32 16, 16
      %69 = vsyncadd [#allocation5], %s68
      %s71 = sshll.u32 [#allocation6], 4
      %s72 = int_to_ptr.vmem [resolvable:$true] %s71
      %74 = dma.hbm_to_vmem [thread:$0]  %s3, 16, %s72, [#allocation5]
    $region17: #{discriminator_forward.1} parent=1 // pred_fallthru
      _
    // Predicated region
    $region18: #{discriminator_forward.1} parent=1 // pred_check
      _
    $region19: #{discriminator_forward.1} parent=1 // pred_check_branch
      %76 = sbr.rel (0) target = $region21
    $region20: #{discriminator_forward.1} parent=1 // pred_region
      %s78 = ssub.s32 16, 16
      %79 = vsyncadd [#allocation8], %s78
      %s81 = sshll.u32 [#allocation7], 4
      %s82 = int_to_ptr.vmem [resolvable:$true] %s81
      %84 = dma.hbm_to_vmem [thread:$0]  %s4, 16, %s82, [#allocation8]
    $region21: #{discriminator_forward.1} parent=1 // pred_fallthru
      _
    // Predicated region
    $region22: #{discriminator_forward.1} parent=1 // pred_check
      _
    $region23: #{discriminator_forward.1} parent=1 // pred_check_branch
      %86 = sbr.rel (0) target = $region25
    $region24: #{discriminator_forward.1} parent=1 // pred_region
      %s88 = ssub.s32 16, 16
      %89 = vsyncadd [#allocation8], %s88
      %s91 = sshll.u32 [#allocation9], 4
      %s92 = int_to_ptr.vmem [resolvable:$true] %s91
      %94 = dma.hbm_to_vmem [thread:$0]  %s5, 16, %s92, [#allocation8]
    $region25: #{discriminator_forward.1} parent=1 // pred_fallthru
      _
    // Predicated region
    $region26: #{discriminator_forward.1} parent=1 // pred_check
      _
    $region27: #{discriminator_forward.1} parent=1 // pred_check_branch
      %96 = sbr.rel (0) target = $region29
    $region28: #{discriminator_forward.1} parent=1 // pred_region
      %s98 = ssub.s32 2304, 2304
      %99 = vsyncadd [#allocation11], %s98
      %s100 = sshll.u32 [#allocation10], 4
      %s101 = int_to_ptr.vmem [resolvable:$true] %s100
      %106 = dma.hbm_to_vmem [thread:$0]  %s6, 2304, %s101, [#allocation11], 64, 64, 4
    $region29: #{discriminator_forward.1} parent=1 // pred_fallthru
      _
    // Predicated region
    $region30: #{discriminator_forward.1} parent=1 // pred_check
      _
    $region31: #{discriminator_forward.1} parent=1 // pred_check_branch
      %108 = sbr.rel (0) target = $region33
    $region32: #{discriminator_forward.1} parent=1 // pred_region
      %s110 = ssub.s32 1152, 1152
      %111 = vsyncadd [#allocation11], %s110
      %s112 = sshll.u32 [#allocation12], 4
      %s113 = int_to_ptr.vmem [resolvable:$true] %s112
      %118 = dma.hbm_to_vmem [thread:$0]  %s7, 1152, %s113, [#allocation11], 64, 64, 4
    $region33: #{discriminator_forward.1} parent=1 // pred_fallthru
      _
    // Predicated region
    $region34: #{discriminator_forward.1} parent=1 // pred_check
      _
    $region35: #{discriminator_forward.1} parent=1 // pred_check_branch
      %120 = sbr.rel (0) target = $region37
    $region36: #{discriminator_forward.1} parent=1 // pred_region
      %s122 = ssub.s32 16, 16
      %123 = vsyncadd [#allocation14], %s122
      %s125 = sshll.u32 [#allocation13], 4
      %s126 = int_to_ptr.vmem [resolvable:$true] %s125
      %128 = dma.hbm_to_vmem [thread:$0]  %s8, 16, %s126, [#allocation14]
    $region37: #{discriminator_forward.1} parent=1 // pred_fallthru
      _
    // Predicated region
    $region38: #{discriminator_forward.1} parent=1 // pred_check
      _
    $region39: #{discriminator_forward.1} parent=1 // pred_check_branch
      %130 = sbr.rel (0) target = $region41
    $region40: #{discriminator_forward.1} parent=1 // pred_region
      %s132 = ssub.s32 16, 16
      %133 = vsyncadd [#allocation14], %s132
      %s135 = sshll.u32 [#allocation15], 4
      %s136 = int_to_ptr.vmem [resolvable:$true] %s135
      %138 = dma.hbm_to_vmem [thread:$0]  %s9, 16, %s136, [#allocation14]
    $region41: #{discriminator_forward.1} parent=1 // pred_fallthru
      _
    // Predicated region
    $region42: #{discriminator_forward.1} parent=1 // pred_check
      _
    $region43: #{discriminator_forward.1} parent=1 // pred_check_branch
      %140 = sbr.rel (0) target = $region45
    $region44: #{discriminator_forward.1} parent=1 // pred_region
      %s142 = ssub.s32 16, 16
      %143 = vsyncadd [#allocation17], %s142
      %s145 = sshll.u32 [#allocation16], 4
      %s146 = int_to_ptr.vmem [resolvable:$true] %s145
      %148 = dma.hbm_to_vmem [thread:$0]  %s10, 16, %s146, [#allocation17]
    $region45: #{discriminator_forward.1} parent=1 // pred_fallthru
      _
    // Predicated region
    $region46: #{discriminator_forward.1} parent=1 // pred_check
      _
    $region47: #{discriminator_forward.1} parent=1 // pred_check_branch
      %150 = sbr.rel (0) target = $region49
    $region48: #{discriminator_forward.1} parent=1 // pred_region
      %s152 = ssub.s32 576, 576
      %153 = vsyncadd [#allocation17], %s152
      %s154 = sshll.u32 [#allocation18], 4
      %s155 = int_to_ptr.vmem [resolvable:$true] %s154
      %160 = dma.hbm_to_vmem [thread:$0]  %s11, 576, %s155, [#allocation17], 64, 64, 4
    $region49: #{discriminator_forward.1} parent=1 // pred_fallthru
      _
    // Predicated region
    $region50: #{discriminator_forward.1} parent=1 // pred_check
      _
    $region51: #{discriminator_forward.1} parent=1 // pred_check_branch
      %162 = sbr.rel (0) target = $region53
    $region52: #{discriminator_forward.1} parent=1 // pred_region
      %s164 = ssub.s32 2304, 2304
      %165 = vsyncadd [#allocation20], %s164
      %s166 = sshll.u32 [#allocation19], 4
      %s167 = int_to_ptr.vmem [resolvable:$true] %s166
      %172 = dma.hbm_to_vmem [thread:$0]  %s12, 2304, %s167, [#allocation20], 64, 64, 4
    $region53: #{discriminator_forward.1} parent=1 // pred_fallthru
      _
    // Predicated region
    $region54: #{discriminator_forward.1} parent=1 // pred_check
      _
    $region55: #{discriminator_forward.1} parent=1 // pred_check_branch
      %174 = sbr.rel (0) target = $region57
    $region56: #{discriminator_forward.1} parent=1 // pred_region
      %s176 = ssub.s32 16, 16
      %177 = vsyncadd [#allocation20], %s176
      %s179 = sshll.u32 [#allocation21], 4
      %s180 = int_to_ptr.vmem [resolvable:$true] %s179
      %182 = dma.hbm_to_vmem [thread:$0]  %s13, 16, %s180, [#allocation20]
    $region57: #{discriminator_forward.1} parent=1 // pred_fallthru
      _
    // Predicated region
    $region58: #{discriminator_forward.1} parent=1 // pred_check
      _
    $region59: #{discriminator_forward.1} parent=1 // pred_check_branch
      %184 = sbr.rel (0) target = $region61
    $region60: #{discriminator_forward.1} parent=1 // pred_region
      %s186 = ssub.s32 16, 16
      %187 = vsyncadd [#allocation23], %s186
      %s189 = sshll.u32 [#allocation22], 4
      %s190 = int_to_ptr.vmem [resolvable:$true] %s189
      %192 = dma.hbm_to_vmem [thread:$0]  %s14, 16, %s190, [#allocation23]
    $region61: #{discriminator_forward.1} parent=1 // pred_fallthru
      _
    // Predicated region
    $region62: #{discriminator_forward.1} parent=1 // pred_check
      _
    $region63: #{discriminator_forward.1} parent=1 // pred_check_branch
      %194 = sbr.rel (0) target = $region65
    $region64: #{discriminator_forward.1} parent=1 // pred_region
      %s196 = ssub.s32 16, 16
      %197 = vsyncadd [#allocation23], %s196
      %s199 = sshll.u32 [#allocation24], 4
      %s200 = int_to_ptr.vmem [resolvable:$true] %s199
      %202 = dma.hbm_to_vmem [thread:$0]  %s15, 16, %s200, [#allocation23]
    $region65: #{discriminator_forward.1} parent=1 // pred_fallthru
      _
    // Predicated region
    $region66: #{discriminator_forward.1} parent=1 // pred_check
      _
    $region67: #{discriminator_forward.1} parent=1 // pred_check_branch
      %204 = sbr.rel (0) target = $region69
    $region68: #{discriminator_forward.1} parent=1 // pred_region
      _
    $region69: #{discriminator_forward.1} parent=1 // pred_fallthru
      _
    // Predicated region
    $region70: #{discriminator_forward.1} parent=1 // pred_check
      _
    $region71: #{discriminator_forward.1} parent=1 // pred_check_branch
      %206 = sbr.rel (0) target = $region73
    $region72: #{discriminator_forward.1} parent=1 // pred_region
      %s208 = ssub.s32 4608, 4608
      %209 = vsyncadd [#allocation26], %s208
      %s210 = sshll.u32 [#allocation25], 4
      %s211 = int_to_ptr.vmem [resolvable:$true] %s210
      %216 = dma.hbm_to_vmem [thread:$0]  %s17, 4608, %s211, [#allocation26], 64, 64, 4
    $region73: #{discriminator_forward.1} parent=1 // pred_fallthru
      _
    // Predicated region
    $region74: #{discriminator_forward.1} parent=1 // pred_check
      _
    $region75: #{discriminator_forward.1} parent=1 // pred_check_branch
      %218 = sbr.rel (0) target = $region77
    $region76: #{discriminator_forward.1} parent=1 // pred_region
      %s220 = ssub.s32 16, 16
      %221 = vsyncadd [#allocation26], %s220
      %s223 = sshll.u32 [#allocation27], 4
      %s224 = int_to_ptr.vmem [resolvable:$true] %s223
      %226 = dma.hbm_to_vmem [thread:$0]  %s18, 16, %s224, [#allocation26]
    $region77: #{discriminator_forward.1} parent=1 // pred_fallthru
      _
    // Predicated region
    $region78: #{discriminator_forward.1} parent=1 // pred_check
      _
    $region79: #{discriminator_forward.1} parent=1 // pred_check_branch
      %228 = sbr.rel (0) target = $region81
    $region80: #{discriminator_forward.1} parent=1 // pred_region
      %s230 = ssub.s32 16, 16
      %231 = vsyncadd [#allocation29], %s230
      %s233 = sshll.u32 [#allocation28], 4
      %s234 = int_to_ptr.vmem [resolvable:$true] %s233
      %236 = dma.hbm_to_vmem [thread:$0]  %s19, 16, %s234, [#allocation29]
    $region81: #{discriminator_forward.1} parent=1 // pred_fallthru
      _
    // Predicated region
    $region82: #{discriminator_forward.1} parent=1 // pred_check
      _
    $region83: #{discriminator_forward.1} parent=1 // pred_check_branch
      %238 = sbr.rel (0) target = $region85
    $region84: #{discriminator_forward.1} parent=1 // pred_region
      %s240 = ssub.s32 16, 16
      %241 = vsyncadd [#allocation29], %s240
      %s243 = sshll.u32 [#allocation30], 4
      %s244 = int_to_ptr.vmem [resolvable:$true] %s243
      %246 = dma.hbm_to_vmem [thread:$0]  %s20, 16, %s244, [#allocation29]
    $region85: #{discriminator_forward.1} parent=1 // pred_fallthru
      _
    // Predicated region
    $region86: #{discriminator_forward.1} parent=1 // pred_check
      _
    $region87: #{discriminator_forward.1} parent=1 // pred_check_branch
      %248 = sbr.rel (0) target = $region89
    $region88: #{discriminator_forward.1} parent=1 // pred_region
      _
    $region89: #{discriminator_forward.1} parent=1 // pred_fallthru
      _
    // Predicated region
    $region90: #{discriminator_forward.1} parent=1 // pred_check
      _
    $region91: #{discriminator_forward.1} parent=1 // pred_check_branch
      %250 = sbr.rel (0) target = $region93
    $region92: #{discriminator_forward.1} parent=1 // pred_region
      %s252 = ssub.s32 16, 16
      %253 = vsyncadd [#allocation32], %s252
      %s255 = sshll.u32 [#allocation31], 4
      %s256 = int_to_ptr.vmem [resolvable:$true] %s255
      %258 = dma.hbm_to_vmem [thread:$0]  %s22, 16, %s256, [#allocation32]
    $region93: #{discriminator_forward.1} parent=1 // pred_fallthru
      _
    // Predicated region
    $region94: #{discriminator_forward.1} parent=1 // pred_check
      _
    $region95: #{discriminator_forward.1} parent=1 // pred_check_branch
      %260 = sbr.rel (0) target = $region97
    $region96: #{discriminator_forward.1} parent=1 // pred_region
      %261 = dma.done [#allocation3], 36864
    $region97: #{discriminator_forward.1} parent=1 // pred_fallthru
      _
    // Predicated region
    $region98: #{discriminator_forward.1} parent=1 // pred_check
      _
    $region99: #{discriminator_forward.1} parent=1 // pred_check_branch
      %263 = sbr.rel (0) target = $region101
    $region100: #{discriminator_forward.1} parent=1 // pred_region
      %264 = dma.done [#allocation5], 288
    $region101: #{discriminator_forward.1} parent=1 // pred_fallthru
      _
    // Predicated region
    $region102: #{discriminator_forward.1} parent=1 // pred_check
      _
    $region103: #{discriminator_forward.1} parent=1 // pred_check_branch
      %266 = sbr.rel (0) target = $region105
    $region104: #{discriminator_forward.1} parent=1 // pred_region
      %267 = dma.done [#allocation5], 16
    $region105: #{discriminator_forward.1} parent=1 // pred_fallthru
      _
    // Predicated region
    $region106: #{discriminator_forward.1} parent=1 // pred_check
      _
    $region107: #{discriminator_forward.1} parent=1 // pred_check_branch
      %269 = sbr.rel (0) target = $region109
    $region108: #{discriminator_forward.1} parent=1 // pred_region
      %270 = dma.done [#allocation8], 16
    $region109: #{discriminator_forward.1} parent=1 // pred_fallthru
      _
    // Predicated region
    $region110: #{discriminator_forward.1} parent=1 // pred_check
      _
    $region111: #{discriminator_forward.1} parent=1 // pred_check_branch
      %272 = sbr.rel (0) target = $region113
    $region112: #{discriminator_forward.1} parent=1 // pred_region
      %273 = dma.done [#allocation8], 16
    $region113: #{discriminator_forward.1} parent=1 // pred_fallthru
      _
    // Predicated region
    $region114: #{discriminator_forward.1} parent=1 // pred_check
      _
    $region115: #{discriminator_forward.1} parent=1 // pred_check_branch
      %275 = sbr.rel (0) target = $region117
    $region116: #{discriminator_forward.1} parent=1 // pred_region
      %276 = dma.done [#allocation11], 2304
    $region117: #{discriminator_forward.1} parent=1 // pred_fallthru
      _
    // Predicated region
    $region118: #{discriminator_forward.1} parent=1 // pred_check
      _
    $region119: #{discriminator_forward.1} parent=1 // pred_check_branch
      %278 = sbr.rel (0) target = $region121
    $region120: #{discriminator_forward.1} parent=1 // pred_region
      %279 = dma.done [#allocation11], 1152
    $region121: #{discriminator_forward.1} parent=1 // pred_fallthru
      _
    // Predicated region
    $region122: #{discriminator_forward.1} parent=1 // pred_check
      _
    $region123: #{discriminator_forward.1} parent=1 // pred_check_branch
      %281 = sbr.rel (0) target = $region125
    $region124: #{discriminator_forward.1} parent=1 // pred_region
      %282 = dma.done [#allocation14], 16
    $region125: #{discriminator_forward.1} parent=1 // pred_fallthru
      _
    // Predicated region
    $region126: #{discriminator_forward.1} parent=1 // pred_check
      _
    $region127: #{discriminator_forward.1} parent=1 // pred_check_branch
      %284 = sbr.rel (0) target = $region129
    $region128: #{discriminator_forward.1} parent=1 // pred_region
      %285 = dma.done [#allocation14], 16
    $region129: #{discriminator_forward.1} parent=1 // pred_fallthru
      _
    // Predicated region
    $region130: #{discriminator_forward.1} parent=1 // pred_check
      _
    $region131: #{discriminator_forward.1} parent=1 // pred_check_branch
      %287 = sbr.rel (0) target = $region133
    $region132: #{discriminator_forward.1} parent=1 // pred_region
      %288 = dma.done [#allocation17], 16
    $region133: #{discriminator_forward.1} parent=1 // pred_fallthru
      _
    // Predicated region
    $region134: #{discriminator_forward.1} parent=1 // pred_check
      _
    $region135: #{discriminator_forward.1} parent=1 // pred_check_branch
      %290 = sbr.rel (0) target = $region137
    $region136: #{discriminator_forward.1} parent=1 // pred_region
      %291 = dma.done [#allocation17], 576
    $region137: #{discriminator_forward.1} parent=1 // pred_fallthru
      _
    // Predicated region
    $region138: #{discriminator_forward.1} parent=1 // pred_check
      _
    $region139: #{discriminator_forward.1} parent=1 // pred_check_branch
      %293 = sbr.rel (0) target = $region141
    $region140: #{discriminator_forward.1} parent=1 // pred_region
      %294 = dma.done [#allocation20], 2304
    $region141: #{discriminator_forward.1} parent=1 // pred_fallthru
      _
    // Predicated region
    $region142: #{discriminator_forward.1} parent=1 // pred_check
      _
    $region143: #{discriminator_forward.1} parent=1 // pred_check_branch
      %296 = sbr.rel (0) target = $region145
    $region144: #{discriminator_forward.1} parent=1 // pred_region
      %297 = dma.done [#allocation20], 16
    $region145: #{discriminator_forward.1} parent=1 // pred_fallthru
      _
    // Predicated region
    $region146: #{discriminator_forward.1} parent=1 // pred_check
      _
    $region147: #{discriminator_forward.1} parent=1 // pred_check_branch
      %299 = sbr.rel (0) target = $region149
    $region148: #{discriminator_forward.1} parent=1 // pred_region
      %300 = dma.done [#allocation23], 16
    $region149: #{discriminator_forward.1} parent=1 // pred_fallthru
      _
    // Predicated region
    $region150: #{discriminator_forward.1} parent=1 // pred_check
      _
    $region151: #{discriminator_forward.1} parent=1 // pred_check_branch
      %302 = sbr.rel (0) target = $region153
    $region152: #{discriminator_forward.1} parent=1 // pred_region
      %303 = dma.done [#allocation23], 16
    $region153: #{discriminator_forward.1} parent=1 // pred_fallthru
      _
    // Predicated region
    $region154: #{discriminator_forward.1} parent=1 // pred_check
      _
    $region155: #{discriminator_forward.1} parent=1 // pred_check_branch
      %305 = sbr.rel (0) target = $region157
    $region156: #{discriminator_forward.1} parent=1 // pred_region
      %306 = dma.done [#allocation26], 4608
    $region157: #{discriminator_forward.1} parent=1 // pred_fallthru
      _
    // Predicated region
    $region158: #{discriminator_forward.1} parent=1 // pred_check
      _
    $region159: #{discriminator_forward.1} parent=1 // pred_check_branch
      %308 = sbr.rel (0) target = $region161
    $region160: #{discriminator_forward.1} parent=1 // pred_region
      %309 = dma.done [#allocation26], 16
    $region161: #{discriminator_forward.1} parent=1 // pred_fallthru
      _
    // Predicated region
    $region162: #{discriminator_forward.1} parent=1 // pred_check
      _
    $region163: #{discriminator_forward.1} parent=1 // pred_check_branch
      %311 = sbr.rel (0) target = $region165
    $region164: #{discriminator_forward.1} parent=1 // pred_region
      %312 = dma.done [#allocation29], 16
    $region165: #{discriminator_forward.1} parent=1 // pred_fallthru
      _
    // Predicated region
    $region166: #{discriminator_forward.1} parent=1 // pred_check
      _
    $region167: #{discriminator_forward.1} parent=1 // pred_check_branch
      %314 = sbr.rel (0) target = $region169
    $region168: #{discriminator_forward.1} parent=1 // pred_region
      %315 = dma.done [#allocation29], 16
    $region169: #{discriminator_forward.1} parent=1 // pred_fallthru
      _
    // Predicated region
    $region170: #{discriminator_forward.1} parent=1 // pred_check
      _
    $region171: #{discriminator_forward.1} parent=1 // pred_check_branch
      %317 = sbr.rel (0) target = $region173
    $region172: #{discriminator_forward.1} parent=1 // pred_region
      %318 = dma.done [#allocation32], 16
    $region173: #{discriminator_forward.1} parent=1 // pred_fallthru
      _
    %v320 = vld [vmem:[%s0] sm:$0xf]
    %v321 = vld [vmem:[%s0 + $0x4] sm:$0xf]
    %v322 = vld [vmem:[%s0 + $0x8] sm:$0xf]
    %v323 = vld [vmem:[%s0 + $0xc] sm:$0xf]
    %v324 = vld [vmem:[%s0 + $0x10] sm:$0xf]
    %v325 = vld [vmem:[%s0 + $0x14] sm:$0xf]
    %v326 = vld [vmem:[%s0 + $0x18] sm:$0xf]
    %v327 = vld [vmem:[%s0 + $0x1c] sm:$0xf]
    %v328 = vld [vmem:[%s0 + $0x20] sm:$0xf]
    %v329 = vld [vmem:[%s0 + $0x24] sm:$0xf]
    %v330 = vld [vmem:[%s0 + $0x28] sm:$0xf]
    %v331 = vld [vmem:[%s0 + $0x2c] sm:$0xf]
    %v332 = vld [vmem:[%s0 + $0x30] sm:$0xf]
    %v333 = vld [vmem:[%s0 + $0x34] sm:$0xf]
    %v334 = vld [vmem:[%s0 + $0x38] sm:$0xf]
    %v335 = vld [vmem:[%s0 + $0x3c] sm:$0xf]
    %v336 = vld [vmem:[%s0 + $0x40] sm:$0xf]
    %v337 = vld [vmem:[%s0 + $0x44] sm:$0xf]
    %v338 = vld [vmem:[%s0 + $0x48] sm:$0xf]
    %v339 = vld [vmem:[%s0 + $0x4c] sm:$0xf]
    %v340 = vld [vmem:[%s0 + $0x50] sm:$0xf]
    %v341 = vld [vmem:[%s0 + $0x54] sm:$0xf]
    %v342 = vld [vmem:[%s0 + $0x58] sm:$0xf]
    %v343 = vld [vmem:[%s0 + $0x5c] sm:$0xf]
    %v344 = vld [vmem:[%s0 + $0x60] sm:$0xf]
    %v345 = vld [vmem:[%s0 + $0x64] sm:$0xf]
    %v346 = vld [vmem:[%s0 + $0x68] sm:$0xf]
    %v347 = vld [vmem:[%s0 + $0x6c] sm:$0xf]
    %v348 = vld [vmem:[%s0 + $0x70] sm:$0xf]
    %v349 = vld [vmem:[%s0 + $0x74] sm:$0xf]
    %v350 = vld [vmem:[%s0 + $0x78] sm:$0xf]
    %v351 = vld [vmem:[%s0 + $0x7c] sm:$0xf]
    %v352 = vld [vmem:[%s0 + $0x80] sm:$0xf]
    %v353 = vld [vmem:[%s0 + $0x84] sm:$0xf]
    %v354 = vld [vmem:[%s0 + $0x88] sm:$0xf]
    %v355 = vld [vmem:[%s0 + $0x8c] sm:$0xf]
    %v356 = vld [vmem:[%s0 + $0x90] sm:$0xf]
    %v357 = vld [vmem:[%s0 + $0x94] sm:$0xf]
    %v358 = vld [vmem:[%s0 + $0x98] sm:$0xf]
    %v359 = vld [vmem:[%s0 + $0x9c] sm:$0xf]
    %v360 = vld [vmem:[%s0 + $0xa0] sm:$0xf]
    %v361 = vld [vmem:[%s0 + $0xa4] sm:$0xf]
    %v362 = vld [vmem:[%s0 + $0xa8] sm:$0xf]
    %v363 = vld [vmem:[%s0 + $0xac] sm:$0xf]
    %v364 = vld [vmem:[%s0 + $0xb0] sm:$0xf]
    %v365 = vld [vmem:[%s0 + $0xb4] sm:$0xf]
    %v366 = vld [vmem:[%s0 + $0xb8] sm:$0xf]
    %v367 = vld [vmem:[%s0 + $0xbc] sm:$0xf]
    %v368 = vld [vmem:[%s0 + $0xc0] sm:$0xf]
    %v369 = vld [vmem:[%s0 + $0xc4] sm:$0xf]
    %v370 = vld [vmem:[%s0 + $0xc8] sm:$0xf]
    %v371 = vld [vmem:[%s0 + $0xcc] sm:$0xf]
    %v372 = vld [vmem:[%s0 + $0xd0] sm:$0xf]
    %v373 = vld [vmem:[%s0 + $0xd4] sm:$0xf]
    %v374 = vld [vmem:[%s0 + $0xd8] sm:$0xf]
    %v375 = vld [vmem:[%s0 + $0xdc] sm:$0xf]
    %v376 = vld [vmem:[%s0 + $0xe0] sm:$0xf]
    %v377 = vld [vmem:[%s0 + $0xe4] sm:$0xf]
    %v378 = vld [vmem:[%s0 + $0xe8] sm:$0xf]
    %v379 = vld [vmem:[%s0 + $0xec] sm:$0xf]
    %v380 = vld [vmem:[%s0 + $0xf0] sm:$0xf]
    %v381 = vld [vmem:[%s0 + $0xf4] sm:$0xf]
    %v382 = vld [vmem:[%s0 + $0xf8] sm:$0xf]
    %v383 = vld [vmem:[%s0 + $0xfc] sm:$0xf]
    %v384 = vld [vmem:[#allocation2] sm:$0xff]
    %v385 = vld [vmem:[#allocation2 + $0x8] sm:$0xff]
    %v386 = vld [vmem:[#allocation2 + $0x10] sm:$0xff]
    %v387 = vld [vmem:[#allocation2 + $0x18] sm:$0xff]
    %v388 = vld [vmem:[#allocation2 + $0x20] sm:$0xff]
    %v389 = vld [vmem:[#allocation2 + $0x28] sm:$0xff]
    %v390 = vld [vmem:[#allocation2 + $0x30] sm:$0xff]
    %v391 = vld [vmem:[#allocation2 + $0x38] sm:$0xff]
    %v392 = vld [vmem:[#allocation2 + $0x40] sm:$0xff]
    %v393 = vld [vmem:[#allocation2 + $0x48] sm:$0xff]
    %v394 = vld [vmem:[#allocation2 + $0x50] sm:$0xff]
    %v395 = vld [vmem:[#allocation2 + $0x58] sm:$0xff]
    %v396 = vld [vmem:[#allocation2 + $0x60] sm:$0xff]
    %v397 = vld [vmem:[#allocation2 + $0x68] sm:$0xff]
    %v398 = vld [vmem:[#allocation2 + $0x70] sm:$0xff]
    %v399 = vld [vmem:[#allocation2 + $0x78] sm:$0xff]
    %v400 = vld [vmem:[#allocation2 + $0x80] sm:$0xff]
    %v401 = vld [vmem:[#allocation2 + $0x88] sm:$0xff]
    %v402 = vld [vmem:[#allocation2 + $0x90] sm:$0xff]
    %v403 = vld [vmem:[#allocation2 + $0x98] sm:$0xff]
    %v404 = vld [vmem:[#allocation2 + $0xa0] sm:$0xff]
    %v405 = vld [vmem:[#allocation2 + $0xa8] sm:$0xff]
    %v406 = vld [vmem:[#allocation2 + $0xb0] sm:$0xff]
    %v407 = vld [vmem:[#allocation2 + $0xb8] sm:$0xff]
    %v408 = vld [vmem:[#allocation2 + $0xc0] sm:$0xff]
    %v409 = vld [vmem:[#allocation2 + $0xc8] sm:$0xff]
    %v410 = vld [vmem:[#allocation2 + $0xd0] sm:$0xff]
    %v411 = vld [vmem:[#allocation2 + $0xd8] sm:$0xff]
    %v412 = vld [vmem:[#allocation2 + $0xe0] sm:$0xff]
    %v413 = vld [vmem:[#allocation2 + $0xe8] sm:$0xff]
    %v414 = vld [vmem:[#allocation2 + $0xf0] sm:$0xff]
    %v415 = vld [vmem:[#allocation2 + $0xf8] sm:$0xff]
    %v448 = vunpack.c.l.b16 %v384
    %v449 = vunpack.c.h.b16 %v384
    %v450 = vunpack.c.l.b16 %v385
    %v451 = vunpack.c.h.b16 %v385
    %v452 = vunpack.c.l.b16 %v386
    %v453 = vunpack.c.h.b16 %v386
    %v454 = vunpack.c.l.b16 %v387
    %v455 = vunpack.c.h.b16 %v387
    %v456 = vunpack.c.l.b16 %v388
    %v457 = vunpack.c.h.b16 %v388
    %v458 = vunpack.c.l.b16 %v389
    %v459 = vunpack.c.h.b16 %v389
    %v460 = vunpack.c.l.b16 %v390
    %v461 = vunpack.c.h.b16 %v390
    %v462 = vunpack.c.l.b16 %v391
    %v463 = vunpack.c.h.b16 %v391
    %v464 = vunpack.c.l.b16 %v392
    %v465 = vunpack.c.h.b16 %v392
    %v466 = vunpack.c.l.b16 %v393
    %v467 = vunpack.c.h.b16 %v393
    %v468 = vunpack.c.l.b16 %v394
    %v469 = vunpack.c.h.b16 %v394
    %v470 = vunpack.c.l.b16 %v395
    %v471 = vunpack.c.h.b16 %v395
    %v472 = vunpack.c.l.b16 %v396
    %v473 = vunpack.c.h.b16 %v396
    %v474 = vunpack.c.l.b16 %v397
    %v475 = vunpack.c.h.b16 %v397
    %v476 = vunpack.c.l.b16 %v398
    %v477 = vunpack.c.h.b16 %v398
    %v478 = vunpack.c.l.b16 %v399
    %v479 = vunpack.c.h.b16 %v399
    %v480 = vunpack.c.l.b16 %v400
    %v481 = vunpack.c.h.b16 %v400
    %v482 = vunpack.c.l.b16 %v401
    %v483 = vunpack.c.h.b16 %v401
    %v484 = vunpack.c.l.b16 %v402
    %v485 = vunpack.c.h.b16 %v402
    %v486 = vunpack.c.l.b16 %v403
    %v487 = vunpack.c.h.b16 %v403
    %v488 = vunpack.c.l.b16 %v404
    %v489 = vunpack.c.h.b16 %v404
    %v490 = vunpack.c.l.b16 %v405
    %v491 = vunpack.c.h.b16 %v405
    %v492 = vunpack.c.l.b16 %v406
    %v493 = vunpack.c.h.b16 %v406
    %v494 = vunpack.c.l.b16 %v407
    %v495 = vunpack.c.h.b16 %v407
    %v496 = vunpack.c.l.b16 %v408
    %v497 = vunpack.c.h.b16 %v408
    %v498 = vunpack.c.l.b16 %v409
    %v499 = vunpack.c.h.b16 %v409
    %v500 = vunpack.c.l.b16 %v410
    %v501 = vunpack.c.h.b16 %v410
    %v502 = vunpack.c.l.b16 %v411
    %v503 = vunpack.c.h.b16 %v411
    %v504 = vunpack.c.l.b16 %v412
    %v505 = vunpack.c.h.b16 %v412
    %v506 = vunpack.c.l.b16 %v413
    %v507 = vunpack.c.h.b16 %v413
    %v508 = vunpack.c.l.b16 %v414
    %v509 = vunpack.c.h.b16 %v414
    %v510 = vunpack.c.l.b16 %v415
    %v511 = vunpack.c.h.b16 %v415
    %v512 = vpack.c.b16 %v452, %v448
    %v513 = vpack.c.b16 %v453, %v449
    %v514 = vpack.c.b16 %v454, %v450
    %v515 = vpack.c.b16 %v455, %v451
    %v516 = vpack.c.b16 %v460, %v456
    %v517 = vpack.c.b16 %v461, %v457
    %v518 = vpack.c.b16 %v462, %v458
    %v519 = vpack.c.b16 %v463, %v459
    %v520 = vpack.c.b16 %v468, %v464
    %v521 = vpack.c.b16 %v469, %v465
    %v522 = vpack.c.b16 %v470, %v466
    %v523 = vpack.c.b16 %v471, %v467
    %v524 = vpack.c.b16 %v476, %v472
    %v525 = vpack.c.b16 %v477, %v473
    %v526 = vpack.c.b16 %v478, %v474
    %v527 = vpack.c.b16 %v479, %v475
    %v528 = vpack.c.b16 %v484, %v480
    %v529 = vpack.c.b16 %v485, %v481
    %v530 = vpack.c.b16 %v486, %v482
    %v531 = vpack.c.b16 %v487, %v483
    %v532 = vpack.c.b16 %v492, %v488
    %v533 = vpack.c.b16 %v493, %v489
    %v534 = vpack.c.b16 %v494, %v490
    %v535 = vpack.c.b16 %v495, %v491
    %v536 = vpack.c.b16 %v500, %v496
    %v537 = vpack.c.b16 %v501, %v497
    %v538 = vpack.c.b16 %v502, %v498
    %v539 = vpack.c.b16 %v503, %v499
    %v540 = vpack.c.b16 %v508, %v504
    %v541 = vpack.c.b16 %v509, %v505
    %v542 = vpack.c.b16 %v510, %v506
    %v543 = vpack.c.b16 %v511, %v507
    %v640 = vunpack.c.l.b16 %v320
    %v641 = vunpack.c.l.b16 %v321
    %v642 = vunpack.c.l.b16 %v322
    %v643 = vunpack.c.l.b16 %v323
    %v644 = vunpack.c.l.b16 %v324
    %v645 = vunpack.c.l.b16 %v325
    %v646 = vunpack.c.l.b16 %v326
    %v647 = vunpack.c.l.b16 %v327
    %v648 = vunpack.c.l.b16 %v328
    %v649 = vunpack.c.l.b16 %v329
    %v650 = vunpack.c.l.b16 %v330
    %v651 = vunpack.c.l.b16 %v331
    %v652 = vunpack.c.l.b16 %v332
    %v653 = vunpack.c.l.b16 %v333
    %v654 = vunpack.c.l.b16 %v334
    %v655 = vunpack.c.l.b16 %v335
    %v656 = vunpack.c.l.b16 %v336
    %v657 = vunpack.c.l.b16 %v337
    %v658 = vunpack.c.l.b16 %v338
    %v659 = vunpack.c.l.b16 %v339
    %v660 = vunpack.c.l.b16 %v340
    %v661 = vunpack.c.l.b16 %v341
    %v662 = vunpack.c.l.b16 %v342
    %v663 = vunpack.c.l.b16 %v343
    %v664 = vunpack.c.l.b16 %v344
    %v665 = vunpack.c.l.b16 %v345
    %v666 = vunpack.c.l.b16 %v346
    %v667 = vunpack.c.l.b16 %v347
    %v668 = vunpack.c.l.b16 %v348
    %v669 = vunpack.c.l.b16 %v349
    %v670 = vunpack.c.l.b16 %v350
    %v671 = vunpack.c.l.b16 %v351
    %v672 = vunpack.c.l.b16 %v352
    %v673 = vunpack.c.l.b16 %v353
    %v674 = vunpack.c.l.b16 %v354
    %v675 = vunpack.c.l.b16 %v355
    %v676 = vunpack.c.l.b16 %v356
    %v677 = vunpack.c.l.b16 %v357
    %v678 = vunpack.c.l.b16 %v358
    %v679 = vunpack.c.l.b16 %v359
    %v680 = vunpack.c.l.b16 %v360
    %v681 = vunpack.c.l.b16 %v361
    %v682 = vunpack.c.l.b16 %v362
    %v683 = vunpack.c.l.b16 %v363
    %v684 = vunpack.c.l.b16 %v364
    %v685 = vunpack.c.l.b16 %v365
    %v686 = vunpack.c.l.b16 %v366
    %v687 = vunpack.c.l.b16 %v367
    %v688 = vunpack.c.l.b16 %v368
    %v689 = vunpack.c.l.b16 %v369
    %v690 = vunpack.c.l.b16 %v370
    %v691 = vunpack.c.l.b16 %v371
    %v692 = vunpack.c.l.b16 %v372
    %v693 = vunpack.c.l.b16 %v373
    %v694 = vunpack.c.l.b16 %v374
    %v695 = vunpack.c.l.b16 %v375
    %v696 = vunpack.c.l.b16 %v376
    %v697 = vunpack.c.l.b16 %v377
    %v698 = vunpack.c.l.b16 %v378
    %v699 = vunpack.c.l.b16 %v379
    %v700 = vunpack.c.l.b16 %v380
    %v701 = vunpack.c.l.b16 %v381
    %v702 = vunpack.c.l.b16 %v382
    %v703 = vunpack.c.l.b16 %v383
    %v704 = vpack.c.b16 %v641, %v640
    %v705 = vpack.c.b16 %v643, %v642
    %v706 = vpack.c.b16 %v645, %v644
    %v707 = vpack.c.b16 %v647, %v646
    %v708 = vpack.c.b16 %v649, %v648
    %v709 = vpack.c.b16 %v651, %v650
    %v710 = vpack.c.b16 %v653, %v652
    %v711 = vpack.c.b16 %v655, %v654
    %v712 = vpack.c.b16 %v657, %v656
    %v713 = vpack.c.b16 %v659, %v658
    %v714 = vpack.c.b16 %v661, %v660
    %v715 = vpack.c.b16 %v663, %v662
    %v716 = vpack.c.b16 %v665, %v664
    %v717 = vpack.c.b16 %v667, %v666
    %v718 = vpack.c.b16 %v669, %v668
    %v719 = vpack.c.b16 %v671, %v670
    %v720 = vpack.c.b16 %v673, %v672
    %v721 = vpack.c.b16 %v675, %v674
    %v722 = vpack.c.b16 %v677, %v676
    %v723 = vpack.c.b16 %v679, %v678
    %v724 = vpack.c.b16 %v681, %v680
    %v725 = vpack.c.b16 %v683, %v682
    %v726 = vpack.c.b16 %v685, %v684
    %v727 = vpack.c.b16 %v687, %v686
    %v728 = vpack.c.b16 %v689, %v688
    %v729 = vpack.c.b16 %v691, %v690
    %v730 = vpack.c.b16 %v693, %v692
    %v731 = vpack.c.b16 %v695, %v694
    %v732 = vpack.c.b16 %v697, %v696
    %v733 = vpack.c.b16 %v699, %v698
    %v734 = vpack.c.b16 %v701, %v700
    %v735 = vpack.c.b16 %v703, %v702
    %768 = vmatprep.subr.bf16.mxu0 0
    %769 = vmatpush1.bf16.msra.mxu0 %v711
    %770 = vmatprep.subr.bf16.mxu0 0
    %771 = vmatpush1.bf16.msra.mxu0 %v710
    %772 = vmatprep.subr.bf16.mxu0 0
    %773 = vmatpush1.bf16.msra.mxu0 %v709
    %774 = vmatprep.subr.bf16.mxu0 0
    %775 = vmatpush1.bf16.msra.mxu0 %v708
    %776 = vmatprep.subr.bf16.mxu0 0
    %777 = vmatpush1.bf16.msra.mxu0 %v707
    %778 = vmatprep.subr.bf16.mxu0 0
    %779 = vmatpush1.bf16.msra.mxu0 %v706
    %780 = vmatprep.subr.bf16.mxu0 0
    %781 = vmatpush1.bf16.msra.mxu0 %v705
    %782 = vmatprep.subr.bf16.mxu0 0
    %783 = vmatpush1.bf16.msra.mxu0 %v704
    %784 = vmatprep.subr.bf16.mxu0 0
    %785 = vmatpush2.bf16.msra.mxu0 %v719
    %786 = vmatprep.subr.bf16.mxu0 0
    %787 = vmatpush2.bf16.msra.mxu0 %v718
    %788 = vmatprep.subr.bf16.mxu0 0
    %789 = vmatpush2.bf16.msra.mxu0 %v717
    %790 = vmatprep.subr.bf16.mxu0 0
    %791 = vmatpush2.bf16.msra.mxu0 %v716
    %792 = vmatprep.subr.bf16.mxu0 0
    %793 = vmatpush2.bf16.msra.mxu0 %v715
    %794 = vmatprep.subr.bf16.mxu0 0
    %795 = vmatpush2.bf16.msra.mxu0 %v714
    %796 = vmatprep.subr.bf16.mxu0 0
    %797 = vmatpush2.bf16.msra.mxu0 %v713
    %798 = vmatprep.subr.bf16.mxu0 0
    %799 = vmatpush2.bf16.msra.mxu0 %v712
    %800 = vmatprep.mubr.bf16.mxu0 %v513
    %801 = vmatmul.mubr.bf16.gmra.mxu0 %v512
    %v802 = vpop.f32.mrf.mxu0
    %v803 = vadd.f32 0.0, %v802
    %v804 = vpop.f32.mrf.mxu0
    %v805 = vpop.f32.mrf.mxu0
    %v806 = vadd.f32 0.0, %v805
    %v807 = vpop.f32.mrf.mxu0
    %808 = vmatprep.mubr.bf16.mxu0 %v517
    %809 = vmatmul.mubr.bf16.gmra.mxu0 %v516
    %v810 = vpop.f32.mrf.mxu0
    %v811 = vadd.f32 0.0, %v810
    %v812 = vpop.f32.mrf.mxu0
    %v813 = vpop.f32.mrf.mxu0
    %v814 = vadd.f32 0.0, %v813
    %v815 = vpop.f32.mrf.mxu0
    %816 = vmatprep.mubr.bf16.mxu0 %v521
    %817 = vmatmul.mubr.bf16.gmra.mxu0 %v520
    %v818 = vpop.f32.mrf.mxu0
    %v819 = vadd.f32 0.0, %v818
    %v820 = vpop.f32.mrf.mxu0
    %v821 = vpop.f32.mrf.mxu0
    %v822 = vadd.f32 0.0, %v821
    %v823 = vpop.f32.mrf.mxu0
    %824 = vmatprep.mubr.bf16.mxu0 %v525
    %825 = vmatmul.mubr.bf16.gmra.mxu0 %v524
    %v826 = vpop.f32.mrf.mxu0
    %v827 = vadd.f32 0.0, %v826
    %v828 = vpop.f32.mrf.mxu0
    %v829 = vpop.f32.mrf.mxu0
    %v830 = vadd.f32 0.0, %v829
    %v831 = vpop.f32.mrf.mxu0
    %832 = vmatprep.mubr.bf16.mxu0 %v529
    %833 = vmatmul.mubr.bf16.gmra.mxu0 %v528
    %v834 = vpop.f32.mrf.mxu0
    %v835 = vadd.f32 0.0, %v834
    %v836 = vpop.f32.mrf.mxu0
    %v837 = vpop.f32.mrf.mxu0
    %v838 = vadd.f32 0.0, %v837
    %v839 = vpop.f32.mrf.mxu0
    %840 = vmatprep.mubr.bf16.mxu0 %v533
    %841 = vmatmul.mubr.bf16.gmra.mxu0 %v532
    %v842 = vpop.f32.mrf.mxu0
    %v843 = vadd.f32 0.0, %v842
    %v844 = vpop.f32.mrf.mxu0
    %v845 = vpop.f32.mrf.mxu0
    %v846 = vadd.f32 0.0, %v845
    %v847 = vpop.f32.mrf.mxu0
    %848 = vmatprep.mubr.bf16.mxu0 %v537
    %849 = vmatmul.mubr.bf16.gmra.mxu0 %v536
    %v850 = vpop.f32.mrf.mxu0
    %v851 = vadd.f32 0.0, %v850
    %v852 = vpop.f32.mrf.mxu0
    %v853 = vpop.f32.mrf.mxu0
    %v854 = vadd.f32 0.0, %v853
    %v855 = vpop.f32.mrf.mxu0
    %856 = vmatprep.mubr.bf16.mxu0 %v541
    %857 = vmatmul.mubr.bf16.gmra.mxu0 %v540
    %v858 = vpop.f32.mrf.mxu0
    %v859 = vadd.f32 0.0, %v858
    %v860 = vpop.f32.mrf.mxu0
    %v861 = vpop.f32.mrf.mxu0
    %v862 = vadd.f32 0.0, %v861
    %v863 = vpop.f32.mrf.mxu0
    %864 = vdwg.mxu0
    %865 = vmatprep.subr.bf16.mxu0 0
    %866 = vmatpush1.bf16.msra.mxu0 %v727
    %867 = vmatprep.subr.bf16.mxu0 0
    %868 = vmatpush1.bf16.msra.mxu0 %v726
    %869 = vmatprep.subr.bf16.mxu0 0
    %870 = vmatpush1.bf16.msra.mxu0 %v725
    %871 = vmatprep.subr.bf16.mxu0 0
    %872 = vmatpush1.bf16.msra.mxu0 %v724
    %873 = vmatprep.subr.bf16.mxu0 0
    %874 = vmatpush1.bf16.msra.mxu0 %v723
    %875 = vmatprep.subr.bf16.mxu0 0
    %876 = vmatpush1.bf16.msra.mxu0 %v722
    %877 = vmatprep.subr.bf16.mxu0 0
    %878 = vmatpush1.bf16.msra.mxu0 %v721
    %879 = vmatprep.subr.bf16.mxu0 0
    %880 = vmatpush1.bf16.msra.mxu0 %v720
    %881 = vmatprep.subr.bf16.mxu0 0
    %882 = vmatpush2.bf16.msra.mxu0 %v735
    %883 = vmatprep.subr.bf16.mxu0 0
    %884 = vmatpush2.bf16.msra.mxu0 %v734
    %885 = vmatprep.subr.bf16.mxu0 0
    %886 = vmatpush2.bf16.msra.mxu0 %v733
    %887 = vmatprep.subr.bf16.mxu0 0
    %888 = vmatpush2.bf16.msra.mxu0 %v732
    %889 = vmatprep.subr.bf16.mxu0 0
    %890 = vmatpush2.bf16.msra.mxu0 %v731
    %891 = vmatprep.subr.bf16.mxu0 0
    %892 = vmatpush2.bf16.msra.mxu0 %v730
    %893 = vmatprep.subr.bf16.mxu0 0
    %894 = vmatpush2.bf16.msra.mxu0 %v729
    %895 = vmatprep.subr.bf16.mxu0 0
    %896 = vmatpush2.bf16.msra.mxu0 %v728
    %897 = vmatprep.mubr.bf16.mxu0 %v515
    %898 = vmatmul.mubr.bf16.gmra.mxu0 %v514
    %v899 = vpop.f32.mrf.mxu0
    %v900 = vadd.f32 %v803, %v899
    %v901 = vpop.f32.mrf.mxu0
    %v902 = vpop.f32.mrf.mxu0
    %v903 = vadd.f32 %v806, %v902
    %v904 = vpop.f32.mrf.mxu0
    %905 = vmatprep.mubr.bf16.mxu0 %v519
    %906 = vmatmul.mubr.bf16.gmra.mxu0 %v518
    %v907 = vpop.f32.mrf.mxu0
    %v908 = vadd.f32 %v811, %v907
    %v909 = vpop.f32.mrf.mxu0
    %v910 = vpop.f32.mrf.mxu0
    %v911 = vadd.f32 %v814, %v910
    %v912 = vpop.f32.mrf.mxu0
    %913 = vmatprep.mubr.bf16.mxu0 %v523
    %914 = vmatmul.mubr.bf16.gmra.mxu0 %v522
    %v915 = vpop.f32.mrf.mxu0
    %v916 = vadd.f32 %v819, %v915
    %v917 = vpop.f32.mrf.mxu0
    %v918 = vpop.f32.mrf.mxu0
    %v919 = vadd.f32 %v822, %v918
    %v920 = vpop.f32.mrf.mxu0
    %921 = vmatprep.mubr.bf16.mxu0 %v527
    %922 = vmatmul.mubr.bf16.gmra.mxu0 %v526
    %v923 = vpop.f32.mrf.mxu0
    %v924 = vadd.f32 %v827, %v923
    %v925 = vpop.f32.mrf.mxu0
    %v926 = vpop.f32.mrf.mxu0
    %v927 = vadd.f32 %v830, %v926
    %v928 = vpop.f32.mrf.mxu0
    %929 = vmatprep.mubr.bf16.mxu0 %v531
    %930 = vmatmul.mubr.bf16.gmra.mxu0 %v530
    %v931 = vpop.f32.mrf.mxu0
    %v932 = vadd.f32 %v835, %v931
    %v933 = vpop.f32.mrf.mxu0
    %v934 = vpop.f32.mrf.mxu0
    %v935 = vadd.f32 %v838, %v934
    %v936 = vpop.f32.mrf.mxu0
    %937 = vmatprep.mubr.bf16.mxu0 %v535
    %938 = vmatmul.mubr.bf16.gmra.mxu0 %v534
    %v939 = vpop.f32.mrf.mxu0
    %v940 = vadd.f32 %v843, %v939
    %v941 = vpop.f32.mrf.mxu0
    %v942 = vpop.f32.mrf.mxu0
    %v943 = vadd.f32 %v846, %v942
    %v944 = vpop.f32.mrf.mxu0
    %945 = vmatprep.mubr.bf16.mxu0 %v539
    %946 = vmatmul.mubr.bf16.gmra.mxu0 %v538
    %v947 = vpop.f32.mrf.mxu0
    %v948 = vadd.f32 %v851, %v947
    %v949 = vpop.f32.mrf.mxu0
    %v950 = vpop.f32.mrf.mxu0
    %v951 = vadd.f32 %v854, %v950
    %v952 = vpop.f32.mrf.mxu0
    %953 = vmatprep.mubr.bf16.mxu0 %v543
    %954 = vmatmul.mubr.bf16.gmra.mxu0 %v542
    %v955 = vpop.f32.mrf.mxu0
    %v956 = vadd.f32 %v859, %v955
    %v957 = vpop.f32.mrf.mxu0
    %v958 = vpop.f32.mrf.mxu0
    %v959 = vadd.f32 %v862, %v958
    %v960 = vpop.f32.mrf.mxu0
    %961 = vdwg.mxu0
    %v962 = vpack.c.bf16 %v903, %v900
    %v963 = vpack.c.bf16 %v911, %v908
    %v964 = vpack.c.bf16 %v919, %v916
    %v965 = vpack.c.bf16 %v927, %v924
    %v966 = vpack.c.bf16 %v935, %v932
    %v967 = vpack.c.bf16 %v943, %v940
    %v968 = vpack.c.bf16 %v951, %v948
    %v969 = vpack.c.bf16 %v959, %v956
    %v970 = vld [vmem:[#allocation4] sm:$0x3]
    %s971 = scalar_lea.vmem [#allocation2], 256
    %v972 = vld [vmem:[%s971] sm:$0xff]
    %v973 = vld [vmem:[%s971 + $0x8] sm:$0xff]
    %v974 = vld [vmem:[%s971 + $0x10] sm:$0xff]
    %v975 = vld [vmem:[%s971 + $0x18] sm:$0xff]
    %v976 = vld [vmem:[%s971 + $0x20] sm:$0xff]
    %v977 = vld [vmem:[%s971 + $0x28] sm:$0xff]
    %v978 = vld [vmem:[%s971 + $0x30] sm:$0xff]
    %v979 = vld [vmem:[%s971 + $0x38] sm:$0xff]
    %v980 = vld [vmem:[%s971 + $0x40] sm:$0xff]
    %v981 = vld [vmem:[%s971 + $0x48] sm:$0xff]
    %v982 = vld [vmem:[%s971 + $0x50] sm:$0xff]
    %v983 = vld [vmem:[%s971 + $0x58] sm:$0xff]
    %v984 = vld [vmem:[%s971 + $0x60] sm:$0xff]
    %v985 = vld [vmem:[%s971 + $0x68] sm:$0xff]
    %v986 = vld [vmem:[%s971 + $0x70] sm:$0xff]
    %v987 = vld [vmem:[%s971 + $0x78] sm:$0xff]
    %v988 = vld [vmem:[%s971 + $0x80] sm:$0xff]
    %v989 = vld [vmem:[%s971 + $0x88] sm:$0xff]
    %v990 = vld [vmem:[%s971 + $0x90] sm:$0xff]
    %v991 = vld [vmem:[%s971 + $0x98] sm:$0xff]
    %v992 = vld [vmem:[%s971 + $0xa0] sm:$0xff]
    %v993 = vld [vmem:[%s971 + $0xa8] sm:$0xff]
    %v994 = vld [vmem:[%s971 + $0xb0] sm:$0xff]
    %v995 = vld [vmem:[%s971 + $0xb8] sm:$0xff]
    %v996 = vld [vmem:[%s971 + $0xc0] sm:$0xff]
    %v997 = vld [vmem:[%s971 + $0xc8] sm:$0xff]
    %v998 = vld [vmem:[%s971 + $0xd0] sm:$0xff]
    %v999 = vld [vmem:[%s971 + $0xd8] sm:$0xff]
    %v1000 = vld [vmem:[%s971 + $0xe0] sm:$0xff]
    %v1001 = vld [vmem:[%s971 + $0xe8] sm:$0xff]
    %v1002 = vld [vmem:[%s971 + $0xf0] sm:$0xff]
    %v1003 = vld [vmem:[%s971 + $0xf8] sm:$0xff]
    %v1036 = vunpack.c.l.b16 %v972
    %v1037 = vunpack.c.h.b16 %v972
    %v1038 = vunpack.c.l.b16 %v973
    %v1039 = vunpack.c.h.b16 %v973
    %v1040 = vunpack.c.l.b16 %v974
    %v1041 = vunpack.c.h.b16 %v974
    %v1042 = vunpack.c.l.b16 %v975
    %v1043 = vunpack.c.h.b16 %v975
    %v1044 = vunpack.c.l.b16 %v976
    %v1045 = vunpack.c.h.b16 %v976
    %v1046 = vunpack.c.l.b16 %v977
    %v1047 = vunpack.c.h.b16 %v977
    %v1048 = vunpack.c.l.b16 %v978
    %v1049 = vunpack.c.h.b16 %v978
    %v1050 = vunpack.c.l.b16 %v979
    %v1051 = vunpack.c.h.b16 %v979
    %v1052 = vunpack.c.l.b16 %v980
    %v1053 = vunpack.c.h.b16 %v980
    %v1054 = vunpack.c.l.b16 %v981
    %v1055 = vunpack.c.h.b16 %v981
    %v1056 = vunpack.c.l.b16 %v982
    %v1057 = vunpack.c.h.b16 %v982
    %v1058 = vunpack.c.l.b16 %v983
    %v1059 = vunpack.c.h.b16 %v983
    %v1060 = vunpack.c.l.b16 %v984
    %v1061 = vunpack.c.h.b16 %v984
    %v1062 = vunpack.c.l.b16 %v985
    %v1063 = vunpack.c.h.b16 %v985
    %v1064 = vunpack.c.l.b16 %v986
    %v1065 = vunpack.c.h.b16 %v986
    %v1066 = vunpack.c.l.b16 %v987
    %v1067 = vunpack.c.h.b16 %v987
    %v1068 = vunpack.c.l.b16 %v988
    %v1069 = vunpack.c.h.b16 %v988
    %v1070 = vunpack.c.l.b16 %v989
    %v1071 = vunpack.c.h.b16 %v989
    %v1072 = vunpack.c.l.b16 %v990
    %v1073 = vunpack.c.h.b16 %v990
    %v1074 = vunpack.c.l.b16 %v991
    %v1075 = vunpack.c.h.b16 %v991
    %v1076 = vunpack.c.l.b16 %v992
    %v1077 = vunpack.c.h.b16 %v992
    %v1078 = vunpack.c.l.b16 %v993
    %v1079 = vunpack.c.h.b16 %v993
    %v1080 = vunpack.c.l.b16 %v994
    %v1081 = vunpack.c.h.b16 %v994
    %v1082 = vunpack.c.l.b16 %v995
    %v1083 = vunpack.c.h.b16 %v995
    %v1084 = vunpack.c.l.b16 %v996
    %v1085 = vunpack.c.h.b16 %v996
    %v1086 = vunpack.c.l.b16 %v997
    %v1087 = vunpack.c.h.b16 %v997
    %v1088 = vunpack.c.l.b16 %v998
    %v1089 = vunpack.c.h.b16 %v998
    %v1090 = vunpack.c.l.b16 %v999
    %v1091 = vunpack.c.h.b16 %v999
    %v1092 = vunpack.c.l.b16 %v1000
    %v1093 = vunpack.c.h.b16 %v1000
    %v1094 = vunpack.c.l.b16 %v1001
    %v1095 = vunpack.c.h.b16 %v1001
    %v1096 = vunpack.c.l.b16 %v1002
    %v1097 = vunpack.c.h.b16 %v1002
    %v1098 = vunpack.c.l.b16 %v1003
    %v1099 = vunpack.c.h.b16 %v1003
    %v1100 = vpack.c.b16 %v1040, %v1036
    %v1101 = vpack.c.b16 %v1041, %v1037
    %v1102 = vpack.c.b16 %v1042, %v1038
    %v1103 = vpack.c.b16 %v1043, %v1039
    %v1104 = vpack.c.b16 %v1048, %v1044
    %v1105 = vpack.c.b16 %v1049, %v1045
    %v1106 = vpack.c.b16 %v1050, %v1046
    %v1107 = vpack.c.b16 %v1051, %v1047
    %v1108 = vpack.c.b16 %v1056, %v1052
    %v1109 = vpack.c.b16 %v1057, %v1053
    %v1110 = vpack.c.b16 %v1058, %v1054
    %v1111 = vpack.c.b16 %v1059, %v1055
    %v1112 = vpack.c.b16 %v1064, %v1060
    %v1113 = vpack.c.b16 %v1065, %v1061
    %v1114 = vpack.c.b16 %v1066, %v1062
    %v1115 = vpack.c.b16 %v1067, %v1063
    %v1116 = vpack.c.b16 %v1072, %v1068
    %v1117 = vpack.c.b16 %v1073, %v1069
    %v1118 = vpack.c.b16 %v1074, %v1070
    %v1119 = vpack.c.b16 %v1075, %v1071
    %v1120 = vpack.c.b16 %v1080, %v1076
    %v1121 = vpack.c.b16 %v1081, %v1077
    %v1122 = vpack.c.b16 %v1082, %v1078
    %v1123 = vpack.c.b16 %v1083, %v1079
    %v1124 = vpack.c.b16 %v1088, %v1084
    %v1125 = vpack.c.b16 %v1089, %v1085
    %v1126 = vpack.c.b16 %v1090, %v1086
    %v1127 = vpack.c.b16 %v1091, %v1087
    %v1128 = vpack.c.b16 %v1096, %v1092
    %v1129 = vpack.c.b16 %v1097, %v1093
    %v1130 = vpack.c.b16 %v1098, %v1094
    %v1131 = vpack.c.b16 %v1099, %v1095
    %1164 = vmatprep.subr.bf16.mxu0 0
    %1165 = vmatpush1.bf16.msra.mxu0 %v711
    %1166 = vmatprep.subr.bf16.mxu0 0
    %1167 = vmatpush1.bf16.msra.mxu0 %v710
    %1168 = vmatprep.subr.bf16.mxu0 0
    %1169 = vmatpush1.bf16.msra.mxu0 %v709
    %1170 = vmatprep.subr.bf16.mxu0 0
    %1171 = vmatpush1.bf16.msra.mxu0 %v708
    %1172 = vmatprep.subr.bf16.mxu0 0
    %1173 = vmatpush1.bf16.msra.mxu0 %v707
    %1174 = vmatprep.subr.bf16.mxu0 0
    %1175 = vmatpush1.bf16.msra.mxu0 %v706
    %1176 = vmatprep.subr.bf16.mxu0 0
    %1177 = vmatpush1.bf16.msra.mxu0 %v705
    %1178 = vmatprep.subr.bf16.mxu0 0
    %1179 = vmatpush1.bf16.msra.mxu0 %v704
    %1180 = vmatprep.subr.bf16.mxu0 0
    %1181 = vmatpush2.bf16.msra.mxu0 %v719
    %1182 = vmatprep.subr.bf16.mxu0 0
    %1183 = vmatpush2.bf16.msra.mxu0 %v718
    %1184 = vmatprep.subr.bf16.mxu0 0
    %1185 = vmatpush2.bf16.msra.mxu0 %v717
    %1186 = vmatprep.subr.bf16.mxu0 0
    %1187 = vmatpush2.bf16.msra.mxu0 %v716
    %1188 = vmatprep.subr.bf16.mxu0 0
    %1189 = vmatpush2.bf16.msra.mxu0 %v715
    %1190 = vmatprep.subr.bf16.mxu0 0
    %1191 = vmatpush2.bf16.msra.mxu0 %v714
    %1192 = vmatprep.subr.bf16.mxu0 0
    %1193 = vmatpush2.bf16.msra.mxu0 %v713
    %1194 = vmatprep.subr.bf16.mxu0 0
    %1195 = vmatpush2.bf16.msra.mxu0 %v712
    %1196 = vmatprep.mubr.bf16.mxu0 %v1101
    %1197 = vmatmul.mubr.bf16.gmra.mxu0 %v1100
    %v1198 = vpop.f32.mrf.mxu0
    %v1199 = vadd.f32 0.0, %v1198
    %v1200 = vpop.f32.mrf.mxu0
    %v1201 = vpop.f32.mrf.mxu0
    %v1202 = vadd.f32 0.0, %v1201
    %v1203 = vpop.f32.mrf.mxu0
    %1204 = vmatprep.mubr.bf16.mxu0 %v1105
    %1205 = vmatmul.mubr.bf16.gmra.mxu0 %v1104
    %v1206 = vpop.f32.mrf.mxu0
    %v1207 = vadd.f32 0.0, %v1206
    %v1208 = vpop.f32.mrf.mxu0
    %v1209 = vpop.f32.mrf.mxu0
    %v1210 = vadd.f32 0.0, %v1209
    %v1211 = vpop.f32.mrf.mxu0
    %1212 = vmatprep.mubr.bf16.mxu0 %v1109
    %1213 = vmatmul.mubr.bf16.gmra.mxu0 %v1108
    %v1214 = vpop.f32.mrf.mxu0
    %v1215 = vadd.f32 0.0, %v1214
    %v1216 = vpop.f32.mrf.mxu0
    %v1217 = vpop.f32.mrf.mxu0
    %v1218 = vadd.f32 0.0, %v1217
    %v1219 = vpop.f32.mrf.mxu0
    %1220 = vmatprep.mubr.bf16.mxu0 %v1113
    %1221 = vmatmul.mubr.bf16.gmra.mxu0 %v1112
    %v1222 = vpop.f32.mrf.mxu0
    %v1223 = vadd.f32 0.0, %v1222
    %v1224 = vpop.f32.mrf.mxu0
    %v1225 = vpop.f32.mrf.mxu0
    %v1226 = vadd.f32 0.0, %v1225
    %v1227 = vpop.f32.mrf.mxu0
    %1228 = vmatprep.mubr.bf16.mxu0 %v1117
    %1229 = vmatmul.mubr.bf16.gmra.mxu0 %v1116
    %v1230 = vpop.f32.mrf.mxu0
    %v1231 = vadd.f32 0.0, %v1230
    %v1232 = vpop.f32.mrf.mxu0
    %v1233 = vpop.f32.mrf.mxu0
    %v1234 = vadd.f32 0.0, %v1233
    %v1235 = vpop.f32.mrf.mxu0
    %1236 = vmatprep.mubr.bf16.mxu0 %v1121
    %1237 = vmatmul.mubr.bf16.gmra.mxu0 %v1120
    %v1238 = vpop.f32.mrf.mxu0
    %v1239 = vadd.f32 0.0, %v1238
    %v1240 = vpop.f32.mrf.mxu0
    %v1241 = vpop.f32.mrf.mxu0
    %v1242 = vadd.f32 0.0, %v1241
    %v1243 = vpop.f32.mrf.mxu0
    %1244 = vmatprep.mubr.bf16.mxu0 %v1125
    %1245 = vmatmul.mubr.bf16.gmra.mxu0 %v1124
    %v1246 = vpop.f32.mrf.mxu0
    %v1247 = vadd.f32 0.0, %v1246
    %v1248 = vpop.f32.mrf.mxu0
    %v1249 = vpop.f32.mrf.mxu0
    %v1250 = vadd.f32 0.0, %v1249
    %v1251 = vpop.f32.mrf.mxu0
    %1252 = vmatprep.mubr.bf16.mxu0 %v1129
    %1253 = vmatmul.mubr.bf16.gmra.mxu0 %v1128
    %v1254 = vpop.f32.mrf.mxu0
    %v1255 = vadd.f32 0.0, %v1254
    %v1256 = vpop.f32.mrf.mxu0
    %v1257 = vpop.f32.mrf.mxu0
    %v1258 = vadd.f32 0.0, %v1257
    %v1259 = vpop.f32.mrf.mxu0
    %1260 = vdwg.mxu0
    %1261 = vmatprep.subr.bf16.mxu0 0
    %1262 = vmatpush1.bf16.msra.mxu0 %v727
    %1263 = vmatprep.subr.bf16.mxu0 0
    %1264 = vmatpush1.bf16.msra.mxu0 %v726
    %1265 = vmatprep.subr.bf16.mxu0 0
    %1266 = vmatpush1.bf16.msra.mxu0 %v725
    %1267 = vmatprep.subr.bf16.mxu0 0
    %1268 = vmatpush1.bf16.msra.mxu0 %v724
    %1269 = vmatprep.subr.bf16.mxu0 0
    %1270 = vmatpush1.bf16.msra.mxu0 %v723
    %1271 = vmatprep.subr.bf16.mxu0 0
    %1272 = vmatpush1.bf16.msra.mxu0 %v722
    %1273 = vmatprep.subr.bf16.mxu0 0
    %1274 = vmatpush1.bf16.msra.mxu0 %v721
    %1275 = vmatprep.subr.bf16.mxu0 0
    %1276 = vmatpush1.bf16.msra.mxu0 %v720
    %1277 = vmatprep.subr.bf16.mxu0 0
    %1278 = vmatpush2.bf16.msra.mxu0 %v735
    %1279 = vmatprep.subr.bf16.mxu0 0
    %1280 = vmatpush2.bf16.msra.mxu0 %v734
    %1281 = vmatprep.subr.bf16.mxu0 0
    %1282 = vmatpush2.bf16.msra.mxu0 %v733
    %1283 = vmatprep.subr.bf16.mxu0 0
    %1284 = vmatpush2.bf16.msra.mxu0 %v732
    %1285 = vmatprep.subr.bf16.mxu0 0
    %1286 = vmatpush2.bf16.msra.mxu0 %v731
    %1287 = vmatprep.subr.bf16.mxu0 0
    %1288 = vmatpush2.bf16.msra.mxu0 %v730
    %1289 = vmatprep.subr.bf16.mxu0 0
    %1290 = vmatpush2.bf16.msra.mxu0 %v729
    %1291 = vmatprep.subr.bf16.mxu0 0
    %1292 = vmatpush2.bf16.msra.mxu0 %v728
    %1293 = vmatprep.mubr.bf16.mxu0 %v1103
    %1294 = vmatmul.mubr.bf16.gmra.mxu0 %v1102
    %v1295 = vpop.f32.mrf.mxu0
    %v1296 = vadd.f32 %v1199, %v1295
    %v1297 = vpop.f32.mrf.mxu0
    %v1298 = vpop.f32.mrf.mxu0
    %v1299 = vadd.f32 %v1202, %v1298
    %v1300 = vpop.f32.mrf.mxu0
    %1301 = vmatprep.mubr.bf16.mxu0 %v1107
    %1302 = vmatmul.mubr.bf16.gmra.mxu0 %v1106
    %v1303 = vpop.f32.mrf.mxu0
    %v1304 = vadd.f32 %v1207, %v1303
    %v1305 = vpop.f32.mrf.mxu0
    %v1306 = vpop.f32.mrf.mxu0
    %v1307 = vadd.f32 %v1210, %v1306
    %v1308 = vpop.f32.mrf.mxu0
    %1309 = vmatprep.mubr.bf16.mxu0 %v1111
    %1310 = vmatmul.mubr.bf16.gmra.mxu0 %v1110
    %v1311 = vpop.f32.mrf.mxu0
    %v1312 = vadd.f32 %v1215, %v1311
    %v1313 = vpop.f32.mrf.mxu0
    %v1314 = vpop.f32.mrf.mxu0
    %v1315 = vadd.f32 %v1218, %v1314
    %v1316 = vpop.f32.mrf.mxu0
    %1317 = vmatprep.mubr.bf16.mxu0 %v1115
    %1318 = vmatmul.mubr.bf16.gmra.mxu0 %v1114
    %v1319 = vpop.f32.mrf.mxu0
    %v1320 = vadd.f32 %v1223, %v1319
    %v1321 = vpop.f32.mrf.mxu0
    %v1322 = vpop.f32.mrf.mxu0
    %v1323 = vadd.f32 %v1226, %v1322
    %v1324 = vpop.f32.mrf.mxu0
    %1325 = vmatprep.mubr.bf16.mxu0 %v1119
    %1326 = vmatmul.mubr.bf16.gmra.mxu0 %v1118
    %v1327 = vpop.f32.mrf.mxu0
    %v1328 = vadd.f32 %v1231, %v1327
    %v1329 = vpop.f32.mrf.mxu0
    %v1330 = vpop.f32.mrf.mxu0
    %v1331 = vadd.f32 %v1234, %v1330
    %v1332 = vpop.f32.mrf.mxu0
    %1333 = vmatprep.mubr.bf16.mxu0 %v1123
    %1334 = vmatmul.mubr.bf16.gmra.mxu0 %v1122
    %v1335 = vpop.f32.mrf.mxu0
    %v1336 = vadd.f32 %v1239, %v1335
    %v1337 = vpop.f32.mrf.mxu0
    %v1338 = vpop.f32.mrf.mxu0
    %v1339 = vadd.f32 %v1242, %v1338
    %v1340 = vpop.f32.mrf.mxu0
    %1341 = vmatprep.mubr.bf16.mxu0 %v1127
    %1342 = vmatmul.mubr.bf16.gmra.mxu0 %v1126
    %v1343 = vpop.f32.mrf.mxu0
    %v1344 = vadd.f32 %v1247, %v1343
    %v1345 = vpop.f32.mrf.mxu0
    %v1346 = vpop.f32.mrf.mxu0
    %v1347 = vadd.f32 %v1250, %v1346
    %v1348 = vpop.f32.mrf.mxu0
    %1349 = vmatprep.mubr.bf16.mxu0 %v1131
    %1350 = vmatmul.mubr.bf16.gmra.mxu0 %v1130
    %v1351 = vpop.f32.mrf.mxu0
    %v1352 = vadd.f32 %v1255, %v1351
    %v1353 = vpop.f32.mrf.mxu0
    %v1354 = vpop.f32.mrf.mxu0
    %v1355 = vadd.f32 %v1258, %v1354
    %v1356 = vpop.f32.mrf.mxu0
    %1357 = vdwg.mxu0
    %v1358 = vpack.c.bf16 %v1299, %v1296
    %v1359 = vpack.c.bf16 %v1307, %v1304
    %v1360 = vpack.c.bf16 %v1315, %v1312
    %v1361 = vpack.c.bf16 %v1323, %v1320
    %v1362 = vpack.c.bf16 %v1331, %v1328
    %v1363 = vpack.c.bf16 %v1339, %v1336
    %v1364 = vpack.c.bf16 %v1347, %v1344
    %v1365 = vpack.c.bf16 %v1355, %v1352
    %s1366 = scalar_lea.vmem [#allocation4], 2
    %v1367 = vld [vmem:[%s1366] sm:$0x3]
    %vm1368 = vcmask 31744
    %v1370 = vsel %vm1368, %v1358, 0
    %v1373 = vsel %vm1368, %v1359, 0
    %v1376 = vsel %vm1368, %v1360, 0
    %v1379 = vsel %vm1368, %v1361, 0
    %v1382 = vsel %vm1368, %v1362, 0
    %v1385 = vsel %vm1368, %v1363, 0
    %v1388 = vsel %vm1368, %v1364, 0
    %v1391 = vsel %vm1368, %v1365, 0
    %vm1393 = vcmask 1041408
    %v1395 = vsel %vm1393, %v1367, 0
    %1397 = vmatprep.subr.bf16.mxu0 0
    %1398 = vmatpush1.bf16.msra.mxu0 0
    %1399 = vmatprep.subr.bf16.mxu0 0
    %1400 = vmatpush1.bf16.msra.mxu0 0
    %1401 = vmatprep.subr.bf16.mxu0 0
    %1402 = vmatpush1.bf16.msra.mxu0 0
    %1403 = vmatprep.subr.bf16.mxu0 0
    %1404 = vmatpush1.bf16.msra.mxu0 0
    %1405 = vmatprep.subr.bf16.mxu0 0
    %1406 = vmatpush1.bf16.msra.mxu0 0
    %1407 = vmatprep.subr.bf16.mxu0 0
    %1408 = vmatpush1.bf16.msra.mxu0 0
    %1409 = vmatprep.subr.bf16.mxu0 0
    %1410 = vmatpush1.bf16.msra.mxu0 0
    %1411 = vmatprep.subr.bf16.mxu0 0
    %1412 = vmatpush1.bf16.msra.mxu0 %v1395
    %1413 = vmatprep.subr.bf16.mxu0 0
    %1414 = vmatpush2.bf16.msra.mxu0 0
    %1415 = vmatprep.subr.bf16.mxu0 0
    %1416 = vmatpush2.bf16.msra.mxu0 0
    %1417 = vmatprep.subr.bf16.mxu0 0
    %1418 = vmatpush2.bf16.msra.mxu0 0
    %1419 = vmatprep.subr.bf16.mxu0 0
    %1420 = vmatpush2.bf16.msra.mxu0 0
    %1421 = vmatprep.subr.bf16.mxu0 0
    %1422 = vmatpush2.bf16.msra.mxu0 0
    %1423 = vmatprep.subr.bf16.mxu0 0
    %1424 = vmatpush2.bf16.msra.mxu0 0
    %1425 = vmatprep.subr.bf16.mxu0 0
    %1426 = vmatpush2.bf16.msra.mxu0 0
    %1427 = vmatprep.subr.bf16.mxu0 0
    %1428 = vmatpush2.bf16.msra.mxu0 0
    %1429 = vmatprep.mubr.bf16.mxu0 0
    %1430 = vmatmul.mubr.bf16.gmra.mxu0 %v1370
    %v1431 = vpop.f32.mrf.mxu0
    %v1432 = vadd.f32 0.0, %v1431
    %v1433 = vpop.f32.mrf.mxu0
    %v1434 = vpop.f32.mrf.mxu0
    %v1435 = vadd.f32 0.0, %v1434
    %v1436 = vpop.f32.mrf.mxu0
    %1437 = vmatprep.mubr.bf16.mxu0 0
    %1438 = vmatmul.mubr.bf16.gmra.mxu0 %v1373
    %v1439 = vpop.f32.mrf.mxu0
    %v1440 = vadd.f32 0.0, %v1439
    %v1441 = vpop.f32.mrf.mxu0
    %v1442 = vpop.f32.mrf.mxu0
    %v1443 = vadd.f32 0.0, %v1442
    %v1444 = vpop.f32.mrf.mxu0
    %1445 = vmatprep.mubr.bf16.mxu0 0
    %1446 = vmatmul.mubr.bf16.gmra.mxu0 %v1376
    %v1447 = vpop.f32.mrf.mxu0
    %v1448 = vadd.f32 0.0, %v1447
    %v1449 = vpop.f32.mrf.mxu0
    %v1450 = vpop.f32.mrf.mxu0
    %v1451 = vadd.f32 0.0, %v1450
    %v1452 = vpop.f32.mrf.mxu0
    %1453 = vmatprep.mubr.bf16.mxu0 0
    %1454 = vmatmul.mubr.bf16.gmra.mxu0 %v1379
    %v1455 = vpop.f32.mrf.mxu0
    %v1456 = vadd.f32 0.0, %v1455
    %v1457 = vpop.f32.mrf.mxu0
    %v1458 = vpop.f32.mrf.mxu0
    %v1459 = vadd.f32 0.0, %v1458
    %v1460 = vpop.f32.mrf.mxu0
    %1461 = vmatprep.mubr.bf16.mxu0 0
    %1462 = vmatmul.mubr.bf16.gmra.mxu0 %v1382
    %v1463 = vpop.f32.mrf.mxu0
    %v1464 = vadd.f32 0.0, %v1463
    %v1465 = vpop.f32.mrf.mxu0
    %v1466 = vpop.f32.mrf.mxu0
    %v1467 = vadd.f32 0.0, %v1466
    %v1468 = vpop.f32.mrf.mxu0
    %1469 = vmatprep.mubr.bf16.mxu0 0
    %1470 = vmatmul.mubr.bf16.gmra.mxu0 %v1385
    %v1471 = vpop.f32.mrf.mxu0
    %v1472 = vadd.f32 0.0, %v1471
    %v1473 = vpop.f32.mrf.mxu0
    %v1474 = vpop.f32.mrf.mxu0
    %v1475 = vadd.f32 0.0, %v1474
    %v1476 = vpop.f32.mrf.mxu0
    %1477 = vmatprep.mubr.bf16.mxu0 0
    %1478 = vmatmul.mubr.bf16.gmra.mxu0 %v1388
    %v1479 = vpop.f32.mrf.mxu0
    %v1480 = vadd.f32 0.0, %v1479
    %v1481 = vpop.f32.mrf.mxu0
    %v1482 = vpop.f32.mrf.mxu0
    %v1483 = vadd.f32 0.0, %v1482
    %v1484 = vpop.f32.mrf.mxu0
    %1485 = vmatprep.mubr.bf16.mxu0 0
    %1486 = vmatmul.mubr.bf16.gmra.mxu0 %v1391
    %v1487 = vpop.f32.mrf.mxu0
    %v1488 = vadd.f32 0.0, %v1487
    %v1489 = vpop.f32.mrf.mxu0
    %v1490 = vpop.f32.mrf.mxu0
    %v1491 = vadd.f32 0.0, %v1490
    %v1492 = vpop.f32.mrf.mxu0
    %1493 = vdwg.mxu0
    %v1495 = vsel %vm1368, %v962, 0
    %v1498 = vsel %vm1368, %v963, 0
    %v1501 = vsel %vm1368, %v964, 0
    %v1504 = vsel %vm1368, %v965, 0
    %v1507 = vsel %vm1368, %v966, 0
    %v1510 = vsel %vm1368, %v967, 0
    %v1513 = vsel %vm1368, %v968, 0
    %v1516 = vsel %vm1368, %v969, 0
    %v1519 = vsel %vm1393, %v970, 0
    %1521 = vmatprep.subr.bf16.mxu0 0
    %1522 = vmatpush1.bf16.msra.mxu0 0
    %1523 = vmatprep.subr.bf16.mxu0 0
    %1524 = vmatpush1.bf16.msra.mxu0 0
    %1525 = vmatprep.subr.bf16.mxu0 0
    %1526 = vmatpush1.bf16.msra.mxu0 0
    %1527 = vmatprep.subr.bf16.mxu0 0
    %1528 = vmatpush1.bf16.msra.mxu0 0
    %1529 = vmatprep.subr.bf16.mxu0 0
    %1530 = vmatpush1.bf16.msra.mxu0 0
    %1531 = vmatprep.subr.bf16.mxu0 0
    %1532 = vmatpush1.bf16.msra.mxu0 0
    %1533 = vmatprep.subr.bf16.mxu0 0
    %1534 = vmatpush1.bf16.msra.mxu0 0
    %1535 = vmatprep.subr.bf16.mxu0 0
    %1536 = vmatpush1.bf16.msra.mxu0 %v1519
    %1537 = vmatprep.subr.bf16.mxu0 0
    %1538 = vmatpush2.bf16.msra.mxu0 0
    %1539 = vmatprep.subr.bf16.mxu0 0
    %1540 = vmatpush2.bf16.msra.mxu0 0
    %1541 = vmatprep.subr.bf16.mxu0 0
    %1542 = vmatpush2.bf16.msra.mxu0 0
    %1543 = vmatprep.subr.bf16.mxu0 0
    %1544 = vmatpush2.bf16.msra.mxu0 0
    %1545 = vmatprep.subr.bf16.mxu0 0
    %1546 = vmatpush2.bf16.msra.mxu0 0
    %1547 = vmatprep.subr.bf16.mxu0 0
    %1548 = vmatpush2.bf16.msra.mxu0 0
    %1549 = vmatprep.subr.bf16.mxu0 0
    %1550 = vmatpush2.bf16.msra.mxu0 0
    %1551 = vmatprep.subr.bf16.mxu0 0
    %1552 = vmatpush2.bf16.msra.mxu0 0
    %1553 = vmatprep.mubr.bf16.mxu0 0
    %1554 = vmatmul.mubr.bf16.gmra.mxu0 %v1495
    %v1555 = vpop.f32.mrf.mxu0
    %v1556 = vadd.f32 %v1432, %v1555
    %v1557 = vpop.f32.mrf.mxu0
    %v1558 = vpop.f32.mrf.mxu0
    %v1559 = vadd.f32 %v1435, %v1558
    %v1560 = vpop.f32.mrf.mxu0
    %1561 = vmatprep.mubr.bf16.mxu0 0
    %1562 = vmatmul.mubr.bf16.gmra.mxu0 %v1498
    %v1563 = vpop.f32.mrf.mxu0
    %v1564 = vadd.f32 %v1440, %v1563
    %v1565 = vpop.f32.mrf.mxu0
    %v1566 = vpop.f32.mrf.mxu0
    %v1567 = vadd.f32 %v1443, %v1566
    %v1568 = vpop.f32.mrf.mxu0
    %1569 = vmatprep.mubr.bf16.mxu0 0
    %1570 = vmatmul.mubr.bf16.gmra.mxu0 %v1501
    %v1571 = vpop.f32.mrf.mxu0
    %v1572 = vadd.f32 %v1448, %v1571
    %v1573 = vpop.f32.mrf.mxu0
    %v1574 = vpop.f32.mrf.mxu0
    %v1575 = vadd.f32 %v1451, %v1574
    %v1576 = vpop.f32.mrf.mxu0
    %1577 = vmatprep.mubr.bf16.mxu0 0
    %1578 = vmatmul.mubr.bf16.gmra.mxu0 %v1504
    %v1579 = vpop.f32.mrf.mxu0
    %v1580 = vadd.f32 %v1456, %v1579
    %v1581 = vpop.f32.mrf.mxu0
    %v1582 = vpop.f32.mrf.mxu0
    %v1583 = vadd.f32 %v1459, %v1582
    %v1584 = vpop.f32.mrf.mxu0
    %1585 = vmatprep.mubr.bf16.mxu0 0
    %1586 = vmatmul.mubr.bf16.gmra.mxu0 %v1507
    %v1587 = vpop.f32.mrf.mxu0
    %v1588 = vadd.f32 %v1464, %v1587
    %v1589 = vpop.f32.mrf.mxu0
    %v1590 = vpop.f32.mrf.mxu0
    %v1591 = vadd.f32 %v1467, %v1590
    %v1592 = vpop.f32.mrf.mxu0
    %1593 = vmatprep.mubr.bf16.mxu0 0
    %1594 = vmatmul.mubr.bf16.gmra.mxu0 %v1510
    %v1595 = vpop.f32.mrf.mxu0
    %v1596 = vadd.f32 %v1472, %v1595
    %v1597 = vpop.f32.mrf.mxu0
    %v1598 = vpop.f32.mrf.mxu0
    %v1599 = vadd.f32 %v1475, %v1598
    %v1600 = vpop.f32.mrf.mxu0
    %1601 = vmatprep.mubr.bf16.mxu0 0
    %1602 = vmatmul.mubr.bf16.gmra.mxu0 %v1513
    %v1603 = vpop.f32.mrf.mxu0
    %v1604 = vadd.f32 %v1480, %v1603
    %v1605 = vpop.f32.mrf.mxu0
    %v1606 = vpop.f32.mrf.mxu0
    %v1607 = vadd.f32 %v1483, %v1606
    %v1608 = vpop.f32.mrf.mxu0
    %1609 = vmatprep.mubr.bf16.mxu0 0
    %1610 = vmatmul.mubr.bf16.gmra.mxu0 %v1516
    %v1611 = vpop.f32.mrf.mxu0
    %v1612 = vadd.f32 %v1488, %v1611
    %v1613 = vpop.f32.mrf.mxu0
    %v1614 = vpop.f32.mrf.mxu0
    %v1615 = vadd.f32 %v1491, %v1614
    %v1616 = vpop.f32.mrf.mxu0
    %1617 = vdwg.mxu0
    %s1618 = scalar_lea.vmem [#allocation2], 512
    %v1619 = vld [vmem:[%s1618] sm:$0xff]
    %v1620 = vld [vmem:[%s1618 + $0x8] sm:$0xff]
    %v1621 = vld [vmem:[%s1618 + $0x10] sm:$0xff]
    %v1622 = vld [vmem:[%s1618 + $0x18] sm:$0xff]
    %v1623 = vld [vmem:[%s1618 + $0x20] sm:$0xff]
    %v1624 = vld [vmem:[%s1618 + $0x28] sm:$0xff]
    %v1625 = vld [vmem:[%s1618 + $0x30] sm:$0xff]
    %v1626 = vld [vmem:[%s1618 + $0x38] sm:$0xff]
    %v1627 = vld [vmem:[%s1618 + $0x40] sm:$0xff]
    %v1628 = vld [vmem:[%s1618 + $0x48] sm:$0xff]
    %v1629 = vld [vmem:[%s1618 + $0x50] sm:$0xff]
    %v1630 = vld [vmem:[%s1618 + $0x58] sm:$0xff]
    %v1631 = vld [vmem:[%s1618 + $0x60] sm:$0xff]
    %v1632 = vld [vmem:[%s1618 + $0x68] sm:$0xff]
    %v1633 = vld [vmem:[%s1618 + $0x70] sm:$0xff]
    %v1634 = vld [vmem:[%s1618 + $0x78] sm:$0xff]
    %v1635 = vld [vmem:[%s1618 + $0x80] sm:$0xff]
    %v1636 = vld [vmem:[%s1618 + $0x88] sm:$0xff]
    %v1637 = vld [vmem:[%s1618 + $0x90] sm:$0xff]
    %v1638 = vld [vmem:[%s1618 + $0x98] sm:$0xff]
    %v1639 = vld [vmem:[%s1618 + $0xa0] sm:$0xff]
    %v1640 = vld [vmem:[%s1618 + $0xa8] sm:$0xff]
    %v1641 = vld [vmem:[%s1618 + $0xb0] sm:$0xff]
    %v1642 = vld [vmem:[%s1618 + $0xb8] sm:$0xff]
    %v1643 = vld [vmem:[%s1618 + $0xc0] sm:$0xff]
    %v1644 = vld [vmem:[%s1618 + $0xc8] sm:$0xff]
    %v1645 = vld [vmem:[%s1618 + $0xd0] sm:$0xff]
    %v1646 = vld [vmem:[%s1618 + $0xd8] sm:$0xff]
    %v1647 = vld [vmem:[%s1618 + $0xe0] sm:$0xff]
    %v1648 = vld [vmem:[%s1618 + $0xe8] sm:$0xff]
    %v1649 = vld [vmem:[%s1618 + $0xf0] sm:$0xff]
    %v1650 = vld [vmem:[%s1618 + $0xf8] sm:$0xff]
    %v1683 = vunpack.c.l.b16 %v1619
    %v1684 = vunpack.c.h.b16 %v1619
    %v1685 = vunpack.c.l.b16 %v1620
    %v1686 = vunpack.c.h.b16 %v1620
    %v1687 = vunpack.c.l.b16 %v1621
    %v1688 = vunpack.c.h.b16 %v1621
    %v1689 = vunpack.c.l.b16 %v1622
    %v1690 = vunpack.c.h.b16 %v1622
    %v1691 = vunpack.c.l.b16 %v1623
    %v1692 = vunpack.c.h.b16 %v1623
    %v1693 = vunpack.c.l.b16 %v1624
    %v1694 = vunpack.c.h.b16 %v1624
    %v1695 = vunpack.c.l.b16 %v1625
    %v1696 = vunpack.c.h.b16 %v1625
    %v1697 = vunpack.c.l.b16 %v1626
    %v1698 = vunpack.c.h.b16 %v1626
    %v1699 = vunpack.c.l.b16 %v1627
    %v1700 = vunpack.c.h.b16 %v1627
    %v1701 = vunpack.c.l.b16 %v1628
    %v1702 = vunpack.c.h.b16 %v1628
    %v1703 = vunpack.c.l.b16 %v1629
    %v1704 = vunpack.c.h.b16 %v1629
    %v1705 = vunpack.c.l.b16 %v1630
    %v1706 = vunpack.c.h.b16 %v1630
    %v1707 = vunpack.c.l.b16 %v1631
    %v1708 = vunpack.c.h.b16 %v1631
    %v1709 = vunpack.c.l.b16 %v1632
    %v1710 = vunpack.c.h.b16 %v1632
    %v1711 = vunpack.c.l.b16 %v1633
    %v1712 = vunpack.c.h.b16 %v1633
    %v1713 = vunpack.c.l.b16 %v1634
    %v1714 = vunpack.c.h.b16 %v1634
    %v1715 = vunpack.c.l.b16 %v1635
    %v1716 = vunpack.c.h.b16 %v1635
    %v1717 = vunpack.c.l.b16 %v1636
    %v1718 = vunpack.c.h.b16 %v1636
    %v1719 = vunpack.c.l.b16 %v1637
    %v1720 = vunpack.c.h.b16 %v1637
    %v1721 = vunpack.c.l.b16 %v1638
    %v1722 = vunpack.c.h.b16 %v1638
    %v1723 = vunpack.c.l.b16 %v1639
    %v1724 = vunpack.c.h.b16 %v1639
    %v1725 = vunpack.c.l.b16 %v1640
    %v1726 = vunpack.c.h.b16 %v1640
    %v1727 = vunpack.c.l.b16 %v1641
    %v1728 = vunpack.c.h.b16 %v1641
    %v1729 = vunpack.c.l.b16 %v1642
    %v1730 = vunpack.c.h.b16 %v1642
    %v1731 = vunpack.c.l.b16 %v1643
    %v1732 = vunpack.c.h.b16 %v1643
    %v1733 = vunpack.c.l.b16 %v1644
    %v1734 = vunpack.c.h.b16 %v1644
    %v1735 = vunpack.c.l.b16 %v1645
    %v1736 = vunpack.c.h.b16 %v1645
    %v1737 = vunpack.c.l.b16 %v1646
    %v1738 = vunpack.c.h.b16 %v1646
    %v1739 = vunpack.c.l.b16 %v1647
    %v1740 = vunpack.c.h.b16 %v1647
    %v1741 = vunpack.c.l.b16 %v1648
    %v1742 = vunpack.c.h.b16 %v1648
    %v1743 = vunpack.c.l.b16 %v1649
    %v1744 = vunpack.c.h.b16 %v1649
    %v1745 = vunpack.c.l.b16 %v1650
    %v1746 = vunpack.c.h.b16 %v1650
    %v1747 = vpack.c.b16 %v1687, %v1683
    %v1748 = vpack.c.b16 %v1688, %v1684
    %v1749 = vpack.c.b16 %v1689, %v1685
    %v1750 = vpack.c.b16 %v1690, %v1686
    %v1751 = vpack.c.b16 %v1695, %v1691
    %v1752 = vpack.c.b16 %v1696, %v1692
    %v1753 = vpack.c.b16 %v1697, %v1693
    %v1754 = vpack.c.b16 %v1698, %v1694
    %v1755 = vpack.c.b16 %v1703, %v1699
    %v1756 = vpack.c.b16 %v1704, %v1700
    %v1757 = vpack.c.b16 %v1705, %v1701
    %v1758 = vpack.c.b16 %v1706, %v1702
    %v1759 = vpack.c.b16 %v1711, %v1707
    %v1760 = vpack.c.b16 %v1712, %v1708
    %v1761 = vpack.c.b16 %v1713, %v1709
    %v1762 = vpack.c.b16 %v1714, %v1710
    %v1763 = vpack.c.b16 %v1719, %v1715
    %v1764 = vpack.c.b16 %v1720, %v1716
    %v1765 = vpack.c.b16 %v1721, %v1717
    %v1766 = vpack.c.b16 %v1722, %v1718
    %v1767 = vpack.c.b16 %v1727, %v1723
    %v1768 = vpack.c.b16 %v1728, %v1724
    %v1769 = vpack.c.b16 %v1729, %v1725
    %v1770 = vpack.c.b16 %v1730, %v1726
    %v1771 = vpack.c.b16 %v1735, %v1731
    %v1772 = vpack.c.b16 %v1736, %v1732
    %v1773 = vpack.c.b16 %v1737, %v1733
    %v1774 = vpack.c.b16 %v1738, %v1734
    %v1775 = vpack.c.b16 %v1743, %v1739
    %v1776 = vpack.c.b16 %v1744, %v1740
    %v1777 = vpack.c.b16 %v1745, %v1741
    %v1778 = vpack.c.b16 %v1746, %v1742
    %1811 = vmatprep.subr.bf16.mxu0 0
    %1812 = vmatpush1.bf16.msra.mxu0 %v711
    %1813 = vmatprep.subr.bf16.mxu0 0
    %1814 = vmatpush1.bf16.msra.mxu0 %v710
    %1815 = vmatprep.subr.bf16.mxu0 0
    %1816 = vmatpush1.bf16.msra.mxu0 %v709
    %1817 = vmatprep.subr.bf16.mxu0 0
    %1818 = vmatpush1.bf16.msra.mxu0 %v708
    %1819 = vmatprep.subr.bf16.mxu0 0
    %1820 = vmatpush1.bf16.msra.mxu0 %v707
    %1821 = vmatprep.subr.bf16.mxu0 0
    %1822 = vmatpush1.bf16.msra.mxu0 %v706
    %1823 = vmatprep.subr.bf16.mxu0 0
    %1824 = vmatpush1.bf16.msra.mxu0 %v705
    %1825 = vmatprep.subr.bf16.mxu0 0
    %1826 = vmatpush1.bf16.msra.mxu0 %v704
    %1827 = vmatprep.subr.bf16.mxu0 0
    %1828 = vmatpush2.bf16.msra.mxu0 %v719
    %1829 = vmatprep.subr.bf16.mxu0 0
    %1830 = vmatpush2.bf16.msra.mxu0 %v718
    %1831 = vmatprep.subr.bf16.mxu0 0
    %1832 = vmatpush2.bf16.msra.mxu0 %v717
    %1833 = vmatprep.subr.bf16.mxu0 0
    %1834 = vmatpush2.bf16.msra.mxu0 %v716
    %1835 = vmatprep.subr.bf16.mxu0 0
    %1836 = vmatpush2.bf16.msra.mxu0 %v715
    %1837 = vmatprep.subr.bf16.mxu0 0
    %1838 = vmatpush2.bf16.msra.mxu0 %v714
    %1839 = vmatprep.subr.bf16.mxu0 0
    %1840 = vmatpush2.bf16.msra.mxu0 %v713
    %1841 = vmatprep.subr.bf16.mxu0 0
    %1842 = vmatpush2.bf16.msra.mxu0 %v712
    %1843 = vmatprep.mubr.bf16.mxu0 %v1748
    %1844 = vmatmul.mubr.bf16.gmra.mxu0 %v1747
    %v1845 = vpop.f32.mrf.mxu0
    %v1846 = vadd.f32 0.0, %v1845
    %v1847 = vpop.f32.mrf.mxu0
    %v1848 = vpop.f32.mrf.mxu0
    %v1849 = vadd.f32 0.0, %v1848
    %v1850 = vpop.f32.mrf.mxu0
    %1851 = vmatprep.mubr.bf16.mxu0 %v1752
    %1852 = vmatmul.mubr.bf16.gmra.mxu0 %v1751
    %v1853 = vpop.f32.mrf.mxu0
    %v1854 = vadd.f32 0.0, %v1853
    %v1855 = vpop.f32.mrf.mxu0
    %v1856 = vpop.f32.mrf.mxu0
    %v1857 = vadd.f32 0.0, %v1856
    %v1858 = vpop.f32.mrf.mxu0
    %1859 = vmatprep.mubr.bf16.mxu0 %v1756
    %1860 = vmatmul.mubr.bf16.gmra.mxu0 %v1755
    %v1861 = vpop.f32.mrf.mxu0
    %v1862 = vadd.f32 0.0, %v1861
    %v1863 = vpop.f32.mrf.mxu0
    %v1864 = vpop.f32.mrf.mxu0
    %v1865 = vadd.f32 0.0, %v1864
    %v1866 = vpop.f32.mrf.mxu0
    %1867 = vmatprep.mubr.bf16.mxu0 %v1760
    %1868 = vmatmul.mubr.bf16.gmra.mxu0 %v1759
    %v1869 = vpop.f32.mrf.mxu0
    %v1870 = vadd.f32 0.0, %v1869
    %v1871 = vpop.f32.mrf.mxu0
    %v1872 = vpop.f32.mrf.mxu0
    %v1873 = vadd.f32 0.0, %v1872
    %v1874 = vpop.f32.mrf.mxu0
    %1875 = vmatprep.mubr.bf16.mxu0 %v1764
    %1876 = vmatmul.mubr.bf16.gmra.mxu0 %v1763
    %v1877 = vpop.f32.mrf.mxu0
    %v1878 = vadd.f32 0.0, %v1877
    %v1879 = vpop.f32.mrf.mxu0
    %v1880 = vpop.f32.mrf.mxu0
    %v1881 = vadd.f32 0.0, %v1880
    %v1882 = vpop.f32.mrf.mxu0
    %1883 = vmatprep.mubr.bf16.mxu0 %v1768
    %1884 = vmatmul.mubr.bf16.gmra.mxu0 %v1767
    %v1885 = vpop.f32.mrf.mxu0
    %v1886 = vadd.f32 0.0, %v1885
    %v1887 = vpop.f32.mrf.mxu0
    %v1888 = vpop.f32.mrf.mxu0
    %v1889 = vadd.f32 0.0, %v1888
    %v1890 = vpop.f32.mrf.mxu0
    %1891 = vmatprep.mubr.bf16.mxu0 %v1772
    %1892 = vmatmul.mubr.bf16.gmra.mxu0 %v1771
    %v1893 = vpop.f32.mrf.mxu0
    %v1894 = vadd.f32 0.0, %v1893
    %v1895 = vpop.f32.mrf.mxu0
    %v1896 = vpop.f32.mrf.mxu0
    %v1897 = vadd.f32 0.0, %v1896
    %v1898 = vpop.f32.mrf.mxu0
    %1899 = vmatprep.mubr.bf16.mxu0 %v1776
    %1900 = vmatmul.mubr.bf16.gmra.mxu0 %v1775
    %v1901 = vpop.f32.mrf.mxu0
    %v1902 = vadd.f32 0.0, %v1901
    %v1903 = vpop.f32.mrf.mxu0
    %v1904 = vpop.f32.mrf.mxu0
    %v1905 = vadd.f32 0.0, %v1904
    %v1906 = vpop.f32.mrf.mxu0
    %1907 = vdwg.mxu0
    %1908 = vmatprep.subr.bf16.mxu0 0
    %1909 = vmatpush1.bf16.msra.mxu0 %v727
    %1910 = vmatprep.subr.bf16.mxu0 0
    %1911 = vmatpush1.bf16.msra.mxu0 %v726
    %1912 = vmatprep.subr.bf16.mxu0 0
    %1913 = vmatpush1.bf16.msra.mxu0 %v725
    %1914 = vmatprep.subr.bf16.mxu0 0
    %1915 = vmatpush1.bf16.msra.mxu0 %v724
    %1916 = vmatprep.subr.bf16.mxu0 0
    %1917 = vmatpush1.bf16.msra.mxu0 %v723
    %1918 = vmatprep.subr.bf16.mxu0 0
    %1919 = vmatpush1.bf16.msra.mxu0 %v722
    %1920 = vmatprep.subr.bf16.mxu0 0
    %1921 = vmatpush1.bf16.msra.mxu0 %v721
    %1922 = vmatprep.subr.bf16.mxu0 0
    %1923 = vmatpush1.bf16.msra.mxu0 %v720
    %1924 = vmatprep.subr.bf16.mxu0 0
    %1925 = vmatpush2.bf16.msra.mxu0 %v735
    %1926 = vmatprep.subr.bf16.mxu0 0
    %1927 = vmatpush2.bf16.msra.mxu0 %v734
    %1928 = vmatprep.subr.bf16.mxu0 0
    %1929 = vmatpush2.bf16.msra.mxu0 %v733
    %1930 = vmatprep.subr.bf16.mxu0 0
    %1931 = vmatpush2.bf16.msra.mxu0 %v732
    %1932 = vmatprep.subr.bf16.mxu0 0
    %1933 = vmatpush2.bf16.msra.mxu0 %v731
    %1934 = vmatprep.subr.bf16.mxu0 0
    %1935 = vmatpush2.bf16.msra.mxu0 %v730
    %1936 = vmatprep.subr.bf16.mxu0 0
    %1937 = vmatpush2.bf16.msra.mxu0 %v729
    %1938 = vmatprep.subr.bf16.mxu0 0
    %1939 = vmatpush2.bf16.msra.mxu0 %v728
    %1940 = vmatprep.mubr.bf16.mxu0 %v1750
    %1941 = vmatmul.mubr.bf16.gmra.mxu0 %v1749
    %v1942 = vpop.f32.mrf.mxu0
    %v1943 = vadd.f32 %v1846, %v1942
    %v1944 = vpop.f32.mrf.mxu0
    %v1945 = vpop.f32.mrf.mxu0
    %v1946 = vadd.f32 %v1849, %v1945
    %v1947 = vpop.f32.mrf.mxu0
    %1948 = vmatprep.mubr.bf16.mxu0 %v1754
    %1949 = vmatmul.mubr.bf16.gmra.mxu0 %v1753
    %v1950 = vpop.f32.mrf.mxu0
    %v1951 = vadd.f32 %v1854, %v1950
    %v1952 = vpop.f32.mrf.mxu0
    %v1953 = vpop.f32.mrf.mxu0
    %v1954 = vadd.f32 %v1857, %v1953
    %v1955 = vpop.f32.mrf.mxu0
    %1956 = vmatprep.mubr.bf16.mxu0 %v1758
    %1957 = vmatmul.mubr.bf16.gmra.mxu0 %v1757
    %v1958 = vpop.f32.mrf.mxu0
    %v1959 = vadd.f32 %v1862, %v1958
    %v1960 = vpop.f32.mrf.mxu0
    %v1961 = vpop.f32.mrf.mxu0
    %v1962 = vadd.f32 %v1865, %v1961
    %v1963 = vpop.f32.mrf.mxu0
    %1964 = vmatprep.mubr.bf16.mxu0 %v1762
    %1965 = vmatmul.mubr.bf16.gmra.mxu0 %v1761
    %v1966 = vpop.f32.mrf.mxu0
    %v1967 = vadd.f32 %v1870, %v1966
    %v1968 = vpop.f32.mrf.mxu0
    %v1969 = vpop.f32.mrf.mxu0
    %v1970 = vadd.f32 %v1873, %v1969
    %v1971 = vpop.f32.mrf.mxu0
    %1972 = vmatprep.mubr.bf16.mxu0 %v1766
    %1973 = vmatmul.mubr.bf16.gmra.mxu0 %v1765
    %v1974 = vpop.f32.mrf.mxu0
    %v1975 = vadd.f32 %v1878, %v1974
    %v1976 = vpop.f32.mrf.mxu0
    %v1977 = vpop.f32.mrf.mxu0
    %v1978 = vadd.f32 %v1881, %v1977
    %v1979 = vpop.f32.mrf.mxu0
    %1980 = vmatprep.mubr.bf16.mxu0 %v1770
    %1981 = vmatmul.mubr.bf16.gmra.mxu0 %v1769
    %v1982 = vpop.f32.mrf.mxu0
    %v1983 = vadd.f32 %v1886, %v1982
    %v1984 = vpop.f32.mrf.mxu0
    %v1985 = vpop.f32.mrf.mxu0
    %v1986 = vadd.f32 %v1889, %v1985
    %v1987 = vpop.f32.mrf.mxu0
    %1988 = vmatprep.mubr.bf16.mxu0 %v1774
    %1989 = vmatmul.mubr.bf16.gmra.mxu0 %v1773
    %v1990 = vpop.f32.mrf.mxu0
    %v1991 = vadd.f32 %v1894, %v1990
    %v1992 = vpop.f32.mrf.mxu0
    %v1993 = vpop.f32.mrf.mxu0
    %v1994 = vadd.f32 %v1897, %v1993
    %v1995 = vpop.f32.mrf.mxu0
    %1996 = vmatprep.mubr.bf16.mxu0 %v1778
    %1997 = vmatmul.mubr.bf16.gmra.mxu0 %v1777
    %v1998 = vpop.f32.mrf.mxu0
    %v1999 = vadd.f32 %v1902, %v1998
    %v2000 = vpop.f32.mrf.mxu0
    %v2001 = vpop.f32.mrf.mxu0
    %v2002 = vadd.f32 %v1905, %v2001
    %v2003 = vpop.f32.mrf.mxu0
    %2004 = vdwg.mxu0
    %v2005 = vpack.c.bf16 %v1946, %v1943
    %v2006 = vpack.c.bf16 %v1954, %v1951
    %v2007 = vpack.c.bf16 %v1962, %v1959
    %v2008 = vpack.c.bf16 %v1970, %v1967
    %v2009 = vpack.c.bf16 %v1978, %v1975
    %v2010 = vpack.c.bf16 %v1986, %v1983
    %v2011 = vpack.c.bf16 %v1994, %v1991
    %v2012 = vpack.c.bf16 %v2002, %v1999
    %s2013 = scalar_lea.vmem [#allocation4], 4
    %v2014 = vld [vmem:[%s2013] sm:$0x3]
    %v2016 = vsel %vm1368, %v2005, 0
    %v2019 = vsel %vm1368, %v2006, 0
    %v2022 = vsel %vm1368, %v2007, 0
    %v2025 = vsel %vm1368, %v2008, 0
    %v2028 = vsel %vm1368, %v2009, 0
    %v2031 = vsel %vm1368, %v2010, 0
    %v2034 = vsel %vm1368, %v2011, 0
    %v2037 = vsel %vm1368, %v2012, 0
    %v2040 = vsel %vm1393, %v2014, 0
    %2042 = vmatprep.subr.bf16.mxu0 0
    %2043 = vmatpush1.bf16.msra.mxu0 0
    %2044 = vmatprep.subr.bf16.mxu0 0
    %2045 = vmatpush1.bf16.msra.mxu0 0
    %2046 = vmatprep.subr.bf16.mxu0 0
    %2047 = vmatpush1.bf16.msra.mxu0 0
    %2048 = vmatprep.subr.bf16.mxu0 0
    %2049 = vmatpush1.bf16.msra.mxu0 0
    %2050 = vmatprep.subr.bf16.mxu0 0
    %2051 = vmatpush1.bf16.msra.mxu0 0
    %2052 = vmatprep.subr.bf16.mxu0 0
    %2053 = vmatpush1.bf16.msra.mxu0 0
    %2054 = vmatprep.subr.bf16.mxu0 0
    %2055 = vmatpush1.bf16.msra.mxu0 0
    %2056 = vmatprep.subr.bf16.mxu0 0
    %2057 = vmatpush1.bf16.msra.mxu0 %v2040
    %2058 = vmatprep.subr.bf16.mxu0 0
    %2059 = vmatpush2.bf16.msra.mxu0 0
    %2060 = vmatprep.subr.bf16.mxu0 0
    %2061 = vmatpush2.bf16.msra.mxu0 0
    %2062 = vmatprep.subr.bf16.mxu0 0
    %2063 = vmatpush2.bf16.msra.mxu0 0
    %2064 = vmatprep.subr.bf16.mxu0 0
    %2065 = vmatpush2.bf16.msra.mxu0 0
    %2066 = vmatprep.subr.bf16.mxu0 0
    %2067 = vmatpush2.bf16.msra.mxu0 0
    %2068 = vmatprep.subr.bf16.mxu0 0
    %2069 = vmatpush2.bf16.msra.mxu0 0
    %2070 = vmatprep.subr.bf16.mxu0 0
    %2071 = vmatpush2.bf16.msra.mxu0 0
    %2072 = vmatprep.subr.bf16.mxu0 0
    %2073 = vmatpush2.bf16.msra.mxu0 0
    %2074 = vmatprep.mubr.bf16.mxu0 0
    %2075 = vmatmul.mubr.bf16.gmra.mxu0 %v2016
    %v2076 = vpop.f32.mrf.mxu0
    %v2077 = vadd.f32 0.0, %v2076
    %v2078 = vpop.f32.mrf.mxu0
    %v2079 = vpop.f32.mrf.mxu0
    %v2080 = vadd.f32 0.0, %v2079
    %v2081 = vpop.f32.mrf.mxu0
    %2082 = vmatprep.mubr.bf16.mxu0 0
    %2083 = vmatmul.mubr.bf16.gmra.mxu0 %v2019
    %v2084 = vpop.f32.mrf.mxu0
    %v2085 = vadd.f32 0.0, %v2084
    %v2086 = vpop.f32.mrf.mxu0
    %v2087 = vpop.f32.mrf.mxu0
    %v2088 = vadd.f32 0.0, %v2087
    %v2089 = vpop.f32.mrf.mxu0
    %2090 = vmatprep.mubr.bf16.mxu0 0
    %2091 = vmatmul.mubr.bf16.gmra.mxu0 %v2022
    %v2092 = vpop.f32.mrf.mxu0
    %v2093 = vadd.f32 0.0, %v2092
    %v2094 = vpop.f32.mrf.mxu0
    %v2095 = vpop.f32.mrf.mxu0
    %v2096 = vadd.f32 0.0, %v2095
    %v2097 = vpop.f32.mrf.mxu0
    %2098 = vmatprep.mubr.bf16.mxu0 0
    %2099 = vmatmul.mubr.bf16.gmra.mxu0 %v2025
    %v2100 = vpop.f32.mrf.mxu0
    %v2101 = vadd.f32 0.0, %v2100
    %v2102 = vpop.f32.mrf.mxu0
    %v2103 = vpop.f32.mrf.mxu0
    %v2104 = vadd.f32 0.0, %v2103
    %v2105 = vpop.f32.mrf.mxu0
    %2106 = vmatprep.mubr.bf16.mxu0 0
    %2107 = vmatmul.mubr.bf16.gmra.mxu0 %v2028
    %v2108 = vpop.f32.mrf.mxu0
    %v2109 = vadd.f32 0.0, %v2108
    %v2110 = vpop.f32.mrf.mxu0
    %v2111 = vpop.f32.mrf.mxu0
    %v2112 = vadd.f32 0.0, %v2111
    %v2113 = vpop.f32.mrf.mxu0
    %2114 = vmatprep.mubr.bf16.mxu0 0
    %2115 = vmatmul.mubr.bf16.gmra.mxu0 %v2031
    %v2116 = vpop.f32.mrf.mxu0
    %v2117 = vadd.f32 0.0, %v2116
    %v2118 = vpop.f32.mrf.mxu0
    %v2119 = vpop.f32.mrf.mxu0
    %v2120 = vadd.f32 0.0, %v2119
    %v2121 = vpop.f32.mrf.mxu0
    %2122 = vmatprep.mubr.bf16.mxu0 0
    %2123 = vmatmul.mubr.bf16.gmra.mxu0 %v2034
    %v2124 = vpop.f32.mrf.mxu0
    %v2125 = vadd.f32 0.0, %v2124
    %v2126 = vpop.f32.mrf.mxu0
    %v2127 = vpop.f32.mrf.mxu0
    %v2128 = vadd.f32 0.0, %v2127
    %v2129 = vpop.f32.mrf.mxu0
    %2130 = vmatprep.mubr.bf16.mxu0 0
    %2131 = vmatmul.mubr.bf16.gmra.mxu0 %v2037
    %v2132 = vpop.f32.mrf.mxu0
    %v2133 = vadd.f32 0.0, %v2132
    %v2134 = vpop.f32.mrf.mxu0
    %v2135 = vpop.f32.mrf.mxu0
    %v2136 = vadd.f32 0.0, %v2135
    %v2137 = vpop.f32.mrf.mxu0
    %2138 = vdwg.mxu0
    %v2139 = vadd.f32 %v1556, %v2077
    %v2140 = vadd.f32 %v1559, %v2080
    %v2141 = vadd.f32 %v1564, %v2085
    %v2142 = vadd.f32 %v1567, %v2088
    %v2143 = vadd.f32 %v1572, %v2093
    %v2144 = vadd.f32 %v1575, %v2096
    %v2145 = vadd.f32 %v1580, %v2101
    %v2146 = vadd.f32 %v1583, %v2104
    %v2147 = vadd.f32 %v1588, %v2109
    %v2148 = vadd.f32 %v1591, %v2112
    %v2149 = vadd.f32 %v1596, %v2117
    %v2150 = vadd.f32 %v1599, %v2120
    %v2151 = vadd.f32 %v1604, %v2125
    %v2152 = vadd.f32 %v1607, %v2128
    %v2153 = vadd.f32 %v1612, %v2133
    %v2154 = vadd.f32 %v1615, %v2136
    %s2155 = scalar_lea.vmem [#allocation2], 768
    %v2156 = vld [vmem:[%s2155] sm:$0xff]
    %v2157 = vld [vmem:[%s2155 + $0x8] sm:$0xff]
    %v2158 = vld [vmem:[%s2155 + $0x10] sm:$0xff]
    %v2159 = vld [vmem:[%s2155 + $0x18] sm:$0xff]
    %v2160 = vld [vmem:[%s2155 + $0x20] sm:$0xff]
    %v2161 = vld [vmem:[%s2155 + $0x28] sm:$0xff]
    %v2162 = vld [vmem:[%s2155 + $0x30] sm:$0xff]
    %v2163 = vld [vmem:[%s2155 + $0x38] sm:$0xff]
    %v2164 = vld [vmem:[%s2155 + $0x40] sm:$0xff]
    %v2165 = vld [vmem:[%s2155 + $0x48] sm:$0xff]
    %v2166 = vld [vmem:[%s2155 + $0x50] sm:$0xff]
    %v2167 = vld [vmem:[%s2155 + $0x58] sm:$0xff]
    %v2168 = vld [vmem:[%s2155 + $0x60] sm:$0xff]
    %v2169 = vld [vmem:[%s2155 + $0x68] sm:$0xff]
    %v2170 = vld [vmem:[%s2155 + $0x70] sm:$0xff]
    %v2171 = vld [vmem:[%s2155 + $0x78] sm:$0xff]
    %v2172 = vld [vmem:[%s2155 + $0x80] sm:$0xff]
    %v2173 = vld [vmem:[%s2155 + $0x88] sm:$0xff]
    %v2174 = vld [vmem:[%s2155 + $0x90] sm:$0xff]
    %v2175 = vld [vmem:[%s2155 + $0x98] sm:$0xff]
    %v2176 = vld [vmem:[%s2155 + $0xa0] sm:$0xff]
    %v2177 = vld [vmem:[%s2155 + $0xa8] sm:$0xff]
    %v2178 = vld [vmem:[%s2155 + $0xb0] sm:$0xff]
    %v2179 = vld [vmem:[%s2155 + $0xb8] sm:$0xff]
    %v2180 = vld [vmem:[%s2155 + $0xc0] sm:$0xff]
    %v2181 = vld [vmem:[%s2155 + $0xc8] sm:$0xff]
    %v2182 = vld [vmem:[%s2155 + $0xd0] sm:$0xff]
    %v2183 = vld [vmem:[%s2155 + $0xd8] sm:$0xff]
    %v2184 = vld [vmem:[%s2155 + $0xe0] sm:$0xff]
    %v2185 = vld [vmem:[%s2155 + $0xe8] sm:$0xff]
    %v2186 = vld [vmem:[%s2155 + $0xf0] sm:$0xff]
    %v2187 = vld [vmem:[%s2155 + $0xf8] sm:$0xff]
    %v2220 = vunpack.c.l.b16 %v2156
    %v2221 = vunpack.c.h.b16 %v2156
    %v2222 = vunpack.c.l.b16 %v2157
    %v2223 = vunpack.c.h.b16 %v2157
    %v2224 = vunpack.c.l.b16 %v2158
    %v2225 = vunpack.c.h.b16 %v2158
    %v2226 = vunpack.c.l.b16 %v2159
    %v2227 = vunpack.c.h.b16 %v2159
    %v2228 = vunpack.c.l.b16 %v2160
    %v2229 = vunpack.c.h.b16 %v2160
    %v2230 = vunpack.c.l.b16 %v2161
    %v2231 = vunpack.c.h.b16 %v2161
    %v2232 = vunpack.c.l.b16 %v2162
    %v2233 = vunpack.c.h.b16 %v2162
    %v2234 = vunpack.c.l.b16 %v2163
    %v2235 = vunpack.c.h.b16 %v2163
    %v2236 = vunpack.c.l.b16 %v2164
    %v2237 = vunpack.c.h.b16 %v2164
    %v2238 = vunpack.c.l.b16 %v2165
    %v2239 = vunpack.c.h.b16 %v2165
    %v2240 = vunpack.c.l.b16 %v2166
    %v2241 = vunpack.c.h.b16 %v2166
    %v2242 = vunpack.c.l.b16 %v2167
    %v2243 = vunpack.c.h.b16 %v2167
    %v2244 = vunpack.c.l.b16 %v2168
    %v2245 = vunpack.c.h.b16 %v2168
    %v2246 = vunpack.c.l.b16 %v2169
    %v2247 = vunpack.c.h.b16 %v2169
    %v2248 = vunpack.c.l.b16 %v2170
    %v2249 = vunpack.c.h.b16 %v2170
    %v2250 = vunpack.c.l.b16 %v2171
    %v2251 = vunpack.c.h.b16 %v2171
    %v2252 = vunpack.c.l.b16 %v2172
    %v2253 = vunpack.c.h.b16 %v2172
    %v2254 = vunpack.c.l.b16 %v2173
    %v2255 = vunpack.c.h.b16 %v2173
    %v2256 = vunpack.c.l.b16 %v2174
    %v2257 = vunpack.c.h.b16 %v2174
    %v2258 = vunpack.c.l.b16 %v2175
    %v2259 = vunpack.c.h.b16 %v2175
    %v2260 = vunpack.c.l.b16 %v2176
    %v2261 = vunpack.c.h.b16 %v2176
    %v2262 = vunpack.c.l.b16 %v2177
    %v2263 = vunpack.c.h.b16 %v2177
    %v2264 = vunpack.c.l.b16 %v2178
    %v2265 = vunpack.c.h.b16 %v2178
    %v2266 = vunpack.c.l.b16 %v2179
    %v2267 = vunpack.c.h.b16 %v2179
    %v2268 = vunpack.c.l.b16 %v2180
    %v2269 = vunpack.c.h.b16 %v2180
    %v2270 = vunpack.c.l.b16 %v2181
    %v2271 = vunpack.c.h.b16 %v2181
    %v2272 = vunpack.c.l.b16 %v2182
    %v2273 = vunpack.c.h.b16 %v2182
    %v2274 = vunpack.c.l.b16 %v2183
    %v2275 = vunpack.c.h.b16 %v2183
    %v2276 = vunpack.c.l.b16 %v2184
    %v2277 = vunpack.c.h.b16 %v2184
    %v2278 = vunpack.c.l.b16 %v2185
    %v2279 = vunpack.c.h.b16 %v2185
    %v2280 = vunpack.c.l.b16 %v2186
    %v2281 = vunpack.c.h.b16 %v2186
    %v2282 = vunpack.c.l.b16 %v2187
    %v2283 = vunpack.c.h.b16 %v2187
    %v2284 = vpack.c.b16 %v2224, %v2220
    %v2285 = vpack.c.b16 %v2225, %v2221
    %v2286 = vpack.c.b16 %v2226, %v2222
    %v2287 = vpack.c.b16 %v2227, %v2223
    %v2288 = vpack.c.b16 %v2232, %v2228
    %v2289 = vpack.c.b16 %v2233, %v2229
    %v2290 = vpack.c.b16 %v2234, %v2230
    %v2291 = vpack.c.b16 %v2235, %v2231
    %v2292 = vpack.c.b16 %v2240, %v2236
    %v2293 = vpack.c.b16 %v2241, %v2237
    %v2294 = vpack.c.b16 %v2242, %v2238
    %v2295 = vpack.c.b16 %v2243, %v2239
    %v2296 = vpack.c.b16 %v2248, %v2244
    %v2297 = vpack.c.b16 %v2249, %v2245
    %v2298 = vpack.c.b16 %v2250, %v2246
    %v2299 = vpack.c.b16 %v2251, %v2247
    %v2300 = vpack.c.b16 %v2256, %v2252
    %v2301 = vpack.c.b16 %v2257, %v2253
    %v2302 = vpack.c.b16 %v2258, %v2254
    %v2303 = vpack.c.b16 %v2259, %v2255
    %v2304 = vpack.c.b16 %v2264, %v2260
    %v2305 = vpack.c.b16 %v2265, %v2261
    %v2306 = vpack.c.b16 %v2266, %v2262
    %v2307 = vpack.c.b16 %v2267, %v2263
    %v2308 = vpack.c.b16 %v2272, %v2268
    %v2309 = vpack.c.b16 %v2273, %v2269
    %v2310 = vpack.c.b16 %v2274, %v2270
    %v2311 = vpack.c.b16 %v2275, %v2271
    %v2312 = vpack.c.b16 %v2280, %v2276
    %v2313 = vpack.c.b16 %v2281, %v2277
    %v2314 = vpack.c.b16 %v2282, %v2278
    %v2315 = vpack.c.b16 %v2283, %v2279
    %2348 = vmatprep.subr.bf16.mxu0 0
    %2349 = vmatpush1.bf16.msra.mxu0 %v711
    %2350 = vmatprep.subr.bf16.mxu0 0
    %2351 = vmatpush1.bf16.msra.mxu0 %v710
    %2352 = vmatprep.subr.bf16.mxu0 0
    %2353 = vmatpush1.bf16.msra.mxu0 %v709
    %2354 = vmatprep.subr.bf16.mxu0 0
    %2355 = vmatpush1.bf16.msra.mxu0 %v708
    %2356 = vmatprep.subr.bf16.mxu0 0
    %2357 = vmatpush1.bf16.msra.mxu0 %v707
    %2358 = vmatprep.subr.bf16.mxu0 0
    %2359 = vmatpush1.bf16.msra.mxu0 %v706
    %2360 = vmatprep.subr.bf16.mxu0 0
    %2361 = vmatpush1.bf16.msra.mxu0 %v705
    %2362 = vmatprep.subr.bf16.mxu0 0
    %2363 = vmatpush1.bf16.msra.mxu0 %v704
    %2364 = vmatprep.subr.bf16.mxu0 0
    %2365 = vmatpush2.bf16.msra.mxu0 %v719
    %2366 = vmatprep.subr.bf16.mxu0 0
    %2367 = vmatpush2.bf16.msra.mxu0 %v718
    %2368 = vmatprep.subr.bf16.mxu0 0
    %2369 = vmatpush2.bf16.msra.mxu0 %v717
    %2370 = vmatprep.subr.bf16.mxu0 0
    %2371 = vmatpush2.bf16.msra.mxu0 %v716
    %2372 = vmatprep.subr.bf16.mxu0 0
    %2373 = vmatpush2.bf16.msra.mxu0 %v715
    %2374 = vmatprep.subr.bf16.mxu0 0
    %2375 = vmatpush2.bf16.msra.mxu0 %v714
    %2376 = vmatprep.subr.bf16.mxu0 0
    %2377 = vmatpush2.bf16.msra.mxu0 %v713
    %2378 = vmatprep.subr.bf16.mxu0 0
    %2379 = vmatpush2.bf16.msra.mxu0 %v712
    %2380 = vmatprep.mubr.bf16.mxu0 %v2285
    %2381 = vmatmul.mubr.bf16.gmra.mxu0 %v2284
    %v2382 = vpop.f32.mrf.mxu0
    %v2383 = vadd.f32 0.0, %v2382
    %v2384 = vpop.f32.mrf.mxu0
    %v2385 = vpop.f32.mrf.mxu0
    %v2386 = vadd.f32 0.0, %v2385
    %v2387 = vpop.f32.mrf.mxu0
    %2388 = vmatprep.mubr.bf16.mxu0 %v2289
    %2389 = vmatmul.mubr.bf16.gmra.mxu0 %v2288
    %v2390 = vpop.f32.mrf.mxu0
    %v2391 = vadd.f32 0.0, %v2390
    %v2392 = vpop.f32.mrf.mxu0
    %v2393 = vpop.f32.mrf.mxu0
    %v2394 = vadd.f32 0.0, %v2393
    %v2395 = vpop.f32.mrf.mxu0
    %2396 = vmatprep.mubr.bf16.mxu0 %v2293
    %2397 = vmatmul.mubr.bf16.gmra.mxu0 %v2292
    %v2398 = vpop.f32.mrf.mxu0
    %v2399 = vadd.f32 0.0, %v2398
    %v2400 = vpop.f32.mrf.mxu0
    %v2401 = vpop.f32.mrf.mxu0
    %v2402 = vadd.f32 0.0, %v2401
    %v2403 = vpop.f32.mrf.mxu0
    %2404 = vmatprep.mubr.bf16.mxu0 %v2297
    %2405 = vmatmul.mubr.bf16.gmra.mxu0 %v2296
    %v2406 = vpop.f32.mrf.mxu0
    %v2407 = vadd.f32 0.0, %v2406
    %v2408 = vpop.f32.mrf.mxu0
    %v2409 = vpop.f32.mrf.mxu0
    %v2410 = vadd.f32 0.0, %v2409
    %v2411 = vpop.f32.mrf.mxu0
    %2412 = vmatprep.mubr.bf16.mxu0 %v2301
    %2413 = vmatmul.mubr.bf16.gmra.mxu0 %v2300
    %v2414 = vpop.f32.mrf.mxu0
    %v2415 = vadd.f32 0.0, %v2414
    %v2416 = vpop.f32.mrf.mxu0
    %v2417 = vpop.f32.mrf.mxu0
    %v2418 = vadd.f32 0.0, %v2417
    %v2419 = vpop.f32.mrf.mxu0
    %2420 = vmatprep.mubr.bf16.mxu0 %v2305
    %2421 = vmatmul.mubr.bf16.gmra.mxu0 %v2304
    %v2422 = vpop.f32.mrf.mxu0
    %v2423 = vadd.f32 0.0, %v2422
    %v2424 = vpop.f32.mrf.mxu0
    %v2425 = vpop.f32.mrf.mxu0
    %v2426 = vadd.f32 0.0, %v2425
    %v2427 = vpop.f32.mrf.mxu0
    %2428 = vmatprep.mubr.bf16.mxu0 %v2309
    %2429 = vmatmul.mubr.bf16.gmra.mxu0 %v2308
    %v2430 = vpop.f32.mrf.mxu0
    %v2431 = vadd.f32 0.0, %v2430
    %v2432 = vpop.f32.mrf.mxu0
    %v2433 = vpop.f32.mrf.mxu0
    %v2434 = vadd.f32 0.0, %v2433
    %v2435 = vpop.f32.mrf.mxu0
    %2436 = vmatprep.mubr.bf16.mxu0 %v2313
    %2437 = vmatmul.mubr.bf16.gmra.mxu0 %v2312
    %v2438 = vpop.f32.mrf.mxu0
    %v2439 = vadd.f32 0.0, %v2438
    %v2440 = vpop.f32.mrf.mxu0
    %v2441 = vpop.f32.mrf.mxu0
    %v2442 = vadd.f32 0.0, %v2441
    %v2443 = vpop.f32.mrf.mxu0
    %2444 = vdwg.mxu0
    %2445 = vmatprep.subr.bf16.mxu0 0
    %2446 = vmatpush1.bf16.msra.mxu0 %v727
    %2447 = vmatprep.subr.bf16.mxu0 0
    %2448 = vmatpush1.bf16.msra.mxu0 %v726
    %2449 = vmatprep.subr.bf16.mxu0 0
    %2450 = vmatpush1.bf16.msra.mxu0 %v725
    %2451 = vmatprep.subr.bf16.mxu0 0
    %2452 = vmatpush1.bf16.msra.mxu0 %v724
    %2453 = vmatprep.subr.bf16.mxu0 0
    %2454 = vmatpush1.bf16.msra.mxu0 %v723
    %2455 = vmatprep.subr.bf16.mxu0 0
    %2456 = vmatpush1.bf16.msra.mxu0 %v722
    %2457 = vmatprep.subr.bf16.mxu0 0
    %2458 = vmatpush1.bf16.msra.mxu0 %v721
    %2459 = vmatprep.subr.bf16.mxu0 0
    %2460 = vmatpush1.bf16.msra.mxu0 %v720
    %2461 = vmatprep.subr.bf16.mxu0 0
    %2462 = vmatpush2.bf16.msra.mxu0 %v735
    %2463 = vmatprep.subr.bf16.mxu0 0
    %2464 = vmatpush2.bf16.msra.mxu0 %v734
    %2465 = vmatprep.subr.bf16.mxu0 0
    %2466 = vmatpush2.bf16.msra.mxu0 %v733
    %2467 = vmatprep.subr.bf16.mxu0 0
    %2468 = vmatpush2.bf16.msra.mxu0 %v732
    %2469 = vmatprep.subr.bf16.mxu0 0
    %2470 = vmatpush2.bf16.msra.mxu0 %v731
    %2471 = vmatprep.subr.bf16.mxu0 0
    %2472 = vmatpush2.bf16.msra.mxu0 %v730
    %2473 = vmatprep.subr.bf16.mxu0 0
    %2474 = vmatpush2.bf16.msra.mxu0 %v729
    %2475 = vmatprep.subr.bf16.mxu0 0
    %2476 = vmatpush2.bf16.msra.mxu0 %v728
    %2477 = vmatprep.mubr.bf16.mxu0 %v2287
    %2478 = vmatmul.mubr.bf16.gmra.mxu0 %v2286
    %v2479 = vpop.f32.mrf.mxu0
    %v2480 = vadd.f32 %v2383, %v2479
    %v2481 = vpop.f32.mrf.mxu0
    %v2482 = vpop.f32.mrf.mxu0
    %v2483 = vadd.f32 %v2386, %v2482
    %v2484 = vpop.f32.mrf.mxu0
    %2485 = vmatprep.mubr.bf16.mxu0 %v2291
    %2486 = vmatmul.mubr.bf16.gmra.mxu0 %v2290
    %v2487 = vpop.f32.mrf.mxu0
    %v2488 = vadd.f32 %v2391, %v2487
    %v2489 = vpop.f32.mrf.mxu0
    %v2490 = vpop.f32.mrf.mxu0
    %v2491 = vadd.f32 %v2394, %v2490
    %v2492 = vpop.f32.mrf.mxu0
    %2493 = vmatprep.mubr.bf16.mxu0 %v2295
    %2494 = vmatmul.mubr.bf16.gmra.mxu0 %v2294
    %v2495 = vpop.f32.mrf.mxu0
    %v2496 = vadd.f32 %v2399, %v2495
    %v2497 = vpop.f32.mrf.mxu0
    %v2498 = vpop.f32.mrf.mxu0
    %v2499 = vadd.f32 %v2402, %v2498
    %v2500 = vpop.f32.mrf.mxu0
    %2501 = vmatprep.mubr.bf16.mxu0 %v2299
    %2502 = vmatmul.mubr.bf16.gmra.mxu0 %v2298
    %v2503 = vpop.f32.mrf.mxu0
    %v2504 = vadd.f32 %v2407, %v2503
    %v2505 = vpop.f32.mrf.mxu0
    %v2506 = vpop.f32.mrf.mxu0
    %v2507 = vadd.f32 %v2410, %v2506
    %v2508 = vpop.f32.mrf.mxu0
    %2509 = vmatprep.mubr.bf16.mxu0 %v2303
    %2510 = vmatmul.mubr.bf16.gmra.mxu0 %v2302
    %v2511 = vpop.f32.mrf.mxu0
    %v2512 = vadd.f32 %v2415, %v2511
    %v2513 = vpop.f32.mrf.mxu0
    %v2514 = vpop.f32.mrf.mxu0
    %v2515 = vadd.f32 %v2418, %v2514
    %v2516 = vpop.f32.mrf.mxu0
    %2517 = vmatprep.mubr.bf16.mxu0 %v2307
    %2518 = vmatmul.mubr.bf16.gmra.mxu0 %v2306
    %v2519 = vpop.f32.mrf.mxu0
    %v2520 = vadd.f32 %v2423, %v2519
    %v2521 = vpop.f32.mrf.mxu0
    %v2522 = vpop.f32.mrf.mxu0
    %v2523 = vadd.f32 %v2426, %v2522
    %v2524 = vpop.f32.mrf.mxu0
    %2525 = vmatprep.mubr.bf16.mxu0 %v2311
    %2526 = vmatmul.mubr.bf16.gmra.mxu0 %v2310
    %v2527 = vpop.f32.mrf.mxu0
    %v2528 = vadd.f32 %v2431, %v2527
    %v2529 = vpop.f32.mrf.mxu0
    %v2530 = vpop.f32.mrf.mxu0
    %v2531 = vadd.f32 %v2434, %v2530
    %v2532 = vpop.f32.mrf.mxu0
    %2533 = vmatprep.mubr.bf16.mxu0 %v2315
    %2534 = vmatmul.mubr.bf16.gmra.mxu0 %v2314
    %v2535 = vpop.f32.mrf.mxu0
    %v2536 = vadd.f32 %v2439, %v2535
    %v2537 = vpop.f32.mrf.mxu0
    %v2538 = vpop.f32.mrf.mxu0
    %v2539 = vadd.f32 %v2442, %v2538
    %v2540 = vpop.f32.mrf.mxu0
    %2541 = vdwg.mxu0
    %v2542 = vpack.c.bf16 %v2483, %v2480
    %v2543 = vpack.c.bf16 %v2491, %v2488
    %v2544 = vpack.c.bf16 %v2499, %v2496
    %v2545 = vpack.c.bf16 %v2507, %v2504
    %v2546 = vpack.c.bf16 %v2515, %v2512
    %v2547 = vpack.c.bf16 %v2523, %v2520
    %v2548 = vpack.c.bf16 %v2531, %v2528
    %v2549 = vpack.c.bf16 %v2539, %v2536
    %s2550 = scalar_lea.vmem [#allocation4], 6
    %v2551 = vld [vmem:[%s2550] sm:$0x3]
    %v2553 = vsel %vm1368, %v2542, 0
    %v2556 = vsel %vm1368, %v2543, 0
    %v2559 = vsel %vm1368, %v2544, 0
    %v2562 = vsel %vm1368, %v2545, 0
    %v2565 = vsel %vm1368, %v2546, 0
    %v2568 = vsel %vm1368, %v2547, 0
    %v2571 = vsel %vm1368, %v2548, 0
    %v2574 = vsel %vm1368, %v2549, 0
    %v2577 = vsel %vm1393, %v2551, 0
    %2579 = vmatprep.subr.bf16.mxu0 0
    %2580 = vmatpush1.bf16.msra.mxu0 0
    %2581 = vmatprep.subr.bf16.mxu0 0
    %2582 = vmatpush1.bf16.msra.mxu0 0
    %2583 = vmatprep.subr.bf16.mxu0 0
    %2584 = vmatpush1.bf16.msra.mxu0 0
    %2585 = vmatprep.subr.bf16.mxu0 0
    %2586 = vmatpush1.bf16.msra.mxu0 0
    %2587 = vmatprep.subr.bf16.mxu0 0
    %2588 = vmatpush1.bf16.msra.mxu0 0
    %2589 = vmatprep.subr.bf16.mxu0 0
    %2590 = vmatpush1.bf16.msra.mxu0 0
    %2591 = vmatprep.subr.bf16.mxu0 0
    %2592 = vmatpush1.bf16.msra.mxu0 0
    %2593 = vmatprep.subr.bf16.mxu0 0
    %2594 = vmatpush1.bf16.msra.mxu0 %v2577
    %2595 = vmatprep.subr.bf16.mxu0 0
    %2596 = vmatpush2.bf16.msra.mxu0 0
    %2597 = vmatprep.subr.bf16.mxu0 0
    %2598 = vmatpush2.bf16.msra.mxu0 0
    %2599 = vmatprep.subr.bf16.mxu0 0
    %2600 = vmatpush2.bf16.msra.mxu0 0
    %2601 = vmatprep.subr.bf16.mxu0 0
    %2602 = vmatpush2.bf16.msra.mxu0 0
    %2603 = vmatprep.subr.bf16.mxu0 0
    %2604 = vmatpush2.bf16.msra.mxu0 0
    %2605 = vmatprep.subr.bf16.mxu0 0
    %2606 = vmatpush2.bf16.msra.mxu0 0
    %2607 = vmatprep.subr.bf16.mxu0 0
    %2608 = vmatpush2.bf16.msra.mxu0 0
    %2609 = vmatprep.subr.bf16.mxu0 0
    %2610 = vmatpush2.bf16.msra.mxu0 0
    %2611 = vmatprep.mubr.bf16.mxu0 0
    %2612 = vmatmul.mubr.bf16.gmra.mxu0 %v2553
    %v2613 = vpop.f32.mrf.mxu0
    %v2614 = vadd.f32 0.0, %v2613
    %v2615 = vpop.f32.mrf.mxu0
    %v2616 = vpop.f32.mrf.mxu0
    %v2617 = vadd.f32 0.0, %v2616
    %v2618 = vpop.f32.mrf.mxu0
    %2619 = vmatprep.mubr.bf16.mxu0 0
    %2620 = vmatmul.mubr.bf16.gmra.mxu0 %v2556
    %v2621 = vpop.f32.mrf.mxu0
    %v2622 = vadd.f32 0.0, %v2621
    %v2623 = vpop.f32.mrf.mxu0
    %v2624 = vpop.f32.mrf.mxu0
    %v2625 = vadd.f32 0.0, %v2624
    %v2626 = vpop.f32.mrf.mxu0
    %2627 = vmatprep.mubr.bf16.mxu0 0
    %2628 = vmatmul.mubr.bf16.gmra.mxu0 %v2559
    %v2629 = vpop.f32.mrf.mxu0
    %v2630 = vadd.f32 0.0, %v2629
    %v2631 = vpop.f32.mrf.mxu0
    %v2632 = vpop.f32.mrf.mxu0
    %v2633 = vadd.f32 0.0, %v2632
    %v2634 = vpop.f32.mrf.mxu0
    %2635 = vmatprep.mubr.bf16.mxu0 0
    %2636 = vmatmul.mubr.bf16.gmra.mxu0 %v2562
    %v2637 = vpop.f32.mrf.mxu0
    %v2638 = vadd.f32 0.0, %v2637
    %v2639 = vpop.f32.mrf.mxu0
    %v2640 = vpop.f32.mrf.mxu0
    %v2641 = vadd.f32 0.0, %v2640
    %v2642 = vpop.f32.mrf.mxu0
    %2643 = vmatprep.mubr.bf16.mxu0 0
    %2644 = vmatmul.mubr.bf16.gmra.mxu0 %v2565
    %v2645 = vpop.f32.mrf.mxu0
    %v2646 = vadd.f32 0.0, %v2645
    %v2647 = vpop.f32.mrf.mxu0
    %v2648 = vpop.f32.mrf.mxu0
    %v2649 = vadd.f32 0.0, %v2648
    %v2650 = vpop.f32.mrf.mxu0
    %2651 = vmatprep.mubr.bf16.mxu0 0
    %2652 = vmatmul.mubr.bf16.gmra.mxu0 %v2568
    %v2653 = vpop.f32.mrf.mxu0
    %v2654 = vadd.f32 0.0, %v2653
    %v2655 = vpop.f32.mrf.mxu0
    %v2656 = vpop.f32.mrf.mxu0
    %v2657 = vadd.f32 0.0, %v2656
    %v2658 = vpop.f32.mrf.mxu0
    %2659 = vmatprep.mubr.bf16.mxu0 0
    %2660 = vmatmul.mubr.bf16.gmra.mxu0 %v2571
    %v2661 = vpop.f32.mrf.mxu0
    %v2662 = vadd.f32 0.0, %v2661
    %v2663 = vpop.f32.mrf.mxu0
    %v2664 = vpop.f32.mrf.mxu0
    %v2665 = vadd.f32 0.0, %v2664
    %v2666 = vpop.f32.mrf.mxu0
    %2667 = vmatprep.mubr.bf16.mxu0 0
    %2668 = vmatmul.mubr.bf16.gmra.mxu0 %v2574
    %v2669 = vpop.f32.mrf.mxu0
    %v2670 = vadd.f32 0.0, %v2669
    %v2671 = vpop.f32.mrf.mxu0
    %v2672 = vpop.f32.mrf.mxu0
    %v2673 = vadd.f32 0.0, %v2672
    %v2674 = vpop.f32.mrf.mxu0
    %2675 = vdwg.mxu0
    %v2676 = vadd.f32 %v2139, %v2614
    %v2677 = vadd.f32 %v2140, %v2617
    %v2678 = vadd.f32 %v2141, %v2622
    %v2679 = vadd.f32 %v2142, %v2625
    %v2680 = vadd.f32 %v2143, %v2630
    %v2681 = vadd.f32 %v2144, %v2633
    %v2682 = vadd.f32 %v2145, %v2638
    %v2683 = vadd.f32 %v2146, %v2641
    %v2684 = vadd.f32 %v2147, %v2646
    %v2685 = vadd.f32 %v2148, %v2649
    %v2686 = vadd.f32 %v2149, %v2654
    %v2687 = vadd.f32 %v2150, %v2657
    %v2688 = vadd.f32 %v2151, %v2662
    %v2689 = vadd.f32 %v2152, %v2665
    %v2690 = vadd.f32 %v2153, %v2670
    %v2691 = vadd.f32 %v2154, %v2673
    %s2692 = scalar_lea.vmem [#allocation2], 1024
    %v2693 = vld [vmem:[%s2692] sm:$0xff]
    %v2694 = vld [vmem:[%s2692 + $0x8] sm:$0xff]
    %v2695 = vld [vmem:[%s2692 + $0x10] sm:$0xff]
    %v2696 = vld [vmem:[%s2692 + $0x18] sm:$0xff]
    %v2697 = vld [vmem:[%s2692 + $0x20] sm:$0xff]
    %v2698 = vld [vmem:[%s2692 + $0x28] sm:$0xff]
    %v2699 = vld [vmem:[%s2692 + $0x30] sm:$0xff]
    %v2700 = vld [vmem:[%s2692 + $0x38] sm:$0xff]
    %v2701 = vld [vmem:[%s2692 + $0x40] sm:$0xff]
    %v2702 = vld [vmem:[%s2692 + $0x48] sm:$0xff]
    %v2703 = vld [vmem:[%s2692 + $0x50] sm:$0xff]
    %v2704 = vld [vmem:[%s2692 + $0x58] sm:$0xff]
    %v2705 = vld [vmem:[%s2692 + $0x60] sm:$0xff]
    %v2706 = vld [vmem:[%s2692 + $0x68] sm:$0xff]
    %v2707 = vld [vmem:[%s2692 + $0x70] sm:$0xff]
    %v2708 = vld [vmem:[%s2692 + $0x78] sm:$0xff]
    %v2709 = vld [vmem:[%s2692 + $0x80] sm:$0xff]
    %v2710 = vld [vmem:[%s2692 + $0x88] sm:$0xff]
    %v2711 = vld [vmem:[%s2692 + $0x90] sm:$0xff]
    %v2712 = vld [vmem:[%s2692 + $0x98] sm:$0xff]
    %v2713 = vld [vmem:[%s2692 + $0xa0] sm:$0xff]
    %v2714 = vld [vmem:[%s2692 + $0xa8] sm:$0xff]
    %v2715 = vld [vmem:[%s2692 + $0xb0] sm:$0xff]
    %v2716 = vld [vmem:[%s2692 + $0xb8] sm:$0xff]
    %v2717 = vld [vmem:[%s2692 + $0xc0] sm:$0xff]
    %v2718 = vld [vmem:[%s2692 + $0xc8] sm:$0xff]
    %v2719 = vld [vmem:[%s2692 + $0xd0] sm:$0xff]
    %v2720 = vld [vmem:[%s2692 + $0xd8] sm:$0xff]
    %v2721 = vld [vmem:[%s2692 + $0xe0] sm:$0xff]
    %v2722 = vld [vmem:[%s2692 + $0xe8] sm:$0xff]
    %v2723 = vld [vmem:[%s2692 + $0xf0] sm:$0xff]
    %v2724 = vld [vmem:[%s2692 + $0xf8] sm:$0xff]
    %v2757 = vunpack.c.l.b16 %v2693
    %v2758 = vunpack.c.h.b16 %v2693
    %v2759 = vunpack.c.l.b16 %v2694
    %v2760 = vunpack.c.h.b16 %v2694
    %v2761 = vunpack.c.l.b16 %v2695
    %v2762 = vunpack.c.h.b16 %v2695
    %v2763 = vunpack.c.l.b16 %v2696
    %v2764 = vunpack.c.h.b16 %v2696
    %v2765 = vunpack.c.l.b16 %v2697
    %v2766 = vunpack.c.h.b16 %v2697
    %v2767 = vunpack.c.l.b16 %v2698
    %v2768 = vunpack.c.h.b16 %v2698
    %v2769 = vunpack.c.l.b16 %v2699
    %v2770 = vunpack.c.h.b16 %v2699
    %v2771 = vunpack.c.l.b16 %v2700
    %v2772 = vunpack.c.h.b16 %v2700
    %v2773 = vunpack.c.l.b16 %v2701
    %v2774 = vunpack.c.h.b16 %v2701
    %v2775 = vunpack.c.l.b16 %v2702
    %v2776 = vunpack.c.h.b16 %v2702
    %v2777 = vunpack.c.l.b16 %v2703
    %v2778 = vunpack.c.h.b16 %v2703
    %v2779 = vunpack.c.l.b16 %v2704
    %v2780 = vunpack.c.h.b16 %v2704
    %v2781 = vunpack.c.l.b16 %v2705
    %v2782 = vunpack.c.h.b16 %v2705
    %v2783 = vunpack.c.l.b16 %v2706
    %v2784 = vunpack.c.h.b16 %v2706
    %v2785 = vunpack.c.l.b16 %v2707
    %v2786 = vunpack.c.h.b16 %v2707
    %v2787 = vunpack.c.l.b16 %v2708
    %v2788 = vunpack.c.h.b16 %v2708
    %v2789 = vunpack.c.l.b16 %v2709
    %v2790 = vunpack.c.h.b16 %v2709
    %v2791 = vunpack.c.l.b16 %v2710
    %v2792 = vunpack.c.h.b16 %v2710
    %v2793 = vunpack.c.l.b16 %v2711
    %v2794 = vunpack.c.h.b16 %v2711
    %v2795 = vunpack.c.l.b16 %v2712
    %v2796 = vunpack.c.h.b16 %v2712
    %v2797 = vunpack.c.l.b16 %v2713
    %v2798 = vunpack.c.h.b16 %v2713
    %v2799 = vunpack.c.l.b16 %v2714
    %v2800 = vunpack.c.h.b16 %v2714
    %v2801 = vunpack.c.l.b16 %v2715
    %v2802 = vunpack.c.h.b16 %v2715
    %v2803 = vunpack.c.l.b16 %v2716
    %v2804 = vunpack.c.h.b16 %v2716
    %v2805 = vunpack.c.l.b16 %v2717
    %v2806 = vunpack.c.h.b16 %v2717
    %v2807 = vunpack.c.l.b16 %v2718
    %v2808 = vunpack.c.h.b16 %v2718
    %v2809 = vunpack.c.l.b16 %v2719
    %v2810 = vunpack.c.h.b16 %v2719
    %v2811 = vunpack.c.l.b16 %v2720
    %v2812 = vunpack.c.h.b16 %v2720
    %v2813 = vunpack.c.l.b16 %v2721
    %v2814 = vunpack.c.h.b16 %v2721
    %v2815 = vunpack.c.l.b16 %v2722
    %v2816 = vunpack.c.h.b16 %v2722
    %v2817 = vunpack.c.l.b16 %v2723
    %v2818 = vunpack.c.h.b16 %v2723
    %v2819 = vunpack.c.l.b16 %v2724
    %v2820 = vunpack.c.h.b16 %v2724
    %v2821 = vpack.c.b16 %v2761, %v2757
    %v2822 = vpack.c.b16 %v2762, %v2758
    %v2823 = vpack.c.b16 %v2763, %v2759
    %v2824 = vpack.c.b16 %v2764, %v2760
    %v2825 = vpack.c.b16 %v2769, %v2765
    %v2826 = vpack.c.b16 %v2770, %v2766
    %v2827 = vpack.c.b16 %v2771, %v2767
    %v2828 = vpack.c.b16 %v2772, %v2768
    %v2829 = vpack.c.b16 %v2777, %v2773
    %v2830 = vpack.c.b16 %v2778, %v2774
    %v2831 = vpack.c.b16 %v2779, %v2775
    %v2832 = vpack.c.b16 %v2780, %v2776
    %v2833 = vpack.c.b16 %v2785, %v2781
    %v2834 = vpack.c.b16 %v2786, %v2782
    %v2835 = vpack.c.b16 %v2787, %v2783
    %v2836 = vpack.c.b16 %v2788, %v2784
    %v2837 = vpack.c.b16 %v2793, %v2789
    %v2838 = vpack.c.b16 %v2794, %v2790
    %v2839 = vpack.c.b16 %v2795, %v2791
    %v2840 = vpack.c.b16 %v2796, %v2792
    %v2841 = vpack.c.b16 %v2801, %v2797
    %v2842 = vpack.c.b16 %v2802, %v2798
    %v2843 = vpack.c.b16 %v2803, %v2799
    %v2844 = vpack.c.b16 %v2804, %v2800
    %v2845 = vpack.c.b16 %v2809, %v2805
    %v2846 = vpack.c.b16 %v2810, %v2806
    %v2847 = vpack.c.b16 %v2811, %v2807
    %v2848 = vpack.c.b16 %v2812, %v2808
    %v2849 = vpack.c.b16 %v2817, %v2813
    %v2850 = vpack.c.b16 %v2818, %v2814
    %v2851 = vpack.c.b16 %v2819, %v2815
    %v2852 = vpack.c.b16 %v2820, %v2816
    %2885 = vmatprep.subr.bf16.mxu0 0
    %2886 = vmatpush1.bf16.msra.mxu0 %v711
    %2887 = vmatprep.subr.bf16.mxu0 0
    %2888 = vmatpush1.bf16.msra.mxu0 %v710
    %2889 = vmatprep.subr.bf16.mxu0 0
    %2890 = vmatpush1.bf16.msra.mxu0 %v709
    %2891 = vmatprep.subr.bf16.mxu0 0
    %2892 = vmatpush1.bf16.msra.mxu0 %v708
    %2893 = vmatprep.subr.bf16.mxu0 0
    %2894 = vmatpush1.bf16.msra.mxu0 %v707
    %2895 = vmatprep.subr.bf16.mxu0 0
    %2896 = vmatpush1.bf16.msra.mxu0 %v706
    %2897 = vmatprep.subr.bf16.mxu0 0
    %2898 = vmatpush1.bf16.msra.mxu0 %v705
    %2899 = vmatprep.subr.bf16.mxu0 0
    %2900 = vmatpush1.bf16.msra.mxu0 %v704
    %2901 = vmatprep.subr.bf16.mxu0 0
    %2902 = vmatpush2.bf16.msra.mxu0 %v719
    %2903 = vmatprep.subr.bf16.mxu0 0
    %2904 = vmatpush2.bf16.msra.mxu0 %v718
    %2905 = vmatprep.subr.bf16.mxu0 0
    %2906 = vmatpush2.bf16.msra.mxu0 %v717
    %2907 = vmatprep.subr.bf16.mxu0 0
    %2908 = vmatpush2.bf16.msra.mxu0 %v716
    %2909 = vmatprep.subr.bf16.mxu0 0
    %2910 = vmatpush2.bf16.msra.mxu0 %v715
    %2911 = vmatprep.subr.bf16.mxu0 0
    %2912 = vmatpush2.bf16.msra.mxu0 %v714
    %2913 = vmatprep.subr.bf16.mxu0 0
    %2914 = vmatpush2.bf16.msra.mxu0 %v713
    %2915 = vmatprep.subr.bf16.mxu0 0
    %2916 = vmatpush2.bf16.msra.mxu0 %v712
    %2917 = vmatprep.mubr.bf16.mxu0 %v2822
    %2918 = vmatmul.mubr.bf16.gmra.mxu0 %v2821
    %v2919 = vpop.f32.mrf.mxu0
    %v2920 = vadd.f32 0.0, %v2919
    %v2921 = vpop.f32.mrf.mxu0
    %v2922 = vpop.f32.mrf.mxu0
    %v2923 = vadd.f32 0.0, %v2922
    %v2924 = vpop.f32.mrf.mxu0
    %2925 = vmatprep.mubr.bf16.mxu0 %v2826
    %2926 = vmatmul.mubr.bf16.gmra.mxu0 %v2825
    %v2927 = vpop.f32.mrf.mxu0
    %v2928 = vadd.f32 0.0, %v2927
    %v2929 = vpop.f32.mrf.mxu0
    %v2930 = vpop.f32.mrf.mxu0
    %v2931 = vadd.f32 0.0, %v2930
    %v2932 = vpop.f32.mrf.mxu0
    %2933 = vmatprep.mubr.bf16.mxu0 %v2830
    %2934 = vmatmul.mubr.bf16.gmra.mxu0 %v2829
    %v2935 = vpop.f32.mrf.mxu0
    %v2936 = vadd.f32 0.0, %v2935
    %v2937 = vpop.f32.mrf.mxu0
    %v2938 = vpop.f32.mrf.mxu0
    %v2939 = vadd.f32 0.0, %v2938
    %v2940 = vpop.f32.mrf.mxu0
    %2941 = vmatprep.mubr.bf16.mxu0 %v2834
    %2942 = vmatmul.mubr.bf16.gmra.mxu0 %v2833
    %v2943 = vpop.f32.mrf.mxu0
    %v2944 = vadd.f32 0.0, %v2943
    %v2945 = vpop.f32.mrf.mxu0
    %v2946 = vpop.f32.mrf.mxu0
    %v2947 = vadd.f32 0.0, %v2946
    %v2948 = vpop.f32.mrf.mxu0
    %2949 = vmatprep.mubr.bf16.mxu0 %v2838
    %2950 = vmatmul.mubr.bf16.gmra.mxu0 %v2837
    %v2951 = vpop.f32.mrf.mxu0
    %v2952 = vadd.f32 0.0, %v2951
    %v2953 = vpop.f32.mrf.mxu0
    %v2954 = vpop.f32.mrf.mxu0
    %v2955 = vadd.f32 0.0, %v2954
    %v2956 = vpop.f32.mrf.mxu0
    %2957 = vmatprep.mubr.bf16.mxu0 %v2842
    %2958 = vmatmul.mubr.bf16.gmra.mxu0 %v2841
    %v2959 = vpop.f32.mrf.mxu0
    %v2960 = vadd.f32 0.0, %v2959
    %v2961 = vpop.f32.mrf.mxu0
    %v2962 = vpop.f32.mrf.mxu0
    %v2963 = vadd.f32 0.0, %v2962
    %v2964 = vpop.f32.mrf.mxu0
    %2965 = vmatprep.mubr.bf16.mxu0 %v2846
    %2966 = vmatmul.mubr.bf16.gmra.mxu0 %v2845
    %v2967 = vpop.f32.mrf.mxu0
    %v2968 = vadd.f32 0.0, %v2967
    %v2969 = vpop.f32.mrf.mxu0
    %v2970 = vpop.f32.mrf.mxu0
    %v2971 = vadd.f32 0.0, %v2970
    %v2972 = vpop.f32.mrf.mxu0
    %2973 = vmatprep.mubr.bf16.mxu0 %v2850
    %2974 = vmatmul.mubr.bf16.gmra.mxu0 %v2849
    %v2975 = vpop.f32.mrf.mxu0
    %v2976 = vadd.f32 0.0, %v2975
    %v2977 = vpop.f32.mrf.mxu0
    %v2978 = vpop.f32.mrf.mxu0
    %v2979 = vadd.f32 0.0, %v2978
    %v2980 = vpop.f32.mrf.mxu0
    %2981 = vdwg.mxu0
    %2982 = vmatprep.subr.bf16.mxu0 0
    %2983 = vmatpush1.bf16.msra.mxu0 %v727
    %2984 = vmatprep.subr.bf16.mxu0 0
    %2985 = vmatpush1.bf16.msra.mxu0 %v726
    %2986 = vmatprep.subr.bf16.mxu0 0
    %2987 = vmatpush1.bf16.msra.mxu0 %v725
    %2988 = vmatprep.subr.bf16.mxu0 0
    %2989 = vmatpush1.bf16.msra.mxu0 %v724
    %2990 = vmatprep.subr.bf16.mxu0 0
    %2991 = vmatpush1.bf16.msra.mxu0 %v723
    %2992 = vmatprep.subr.bf16.mxu0 0
    %2993 = vmatpush1.bf16.msra.mxu0 %v722
    %2994 = vmatprep.subr.bf16.mxu0 0
    %2995 = vmatpush1.bf16.msra.mxu0 %v721
    %2996 = vmatprep.subr.bf16.mxu0 0
    %2997 = vmatpush1.bf16.msra.mxu0 %v720
    %2998 = vmatprep.subr.bf16.mxu0 0
    %2999 = vmatpush2.bf16.msra.mxu0 %v735
    %3000 = vmatprep.subr.bf16.mxu0 0
    %3001 = vmatpush2.bf16.msra.mxu0 %v734
    %3002 = vmatprep.subr.bf16.mxu0 0
    %3003 = vmatpush2.bf16.msra.mxu0 %v733
    %3004 = vmatprep.subr.bf16.mxu0 0
    %3005 = vmatpush2.bf16.msra.mxu0 %v732
    %3006 = vmatprep.subr.bf16.mxu0 0
    %3007 = vmatpush2.bf16.msra.mxu0 %v731
    %3008 = vmatprep.subr.bf16.mxu0 0
    %3009 = vmatpush2.bf16.msra.mxu0 %v730
    %3010 = vmatprep.subr.bf16.mxu0 0
    %3011 = vmatpush2.bf16.msra.mxu0 %v729
    %3012 = vmatprep.subr.bf16.mxu0 0
    %3013 = vmatpush2.bf16.msra.mxu0 %v728
    %3014 = vmatprep.mubr.bf16.mxu0 %v2824
    %3015 = vmatmul.mubr.bf16.gmra.mxu0 %v2823
    %v3016 = vpop.f32.mrf.mxu0
    %v3017 = vadd.f32 %v2920, %v3016
    %v3018 = vpop.f32.mrf.mxu0
    %v3019 = vpop.f32.mrf.mxu0
    %v3020 = vadd.f32 %v2923, %v3019
    %v3021 = vpop.f32.mrf.mxu0
    %3022 = vmatprep.mubr.bf16.mxu0 %v2828
    %3023 = vmatmul.mubr.bf16.gmra.mxu0 %v2827
    %v3024 = vpop.f32.mrf.mxu0
    %v3025 = vadd.f32 %v2928, %v3024
    %v3026 = vpop.f32.mrf.mxu0
    %v3027 = vpop.f32.mrf.mxu0
    %v3028 = vadd.f32 %v2931, %v3027
    %v3029 = vpop.f32.mrf.mxu0
    %3030 = vmatprep.mubr.bf16.mxu0 %v2832
    %3031 = vmatmul.mubr.bf16.gmra.mxu0 %v2831
    %v3032 = vpop.f32.mrf.mxu0
    %v3033 = vadd.f32 %v2936, %v3032
    %v3034 = vpop.f32.mrf.mxu0
    %v3035 = vpop.f32.mrf.mxu0
    %v3036 = vadd.f32 %v2939, %v3035
    %v3037 = vpop.f32.mrf.mxu0
    %3038 = vmatprep.mubr.bf16.mxu0 %v2836
    %3039 = vmatmul.mubr.bf16.gmra.mxu0 %v2835
    %v3040 = vpop.f32.mrf.mxu0
    %v3041 = vadd.f32 %v2944, %v3040
    %v3042 = vpop.f32.mrf.mxu0
    %v3043 = vpop.f32.mrf.mxu0
    %v3044 = vadd.f32 %v2947, %v3043
    %v3045 = vpop.f32.mrf.mxu0
    %3046 = vmatprep.mubr.bf16.mxu0 %v2840
    %3047 = vmatmul.mubr.bf16.gmra.mxu0 %v2839
    %v3048 = vpop.f32.mrf.mxu0
    %v3049 = vadd.f32 %v2952, %v3048
    %v3050 = vpop.f32.mrf.mxu0
    %v3051 = vpop.f32.mrf.mxu0
    %v3052 = vadd.f32 %v2955, %v3051
    %v3053 = vpop.f32.mrf.mxu0
    %3054 = vmatprep.mubr.bf16.mxu0 %v2844
    %3055 = vmatmul.mubr.bf16.gmra.mxu0 %v2843
    %v3056 = vpop.f32.mrf.mxu0
    %v3057 = vadd.f32 %v2960, %v3056
    %v3058 = vpop.f32.mrf.mxu0
    %v3059 = vpop.f32.mrf.mxu0
    %v3060 = vadd.f32 %v2963, %v3059
    %v3061 = vpop.f32.mrf.mxu0
    %3062 = vmatprep.mubr.bf16.mxu0 %v2848
    %3063 = vmatmul.mubr.bf16.gmra.mxu0 %v2847
    %v3064 = vpop.f32.mrf.mxu0
    %v3065 = vadd.f32 %v2968, %v3064
    %v3066 = vpop.f32.mrf.mxu0
    %v3067 = vpop.f32.mrf.mxu0
    %v3068 = vadd.f32 %v2971, %v3067
    %v3069 = vpop.f32.mrf.mxu0
    %3070 = vmatprep.mubr.bf16.mxu0 %v2852
    %3071 = vmatmul.mubr.bf16.gmra.mxu0 %v2851
    %v3072 = vpop.f32.mrf.mxu0
    %v3073 = vadd.f32 %v2976, %v3072
    %v3074 = vpop.f32.mrf.mxu0
    %v3075 = vpop.f32.mrf.mxu0
    %v3076 = vadd.f32 %v2979, %v3075
    %v3077 = vpop.f32.mrf.mxu0
    %3078 = vdwg.mxu0
    %v3079 = vpack.c.bf16 %v3020, %v3017
    %v3080 = vpack.c.bf16 %v3028, %v3025
    %v3081 = vpack.c.bf16 %v3036, %v3033
    %v3082 = vpack.c.bf16 %v3044, %v3041
    %v3083 = vpack.c.bf16 %v3052, %v3049
    %v3084 = vpack.c.bf16 %v3060, %v3057
    %v3085 = vpack.c.bf16 %v3068, %v3065
    %v3086 = vpack.c.bf16 %v3076, %v3073
    %s3087 = scalar_lea.vmem [#allocation4], 8
    %v3088 = vld [vmem:[%s3087] sm:$0x3]
    %v3090 = vsel %vm1368, %v3079, 0
    %v3093 = vsel %vm1368, %v3080, 0
    %v3096 = vsel %vm1368, %v3081, 0
    %v3099 = vsel %vm1368, %v3082, 0
    %v3102 = vsel %vm1368, %v3083, 0
    %v3105 = vsel %vm1368, %v3084, 0
    %v3108 = vsel %vm1368, %v3085, 0
    %v3111 = vsel %vm1368, %v3086, 0
    %v3114 = vsel %vm1393, %v3088, 0
    %3116 = vmatprep.subr.bf16.mxu0 0
    %3117 = vmatpush1.bf16.msra.mxu0 0
    %3118 = vmatprep.subr.bf16.mxu0 0
    %3119 = vmatpush1.bf16.msra.mxu0 0
    %3120 = vmatprep.subr.bf16.mxu0 0
    %3121 = vmatpush1.bf16.msra.mxu0 0
    %3122 = vmatprep.subr.bf16.mxu0 0
    %3123 = vmatpush1.bf16.msra.mxu0 0
    %3124 = vmatprep.subr.bf16.mxu0 0
    %3125 = vmatpush1.bf16.msra.mxu0 0
    %3126 = vmatprep.subr.bf16.mxu0 0
    %3127 = vmatpush1.bf16.msra.mxu0 0
    %3128 = vmatprep.subr.bf16.mxu0 0
    %3129 = vmatpush1.bf16.msra.mxu0 0
    %3130 = vmatprep.subr.bf16.mxu0 0
    %3131 = vmatpush1.bf16.msra.mxu0 %v3114
    %3132 = vmatprep.subr.bf16.mxu0 0
    %3133 = vmatpush2.bf16.msra.mxu0 0
    %3134 = vmatprep.subr.bf16.mxu0 0
    %3135 = vmatpush2.bf16.msra.mxu0 0
    %3136 = vmatprep.subr.bf16.mxu0 0
    %3137 = vmatpush2.bf16.msra.mxu0 0
    %3138 = vmatprep.subr.bf16.mxu0 0
    %3139 = vmatpush2.bf16.msra.mxu0 0
    %3140 = vmatprep.subr.bf16.mxu0 0
    %3141 = vmatpush2.bf16.msra.mxu0 0
    %3142 = vmatprep.subr.bf16.mxu0 0
    %3143 = vmatpush2.bf16.msra.mxu0 0
    %3144 = vmatprep.subr.bf16.mxu0 0
    %3145 = vmatpush2.bf16.msra.mxu0 0
    %3146 = vmatprep.subr.bf16.mxu0 0
    %3147 = vmatpush2.bf16.msra.mxu0 0
    %3148 = vmatprep.mubr.bf16.mxu0 0
    %3149 = vmatmul.mubr.bf16.gmra.mxu0 %v3090
    %v3150 = vpop.f32.mrf.mxu0
    %v3151 = vadd.f32 0.0, %v3150
    %v3152 = vpop.f32.mrf.mxu0
    %v3153 = vpop.f32.mrf.mxu0
    %v3154 = vadd.f32 0.0, %v3153
    %v3155 = vpop.f32.mrf.mxu0
    %3156 = vmatprep.mubr.bf16.mxu0 0
    %3157 = vmatmul.mubr.bf16.gmra.mxu0 %v3093
    %v3158 = vpop.f32.mrf.mxu0
    %v3159 = vadd.f32 0.0, %v3158
    %v3160 = vpop.f32.mrf.mxu0
    %v3161 = vpop.f32.mrf.mxu0
    %v3162 = vadd.f32 0.0, %v3161
    %v3163 = vpop.f32.mrf.mxu0
    %3164 = vmatprep.mubr.bf16.mxu0 0
    %3165 = vmatmul.mubr.bf16.gmra.mxu0 %v3096
    %v3166 = vpop.f32.mrf.mxu0
    %v3167 = vadd.f32 0.0, %v3166
    %v3168 = vpop.f32.mrf.mxu0
    %v3169 = vpop.f32.mrf.mxu0
    %v3170 = vadd.f32 0.0, %v3169
    %v3171 = vpop.f32.mrf.mxu0
    %3172 = vmatprep.mubr.bf16.mxu0 0
    %3173 = vmatmul.mubr.bf16.gmra.mxu0 %v3099
    %v3174 = vpop.f32.mrf.mxu0
    %v3175 = vadd.f32 0.0, %v3174
    %v3176 = vpop.f32.mrf.mxu0
    %v3177 = vpop.f32.mrf.mxu0
    %v3178 = vadd.f32 0.0, %v3177
    %v3179 = vpop.f32.mrf.mxu0
    %3180 = vmatprep.mubr.bf16.mxu0 0
    %3181 = vmatmul.mubr.bf16.gmra.mxu0 %v3102
    %v3182 = vpop.f32.mrf.mxu0
    %v3183 = vadd.f32 0.0, %v3182
    %v3184 = vpop.f32.mrf.mxu0
    %v3185 = vpop.f32.mrf.mxu0
    %v3186 = vadd.f32 0.0, %v3185
    %v3187 = vpop.f32.mrf.mxu0
    %3188 = vmatprep.mubr.bf16.mxu0 0
    %3189 = vmatmul.mubr.bf16.gmra.mxu0 %v3105
    %v3190 = vpop.f32.mrf.mxu0
    %v3191 = vadd.f32 0.0, %v3190
    %v3192 = vpop.f32.mrf.mxu0
    %v3193 = vpop.f32.mrf.mxu0
    %v3194 = vadd.f32 0.0, %v3193
    %v3195 = vpop.f32.mrf.mxu0
    %3196 = vmatprep.mubr.bf16.mxu0 0
    %3197 = vmatmul.mubr.bf16.gmra.mxu0 %v3108
    %v3198 = vpop.f32.mrf.mxu0
    %v3199 = vadd.f32 0.0, %v3198
    %v3200 = vpop.f32.mrf.mxu0
    %v3201 = vpop.f32.mrf.mxu0
    %v3202 = vadd.f32 0.0, %v3201
    %v3203 = vpop.f32.mrf.mxu0
    %3204 = vmatprep.mubr.bf16.mxu0 0
    %3205 = vmatmul.mubr.bf16.gmra.mxu0 %v3111
    %v3206 = vpop.f32.mrf.mxu0
    %v3207 = vadd.f32 0.0, %v3206
    %v3208 = vpop.f32.mrf.mxu0
    %v3209 = vpop.f32.mrf.mxu0
    %v3210 = vadd.f32 0.0, %v3209
    %v3211 = vpop.f32.mrf.mxu0
    %3212 = vdwg.mxu0
    %v3213 = vadd.f32 %v2676, %v3151
    %v3214 = vadd.f32 %v2677, %v3154
    %v3215 = vadd.f32 %v2678, %v3159
    %v3216 = vadd.f32 %v2679, %v3162
    %v3217 = vadd.f32 %v2680, %v3167
    %v3218 = vadd.f32 %v2681, %v3170
    %v3219 = vadd.f32 %v2682, %v3175
    %v3220 = vadd.f32 %v2683, %v3178
    %v3221 = vadd.f32 %v2684, %v3183
    %v3222 = vadd.f32 %v2685, %v3186
    %v3223 = vadd.f32 %v2686, %v3191
    %v3224 = vadd.f32 %v2687, %v3194
    %v3225 = vadd.f32 %v2688, %v3199
    %v3226 = vadd.f32 %v2689, %v3202
    %v3227 = vadd.f32 %v2690, %v3207
    %v3228 = vadd.f32 %v2691, %v3210
    %s3229 = scalar_lea.vmem [#allocation2], 1280
    %v3230 = vld [vmem:[%s3229] sm:$0xff]
    %v3231 = vld [vmem:[%s3229 + $0x8] sm:$0xff]
    %v3232 = vld [vmem:[%s3229 + $0x10] sm:$0xff]
    %v3233 = vld [vmem:[%s3229 + $0x18] sm:$0xff]
    %v3234 = vld [vmem:[%s3229 + $0x20] sm:$0xff]
    %v3235 = vld [vmem:[%s3229 + $0x28] sm:$0xff]
    %v3236 = vld [vmem:[%s3229 + $0x30] sm:$0xff]
    %v3237 = vld [vmem:[%s3229 + $0x38] sm:$0xff]
    %v3238 = vld [vmem:[%s3229 + $0x40] sm:$0xff]
    %v3239 = vld [vmem:[%s3229 + $0x48] sm:$0xff]
    %v3240 = vld [vmem:[%s3229 + $0x50] sm:$0xff]
    %v3241 = vld [vmem:[%s3229 + $0x58] sm:$0xff]
    %v3242 = vld [vmem:[%s3229 + $0x60] sm:$0xff]
    %v3243 = vld [vmem:[%s3229 + $0x68] sm:$0xff]
    %v3244 = vld [vmem:[%s3229 + $0x70] sm:$0xff]
    %v3245 = vld [vmem:[%s3229 + $0x78] sm:$0xff]
    %v3246 = vld [vmem:[%s3229 + $0x80] sm:$0xff]
    %v3247 = vld [vmem:[%s3229 + $0x88] sm:$0xff]
    %v3248 = vld [vmem:[%s3229 + $0x90] sm:$0xff]
    %v3249 = vld [vmem:[%s3229 + $0x98] sm:$0xff]
    %v3250 = vld [vmem:[%s3229 + $0xa0] sm:$0xff]
    %v3251 = vld [vmem:[%s3229 + $0xa8] sm:$0xff]
    %v3252 = vld [vmem:[%s3229 + $0xb0] sm:$0xff]
    %v3253 = vld [vmem:[%s3229 + $0xb8] sm:$0xff]
    %v3254 = vld [vmem:[%s3229 + $0xc0] sm:$0xff]
    %v3255 = vld [vmem:[%s3229 + $0xc8] sm:$0xff]
    %v3256 = vld [vmem:[%s3229 + $0xd0] sm:$0xff]
    %v3257 = vld [vmem:[%s3229 + $0xd8] sm:$0xff]
    %v3258 = vld [vmem:[%s3229 + $0xe0] sm:$0xff]
    %v3259 = vld [vmem:[%s3229 + $0xe8] sm:$0xff]
    %v3260 = vld [vmem:[%s3229 + $0xf0] sm:$0xff]
    %v3261 = vld [vmem:[%s3229 + $0xf8] sm:$0xff]
    %v3294 = vunpack.c.l.b16 %v3230
    %v3295 = vunpack.c.h.b16 %v3230
    %v3296 = vunpack.c.l.b16 %v3231
    %v3297 = vunpack.c.h.b16 %v3231
    %v3298 = vunpack.c.l.b16 %v3232
    %v3299 = vunpack.c.h.b16 %v3232
    %v3300 = vunpack.c.l.b16 %v3233
    %v3301 = vunpack.c.h.b16 %v3233
    %v3302 = vunpack.c.l.b16 %v3234
    %v3303 = vunpack.c.h.b16 %v3234
    %v3304 = vunpack.c.l.b16 %v3235
    %v3305 = vunpack.c.h.b16 %v3235
    %v3306 = vunpack.c.l.b16 %v3236
    %v3307 = vunpack.c.h.b16 %v3236
    %v3308 = vunpack.c.l.b16 %v3237
    %v3309 = vunpack.c.h.b16 %v3237
    %v3310 = vunpack.c.l.b16 %v3238
    %v3311 = vunpack.c.h.b16 %v3238
    %v3312 = vunpack.c.l.b16 %v3239
    %v3313 = vunpack.c.h.b16 %v3239
    %v3314 = vunpack.c.l.b16 %v3240
    %v3315 = vunpack.c.h.b16 %v3240
    %v3316 = vunpack.c.l.b16 %v3241
    %v3317 = vunpack.c.h.b16 %v3241
    %v3318 = vunpack.c.l.b16 %v3242
    %v3319 = vunpack.c.h.b16 %v3242
    %v3320 = vunpack.c.l.b16 %v3243
    %v3321 = vunpack.c.h.b16 %v3243
    %v3322 = vunpack.c.l.b16 %v3244
    %v3323 = vunpack.c.h.b16 %v3244
    %v3324 = vunpack.c.l.b16 %v3245
    %v3325 = vunpack.c.h.b16 %v3245
    %v3326 = vunpack.c.l.b16 %v3246
    %v3327 = vunpack.c.h.b16 %v3246
    %v3328 = vunpack.c.l.b16 %v3247
    %v3329 = vunpack.c.h.b16 %v3247
    %v3330 = vunpack.c.l.b16 %v3248
    %v3331 = vunpack.c.h.b16 %v3248
    %v3332 = vunpack.c.l.b16 %v3249
    %v3333 = vunpack.c.h.b16 %v3249
    %v3334 = vunpack.c.l.b16 %v3250
    %v3335 = vunpack.c.h.b16 %v3250
    %v3336 = vunpack.c.l.b16 %v3251
    %v3337 = vunpack.c.h.b16 %v3251
    %v3338 = vunpack.c.l.b16 %v3252
    %v3339 = vunpack.c.h.b16 %v3252
    %v3340 = vunpack.c.l.b16 %v3253
    %v3341 = vunpack.c.h.b16 %v3253
    %v3342 = vunpack.c.l.b16 %v3254
    %v3343 = vunpack.c.h.b16 %v3254
    %v3344 = vunpack.c.l.b16 %v3255
    %v3345 = vunpack.c.h.b16 %v3255
    %v3346 = vunpack.c.l.b16 %v3256
    %v3347 = vunpack.c.h.b16 %v3256
    %v3348 = vunpack.c.l.b16 %v3257
    %v3349 = vunpack.c.h.b16 %v3257
    %v3350 = vunpack.c.l.b16 %v3258
    %v3351 = vunpack.c.h.b16 %v3258
    %v3352 = vunpack.c.l.b16 %v3259
    %v3353 = vunpack.c.h.b16 %v3259
    %v3354 = vunpack.c.l.b16 %v3260
    %v3355 = vunpack.c.h.b16 %v3260
    %v3356 = vunpack.c.l.b16 %v3261
    %v3357 = vunpack.c.h.b16 %v3261
    %v3358 = vpack.c.b16 %v3298, %v3294
    %v3359 = vpack.c.b16 %v3299, %v3295
    %v3360 = vpack.c.b16 %v3300, %v3296
    %v3361 = vpack.c.b16 %v3301, %v3297
    %v3362 = vpack.c.b16 %v3306, %v3302
    %v3363 = vpack.c.b16 %v3307, %v3303
    %v3364 = vpack.c.b16 %v3308, %v3304
    %v3365 = vpack.c.b16 %v3309, %v3305
    %v3366 = vpack.c.b16 %v3314, %v3310
    %v3367 = vpack.c.b16 %v3315, %v3311
    %v3368 = vpack.c.b16 %v3316, %v3312
    %v3369 = vpack.c.b16 %v3317, %v3313
    %v3370 = vpack.c.b16 %v3322, %v3318
    %v3371 = vpack.c.b16 %v3323, %v3319
    %v3372 = vpack.c.b16 %v3324, %v3320
    %v3373 = vpack.c.b16 %v3325, %v3321
    %v3374 = vpack.c.b16 %v3330, %v3326
    %v3375 = vpack.c.b16 %v3331, %v3327
    %v3376 = vpack.c.b16 %v3332, %v3328
    %v3377 = vpack.c.b16 %v3333, %v3329
    %v3378 = vpack.c.b16 %v3338, %v3334
    %v3379 = vpack.c.b16 %v3339, %v3335
    %v3380 = vpack.c.b16 %v3340, %v3336
    %v3381 = vpack.c.b16 %v3341, %v3337
    %v3382 = vpack.c.b16 %v3346, %v3342
    %v3383 = vpack.c.b16 %v3347, %v3343
    %v3384 = vpack.c.b16 %v3348, %v3344
    %v3385 = vpack.c.b16 %v3349, %v3345
    %v3386 = vpack.c.b16 %v3354, %v3350
    %v3387 = vpack.c.b16 %v3355, %v3351
    %v3388 = vpack.c.b16 %v3356, %v3352
    %v3389 = vpack.c.b16 %v3357, %v3353
    %3422 = vmatprep.subr.bf16.mxu0 0
    %3423 = vmatpush1.bf16.msra.mxu0 %v711
    %3424 = vmatprep.subr.bf16.mxu0 0
    %3425 = vmatpush1.bf16.msra.mxu0 %v710
    %3426 = vmatprep.subr.bf16.mxu0 0
    %3427 = vmatpush1.bf16.msra.mxu0 %v709
    %3428 = vmatprep.subr.bf16.mxu0 0
    %3429 = vmatpush1.bf16.msra.mxu0 %v708
    %3430 = vmatprep.subr.bf16.mxu0 0
    %3431 = vmatpush1.bf16.msra.mxu0 %v707
    %3432 = vmatprep.subr.bf16.mxu0 0
    %3433 = vmatpush1.bf16.msra.mxu0 %v706
    %3434 = vmatprep.subr.bf16.mxu0 0
    %3435 = vmatpush1.bf16.msra.mxu0 %v705
    %3436 = vmatprep.subr.bf16.mxu0 0
    %3437 = vmatpush1.bf16.msra.mxu0 %v704
    %3438 = vmatprep.subr.bf16.mxu0 0
    %3439 = vmatpush2.bf16.msra.mxu0 %v719
    %3440 = vmatprep.subr.bf16.mxu0 0
    %3441 = vmatpush2.bf16.msra.mxu0 %v718
    %3442 = vmatprep.subr.bf16.mxu0 0
    %3443 = vmatpush2.bf16.msra.mxu0 %v717
    %3444 = vmatprep.subr.bf16.mxu0 0
    %3445 = vmatpush2.bf16.msra.mxu0 %v716
    %3446 = vmatprep.subr.bf16.mxu0 0
    %3447 = vmatpush2.bf16.msra.mxu0 %v715
    %3448 = vmatprep.subr.bf16.mxu0 0
    %3449 = vmatpush2.bf16.msra.mxu0 %v714
    %3450 = vmatprep.subr.bf16.mxu0 0
    %3451 = vmatpush2.bf16.msra.mxu0 %v713
    %3452 = vmatprep.subr.bf16.mxu0 0
    %3453 = vmatpush2.bf16.msra.mxu0 %v712
    %3454 = vmatprep.mubr.bf16.mxu0 %v3359
    %3455 = vmatmul.mubr.bf16.gmra.mxu0 %v3358
    %v3456 = vpop.f32.mrf.mxu0
    %v3457 = vadd.f32 0.0, %v3456
    %v3458 = vpop.f32.mrf.mxu0
    %v3459 = vpop.f32.mrf.mxu0
    %v3460 = vadd.f32 0.0, %v3459
    %v3461 = vpop.f32.mrf.mxu0
    %3462 = vmatprep.mubr.bf16.mxu0 %v3363
    %3463 = vmatmul.mubr.bf16.gmra.mxu0 %v3362
    %v3464 = vpop.f32.mrf.mxu0
    %v3465 = vadd.f32 0.0, %v3464
    %v3466 = vpop.f32.mrf.mxu0
    %v3467 = vpop.f32.mrf.mxu0
    %v3468 = vadd.f32 0.0, %v3467
    %v3469 = vpop.f32.mrf.mxu0
    %3470 = vmatprep.mubr.bf16.mxu0 %v3367
    %3471 = vmatmul.mubr.bf16.gmra.mxu0 %v3366
    %v3472 = vpop.f32.mrf.mxu0
    %v3473 = vadd.f32 0.0, %v3472
    %v3474 = vpop.f32.mrf.mxu0
    %v3475 = vpop.f32.mrf.mxu0
    %v3476 = vadd.f32 0.0, %v3475
    %v3477 = vpop.f32.mrf.mxu0
    %3478 = vmatprep.mubr.bf16.mxu0 %v3371
    %3479 = vmatmul.mubr.bf16.gmra.mxu0 %v3370
    %v3480 = vpop.f32.mrf.mxu0
    %v3481 = vadd.f32 0.0, %v3480
    %v3482 = vpop.f32.mrf.mxu0
    %v3483 = vpop.f32.mrf.mxu0
    %v3484 = vadd.f32 0.0, %v3483
    %v3485 = vpop.f32.mrf.mxu0
    %3486 = vmatprep.mubr.bf16.mxu0 %v3375
    %3487 = vmatmul.mubr.bf16.gmra.mxu0 %v3374
    %v3488 = vpop.f32.mrf.mxu0
    %v3489 = vadd.f32 0.0, %v3488
    %v3490 = vpop.f32.mrf.mxu0
    %v3491 = vpop.f32.mrf.mxu0
    %v3492 = vadd.f32 0.0, %v3491
    %v3493 = vpop.f32.mrf.mxu0
    %3494 = vmatprep.mubr.bf16.mxu0 %v3379
    %3495 = vmatmul.mubr.bf16.gmra.mxu0 %v3378
    %v3496 = vpop.f32.mrf.mxu0
    %v3497 = vadd.f32 0.0, %v3496
    %v3498 = vpop.f32.mrf.mxu0
    %v3499 = vpop.f32.mrf.mxu0
    %v3500 = vadd.f32 0.0, %v3499
    %v3501 = vpop.f32.mrf.mxu0
    %3502 = vmatprep.mubr.bf16.mxu0 %v3383
    %3503 = vmatmul.mubr.bf16.gmra.mxu0 %v3382
    %v3504 = vpop.f32.mrf.mxu0
    %v3505 = vadd.f32 0.0, %v3504
    %v3506 = vpop.f32.mrf.mxu0
    %v3507 = vpop.f32.mrf.mxu0
    %v3508 = vadd.f32 0.0, %v3507
    %v3509 = vpop.f32.mrf.mxu0
    %3510 = vmatprep.mubr.bf16.mxu0 %v3387
    %3511 = vmatmul.mubr.bf16.gmra.mxu0 %v3386
    %v3512 = vpop.f32.mrf.mxu0
    %v3513 = vadd.f32 0.0, %v3512
    %v3514 = vpop.f32.mrf.mxu0
    %v3515 = vpop.f32.mrf.mxu0
    %v3516 = vadd.f32 0.0, %v3515
    %v3517 = vpop.f32.mrf.mxu0
    %3518 = vdwg.mxu0
    %3519 = vmatprep.subr.bf16.mxu0 0
    %3520 = vmatpush1.bf16.msra.mxu0 %v727
    %3521 = vmatprep.subr.bf16.mxu0 0
    %3522 = vmatpush1.bf16.msra.mxu0 %v726
    %3523 = vmatprep.subr.bf16.mxu0 0
    %3524 = vmatpush1.bf16.msra.mxu0 %v725
    %3525 = vmatprep.subr.bf16.mxu0 0
    %3526 = vmatpush1.bf16.msra.mxu0 %v724
    %3527 = vmatprep.subr.bf16.mxu0 0
    %3528 = vmatpush1.bf16.msra.mxu0 %v723
    %3529 = vmatprep.subr.bf16.mxu0 0
    %3530 = vmatpush1.bf16.msra.mxu0 %v722
    %3531 = vmatprep.subr.bf16.mxu0 0
    %3532 = vmatpush1.bf16.msra.mxu0 %v721
    %3533 = vmatprep.subr.bf16.mxu0 0
    %3534 = vmatpush1.bf16.msra.mxu0 %v720
    %3535 = vmatprep.subr.bf16.mxu0 0
    %3536 = vmatpush2.bf16.msra.mxu0 %v735
    %3537 = vmatprep.subr.bf16.mxu0 0
    %3538 = vmatpush2.bf16.msra.mxu0 %v734
    %3539 = vmatprep.subr.bf16.mxu0 0
    %3540 = vmatpush2.bf16.msra.mxu0 %v733
    %3541 = vmatprep.subr.bf16.mxu0 0
    %3542 = vmatpush2.bf16.msra.mxu0 %v732
    %3543 = vmatprep.subr.bf16.mxu0 0
    %3544 = vmatpush2.bf16.msra.mxu0 %v731
    %3545 = vmatprep.subr.bf16.mxu0 0
    %3546 = vmatpush2.bf16.msra.mxu0 %v730
    %3547 = vmatprep.subr.bf16.mxu0 0
    %3548 = vmatpush2.bf16.msra.mxu0 %v729
    %3549 = vmatprep.subr.bf16.mxu0 0
    %3550 = vmatpush2.bf16.msra.mxu0 %v728
    %3551 = vmatprep.mubr.bf16.mxu0 %v3361
    %3552 = vmatmul.mubr.bf16.gmra.mxu0 %v3360
    %v3553 = vpop.f32.mrf.mxu0
    %v3554 = vadd.f32 %v3457, %v3553
    %v3555 = vpop.f32.mrf.mxu0
    %v3556 = vpop.f32.mrf.mxu0
    %v3557 = vadd.f32 %v3460, %v3556
    %v3558 = vpop.f32.mrf.mxu0
    %3559 = vmatprep.mubr.bf16.mxu0 %v3365
    %3560 = vmatmul.mubr.bf16.gmra.mxu0 %v3364
    %v3561 = vpop.f32.mrf.mxu0
    %v3562 = vadd.f32 %v3465, %v3561
    %v3563 = vpop.f32.mrf.mxu0
    %v3564 = vpop.f32.mrf.mxu0
    %v3565 = vadd.f32 %v3468, %v3564
    %v3566 = vpop.f32.mrf.mxu0
    %3567 = vmatprep.mubr.bf16.mxu0 %v3369
    %3568 = vmatmul.mubr.bf16.gmra.mxu0 %v3368
    %v3569 = vpop.f32.mrf.mxu0
    %v3570 = vadd.f32 %v3473, %v3569
    %v3571 = vpop.f32.mrf.mxu0
    %v3572 = vpop.f32.mrf.mxu0
    %v3573 = vadd.f32 %v3476, %v3572
    %v3574 = vpop.f32.mrf.mxu0
    %3575 = vmatprep.mubr.bf16.mxu0 %v3373
    %3576 = vmatmul.mubr.bf16.gmra.mxu0 %v3372
    %v3577 = vpop.f32.mrf.mxu0
    %v3578 = vadd.f32 %v3481, %v3577
    %v3579 = vpop.f32.mrf.mxu0
    %v3580 = vpop.f32.mrf.mxu0
    %v3581 = vadd.f32 %v3484, %v3580
    %v3582 = vpop.f32.mrf.mxu0
    %3583 = vmatprep.mubr.bf16.mxu0 %v3377
    %3584 = vmatmul.mubr.bf16.gmra.mxu0 %v3376
    %v3585 = vpop.f32.mrf.mxu0
    %v3586 = vadd.f32 %v3489, %v3585
    %v3587 = vpop.f32.mrf.mxu0
    %v3588 = vpop.f32.mrf.mxu0
    %v3589 = vadd.f32 %v3492, %v3588
    %v3590 = vpop.f32.mrf.mxu0
    %3591 = vmatprep.mubr.bf16.mxu0 %v3381
    %3592 = vmatmul.mubr.bf16.gmra.mxu0 %v3380
    %v3593 = vpop.f32.mrf.mxu0
    %v3594 = vadd.f32 %v3497, %v3593
    %v3595 = vpop.f32.mrf.mxu0
    %v3596 = vpop.f32.mrf.mxu0
    %v3597 = vadd.f32 %v3500, %v3596
    %v3598 = vpop.f32.mrf.mxu0
    %3599 = vmatprep.mubr.bf16.mxu0 %v3385
    %3600 = vmatmul.mubr.bf16.gmra.mxu0 %v3384
    %v3601 = vpop.f32.mrf.mxu0
    %v3602 = vadd.f32 %v3505, %v3601
    %v3603 = vpop.f32.mrf.mxu0
    %v3604 = vpop.f32.mrf.mxu0
    %v3605 = vadd.f32 %v3508, %v3604
    %v3606 = vpop.f32.mrf.mxu0
    %3607 = vmatprep.mubr.bf16.mxu0 %v3389
    %3608 = vmatmul.mubr.bf16.gmra.mxu0 %v3388
    %v3609 = vpop.f32.mrf.mxu0
    %v3610 = vadd.f32 %v3513, %v3609
    %v3611 = vpop.f32.mrf.mxu0
    %v3612 = vpop.f32.mrf.mxu0
    %v3613 = vadd.f32 %v3516, %v3612
    %v3614 = vpop.f32.mrf.mxu0
    %3615 = vdwg.mxu0
    %v3616 = vpack.c.bf16 %v3557, %v3554
    %v3617 = vpack.c.bf16 %v3565, %v3562
    %v3618 = vpack.c.bf16 %v3573, %v3570
    %v3619 = vpack.c.bf16 %v3581, %v3578
    %v3620 = vpack.c.bf16 %v3589, %v3586
    %v3621 = vpack.c.bf16 %v3597, %v3594
    %v3622 = vpack.c.bf16 %v3605, %v3602
    %v3623 = vpack.c.bf16 %v3613, %v3610
    %s3624 = scalar_lea.vmem [#allocation4], 10
    %v3625 = vld [vmem:[%s3624] sm:$0x3]
    %v3627 = vsel %vm1368, %v3616, 0
    %v3630 = vsel %vm1368, %v3617, 0
    %v3633 = vsel %vm1368, %v3618, 0
    %v3636 = vsel %vm1368, %v3619, 0
    %v3639 = vsel %vm1368, %v3620, 0
    %v3642 = vsel %vm1368, %v3621, 0
    %v3645 = vsel %vm1368, %v3622, 0
    %v3648 = vsel %vm1368, %v3623, 0
    %v3651 = vsel %vm1393, %v3625, 0
    %3653 = vmatprep.subr.bf16.mxu0 0
    %3654 = vmatpush1.bf16.msra.mxu0 0
    %3655 = vmatprep.subr.bf16.mxu0 0
    %3656 = vmatpush1.bf16.msra.mxu0 0
    %3657 = vmatprep.subr.bf16.mxu0 0
    %3658 = vmatpush1.bf16.msra.mxu0 0
    %3659 = vmatprep.subr.bf16.mxu0 0
    %3660 = vmatpush1.bf16.msra.mxu0 0
    %3661 = vmatprep.subr.bf16.mxu0 0
    %3662 = vmatpush1.bf16.msra.mxu0 0
    %3663 = vmatprep.subr.bf16.mxu0 0
    %3664 = vmatpush1.bf16.msra.mxu0 0
    %3665 = vmatprep.subr.bf16.mxu0 0
    %3666 = vmatpush1.bf16.msra.mxu0 0
    %3667 = vmatprep.subr.bf16.mxu0 0
    %3668 = vmatpush1.bf16.msra.mxu0 %v3651
    %3669 = vmatprep.subr.bf16.mxu0 0
    %3670 = vmatpush2.bf16.msra.mxu0 0
    %3671 = vmatprep.subr.bf16.mxu0 0
    %3672 = vmatpush2.bf16.msra.mxu0 0
    %3673 = vmatprep.subr.bf16.mxu0 0
    %3674 = vmatpush2.bf16.msra.mxu0 0
    %3675 = vmatprep.subr.bf16.mxu0 0
    %3676 = vmatpush2.bf16.msra.mxu0 0
    %3677 = vmatprep.subr.bf16.mxu0 0
    %3678 = vmatpush2.bf16.msra.mxu0 0
    %3679 = vmatprep.subr.bf16.mxu0 0
    %3680 = vmatpush2.bf16.msra.mxu0 0
    %3681 = vmatprep.subr.bf16.mxu0 0
    %3682 = vmatpush2.bf16.msra.mxu0 0
    %3683 = vmatprep.subr.bf16.mxu0 0
    %3684 = vmatpush2.bf16.msra.mxu0 0
    %3685 = vmatprep.mubr.bf16.mxu0 0
    %3686 = vmatmul.mubr.bf16.gmra.mxu0 %v3627
    %v3687 = vpop.f32.mrf.mxu0
    %v3688 = vadd.f32 0.0, %v3687
    %v3689 = vpop.f32.mrf.mxu0
    %v3690 = vpop.f32.mrf.mxu0
    %v3691 = vadd.f32 0.0, %v3690
    %v3692 = vpop.f32.mrf.mxu0
    %3693 = vmatprep.mubr.bf16.mxu0 0
    %3694 = vmatmul.mubr.bf16.gmra.mxu0 %v3630
    %v3695 = vpop.f32.mrf.mxu0
    %v3696 = vadd.f32 0.0, %v3695
    %v3697 = vpop.f32.mrf.mxu0
    %v3698 = vpop.f32.mrf.mxu0
    %v3699 = vadd.f32 0.0, %v3698
    %v3700 = vpop.f32.mrf.mxu0
    %3701 = vmatprep.mubr.bf16.mxu0 0
    %3702 = vmatmul.mubr.bf16.gmra.mxu0 %v3633
    %v3703 = vpop.f32.mrf.mxu0
    %v3704 = vadd.f32 0.0, %v3703
    %v3705 = vpop.f32.mrf.mxu0
    %v3706 = vpop.f32.mrf.mxu0
    %v3707 = vadd.f32 0.0, %v3706
    %v3708 = vpop.f32.mrf.mxu0
    %3709 = vmatprep.mubr.bf16.mxu0 0
    %3710 = vmatmul.mubr.bf16.gmra.mxu0 %v3636
    %v3711 = vpop.f32.mrf.mxu0
    %v3712 = vadd.f32 0.0, %v3711
    %v3713 = vpop.f32.mrf.mxu0
    %v3714 = vpop.f32.mrf.mxu0
    %v3715 = vadd.f32 0.0, %v3714
    %v3716 = vpop.f32.mrf.mxu0
    %3717 = vmatprep.mubr.bf16.mxu0 0
    %3718 = vmatmul.mubr.bf16.gmra.mxu0 %v3639
    %v3719 = vpop.f32.mrf.mxu0
    %v3720 = vadd.f32 0.0, %v3719
    %v3721 = vpop.f32.mrf.mxu0
    %v3722 = vpop.f32.mrf.mxu0
    %v3723 = vadd.f32 0.0, %v3722
    %v3724 = vpop.f32.mrf.mxu0
    %3725 = vmatprep.mubr.bf16.mxu0 0
    %3726 = vmatmul.mubr.bf16.gmra.mxu0 %v3642
    %v3727 = vpop.f32.mrf.mxu0
    %v3728 = vadd.f32 0.0, %v3727
    %v3729 = vpop.f32.mrf.mxu0
    %v3730 = vpop.f32.mrf.mxu0
    %v3731 = vadd.f32 0.0, %v3730
    %v3732 = vpop.f32.mrf.mxu0
    %3733 = vmatprep.mubr.bf16.mxu0 0
    %3734 = vmatmul.mubr.bf16.gmra.mxu0 %v3645
    %v3735 = vpop.f32.mrf.mxu0
    %v3736 = vadd.f32 0.0, %v3735
    %v3737 = vpop.f32.mrf.mxu0
    %v3738 = vpop.f32.mrf.mxu0
    %v3739 = vadd.f32 0.0, %v3738
    %v3740 = vpop.f32.mrf.mxu0
    %3741 = vmatprep.mubr.bf16.mxu0 0
    %3742 = vmatmul.mubr.bf16.gmra.mxu0 %v3648
    %v3743 = vpop.f32.mrf.mxu0
    %v3744 = vadd.f32 0.0, %v3743
    %v3745 = vpop.f32.mrf.mxu0
    %v3746 = vpop.f32.mrf.mxu0
    %v3747 = vadd.f32 0.0, %v3746
    %v3748 = vpop.f32.mrf.mxu0
    %3749 = vdwg.mxu0
    %v3750 = vadd.f32 %v3213, %v3688
    %v3751 = vadd.f32 %v3214, %v3691
    %v3752 = vadd.f32 %v3215, %v3696
    %v3753 = vadd.f32 %v3216, %v3699
    %v3754 = vadd.f32 %v3217, %v3704
    %v3755 = vadd.f32 %v3218, %v3707
    %v3756 = vadd.f32 %v3219, %v3712
    %v3757 = vadd.f32 %v3220, %v3715
    %v3758 = vadd.f32 %v3221, %v3720
    %v3759 = vadd.f32 %v3222, %v3723
    %v3760 = vadd.f32 %v3223, %v3728
    %v3761 = vadd.f32 %v3224, %v3731
    %v3762 = vadd.f32 %v3225, %v3736
    %v3763 = vadd.f32 %v3226, %v3739
    %v3764 = vadd.f32 %v3227, %v3744
    %v3765 = vadd.f32 %v3228, %v3747
    %s3766 = scalar_lea.vmem [#allocation2], 1536
    %v3767 = vld [vmem:[%s3766] sm:$0xff]
    %v3768 = vld [vmem:[%s3766 + $0x8] sm:$0xff]
    %v3769 = vld [vmem:[%s3766 + $0x10] sm:$0xff]
    %v3770 = vld [vmem:[%s3766 + $0x18] sm:$0xff]
    %v3771 = vld [vmem:[%s3766 + $0x20] sm:$0xff]
    %v3772 = vld [vmem:[%s3766 + $0x28] sm:$0xff]
    %v3773 = vld [vmem:[%s3766 + $0x30] sm:$0xff]
    %v3774 = vld [vmem:[%s3766 + $0x38] sm:$0xff]
    %v3775 = vld [vmem:[%s3766 + $0x40] sm:$0xff]
    %v3776 = vld [vmem:[%s3766 + $0x48] sm:$0xff]
    %v3777 = vld [vmem:[%s3766 + $0x50] sm:$0xff]
    %v3778 = vld [vmem:[%s3766 + $0x58] sm:$0xff]
    %v3779 = vld [vmem:[%s3766 + $0x60] sm:$0xff]
    %v3780 = vld [vmem:[%s3766 + $0x68] sm:$0xff]
    %v3781 = vld [vmem:[%s3766 + $0x70] sm:$0xff]
    %v3782 = vld [vmem:[%s3766 + $0x78] sm:$0xff]
    %v3783 = vld [vmem:[%s3766 + $0x80] sm:$0xff]
    %v3784 = vld [vmem:[%s3766 + $0x88] sm:$0xff]
    %v3785 = vld [vmem:[%s3766 + $0x90] sm:$0xff]
    %v3786 = vld [vmem:[%s3766 + $0x98] sm:$0xff]
    %v3787 = vld [vmem:[%s3766 + $0xa0] sm:$0xff]
    %v3788 = vld [vmem:[%s3766 + $0xa8] sm:$0xff]
    %v3789 = vld [vmem:[%s3766 + $0xb0] sm:$0xff]
    %v3790 = vld [vmem:[%s3766 + $0xb8] sm:$0xff]
    %v3791 = vld [vmem:[%s3766 + $0xc0] sm:$0xff]
    %v3792 = vld [vmem:[%s3766 + $0xc8] sm:$0xff]
    %v3793 = vld [vmem:[%s3766 + $0xd0] sm:$0xff]
    %v3794 = vld [vmem:[%s3766 + $0xd8] sm:$0xff]
    %v3795 = vld [vmem:[%s3766 + $0xe0] sm:$0xff]
    %v3796 = vld [vmem:[%s3766 + $0xe8] sm:$0xff]
    %v3797 = vld [vmem:[%s3766 + $0xf0] sm:$0xff]
    %v3798 = vld [vmem:[%s3766 + $0xf8] sm:$0xff]
    %v3831 = vunpack.c.l.b16 %v3767
    %v3832 = vunpack.c.h.b16 %v3767
    %v3833 = vunpack.c.l.b16 %v3768
    %v3834 = vunpack.c.h.b16 %v3768
    %v3835 = vunpack.c.l.b16 %v3769
    %v3836 = vunpack.c.h.b16 %v3769
    %v3837 = vunpack.c.l.b16 %v3770
    %v3838 = vunpack.c.h.b16 %v3770
    %v3839 = vunpack.c.l.b16 %v3771
    %v3840 = vunpack.c.h.b16 %v3771
    %v3841 = vunpack.c.l.b16 %v3772
    %v3842 = vunpack.c.h.b16 %v3772
    %v3843 = vunpack.c.l.b16 %v3773
    %v3844 = vunpack.c.h.b16 %v3773
    %v3845 = vunpack.c.l.b16 %v3774
    %v3846 = vunpack.c.h.b16 %v3774
    %v3847 = vunpack.c.l.b16 %v3775
    %v3848 = vunpack.c.h.b16 %v3775
    %v3849 = vunpack.c.l.b16 %v3776
    %v3850 = vunpack.c.h.b16 %v3776
    %v3851 = vunpack.c.l.b16 %v3777
    %v3852 = vunpack.c.h.b16 %v3777
    %v3853 = vunpack.c.l.b16 %v3778
    %v3854 = vunpack.c.h.b16 %v3778
    %v3855 = vunpack.c.l.b16 %v3779
    %v3856 = vunpack.c.h.b16 %v3779
    %v3857 = vunpack.c.l.b16 %v3780
    %v3858 = vunpack.c.h.b16 %v3780
    %v3859 = vunpack.c.l.b16 %v3781
    %v3860 = vunpack.c.h.b16 %v3781
    %v3861 = vunpack.c.l.b16 %v3782
    %v3862 = vunpack.c.h.b16 %v3782
    %v3863 = vunpack.c.l.b16 %v3783
    %v3864 = vunpack.c.h.b16 %v3783
    %v3865 = vunpack.c.l.b16 %v3784
    %v3866 = vunpack.c.h.b16 %v3784
    %v3867 = vunpack.c.l.b16 %v3785
    %v3868 = vunpack.c.h.b16 %v3785
    %v3869 = vunpack.c.l.b16 %v3786
    %v3870 = vunpack.c.h.b16 %v3786
    %v3871 = vunpack.c.l.b16 %v3787
    %v3872 = vunpack.c.h.b16 %v3787
    %v3873 = vunpack.c.l.b16 %v3788
    %v3874 = vunpack.c.h.b16 %v3788
    %v3875 = vunpack.c.l.b16 %v3789
    %v3876 = vunpack.c.h.b16 %v3789
    %v3877 = vunpack.c.l.b16 %v3790
    %v3878 = vunpack.c.h.b16 %v3790
    %v3879 = vunpack.c.l.b16 %v3791
    %v3880 = vunpack.c.h.b16 %v3791
    %v3881 = vunpack.c.l.b16 %v3792
    %v3882 = vunpack.c.h.b16 %v3792
    %v3883 = vunpack.c.l.b16 %v3793
    %v3884 = vunpack.c.h.b16 %v3793
    %v3885 = vunpack.c.l.b16 %v3794
    %v3886 = vunpack.c.h.b16 %v3794
    %v3887 = vunpack.c.l.b16 %v3795
    %v3888 = vunpack.c.h.b16 %v3795
    %v3889 = vunpack.c.l.b16 %v3796
    %v3890 = vunpack.c.h.b16 %v3796
    %v3891 = vunpack.c.l.b16 %v3797
    %v3892 = vunpack.c.h.b16 %v3797
    %v3893 = vunpack.c.l.b16 %v3798
    %v3894 = vunpack.c.h.b16 %v3798
    %v3895 = vpack.c.b16 %v3835, %v3831
    %v3896 = vpack.c.b16 %v3836, %v3832
    %v3897 = vpack.c.b16 %v3837, %v3833
    %v3898 = vpack.c.b16 %v3838, %v3834
    %v3899 = vpack.c.b16 %v3843, %v3839
    %v3900 = vpack.c.b16 %v3844, %v3840
    %v3901 = vpack.c.b16 %v3845, %v3841
    %v3902 = vpack.c.b16 %v3846, %v3842
    %v3903 = vpack.c.b16 %v3851, %v3847
    %v3904 = vpack.c.b16 %v3852, %v3848
    %v3905 = vpack.c.b16 %v3853, %v3849
    %v3906 = vpack.c.b16 %v3854, %v3850
    %v3907 = vpack.c.b16 %v3859, %v3855
    %v3908 = vpack.c.b16 %v3860, %v3856
    %v3909 = vpack.c.b16 %v3861, %v3857
    %v3910 = vpack.c.b16 %v3862, %v3858
    %v3911 = vpack.c.b16 %v3867, %v3863
    %v3912 = vpack.c.b16 %v3868, %v3864
    %v3913 = vpack.c.b16 %v3869, %v3865
    %v3914 = vpack.c.b16 %v3870, %v3866
    %v3915 = vpack.c.b16 %v3875, %v3871
    %v3916 = vpack.c.b16 %v3876, %v3872
    %v3917 = vpack.c.b16 %v3877, %v3873
    %v3918 = vpack.c.b16 %v3878, %v3874
    %v3919 = vpack.c.b16 %v3883, %v3879
    %v3920 = vpack.c.b16 %v3884, %v3880
    %v3921 = vpack.c.b16 %v3885, %v3881
    %v3922 = vpack.c.b16 %v3886, %v3882
    %v3923 = vpack.c.b16 %v3891, %v3887
    %v3924 = vpack.c.b16 %v3892, %v3888
    %v3925 = vpack.c.b16 %v3893, %v3889
    %v3926 = vpack.c.b16 %v3894, %v3890
    %3959 = vmatprep.subr.bf16.mxu0 0
    %3960 = vmatpush1.bf16.msra.mxu0 %v711
    %3961 = vmatprep.subr.bf16.mxu0 0
    %3962 = vmatpush1.bf16.msra.mxu0 %v710
    %3963 = vmatprep.subr.bf16.mxu0 0
    %3964 = vmatpush1.bf16.msra.mxu0 %v709
    %3965 = vmatprep.subr.bf16.mxu0 0
    %3966 = vmatpush1.bf16.msra.mxu0 %v708
    %3967 = vmatprep.subr.bf16.mxu0 0
    %3968 = vmatpush1.bf16.msra.mxu0 %v707
    %3969 = vmatprep.subr.bf16.mxu0 0
    %3970 = vmatpush1.bf16.msra.mxu0 %v706
    %3971 = vmatprep.subr.bf16.mxu0 0
    %3972 = vmatpush1.bf16.msra.mxu0 %v705
    %3973 = vmatprep.subr.bf16.mxu0 0
    %3974 = vmatpush1.bf16.msra.mxu0 %v704
    %3975 = vmatprep.subr.bf16.mxu0 0
    %3976 = vmatpush2.bf16.msra.mxu0 %v719
    %3977 = vmatprep.subr.bf16.mxu0 0
    %3978 = vmatpush2.bf16.msra.mxu0 %v718
    %3979 = vmatprep.subr.bf16.mxu0 0
    %3980 = vmatpush2.bf16.msra.mxu0 %v717
    %3981 = vmatprep.subr.bf16.mxu0 0
    %3982 = vmatpush2.bf16.msra.mxu0 %v716
    %3983 = vmatprep.subr.bf16.mxu0 0
    %3984 = vmatpush2.bf16.msra.mxu0 %v715
    %3985 = vmatprep.subr.bf16.mxu0 0
    %3986 = vmatpush2.bf16.msra.mxu0 %v714
    %3987 = vmatprep.subr.bf16.mxu0 0
    %3988 = vmatpush2.bf16.msra.mxu0 %v713
    %3989 = vmatprep.subr.bf16.mxu0 0
    %3990 = vmatpush2.bf16.msra.mxu0 %v712
    %3991 = vmatprep.mubr.bf16.mxu0 %v3896
    %3992 = vmatmul.mubr.bf16.gmra.mxu0 %v3895
    %v3993 = vpop.f32.mrf.mxu0
    %v3994 = vadd.f32 0.0, %v3993
    %v3995 = vpop.f32.mrf.mxu0
    %v3996 = vpop.f32.mrf.mxu0
    %v3997 = vadd.f32 0.0, %v3996
    %v3998 = vpop.f32.mrf.mxu0
    %3999 = vmatprep.mubr.bf16.mxu0 %v3900
    %4000 = vmatmul.mubr.bf16.gmra.mxu0 %v3899
    %v4001 = vpop.f32.mrf.mxu0
    %v4002 = vadd.f32 0.0, %v4001
    %v4003 = vpop.f32.mrf.mxu0
    %v4004 = vpop.f32.mrf.mxu0
    %v4005 = vadd.f32 0.0, %v4004
    %v4006 = vpop.f32.mrf.mxu0
    %4007 = vmatprep.mubr.bf16.mxu0 %v3904
    %4008 = vmatmul.mubr.bf16.gmra.mxu0 %v3903
    %v4009 = vpop.f32.mrf.mxu0
    %v4010 = vadd.f32 0.0, %v4009
    %v4011 = vpop.f32.mrf.mxu0
    %v4012 = vpop.f32.mrf.mxu0
    %v4013 = vadd.f32 0.0, %v4012
    %v4014 = vpop.f32.mrf.mxu0
    %4015 = vmatprep.mubr.bf16.mxu0 %v3908
    %4016 = vmatmul.mubr.bf16.gmra.mxu0 %v3907
    %v4017 = vpop.f32.mrf.mxu0
    %v4018 = vadd.f32 0.0, %v4017
    %v4019 = vpop.f32.mrf.mxu0
    %v4020 = vpop.f32.mrf.mxu0
    %v4021 = vadd.f32 0.0, %v4020
    %v4022 = vpop.f32.mrf.mxu0
    %4023 = vmatprep.mubr.bf16.mxu0 %v3912
    %4024 = vmatmul.mubr.bf16.gmra.mxu0 %v3911
    %v4025 = vpop.f32.mrf.mxu0
    %v4026 = vadd.f32 0.0, %v4025
    %v4027 = vpop.f32.mrf.mxu0
    %v4028 = vpop.f32.mrf.mxu0
    %v4029 = vadd.f32 0.0, %v4028
    %v4030 = vpop.f32.mrf.mxu0
    %4031 = vmatprep.mubr.bf16.mxu0 %v3916
    %4032 = vmatmul.mubr.bf16.gmra.mxu0 %v3915
    %v4033 = vpop.f32.mrf.mxu0
    %v4034 = vadd.f32 0.0, %v4033
    %v4035 = vpop.f32.mrf.mxu0
    %v4036 = vpop.f32.mrf.mxu0
    %v4037 = vadd.f32 0.0, %v4036
    %v4038 = vpop.f32.mrf.mxu0
    %4039 = vmatprep.mubr.bf16.mxu0 %v3920
    %4040 = vmatmul.mubr.bf16.gmra.mxu0 %v3919
    %v4041 = vpop.f32.mrf.mxu0
    %v4042 = vadd.f32 0.0, %v4041
    %v4043 = vpop.f32.mrf.mxu0
    %v4044 = vpop.f32.mrf.mxu0
    %v4045 = vadd.f32 0.0, %v4044
    %v4046 = vpop.f32.mrf.mxu0
    %4047 = vmatprep.mubr.bf16.mxu0 %v3924
    %4048 = vmatmul.mubr.bf16.gmra.mxu0 %v3923
    %v4049 = vpop.f32.mrf.mxu0
    %v4050 = vadd.f32 0.0, %v4049
    %v4051 = vpop.f32.mrf.mxu0
    %v4052 = vpop.f32.mrf.mxu0
    %v4053 = vadd.f32 0.0, %v4052
    %v4054 = vpop.f32.mrf.mxu0
    %4055 = vdwg.mxu0
    %4056 = vmatprep.subr.bf16.mxu0 0
    %4057 = vmatpush1.bf16.msra.mxu0 %v727
    %4058 = vmatprep.subr.bf16.mxu0 0
    %4059 = vmatpush1.bf16.msra.mxu0 %v726
    %4060 = vmatprep.subr.bf16.mxu0 0
    %4061 = vmatpush1.bf16.msra.mxu0 %v725
    %4062 = vmatprep.subr.bf16.mxu0 0
    %4063 = vmatpush1.bf16.msra.mxu0 %v724
    %4064 = vmatprep.subr.bf16.mxu0 0
    %4065 = vmatpush1.bf16.msra.mxu0 %v723
    %4066 = vmatprep.subr.bf16.mxu0 0
    %4067 = vmatpush1.bf16.msra.mxu0 %v722
    %4068 = vmatprep.subr.bf16.mxu0 0
    %4069 = vmatpush1.bf16.msra.mxu0 %v721
    %4070 = vmatprep.subr.bf16.mxu0 0
    %4071 = vmatpush1.bf16.msra.mxu0 %v720
    %4072 = vmatprep.subr.bf16.mxu0 0
    %4073 = vmatpush2.bf16.msra.mxu0 %v735
    %4074 = vmatprep.subr.bf16.mxu0 0
    %4075 = vmatpush2.bf16.msra.mxu0 %v734
    %4076 = vmatprep.subr.bf16.mxu0 0
    %4077 = vmatpush2.bf16.msra.mxu0 %v733
    %4078 = vmatprep.subr.bf16.mxu0 0
    %4079 = vmatpush2.bf16.msra.mxu0 %v732
    %4080 = vmatprep.subr.bf16.mxu0 0
    %4081 = vmatpush2.bf16.msra.mxu0 %v731
    %4082 = vmatprep.subr.bf16.mxu0 0
    %4083 = vmatpush2.bf16.msra.mxu0 %v730
    %4084 = vmatprep.subr.bf16.mxu0 0
    %4085 = vmatpush2.bf16.msra.mxu0 %v729
    %4086 = vmatprep.subr.bf16.mxu0 0
    %4087 = vmatpush2.bf16.msra.mxu0 %v728
    %4088 = vmatprep.mubr.bf16.mxu0 %v3898
    %4089 = vmatmul.mubr.bf16.gmra.mxu0 %v3897
    %v4090 = vpop.f32.mrf.mxu0
    %v4091 = vadd.f32 %v3994, %v4090
    %v4092 = vpop.f32.mrf.mxu0
    %v4093 = vpop.f32.mrf.mxu0
    %v4094 = vadd.f32 %v3997, %v4093
    %v4095 = vpop.f32.mrf.mxu0
    %4096 = vmatprep.mubr.bf16.mxu0 %v3902
    %4097 = vmatmul.mubr.bf16.gmra.mxu0 %v3901
    %v4098 = vpop.f32.mrf.mxu0
    %v4099 = vadd.f32 %v4002, %v4098
    %v4100 = vpop.f32.mrf.mxu0
    %v4101 = vpop.f32.mrf.mxu0
    %v4102 = vadd.f32 %v4005, %v4101
    %v4103 = vpop.f32.mrf.mxu0
    %4104 = vmatprep.mubr.bf16.mxu0 %v3906
    %4105 = vmatmul.mubr.bf16.gmra.mxu0 %v3905
    %v4106 = vpop.f32.mrf.mxu0
    %v4107 = vadd.f32 %v4010, %v4106
    %v4108 = vpop.f32.mrf.mxu0
    %v4109 = vpop.f32.mrf.mxu0
    %v4110 = vadd.f32 %v4013, %v4109
    %v4111 = vpop.f32.mrf.mxu0
    %4112 = vmatprep.mubr.bf16.mxu0 %v3910
    %4113 = vmatmul.mubr.bf16.gmra.mxu0 %v3909
    %v4114 = vpop.f32.mrf.mxu0
    %v4115 = vadd.f32 %v4018, %v4114
    %v4116 = vpop.f32.mrf.mxu0
    %v4117 = vpop.f32.mrf.mxu0
    %v4118 = vadd.f32 %v4021, %v4117
    %v4119 = vpop.f32.mrf.mxu0
    %4120 = vmatprep.mubr.bf16.mxu0 %v3914
    %4121 = vmatmul.mubr.bf16.gmra.mxu0 %v3913
    %v4122 = vpop.f32.mrf.mxu0
    %v4123 = vadd.f32 %v4026, %v4122
    %v4124 = vpop.f32.mrf.mxu0
    %v4125 = vpop.f32.mrf.mxu0
    %v4126 = vadd.f32 %v4029, %v4125
    %v4127 = vpop.f32.mrf.mxu0
    %4128 = vmatprep.mubr.bf16.mxu0 %v3918
    %4129 = vmatmul.mubr.bf16.gmra.mxu0 %v3917
    %v4130 = vpop.f32.mrf.mxu0
    %v4131 = vadd.f32 %v4034, %v4130
    %v4132 = vpop.f32.mrf.mxu0
    %v4133 = vpop.f32.mrf.mxu0
    %v4134 = vadd.f32 %v4037, %v4133
    %v4135 = vpop.f32.mrf.mxu0
    %4136 = vmatprep.mubr.bf16.mxu0 %v3922
    %4137 = vmatmul.mubr.bf16.gmra.mxu0 %v3921
    %v4138 = vpop.f32.mrf.mxu0
    %v4139 = vadd.f32 %v4042, %v4138
    %v4140 = vpop.f32.mrf.mxu0
    %v4141 = vpop.f32.mrf.mxu0
    %v4142 = vadd.f32 %v4045, %v4141
    %v4143 = vpop.f32.mrf.mxu0
    %4144 = vmatprep.mubr.bf16.mxu0 %v3926
    %4145 = vmatmul.mubr.bf16.gmra.mxu0 %v3925
    %v4146 = vpop.f32.mrf.mxu0
    %v4147 = vadd.f32 %v4050, %v4146
    %v4148 = vpop.f32.mrf.mxu0
    %v4149 = vpop.f32.mrf.mxu0
    %v4150 = vadd.f32 %v4053, %v4149
    %v4151 = vpop.f32.mrf.mxu0
    %4152 = vdwg.mxu0
    %v4153 = vpack.c.bf16 %v4094, %v4091
    %v4154 = vpack.c.bf16 %v4102, %v4099
    %v4155 = vpack.c.bf16 %v4110, %v4107
    %v4156 = vpack.c.bf16 %v4118, %v4115
    %v4157 = vpack.c.bf16 %v4126, %v4123
    %v4158 = vpack.c.bf16 %v4134, %v4131
    %v4159 = vpack.c.bf16 %v4142, %v4139
    %v4160 = vpack.c.bf16 %v4150, %v4147
    %s4161 = scalar_lea.vmem [#allocation4], 12
    %v4162 = vld [vmem:[%s4161] sm:$0x3]
    %v4164 = vsel %vm1368, %v4153, 0
    %v4167 = vsel %vm1368, %v4154, 0
    %v4170 = vsel %vm1368, %v4155, 0
    %v4173 = vsel %vm1368, %v4156, 0
    %v4176 = vsel %vm1368, %v4157, 0
    %v4179 = vsel %vm1368, %v4158, 0
    %v4182 = vsel %vm1368, %v4159, 0
    %v4185 = vsel %vm1368, %v4160, 0
    %v4188 = vsel %vm1393, %v4162, 0
    %4190 = vmatprep.subr.bf16.mxu0 0
    %4191 = vmatpush1.bf16.msra.mxu0 0
    %4192 = vmatprep.subr.bf16.mxu0 0
    %4193 = vmatpush1.bf16.msra.mxu0 0
    %4194 = vmatprep.subr.bf16.mxu0 0
    %4195 = vmatpush1.bf16.msra.mxu0 0
    %4196 = vmatprep.subr.bf16.mxu0 0
    %4197 = vmatpush1.bf16.msra.mxu0 0
    %4198 = vmatprep.subr.bf16.mxu0 0
    %4199 = vmatpush1.bf16.msra.mxu0 0
    %4200 = vmatprep.subr.bf16.mxu0 0
    %4201 = vmatpush1.bf16.msra.mxu0 0
    %4202 = vmatprep.subr.bf16.mxu0 0
    %4203 = vmatpush1.bf16.msra.mxu0 0
    %4204 = vmatprep.subr.bf16.mxu0 0
    %4205 = vmatpush1.bf16.msra.mxu0 %v4188
    %4206 = vmatprep.subr.bf16.mxu0 0
    %4207 = vmatpush2.bf16.msra.mxu0 0
    %4208 = vmatprep.subr.bf16.mxu0 0
    %4209 = vmatpush2.bf16.msra.mxu0 0
    %4210 = vmatprep.subr.bf16.mxu0 0
    %4211 = vmatpush2.bf16.msra.mxu0 0
    %4212 = vmatprep.subr.bf16.mxu0 0
    %4213 = vmatpush2.bf16.msra.mxu0 0
    %4214 = vmatprep.subr.bf16.mxu0 0
    %4215 = vmatpush2.bf16.msra.mxu0 0
    %4216 = vmatprep.subr.bf16.mxu0 0
    %4217 = vmatpush2.bf16.msra.mxu0 0
    %4218 = vmatprep.subr.bf16.mxu0 0
    %4219 = vmatpush2.bf16.msra.mxu0 0
    %4220 = vmatprep.subr.bf16.mxu0 0
    %4221 = vmatpush2.bf16.msra.mxu0 0
    %4222 = vmatprep.mubr.bf16.mxu0 0
    %4223 = vmatmul.mubr.bf16.gmra.mxu0 %v4164
    %v4224 = vpop.f32.mrf.mxu0
    %v4225 = vadd.f32 0.0, %v4224
    %v4226 = vpop.f32.mrf.mxu0
    %v4227 = vpop.f32.mrf.mxu0
    %v4228 = vadd.f32 0.0, %v4227
    %v4229 = vpop.f32.mrf.mxu0
    %4230 = vmatprep.mubr.bf16.mxu0 0
    %4231 = vmatmul.mubr.bf16.gmra.mxu0 %v4167
    %v4232 = vpop.f32.mrf.mxu0
    %v4233 = vadd.f32 0.0, %v4232
    %v4234 = vpop.f32.mrf.mxu0
    %v4235 = vpop.f32.mrf.mxu0
    %v4236 = vadd.f32 0.0, %v4235
    %v4237 = vpop.f32.mrf.mxu0
    %4238 = vmatprep.mubr.bf16.mxu0 0
    %4239 = vmatmul.mubr.bf16.gmra.mxu0 %v4170
    %v4240 = vpop.f32.mrf.mxu0
    %v4241 = vadd.f32 0.0, %v4240
    %v4242 = vpop.f32.mrf.mxu0
    %v4243 = vpop.f32.mrf.mxu0
    %v4244 = vadd.f32 0.0, %v4243
    %v4245 = vpop.f32.mrf.mxu0
    %4246 = vmatprep.mubr.bf16.mxu0 0
    %4247 = vmatmul.mubr.bf16.gmra.mxu0 %v4173
    %v4248 = vpop.f32.mrf.mxu0
    %v4249 = vadd.f32 0.0, %v4248
    %v4250 = vpop.f32.mrf.mxu0
    %v4251 = vpop.f32.mrf.mxu0
    %v4252 = vadd.f32 0.0, %v4251
    %v4253 = vpop.f32.mrf.mxu0
    %4254 = vmatprep.mubr.bf16.mxu0 0
    %4255 = vmatmul.mubr.bf16.gmra.mxu0 %v4176
    %v4256 = vpop.f32.mrf.mxu0
    %v4257 = vadd.f32 0.0, %v4256
    %v4258 = vpop.f32.mrf.mxu0
    %v4259 = vpop.f32.mrf.mxu0
    %v4260 = vadd.f32 0.0, %v4259
    %v4261 = vpop.f32.mrf.mxu0
    %4262 = vmatprep.mubr.bf16.mxu0 0
    %4263 = vmatmul.mubr.bf16.gmra.mxu0 %v4179
    %v4264 = vpop.f32.mrf.mxu0
    %v4265 = vadd.f32 0.0, %v4264
    %v4266 = vpop.f32.mrf.mxu0
    %v4267 = vpop.f32.mrf.mxu0
    %v4268 = vadd.f32 0.0, %v4267
    %v4269 = vpop.f32.mrf.mxu0
    %4270 = vmatprep.mubr.bf16.mxu0 0
    %4271 = vmatmul.mubr.bf16.gmra.mxu0 %v4182
    %v4272 = vpop.f32.mrf.mxu0
    %v4273 = vadd.f32 0.0, %v4272
    %v4274 = vpop.f32.mrf.mxu0
    %v4275 = vpop.f32.mrf.mxu0
    %v4276 = vadd.f32 0.0, %v4275
    %v4277 = vpop.f32.mrf.mxu0
    %4278 = vmatprep.mubr.bf16.mxu0 0
    %4279 = vmatmul.mubr.bf16.gmra.mxu0 %v4185
    %v4280 = vpop.f32.mrf.mxu0
    %v4281 = vadd.f32 0.0, %v4280
    %v4282 = vpop.f32.mrf.mxu0
    %v4283 = vpop.f32.mrf.mxu0
    %v4284 = vadd.f32 0.0, %v4283
    %v4285 = vpop.f32.mrf.mxu0
    %4286 = vdwg.mxu0
    %v4287 = vadd.f32 %v3750, %v4225
    %v4288 = vadd.f32 %v3751, %v4228
    %v4289 = vadd.f32 %v3752, %v4233
    %v4290 = vadd.f32 %v3753, %v4236
    %v4291 = vadd.f32 %v3754, %v4241
    %v4292 = vadd.f32 %v3755, %v4244
    %v4293 = vadd.f32 %v3756, %v4249
    %v4294 = vadd.f32 %v3757, %v4252
    %v4295 = vadd.f32 %v3758, %v4257
    %v4296 = vadd.f32 %v3759, %v4260
    %v4297 = vadd.f32 %v3760, %v4265
    %v4298 = vadd.f32 %v3761, %v4268
    %v4299 = vadd.f32 %v3762, %v4273
    %v4300 = vadd.f32 %v3763, %v4276
    %v4301 = vadd.f32 %v3764, %v4281
    %v4302 = vadd.f32 %v3765, %v4284
    %s4303 = scalar_lea.vmem [#allocation2], 1792
    %v4304 = vld [vmem:[%s4303] sm:$0xff]
    %v4305 = vld [vmem:[%s4303 + $0x8] sm:$0xff]
    %v4306 = vld [vmem:[%s4303 + $0x10] sm:$0xff]
    %v4307 = vld [vmem:[%s4303 + $0x18] sm:$0xff]
    %v4308 = vld [vmem:[%s4303 + $0x20] sm:$0xff]
    %v4309 = vld [vmem:[%s4303 + $0x28] sm:$0xff]
    %v4310 = vld [vmem:[%s4303 + $0x30] sm:$0xff]
    %v4311 = vld [vmem:[%s4303 + $0x38] sm:$0xff]
    %v4312 = vld [vmem:[%s4303 + $0x40] sm:$0xff]
    %v4313 = vld [vmem:[%s4303 + $0x48] sm:$0xff]
    %v4314 = vld [vmem:[%s4303 + $0x50] sm:$0xff]
    %v4315 = vld [vmem:[%s4303 + $0x58] sm:$0xff]
    %v4316 = vld [vmem:[%s4303 + $0x60] sm:$0xff]
    %v4317 = vld [vmem:[%s4303 + $0x68] sm:$0xff]
    %v4318 = vld [vmem:[%s4303 + $0x70] sm:$0xff]
    %v4319 = vld [vmem:[%s4303 + $0x78] sm:$0xff]
    %v4320 = vld [vmem:[%s4303 + $0x80] sm:$0xff]
    %v4321 = vld [vmem:[%s4303 + $0x88] sm:$0xff]
    %v4322 = vld [vmem:[%s4303 + $0x90] sm:$0xff]
    %v4323 = vld [vmem:[%s4303 + $0x98] sm:$0xff]
    %v4324 = vld [vmem:[%s4303 + $0xa0] sm:$0xff]
    %v4325 = vld [vmem:[%s4303 + $0xa8] sm:$0xff]
    %v4326 = vld [vmem:[%s4303 + $0xb0] sm:$0xff]
    %v4327 = vld [vmem:[%s4303 + $0xb8] sm:$0xff]
    %v4328 = vld [vmem:[%s4303 + $0xc0] sm:$0xff]
    %v4329 = vld [vmem:[%s4303 + $0xc8] sm:$0xff]
    %v4330 = vld [vmem:[%s4303 + $0xd0] sm:$0xff]
    %v4331 = vld [vmem:[%s4303 + $0xd8] sm:$0xff]
    %v4332 = vld [vmem:[%s4303 + $0xe0] sm:$0xff]
    %v4333 = vld [vmem:[%s4303 + $0xe8] sm:$0xff]
    %v4334 = vld [vmem:[%s4303 + $0xf0] sm:$0xff]
    %v4335 = vld [vmem:[%s4303 + $0xf8] sm:$0xff]
    %v4368 = vunpack.c.l.b16 %v4304
    %v4369 = vunpack.c.h.b16 %v4304
    %v4370 = vunpack.c.l.b16 %v4305
    %v4371 = vunpack.c.h.b16 %v4305
    %v4372 = vunpack.c.l.b16 %v4306
    %v4373 = vunpack.c.h.b16 %v4306
    %v4374 = vunpack.c.l.b16 %v4307
    %v4375 = vunpack.c.h.b16 %v4307
    %v4376 = vunpack.c.l.b16 %v4308
    %v4377 = vunpack.c.h.b16 %v4308
    %v4378 = vunpack.c.l.b16 %v4309
    %v4379 = vunpack.c.h.b16 %v4309
    %v4380 = vunpack.c.l.b16 %v4310
    %v4381 = vunpack.c.h.b16 %v4310
    %v4382 = vunpack.c.l.b16 %v4311
    %v4383 = vunpack.c.h.b16 %v4311
    %v4384 = vunpack.c.l.b16 %v4312
    %v4385 = vunpack.c.h.b16 %v4312
    %v4386 = vunpack.c.l.b16 %v4313
    %v4387 = vunpack.c.h.b16 %v4313
    %v4388 = vunpack.c.l.b16 %v4314
    %v4389 = vunpack.c.h.b16 %v4314
    %v4390 = vunpack.c.l.b16 %v4315
    %v4391 = vunpack.c.h.b16 %v4315
    %v4392 = vunpack.c.l.b16 %v4316
    %v4393 = vunpack.c.h.b16 %v4316
    %v4394 = vunpack.c.l.b16 %v4317
    %v4395 = vunpack.c.h.b16 %v4317
    %v4396 = vunpack.c.l.b16 %v4318
    %v4397 = vunpack.c.h.b16 %v4318
    %v4398 = vunpack.c.l.b16 %v4319
    %v4399 = vunpack.c.h.b16 %v4319
    %v4400 = vunpack.c.l.b16 %v4320
    %v4401 = vunpack.c.h.b16 %v4320
    %v4402 = vunpack.c.l.b16 %v4321
    %v4403 = vunpack.c.h.b16 %v4321
    %v4404 = vunpack.c.l.b16 %v4322
    %v4405 = vunpack.c.h.b16 %v4322
    %v4406 = vunpack.c.l.b16 %v4323
    %v4407 = vunpack.c.h.b16 %v4323
    %v4408 = vunpack.c.l.b16 %v4324
    %v4409 = vunpack.c.h.b16 %v4324
    %v4410 = vunpack.c.l.b16 %v4325
    %v4411 = vunpack.c.h.b16 %v4325
    %v4412 = vunpack.c.l.b16 %v4326
    %v4413 = vunpack.c.h.b16 %v4326
    %v4414 = vunpack.c.l.b16 %v4327
    %v4415 = vunpack.c.h.b16 %v4327
    %v4416 = vunpack.c.l.b16 %v4328
    %v4417 = vunpack.c.h.b16 %v4328
    %v4418 = vunpack.c.l.b16 %v4329
    %v4419 = vunpack.c.h.b16 %v4329
    %v4420 = vunpack.c.l.b16 %v4330
    %v4421 = vunpack.c.h.b16 %v4330
    %v4422 = vunpack.c.l.b16 %v4331
    %v4423 = vunpack.c.h.b16 %v4331
    %v4424 = vunpack.c.l.b16 %v4332
    %v4425 = vunpack.c.h.b16 %v4332
    %v4426 = vunpack.c.l.b16 %v4333
    %v4427 = vunpack.c.h.b16 %v4333
    %v4428 = vunpack.c.l.b16 %v4334
    %v4429 = vunpack.c.h.b16 %v4334
    %v4430 = vunpack.c.l.b16 %v4335
    %v4431 = vunpack.c.h.b16 %v4335
    %v4432 = vpack.c.b16 %v4372, %v4368
    %v4433 = vpack.c.b16 %v4373, %v4369
    %v4434 = vpack.c.b16 %v4374, %v4370
    %v4435 = vpack.c.b16 %v4375, %v4371
    %v4436 = vpack.c.b16 %v4380, %v4376
    %v4437 = vpack.c.b16 %v4381, %v4377
    %v4438 = vpack.c.b16 %v4382, %v4378
    %v4439 = vpack.c.b16 %v4383, %v4379
    %v4440 = vpack.c.b16 %v4388, %v4384
    %v4441 = vpack.c.b16 %v4389, %v4385
    %v4442 = vpack.c.b16 %v4390, %v4386
    %v4443 = vpack.c.b16 %v4391, %v4387
    %v4444 = vpack.c.b16 %v4396, %v4392
    %v4445 = vpack.c.b16 %v4397, %v4393
    %v4446 = vpack.c.b16 %v4398, %v4394
    %v4447 = vpack.c.b16 %v4399, %v4395
    %v4448 = vpack.c.b16 %v4404, %v4400
    %v4449 = vpack.c.b16 %v4405, %v4401
    %v4450 = vpack.c.b16 %v4406, %v4402
    %v4451 = vpack.c.b16 %v4407, %v4403
    %v4452 = vpack.c.b16 %v4412, %v4408
    %v4453 = vpack.c.b16 %v4413, %v4409
    %v4454 = vpack.c.b16 %v4414, %v4410
    %v4455 = vpack.c.b16 %v4415, %v4411
    %v4456 = vpack.c.b16 %v4420, %v4416
    %v4457 = vpack.c.b16 %v4421, %v4417
    %v4458 = vpack.c.b16 %v4422, %v4418
    %v4459 = vpack.c.b16 %v4423, %v4419
    %v4460 = vpack.c.b16 %v4428, %v4424
    %v4461 = vpack.c.b16 %v4429, %v4425
    %v4462 = vpack.c.b16 %v4430, %v4426
    %v4463 = vpack.c.b16 %v4431, %v4427
    %4496 = vmatprep.subr.bf16.mxu0 0
    %4497 = vmatpush1.bf16.msra.mxu0 %v711
    %4498 = vmatprep.subr.bf16.mxu0 0
    %4499 = vmatpush1.bf16.msra.mxu0 %v710
    %4500 = vmatprep.subr.bf16.mxu0 0
    %4501 = vmatpush1.bf16.msra.mxu0 %v709
    %4502 = vmatprep.subr.bf16.mxu0 0
    %4503 = vmatpush1.bf16.msra.mxu0 %v708
    %4504 = vmatprep.subr.bf16.mxu0 0
    %4505 = vmatpush1.bf16.msra.mxu0 %v707
    %4506 = vmatprep.subr.bf16.mxu0 0
    %4507 = vmatpush1.bf16.msra.mxu0 %v706
    %4508 = vmatprep.subr.bf16.mxu0 0
    %4509 = vmatpush1.bf16.msra.mxu0 %v705
    %4510 = vmatprep.subr.bf16.mxu0 0
    %4511 = vmatpush1.bf16.msra.mxu0 %v704
    %4512 = vmatprep.subr.bf16.mxu0 0
    %4513 = vmatpush2.bf16.msra.mxu0 %v719
    %4514 = vmatprep.subr.bf16.mxu0 0
    %4515 = vmatpush2.bf16.msra.mxu0 %v718
    %4516 = vmatprep.subr.bf16.mxu0 0
    %4517 = vmatpush2.bf16.msra.mxu0 %v717
    %4518 = vmatprep.subr.bf16.mxu0 0
    %4519 = vmatpush2.bf16.msra.mxu0 %v716
    %4520 = vmatprep.subr.bf16.mxu0 0
    %4521 = vmatpush2.bf16.msra.mxu0 %v715
    %4522 = vmatprep.subr.bf16.mxu0 0
    %4523 = vmatpush2.bf16.msra.mxu0 %v714
    %4524 = vmatprep.subr.bf16.mxu0 0
    %4525 = vmatpush2.bf16.msra.mxu0 %v713
    %4526 = vmatprep.subr.bf16.mxu0 0
    %4527 = vmatpush2.bf16.msra.mxu0 %v712
    %4528 = vmatprep.mubr.bf16.mxu0 %v4433
    %4529 = vmatmul.mubr.bf16.gmra.mxu0 %v4432
    %v4530 = vpop.f32.mrf.mxu0
    %v4531 = vadd.f32 0.0, %v4530
    %v4532 = vpop.f32.mrf.mxu0
    %v4533 = vpop.f32.mrf.mxu0
    %v4534 = vadd.f32 0.0, %v4533
    %v4535 = vpop.f32.mrf.mxu0
    %4536 = vmatprep.mubr.bf16.mxu0 %v4437
    %4537 = vmatmul.mubr.bf16.gmra.mxu0 %v4436
    %v4538 = vpop.f32.mrf.mxu0
    %v4539 = vadd.f32 0.0, %v4538
    %v4540 = vpop.f32.mrf.mxu0
    %v4541 = vpop.f32.mrf.mxu0
    %v4542 = vadd.f32 0.0, %v4541
    %v4543 = vpop.f32.mrf.mxu0
    %4544 = vmatprep.mubr.bf16.mxu0 %v4441
    %4545 = vmatmul.mubr.bf16.gmra.mxu0 %v4440
    %v4546 = vpop.f32.mrf.mxu0
    %v4547 = vadd.f32 0.0, %v4546
    %v4548 = vpop.f32.mrf.mxu0
    %v4549 = vpop.f32.mrf.mxu0
    %v4550 = vadd.f32 0.0, %v4549
    %v4551 = vpop.f32.mrf.mxu0
    %4552 = vmatprep.mubr.bf16.mxu0 %v4445
    %4553 = vmatmul.mubr.bf16.gmra.mxu0 %v4444
    %v4554 = vpop.f32.mrf.mxu0
    %v4555 = vadd.f32 0.0, %v4554
    %v4556 = vpop.f32.mrf.mxu0
    %v4557 = vpop.f32.mrf.mxu0
    %v4558 = vadd.f32 0.0, %v4557
    %v4559 = vpop.f32.mrf.mxu0
    %4560 = vmatprep.mubr.bf16.mxu0 %v4449
    %4561 = vmatmul.mubr.bf16.gmra.mxu0 %v4448
    %v4562 = vpop.f32.mrf.mxu0
    %v4563 = vadd.f32 0.0, %v4562
    %v4564 = vpop.f32.mrf.mxu0
    %v4565 = vpop.f32.mrf.mxu0
    %v4566 = vadd.f32 0.0, %v4565
    %v4567 = vpop.f32.mrf.mxu0
    %4568 = vmatprep.mubr.bf16.mxu0 %v4453
    %4569 = vmatmul.mubr.bf16.gmra.mxu0 %v4452
    %v4570 = vpop.f32.mrf.mxu0
    %v4571 = vadd.f32 0.0, %v4570
    %v4572 = vpop.f32.mrf.mxu0
    %v4573 = vpop.f32.mrf.mxu0
    %v4574 = vadd.f32 0.0, %v4573
    %v4575 = vpop.f32.mrf.mxu0
    %4576 = vmatprep.mubr.bf16.mxu0 %v4457
    %4577 = vmatmul.mubr.bf16.gmra.mxu0 %v4456
    %v4578 = vpop.f32.mrf.mxu0
    %v4579 = vadd.f32 0.0, %v4578
    %v4580 = vpop.f32.mrf.mxu0
    %v4581 = vpop.f32.mrf.mxu0
    %v4582 = vadd.f32 0.0, %v4581
    %v4583 = vpop.f32.mrf.mxu0
    %4584 = vmatprep.mubr.bf16.mxu0 %v4461
    %4585 = vmatmul.mubr.bf16.gmra.mxu0 %v4460
    %v4586 = vpop.f32.mrf.mxu0
    %v4587 = vadd.f32 0.0, %v4586
    %v4588 = vpop.f32.mrf.mxu0
    %v4589 = vpop.f32.mrf.mxu0
    %v4590 = vadd.f32 0.0, %v4589
    %v4591 = vpop.f32.mrf.mxu0
    %4592 = vdwg.mxu0
    %4593 = vmatprep.subr.bf16.mxu0 0
    %4594 = vmatpush1.bf16.msra.mxu0 %v727
    %4595 = vmatprep.subr.bf16.mxu0 0
    %4596 = vmatpush1.bf16.msra.mxu0 %v726
    %4597 = vmatprep.subr.bf16.mxu0 0
    %4598 = vmatpush1.bf16.msra.mxu0 %v725
    %4599 = vmatprep.subr.bf16.mxu0 0
    %4600 = vmatpush1.bf16.msra.mxu0 %v724
    %4601 = vmatprep.subr.bf16.mxu0 0
    %4602 = vmatpush1.bf16.msra.mxu0 %v723
    %4603 = vmatprep.subr.bf16.mxu0 0
    %4604 = vmatpush1.bf16.msra.mxu0 %v722
    %4605 = vmatprep.subr.bf16.mxu0 0
    %4606 = vmatpush1.bf16.msra.mxu0 %v721
    %4607 = vmatprep.subr.bf16.mxu0 0
    %4608 = vmatpush1.bf16.msra.mxu0 %v720
    %4609 = vmatprep.subr.bf16.mxu0 0
    %4610 = vmatpush2.bf16.msra.mxu0 %v735
    %4611 = vmatprep.subr.bf16.mxu0 0
    %4612 = vmatpush2.bf16.msra.mxu0 %v734
    %4613 = vmatprep.subr.bf16.mxu0 0
    %4614 = vmatpush2.bf16.msra.mxu0 %v733
    %4615 = vmatprep.subr.bf16.mxu0 0
    %4616 = vmatpush2.bf16.msra.mxu0 %v732
    %4617 = vmatprep.subr.bf16.mxu0 0
    %4618 = vmatpush2.bf16.msra.mxu0 %v731
    %4619 = vmatprep.subr.bf16.mxu0 0
    %4620 = vmatpush2.bf16.msra.mxu0 %v730
    %4621 = vmatprep.subr.bf16.mxu0 0
    %4622 = vmatpush2.bf16.msra.mxu0 %v729
    %4623 = vmatprep.subr.bf16.mxu0 0
    %4624 = vmatpush2.bf16.msra.mxu0 %v728
    %4625 = vmatprep.mubr.bf16.mxu0 %v4435
    %4626 = vmatmul.mubr.bf16.gmra.mxu0 %v4434
    %v4627 = vpop.f32.mrf.mxu0
    %v4628 = vadd.f32 %v4531, %v4627
    %v4629 = vpop.f32.mrf.mxu0
    %v4630 = vpop.f32.mrf.mxu0
    %v4631 = vadd.f32 %v4534, %v4630
    %v4632 = vpop.f32.mrf.mxu0
    %4633 = vmatprep.mubr.bf16.mxu0 %v4439
    %4634 = vmatmul.mubr.bf16.gmra.mxu0 %v4438
    %v4635 = vpop.f32.mrf.mxu0
    %v4636 = vadd.f32 %v4539, %v4635
    %v4637 = vpop.f32.mrf.mxu0
    %v4638 = vpop.f32.mrf.mxu0
    %v4639 = vadd.f32 %v4542, %v4638
    %v4640 = vpop.f32.mrf.mxu0
    %4641 = vmatprep.mubr.bf16.mxu0 %v4443
    %4642 = vmatmul.mubr.bf16.gmra.mxu0 %v4442
    %v4643 = vpop.f32.mrf.mxu0
    %v4644 = vadd.f32 %v4547, %v4643
    %v4645 = vpop.f32.mrf.mxu0
    %v4646 = vpop.f32.mrf.mxu0
    %v4647 = vadd.f32 %v4550, %v4646
    %v4648 = vpop.f32.mrf.mxu0
    %4649 = vmatprep.mubr.bf16.mxu0 %v4447
    %4650 = vmatmul.mubr.bf16.gmra.mxu0 %v4446
    %v4651 = vpop.f32.mrf.mxu0
    %v4652 = vadd.f32 %v4555, %v4651
    %v4653 = vpop.f32.mrf.mxu0
    %v4654 = vpop.f32.mrf.mxu0
    %v4655 = vadd.f32 %v4558, %v4654
    %v4656 = vpop.f32.mrf.mxu0
    %4657 = vmatprep.mubr.bf16.mxu0 %v4451
    %4658 = vmatmul.mubr.bf16.gmra.mxu0 %v4450
    %v4659 = vpop.f32.mrf.mxu0
    %v4660 = vadd.f32 %v4563, %v4659
    %v4661 = vpop.f32.mrf.mxu0
    %v4662 = vpop.f32.mrf.mxu0
    %v4663 = vadd.f32 %v4566, %v4662
    %v4664 = vpop.f32.mrf.mxu0
    %4665 = vmatprep.mubr.bf16.mxu0 %v4455
    %4666 = vmatmul.mubr.bf16.gmra.mxu0 %v4454
    %v4667 = vpop.f32.mrf.mxu0
    %v4668 = vadd.f32 %v4571, %v4667
    %v4669 = vpop.f32.mrf.mxu0
    %v4670 = vpop.f32.mrf.mxu0
    %v4671 = vadd.f32 %v4574, %v4670
    %v4672 = vpop.f32.mrf.mxu0
    %4673 = vmatprep.mubr.bf16.mxu0 %v4459
    %4674 = vmatmul.mubr.bf16.gmra.mxu0 %v4458
    %v4675 = vpop.f32.mrf.mxu0
    %v4676 = vadd.f32 %v4579, %v4675
    %v4677 = vpop.f32.mrf.mxu0
    %v4678 = vpop.f32.mrf.mxu0
    %v4679 = vadd.f32 %v4582, %v4678
    %v4680 = vpop.f32.mrf.mxu0
    %4681 = vmatprep.mubr.bf16.mxu0 %v4463
    %4682 = vmatmul.mubr.bf16.gmra.mxu0 %v4462
    %v4683 = vpop.f32.mrf.mxu0
    %v4684 = vadd.f32 %v4587, %v4683
    %v4685 = vpop.f32.mrf.mxu0
    %v4686 = vpop.f32.mrf.mxu0
    %v4687 = vadd.f32 %v4590, %v4686
    %v4688 = vpop.f32.mrf.mxu0
    %4689 = vdwg.mxu0
    %v4690 = vpack.c.bf16 %v4631, %v4628
    %v4691 = vpack.c.bf16 %v4639, %v4636
    %v4692 = vpack.c.bf16 %v4647, %v4644
    %v4693 = vpack.c.bf16 %v4655, %v4652
    %v4694 = vpack.c.bf16 %v4663, %v4660
    %v4695 = vpack.c.bf16 %v4671, %v4668
    %v4696 = vpack.c.bf16 %v4679, %v4676
    %v4697 = vpack.c.bf16 %v4687, %v4684
    %s4698 = scalar_lea.vmem [#allocation4], 14
    %v4699 = vld [vmem:[%s4698] sm:$0x3]
    %v4701 = vsel %vm1368, %v4690, 0
    %v4704 = vsel %vm1368, %v4691, 0
    %v4707 = vsel %vm1368, %v4692, 0
    %v4710 = vsel %vm1368, %v4693, 0
    %v4713 = vsel %vm1368, %v4694, 0
    %v4716 = vsel %vm1368, %v4695, 0
    %v4719 = vsel %vm1368, %v4696, 0
    %v4722 = vsel %vm1368, %v4697, 0
    %v4725 = vsel %vm1393, %v4699, 0
    %4727 = vmatprep.subr.bf16.mxu0 0
    %4728 = vmatpush1.bf16.msra.mxu0 0
    %4729 = vmatprep.subr.bf16.mxu0 0
    %4730 = vmatpush1.bf16.msra.mxu0 0
    %4731 = vmatprep.subr.bf16.mxu0 0
    %4732 = vmatpush1.bf16.msra.mxu0 0
    %4733 = vmatprep.subr.bf16.mxu0 0
    %4734 = vmatpush1.bf16.msra.mxu0 0
    %4735 = vmatprep.subr.bf16.mxu0 0
    %4736 = vmatpush1.bf16.msra.mxu0 0
    %4737 = vmatprep.subr.bf16.mxu0 0
    %4738 = vmatpush1.bf16.msra.mxu0 0
    %4739 = vmatprep.subr.bf16.mxu0 0
    %4740 = vmatpush1.bf16.msra.mxu0 0
    %4741 = vmatprep.subr.bf16.mxu0 0
    %4742 = vmatpush1.bf16.msra.mxu0 %v4725
    %4743 = vmatprep.subr.bf16.mxu0 0
    %4744 = vmatpush2.bf16.msra.mxu0 0
    %4745 = vmatprep.subr.bf16.mxu0 0
    %4746 = vmatpush2.bf16.msra.mxu0 0
    %4747 = vmatprep.subr.bf16.mxu0 0
    %4748 = vmatpush2.bf16.msra.mxu0 0
    %4749 = vmatprep.subr.bf16.mxu0 0
    %4750 = vmatpush2.bf16.msra.mxu0 0
    %4751 = vmatprep.subr.bf16.mxu0 0
    %4752 = vmatpush2.bf16.msra.mxu0 0
    %4753 = vmatprep.subr.bf16.mxu0 0
    %4754 = vmatpush2.bf16.msra.mxu0 0
    %4755 = vmatprep.subr.bf16.mxu0 0
    %4756 = vmatpush2.bf16.msra.mxu0 0
    %4757 = vmatprep.subr.bf16.mxu0 0
    %4758 = vmatpush2.bf16.msra.mxu0 0
    %4759 = vmatprep.mubr.bf16.mxu0 0
    %4760 = vmatmul.mubr.bf16.gmra.mxu0 %v4701
    %v4761 = vpop.f32.mrf.mxu0
    %v4762 = vadd.f32 0.0, %v4761
    %v4763 = vpop.f32.mrf.mxu0
    %v4764 = vpop.f32.mrf.mxu0
    %v4765 = vadd.f32 0.0, %v4764
    %v4766 = vpop.f32.mrf.mxu0
    %4767 = vmatprep.mubr.bf16.mxu0 0
    %4768 = vmatmul.mubr.bf16.gmra.mxu0 %v4704
    %v4769 = vpop.f32.mrf.mxu0
    %v4770 = vadd.f32 0.0, %v4769
    %v4771 = vpop.f32.mrf.mxu0
    %v4772 = vpop.f32.mrf.mxu0
    %v4773 = vadd.f32 0.0, %v4772
    %v4774 = vpop.f32.mrf.mxu0
    %4775 = vmatprep.mubr.bf16.mxu0 0
    %4776 = vmatmul.mubr.bf16.gmra.mxu0 %v4707
    %v4777 = vpop.f32.mrf.mxu0
    %v4778 = vadd.f32 0.0, %v4777
    %v4779 = vpop.f32.mrf.mxu0
    %v4780 = vpop.f32.mrf.mxu0
    %v4781 = vadd.f32 0.0, %v4780
    %v4782 = vpop.f32.mrf.mxu0
    %4783 = vmatprep.mubr.bf16.mxu0 0
    %4784 = vmatmul.mubr.bf16.gmra.mxu0 %v4710
    %v4785 = vpop.f32.mrf.mxu0
    %v4786 = vadd.f32 0.0, %v4785
    %v4787 = vpop.f32.mrf.mxu0
    %v4788 = vpop.f32.mrf.mxu0
    %v4789 = vadd.f32 0.0, %v4788
    %v4790 = vpop.f32.mrf.mxu0
    %4791 = vmatprep.mubr.bf16.mxu0 0
    %4792 = vmatmul.mubr.bf16.gmra.mxu0 %v4713
    %v4793 = vpop.f32.mrf.mxu0
    %v4794 = vadd.f32 0.0, %v4793
    %v4795 = vpop.f32.mrf.mxu0
    %v4796 = vpop.f32.mrf.mxu0
    %v4797 = vadd.f32 0.0, %v4796
    %v4798 = vpop.f32.mrf.mxu0
    %4799 = vmatprep.mubr.bf16.mxu0 0
    %4800 = vmatmul.mubr.bf16.gmra.mxu0 %v4716
    %v4801 = vpop.f32.mrf.mxu0
    %v4802 = vadd.f32 0.0, %v4801
    %v4803 = vpop.f32.mrf.mxu0
    %v4804 = vpop.f32.mrf.mxu0
    %v4805 = vadd.f32 0.0, %v4804
    %v4806 = vpop.f32.mrf.mxu0
    %4807 = vmatprep.mubr.bf16.mxu0 0
    %4808 = vmatmul.mubr.bf16.gmra.mxu0 %v4719
    %v4809 = vpop.f32.mrf.mxu0
    %v4810 = vadd.f32 0.0, %v4809
    %v4811 = vpop.f32.mrf.mxu0
    %v4812 = vpop.f32.mrf.mxu0
    %v4813 = vadd.f32 0.0, %v4812
    %v4814 = vpop.f32.mrf.mxu0
    %4815 = vmatprep.mubr.bf16.mxu0 0
    %4816 = vmatmul.mubr.bf16.gmra.mxu0 %v4722
    %v4817 = vpop.f32.mrf.mxu0
    %v4818 = vadd.f32 0.0, %v4817
    %v4819 = vpop.f32.mrf.mxu0
    %v4820 = vpop.f32.mrf.mxu0
    %v4821 = vadd.f32 0.0, %v4820
    %v4822 = vpop.f32.mrf.mxu0
    %4823 = vdwg.mxu0
    %v4824 = vadd.f32 %v4287, %v4762
    %v4825 = vadd.f32 %v4288, %v4765
    %v4826 = vadd.f32 %v4289, %v4770
    %v4827 = vadd.f32 %v4290, %v4773
    %v4828 = vadd.f32 %v4291, %v4778
    %v4829 = vadd.f32 %v4292, %v4781
    %v4830 = vadd.f32 %v4293, %v4786
    %v4831 = vadd.f32 %v4294, %v4789
    %v4832 = vadd.f32 %v4295, %v4794
    %v4833 = vadd.f32 %v4296, %v4797
    %v4834 = vadd.f32 %v4297, %v4802
    %v4835 = vadd.f32 %v4298, %v4805
    %v4836 = vadd.f32 %v4299, %v4810
    %v4837 = vadd.f32 %v4300, %v4813
    %v4838 = vadd.f32 %v4301, %v4818
    %v4839 = vadd.f32 %v4302, %v4821
    %s4840 = scalar_lea.vmem [#allocation2], 2048
    %v4841 = vld [vmem:[%s4840] sm:$0xff]
    %v4842 = vld [vmem:[%s4840 + $0x8] sm:$0xff]
    %v4843 = vld [vmem:[%s4840 + $0x10] sm:$0xff]
    %v4844 = vld [vmem:[%s4840 + $0x18] sm:$0xff]
    %v4845 = vld [vmem:[%s4840 + $0x20] sm:$0xff]
    %v4846 = vld [vmem:[%s4840 + $0x28] sm:$0xff]
    %v4847 = vld [vmem:[%s4840 + $0x30] sm:$0xff]
    %v4848 = vld [vmem:[%s4840 + $0x38] sm:$0xff]
    %v4849 = vld [vmem:[%s4840 + $0x40] sm:$0xff]
    %v4850 = vld [vmem:[%s4840 + $0x48] sm:$0xff]
    %v4851 = vld [vmem:[%s4840 + $0x50] sm:$0xff]
    %v4852 = vld [vmem:[%s4840 + $0x58] sm:$0xff]
    %v4853 = vld [vmem:[%s4840 + $0x60] sm:$0xff]
    %v4854 = vld [vmem:[%s4840 + $0x68] sm:$0xff]
    %v4855 = vld [vmem:[%s4840 + $0x70] sm:$0xff]
    %v4856 = vld [vmem:[%s4840 + $0x78] sm:$0xff]
    %v4857 = vld [vmem:[%s4840 + $0x80] sm:$0xff]
    %v4858 = vld [vmem:[%s4840 + $0x88] sm:$0xff]
    %v4859 = vld [vmem:[%s4840 + $0x90] sm:$0xff]
    %v4860 = vld [vmem:[%s4840 + $0x98] sm:$0xff]
    %v4861 = vld [vmem:[%s4840 + $0xa0] sm:$0xff]
    %v4862 = vld [vmem:[%s4840 + $0xa8] sm:$0xff]
    %v4863 = vld [vmem:[%s4840 + $0xb0] sm:$0xff]
    %v4864 = vld [vmem:[%s4840 + $0xb8] sm:$0xff]
    %v4865 = vld [vmem:[%s4840 + $0xc0] sm:$0xff]
    %v4866 = vld [vmem:[%s4840 + $0xc8] sm:$0xff]
    %v4867 = vld [vmem:[%s4840 + $0xd0] sm:$0xff]
    %v4868 = vld [vmem:[%s4840 + $0xd8] sm:$0xff]
    %v4869 = vld [vmem:[%s4840 + $0xe0] sm:$0xff]
    %v4870 = vld [vmem:[%s4840 + $0xe8] sm:$0xff]
    %v4871 = vld [vmem:[%s4840 + $0xf0] sm:$0xff]
    %v4872 = vld [vmem:[%s4840 + $0xf8] sm:$0xff]
    %v4905 = vunpack.c.l.b16 %v4841
    %v4906 = vunpack.c.h.b16 %v4841
    %v4907 = vunpack.c.l.b16 %v4842
    %v4908 = vunpack.c.h.b16 %v4842
    %v4909 = vunpack.c.l.b16 %v4843
    %v4910 = vunpack.c.h.b16 %v4843
    %v4911 = vunpack.c.l.b16 %v4844
    %v4912 = vunpack.c.h.b16 %v4844
    %v4913 = vunpack.c.l.b16 %v4845
    %v4914 = vunpack.c.h.b16 %v4845
    %v4915 = vunpack.c.l.b16 %v4846
    %v4916 = vunpack.c.h.b16 %v4846
    %v4917 = vunpack.c.l.b16 %v4847
    %v4918 = vunpack.c.h.b16 %v4847
    %v4919 = vunpack.c.l.b16 %v4848
    %v4920 = vunpack.c.h.b16 %v4848
    %v4921 = vunpack.c.l.b16 %v4849
    %v4922 = vunpack.c.h.b16 %v4849
    %v4923 = vunpack.c.l.b16 %v4850
    %v4924 = vunpack.c.h.b16 %v4850
    %v4925 = vunpack.c.l.b16 %v4851
    %v4926 = vunpack.c.h.b16 %v4851
    %v4927 = vunpack.c.l.b16 %v4852
    %v4928 = vunpack.c.h.b16 %v4852
    %v4929 = vunpack.c.l.b16 %v4853
    %v4930 = vunpack.c.h.b16 %v4853
    %v4931 = vunpack.c.l.b16 %v4854
    %v4932 = vunpack.c.h.b16 %v4854
    %v4933 = vunpack.c.l.b16 %v4855
    %v4934 = vunpack.c.h.b16 %v4855
    %v4935 = vunpack.c.l.b16 %v4856
    %v4936 = vunpack.c.h.b16 %v4856
    %v4937 = vunpack.c.l.b16 %v4857
    %v4938 = vunpack.c.h.b16 %v4857
    %v4939 = vunpack.c.l.b16 %v4858
    %v4940 = vunpack.c.h.b16 %v4858
    %v4941 = vunpack.c.l.b16 %v4859
    %v4942 = vunpack.c.h.b16 %v4859
    %v4943 = vunpack.c.l.b16 %v4860
    %v4944 = vunpack.c.h.b16 %v4860
    %v4945 = vunpack.c.l.b16 %v4861
    %v4946 = vunpack.c.h.b16 %v4861
    %v4947 = vunpack.c.l.b16 %v4862
    %v4948 = vunpack.c.h.b16 %v4862
    %v4949 = vunpack.c.l.b16 %v4863
    %v4950 = vunpack.c.h.b16 %v4863
    %v4951 = vunpack.c.l.b16 %v4864
    %v4952 = vunpack.c.h.b16 %v4864
    %v4953 = vunpack.c.l.b16 %v4865
    %v4954 = vunpack.c.h.b16 %v4865
    %v4955 = vunpack.c.l.b16 %v4866
    %v4956 = vunpack.c.h.b16 %v4866
    %v4957 = vunpack.c.l.b16 %v4867
    %v4958 = vunpack.c.h.b16 %v4867
    %v4959 = vunpack.c.l.b16 %v4868
    %v4960 = vunpack.c.h.b16 %v4868
    %v4961 = vunpack.c.l.b16 %v4869
    %v4962 = vunpack.c.h.b16 %v4869
    %v4963 = vunpack.c.l.b16 %v4870
    %v4964 = vunpack.c.h.b16 %v4870
    %v4965 = vunpack.c.l.b16 %v4871
    %v4966 = vunpack.c.h.b16 %v4871
    %v4967 = vunpack.c.l.b16 %v4872
    %v4968 = vunpack.c.h.b16 %v4872
    %v4969 = vpack.c.b16 %v4909, %v4905
    %v4970 = vpack.c.b16 %v4910, %v4906
    %v4971 = vpack.c.b16 %v4911, %v4907
    %v4972 = vpack.c.b16 %v4912, %v4908
    %v4973 = vpack.c.b16 %v4917, %v4913
    %v4974 = vpack.c.b16 %v4918, %v4914
    %v4975 = vpack.c.b16 %v4919, %v4915
    %v4976 = vpack.c.b16 %v4920, %v4916
    %v4977 = vpack.c.b16 %v4925, %v4921
    %v4978 = vpack.c.b16 %v4926, %v4922
    %v4979 = vpack.c.b16 %v4927, %v4923
    %v4980 = vpack.c.b16 %v4928, %v4924
    %v4981 = vpack.c.b16 %v4933, %v4929
    %v4982 = vpack.c.b16 %v4934, %v4930
    %v4983 = vpack.c.b16 %v4935, %v4931
    %v4984 = vpack.c.b16 %v4936, %v4932
    %v4985 = vpack.c.b16 %v4941, %v4937
    %v4986 = vpack.c.b16 %v4942, %v4938
    %v4987 = vpack.c.b16 %v4943, %v4939
    %v4988 = vpack.c.b16 %v4944, %v4940
    %v4989 = vpack.c.b16 %v4949, %v4945
    %v4990 = vpack.c.b16 %v4950, %v4946
    %v4991 = vpack.c.b16 %v4951, %v4947
    %v4992 = vpack.c.b16 %v4952, %v4948
    %v4993 = vpack.c.b16 %v4957, %v4953
    %v4994 = vpack.c.b16 %v4958, %v4954
    %v4995 = vpack.c.b16 %v4959, %v4955
    %v4996 = vpack.c.b16 %v4960, %v4956
    %v4997 = vpack.c.b16 %v4965, %v4961
    %v4998 = vpack.c.b16 %v4966, %v4962
    %v4999 = vpack.c.b16 %v4967, %v4963
    %v5000 = vpack.c.b16 %v4968, %v4964
    %5033 = vmatprep.subr.bf16.mxu0 0
    %5034 = vmatpush1.bf16.msra.mxu0 %v711
    %5035 = vmatprep.subr.bf16.mxu0 0
    %5036 = vmatpush1.bf16.msra.mxu0 %v710
    %5037 = vmatprep.subr.bf16.mxu0 0
    %5038 = vmatpush1.bf16.msra.mxu0 %v709
    %5039 = vmatprep.subr.bf16.mxu0 0
    %5040 = vmatpush1.bf16.msra.mxu0 %v708
    %5041 = vmatprep.subr.bf16.mxu0 0
    %5042 = vmatpush1.bf16.msra.mxu0 %v707
    %5043 = vmatprep.subr.bf16.mxu0 0
    %5044 = vmatpush1.bf16.msra.mxu0 %v706
    %5045 = vmatprep.subr.bf16.mxu0 0
    %5046 = vmatpush1.bf16.msra.mxu0 %v705
    %5047 = vmatprep.subr.bf16.mxu0 0
    %5048 = vmatpush1.bf16.msra.mxu0 %v704
    %5049 = vmatprep.subr.bf16.mxu0 0
    %5050 = vmatpush2.bf16.msra.mxu0 %v719
    %5051 = vmatprep.subr.bf16.mxu0 0
    %5052 = vmatpush2.bf16.msra.mxu0 %v718
    %5053 = vmatprep.subr.bf16.mxu0 0
    %5054 = vmatpush2.bf16.msra.mxu0 %v717
    %5055 = vmatprep.subr.bf16.mxu0 0
    %5056 = vmatpush2.bf16.msra.mxu0 %v716
    %5057 = vmatprep.subr.bf16.mxu0 0
    %5058 = vmatpush2.bf16.msra.mxu0 %v715
    %5059 = vmatprep.subr.bf16.mxu0 0
    %5060 = vmatpush2.bf16.msra.mxu0 %v714
    %5061 = vmatprep.subr.bf16.mxu0 0
    %5062 = vmatpush2.bf16.msra.mxu0 %v713
    %5063 = vmatprep.subr.bf16.mxu0 0
    %5064 = vmatpush2.bf16.msra.mxu0 %v712
    %5065 = vmatprep.mubr.bf16.mxu0 %v4970
    %5066 = vmatmul.mubr.bf16.gmra.mxu0 %v4969
    %v5067 = vpop.f32.mrf.mxu0
    %v5068 = vadd.f32 0.0, %v5067
    %v5069 = vpop.f32.mrf.mxu0
    %v5070 = vpop.f32.mrf.mxu0
    %v5071 = vadd.f32 0.0, %v5070
    %v5072 = vpop.f32.mrf.mxu0
    %5073 = vmatprep.mubr.bf16.mxu0 %v4974
    %5074 = vmatmul.mubr.bf16.gmra.mxu0 %v4973
    %v5075 = vpop.f32.mrf.mxu0
    %v5076 = vadd.f32 0.0, %v5075
    %v5077 = vpop.f32.mrf.mxu0
    %v5078 = vpop.f32.mrf.mxu0
    %v5079 = vadd.f32 0.0, %v5078
    %v5080 = vpop.f32.mrf.mxu0
    %5081 = vmatprep.mubr.bf16.mxu0 %v4978
    %5082 = vmatmul.mubr.bf16.gmra.mxu0 %v4977
    %v5083 = vpop.f32.mrf.mxu0
    %v5084 = vadd.f32 0.0, %v5083
    %v5085 = vpop.f32.mrf.mxu0
    %v5086 = vpop.f32.mrf.mxu0
    %v5087 = vadd.f32 0.0, %v5086
    %v5088 = vpop.f32.mrf.mxu0
    %5089 = vmatprep.mubr.bf16.mxu0 %v4982
    %5090 = vmatmul.mubr.bf16.gmra.mxu0 %v4981
    %v5091 = vpop.f32.mrf.mxu0
    %v5092 = vadd.f32 0.0, %v5091
    %v5093 = vpop.f32.mrf.mxu0
    %v5094 = vpop.f32.mrf.mxu0
    %v5095 = vadd.f32 0.0, %v5094
    %v5096 = vpop.f32.mrf.mxu0
    %5097 = vmatprep.mubr.bf16.mxu0 %v4986
    %5098 = vmatmul.mubr.bf16.gmra.mxu0 %v4985
    %v5099 = vpop.f32.mrf.mxu0
    %v5100 = vadd.f32 0.0, %v5099
    %v5101 = vpop.f32.mrf.mxu0
    %v5102 = vpop.f32.mrf.mxu0
    %v5103 = vadd.f32 0.0, %v5102
    %v5104 = vpop.f32.mrf.mxu0
    %5105 = vmatprep.mubr.bf16.mxu0 %v4990
    %5106 = vmatmul.mubr.bf16.gmra.mxu0 %v4989
    %v5107 = vpop.f32.mrf.mxu0
    %v5108 = vadd.f32 0.0, %v5107
    %v5109 = vpop.f32.mrf.mxu0
    %v5110 = vpop.f32.mrf.mxu0
    %v5111 = vadd.f32 0.0, %v5110
    %v5112 = vpop.f32.mrf.mxu0
    %5113 = vmatprep.mubr.bf16.mxu0 %v4994
    %5114 = vmatmul.mubr.bf16.gmra.mxu0 %v4993
    %v5115 = vpop.f32.mrf.mxu0
    %v5116 = vadd.f32 0.0, %v5115
    %v5117 = vpop.f32.mrf.mxu0
    %v5118 = vpop.f32.mrf.mxu0
    %v5119 = vadd.f32 0.0, %v5118
    %v5120 = vpop.f32.mrf.mxu0
    %5121 = vmatprep.mubr.bf16.mxu0 %v4998
    %5122 = vmatmul.mubr.bf16.gmra.mxu0 %v4997
    %v5123 = vpop.f32.mrf.mxu0
    %v5124 = vadd.f32 0.0, %v5123
    %v5125 = vpop.f32.mrf.mxu0
    %v5126 = vpop.f32.mrf.mxu0
    %v5127 = vadd.f32 0.0, %v5126
    %v5128 = vpop.f32.mrf.mxu0
    %5129 = vdwg.mxu0
    %5130 = vmatprep.subr.bf16.mxu0 0
    %5131 = vmatpush1.bf16.msra.mxu0 %v727
    %5132 = vmatprep.subr.bf16.mxu0 0
    %5133 = vmatpush1.bf16.msra.mxu0 %v726
    %5134 = vmatprep.subr.bf16.mxu0 0
    %5135 = vmatpush1.bf16.msra.mxu0 %v725
    %5136 = vmatprep.subr.bf16.mxu0 0
    %5137 = vmatpush1.bf16.msra.mxu0 %v724
    %5138 = vmatprep.subr.bf16.mxu0 0
    %5139 = vmatpush1.bf16.msra.mxu0 %v723
    %5140 = vmatprep.subr.bf16.mxu0 0
    %5141 = vmatpush1.bf16.msra.mxu0 %v722
    %5142 = vmatprep.subr.bf16.mxu0 0
    %5143 = vmatpush1.bf16.msra.mxu0 %v721
    %5144 = vmatprep.subr.bf16.mxu0 0
    %5145 = vmatpush1.bf16.msra.mxu0 %v720
    %5146 = vmatprep.subr.bf16.mxu0 0
    %5147 = vmatpush2.bf16.msra.mxu0 %v735
    %5148 = vmatprep.subr.bf16.mxu0 0
    %5149 = vmatpush2.bf16.msra.mxu0 %v734
    %5150 = vmatprep.subr.bf16.mxu0 0
    %5151 = vmatpush2.bf16.msra.mxu0 %v733
    %5152 = vmatprep.subr.bf16.mxu0 0
    %5153 = vmatpush2.bf16.msra.mxu0 %v732
    %5154 = vmatprep.subr.bf16.mxu0 0
    %5155 = vmatpush2.bf16.msra.mxu0 %v731
    %5156 = vmatprep.subr.bf16.mxu0 0
    %5157 = vmatpush2.bf16.msra.mxu0 %v730
    %5158 = vmatprep.subr.bf16.mxu0 0
    %5159 = vmatpush2.bf16.msra.mxu0 %v729
    %5160 = vmatprep.subr.bf16.mxu0 0
    %5161 = vmatpush2.bf16.msra.mxu0 %v728
    %5162 = vmatprep.mubr.bf16.mxu0 %v4972
    %5163 = vmatmul.mubr.bf16.gmra.mxu0 %v4971
    %v5164 = vpop.f32.mrf.mxu0
    %v5165 = vadd.f32 %v5068, %v5164
    %v5166 = vpop.f32.mrf.mxu0
    %v5167 = vpop.f32.mrf.mxu0
    %v5168 = vadd.f32 %v5071, %v5167
    %v5169 = vpop.f32.mrf.mxu0
    %5170 = vmatprep.mubr.bf16.mxu0 %v4976
    %5171 = vmatmul.mubr.bf16.gmra.mxu0 %v4975
    %v5172 = vpop.f32.mrf.mxu0
    %v5173 = vadd.f32 %v5076, %v5172
    %v5174 = vpop.f32.mrf.mxu0
    %v5175 = vpop.f32.mrf.mxu0
    %v5176 = vadd.f32 %v5079, %v5175
    %v5177 = vpop.f32.mrf.mxu0
    %5178 = vmatprep.mubr.bf16.mxu0 %v4980
    %5179 = vmatmul.mubr.bf16.gmra.mxu0 %v4979
    %v5180 = vpop.f32.mrf.mxu0
    %v5181 = vadd.f32 %v5084, %v5180
    %v5182 = vpop.f32.mrf.mxu0
    %v5183 = vpop.f32.mrf.mxu0
    %v5184 = vadd.f32 %v5087, %v5183
    %v5185 = vpop.f32.mrf.mxu0
    %5186 = vmatprep.mubr.bf16.mxu0 %v4984
    %5187 = vmatmul.mubr.bf16.gmra.mxu0 %v4983
    %v5188 = vpop.f32.mrf.mxu0
    %v5189 = vadd.f32 %v5092, %v5188
    %v5190 = vpop.f32.mrf.mxu0
    %v5191 = vpop.f32.mrf.mxu0
    %v5192 = vadd.f32 %v5095, %v5191
    %v5193 = vpop.f32.mrf.mxu0
    %5194 = vmatprep.mubr.bf16.mxu0 %v4988
    %5195 = vmatmul.mubr.bf16.gmra.mxu0 %v4987
    %v5196 = vpop.f32.mrf.mxu0
    %v5197 = vadd.f32 %v5100, %v5196
    %v5198 = vpop.f32.mrf.mxu0
    %v5199 = vpop.f32.mrf.mxu0
    %v5200 = vadd.f32 %v5103, %v5199
    %v5201 = vpop.f32.mrf.mxu0
    %5202 = vmatprep.mubr.bf16.mxu0 %v4992
    %5203 = vmatmul.mubr.bf16.gmra.mxu0 %v4991
    %v5204 = vpop.f32.mrf.mxu0
    %v5205 = vadd.f32 %v5108, %v5204
    %v5206 = vpop.f32.mrf.mxu0
    %v5207 = vpop.f32.mrf.mxu0
    %v5208 = vadd.f32 %v5111, %v5207
    %v5209 = vpop.f32.mrf.mxu0
    %5210 = vmatprep.mubr.bf16.mxu0 %v4996
    %5211 = vmatmul.mubr.bf16.gmra.mxu0 %v4995
    %v5212 = vpop.f32.mrf.mxu0
    %v5213 = vadd.f32 %v5116, %v5212
    %v5214 = vpop.f32.mrf.mxu0
    %v5215 = vpop.f32.mrf.mxu0
    %v5216 = vadd.f32 %v5119, %v5215
    %v5217 = vpop.f32.mrf.mxu0
    %5218 = vmatprep.mubr.bf16.mxu0 %v5000
    %5219 = vmatmul.mubr.bf16.gmra.mxu0 %v4999
    %v5220 = vpop.f32.mrf.mxu0
    %v5221 = vadd.f32 %v5124, %v5220
    %v5222 = vpop.f32.mrf.mxu0
    %v5223 = vpop.f32.mrf.mxu0
    %v5224 = vadd.f32 %v5127, %v5223
    %v5225 = vpop.f32.mrf.mxu0
    %5226 = vdwg.mxu0
    %v5227 = vpack.c.bf16 %v5168, %v5165
    %v5228 = vpack.c.bf16 %v5176, %v5173
    %v5229 = vpack.c.bf16 %v5184, %v5181
    %v5230 = vpack.c.bf16 %v5192, %v5189
    %v5231 = vpack.c.bf16 %v5200, %v5197
    %v5232 = vpack.c.bf16 %v5208, %v5205
    %v5233 = vpack.c.bf16 %v5216, %v5213
    %v5234 = vpack.c.bf16 %v5224, %v5221
    %s5235 = scalar_lea.vmem [#allocation4], 16
    %v5236 = vld [vmem:[%s5235] sm:$0x3]
    %v5238 = vsel %vm1368, %v5227, 0
    %v5241 = vsel %vm1368, %v5228, 0
    %v5244 = vsel %vm1368, %v5229, 0
    %v5247 = vsel %vm1368, %v5230, 0
    %v5250 = vsel %vm1368, %v5231, 0
    %v5253 = vsel %vm1368, %v5232, 0
    %v5256 = vsel %vm1368, %v5233, 0
    %v5259 = vsel %vm1368, %v5234, 0
    %v5262 = vsel %vm1393, %v5236, 0
    %5264 = vmatprep.subr.bf16.mxu0 0
    %5265 = vmatpush1.bf16.msra.mxu0 0
    %5266 = vmatprep.subr.bf16.mxu0 0
    %5267 = vmatpush1.bf16.msra.mxu0 0
    %5268 = vmatprep.subr.bf16.mxu0 0
    %5269 = vmatpush1.bf16.msra.mxu0 0
    %5270 = vmatprep.subr.bf16.mxu0 0
    %5271 = vmatpush1.bf16.msra.mxu0 0
    %5272 = vmatprep.subr.bf16.mxu0 0
    %5273 = vmatpush1.bf16.msra.mxu0 0
    %5274 = vmatprep.subr.bf16.mxu0 0
    %5275 = vmatpush1.bf16.msra.mxu0 0
    %5276 = vmatprep.subr.bf16.mxu0 0
    %5277 = vmatpush1.bf16.msra.mxu0 0
    %5278 = vmatprep.subr.bf16.mxu0 0
    %5279 = vmatpush1.bf16.msra.mxu0 %v5262
    %5280 = vmatprep.subr.bf16.mxu0 0
    %5281 = vmatpush2.bf16.msra.mxu0 0
    %5282 = vmatprep.subr.bf16.mxu0 0
    %5283 = vmatpush2.bf16.msra.mxu0 0
    %5284 = vmatprep.subr.bf16.mxu0 0
    %5285 = vmatpush2.bf16.msra.mxu0 0
    %5286 = vmatprep.subr.bf16.mxu0 0
    %5287 = vmatpush2.bf16.msra.mxu0 0
    %5288 = vmatprep.subr.bf16.mxu0 0
    %5289 = vmatpush2.bf16.msra.mxu0 0
    %5290 = vmatprep.subr.bf16.mxu0 0
    %5291 = vmatpush2.bf16.msra.mxu0 0
    %5292 = vmatprep.subr.bf16.mxu0 0
    %5293 = vmatpush2.bf16.msra.mxu0 0
    %5294 = vmatprep.subr.bf16.mxu0 0
    %5295 = vmatpush2.bf16.msra.mxu0 0
    %5296 = vmatprep.mubr.bf16.mxu0 0
    %5297 = vmatmul.mubr.bf16.gmra.mxu0 %v5238
    %v5298 = vpop.f32.mrf.mxu0
    %v5299 = vadd.f32 0.0, %v5298
    %v5300 = vpop.f32.mrf.mxu0
    %v5301 = vpop.f32.mrf.mxu0
    %v5302 = vadd.f32 0.0, %v5301
    %v5303 = vpop.f32.mrf.mxu0
    %5304 = vmatprep.mubr.bf16.mxu0 0
    %5305 = vmatmul.mubr.bf16.gmra.mxu0 %v5241
    %v5306 = vpop.f32.mrf.mxu0
    %v5307 = vadd.f32 0.0, %v5306
    %v5308 = vpop.f32.mrf.mxu0
    %v5309 = vpop.f32.mrf.mxu0
    %v5310 = vadd.f32 0.0, %v5309
    %v5311 = vpop.f32.mrf.mxu0
    %5312 = vmatprep.mubr.bf16.mxu0 0
    %5313 = vmatmul.mubr.bf16.gmra.mxu0 %v5244
    %v5314 = vpop.f32.mrf.mxu0
    %v5315 = vadd.f32 0.0, %v5314
    %v5316 = vpop.f32.mrf.mxu0
    %v5317 = vpop.f32.mrf.mxu0
    %v5318 = vadd.f32 0.0, %v5317
    %v5319 = vpop.f32.mrf.mxu0
    %5320 = vmatprep.mubr.bf16.mxu0 0
    %5321 = vmatmul.mubr.bf16.gmra.mxu0 %v5247
    %v5322 = vpop.f32.mrf.mxu0
    %v5323 = vadd.f32 0.0, %v5322
    %v5324 = vpop.f32.mrf.mxu0
    %v5325 = vpop.f32.mrf.mxu0
    %v5326 = vadd.f32 0.0, %v5325
    %v5327 = vpop.f32.mrf.mxu0
    %5328 = vmatprep.mubr.bf16.mxu0 0
    %5329 = vmatmul.mubr.bf16.gmra.mxu0 %v5250
    %v5330 = vpop.f32.mrf.mxu0
    %v5331 = vadd.f32 0.0, %v5330
    %v5332 = vpop.f32.mrf.mxu0
    %v5333 = vpop.f32.mrf.mxu0
    %v5334 = vadd.f32 0.0, %v5333
    %v5335 = vpop.f32.mrf.mxu0
    %5336 = vmatprep.mubr.bf16.mxu0 0
    %5337 = vmatmul.mubr.bf16.gmra.mxu0 %v5253
    %v5338 = vpop.f32.mrf.mxu0
    %v5339 = vadd.f32 0.0, %v5338
    %v5340 = vpop.f32.mrf.mxu0
    %v5341 = vpop.f32.mrf.mxu0
    %v5342 = vadd.f32 0.0, %v5341
    %v5343 = vpop.f32.mrf.mxu0
    %5344 = vmatprep.mubr.bf16.mxu0 0
    %5345 = vmatmul.mubr.bf16.gmra.mxu0 %v5256
    %v5346 = vpop.f32.mrf.mxu0
    %v5347 = vadd.f32 0.0, %v5346
    %v5348 = vpop.f32.mrf.mxu0
    %v5349 = vpop.f32.mrf.mxu0
    %v5350 = vadd.f32 0.0, %v5349
    %v5351 = vpop.f32.mrf.mxu0
    %5352 = vmatprep.mubr.bf16.mxu0 0
    %5353 = vmatmul.mubr.bf16.gmra.mxu0 %v5259
    %v5354 = vpop.f32.mrf.mxu0
    %v5355 = vadd.f32 0.0, %v5354
    %v5356 = vpop.f32.mrf.mxu0
    %v5357 = vpop.f32.mrf.mxu0
    %v5358 = vadd.f32 0.0, %v5357
    %v5359 = vpop.f32.mrf.mxu0
    %5360 = vdwg.mxu0
    %v5361 = vadd.f32 %v4824, %v5299
    %v5362 = vadd.f32 %v4825, %v5302
    %v5363 = vadd.f32 %v4826, %v5307
    %v5364 = vadd.f32 %v4827, %v5310
    %v5365 = vadd.f32 %v4828, %v5315
    %v5366 = vadd.f32 %v4829, %v5318
    %v5367 = vadd.f32 %v4830, %v5323
    %v5368 = vadd.f32 %v4831, %v5326
    %v5369 = vadd.f32 %v4832, %v5331
    %v5370 = vadd.f32 %v4833, %v5334
    %v5371 = vadd.f32 %v4834, %v5339
    %v5372 = vadd.f32 %v4835, %v5342
    %v5373 = vadd.f32 %v4836, %v5347
    %v5374 = vadd.f32 %v4837, %v5350
    %v5375 = vadd.f32 %v4838, %v5355
    %v5376 = vadd.f32 %v4839, %v5358
    %v5377 = vld [vmem:[#allocation6] sm:$0x1]
    %v5379 = vlaneseq
    %v5380 = vshrl.u32 %v5379, 7
    %v5381 = vsub.s32 0, %v5380
    %v5382 = vrot.slane %v5377, %v5381
    %v5384 = vadd.f32 %v5361, %v5382
    %v5385 = vadd.f32 %v5362, %v5382
    %v5386 = vadd.f32 %v5363, %v5382
    %v5387 = vadd.f32 %v5364, %v5382
    %v5388 = vadd.f32 %v5365, %v5382
    %v5389 = vadd.f32 %v5366, %v5382
    %v5390 = vadd.f32 %v5367, %v5382
    %v5391 = vadd.f32 %v5368, %v5382
    %v5392 = vadd.f32 %v5369, %v5382
    %v5393 = vadd.f32 %v5370, %v5382
    %v5394 = vadd.f32 %v5371, %v5382
    %v5395 = vadd.f32 %v5372, %v5382
    %v5396 = vadd.f32 %v5373, %v5382
    %v5397 = vadd.f32 %v5374, %v5382
    %v5398 = vadd.f32 %v5375, %v5382
    %v5399 = vadd.f32 %v5376, %v5382
    %vm5400 = vcmp.gt.f32.partialorder %v5384, 0.0
    %vm5401 = vcmp.gt.f32.partialorder %v5385, 0.0
    %vm5402 = vcmp.gt.f32.partialorder %v5386, 0.0
    %vm5403 = vcmp.gt.f32.partialorder %v5387, 0.0
    %vm5404 = vcmp.gt.f32.partialorder %v5388, 0.0
    %vm5405 = vcmp.gt.f32.partialorder %v5389, 0.0
    %vm5406 = vcmp.gt.f32.partialorder %v5390, 0.0
    %vm5407 = vcmp.gt.f32.partialorder %v5391, 0.0
    %vm5408 = vcmp.gt.f32.partialorder %v5392, 0.0
    %vm5409 = vcmp.gt.f32.partialorder %v5393, 0.0
    %vm5410 = vcmp.gt.f32.partialorder %v5394, 0.0
    %vm5411 = vcmp.gt.f32.partialorder %v5395, 0.0
    %vm5412 = vcmp.gt.f32.partialorder %v5396, 0.0
    %vm5413 = vcmp.gt.f32.partialorder %v5397, 0.0
    %vm5414 = vcmp.gt.f32.partialorder %v5398, 0.0
    %vm5415 = vcmp.gt.f32.partialorder %v5399, 0.0
    %v5416 = vmul.f32 %v5384, 0.2
    %v5417 = vmul.f32 %v5385, 0.2
    %v5418 = vmul.f32 %v5386, 0.2
    %v5419 = vmul.f32 %v5387, 0.2
    %v5420 = vmul.f32 %v5388, 0.2
    %v5421 = vmul.f32 %v5389, 0.2
    %v5422 = vmul.f32 %v5390, 0.2
    %v5423 = vmul.f32 %v5391, 0.2
    %v5424 = vmul.f32 %v5392, 0.2
    %v5425 = vmul.f32 %v5393, 0.2
    %v5426 = vmul.f32 %v5394, 0.2
    %v5427 = vmul.f32 %v5395, 0.2
    %v5428 = vmul.f32 %v5396, 0.2
    %v5429 = vmul.f32 %v5397, 0.2
    %v5430 = vmul.f32 %v5398, 0.2
    %v5431 = vmul.f32 %v5399, 0.2
    %v5432 = vsel %vm5400, %v5384, %v5416
    %v5433 = vsel %vm5401, %v5385, %v5417
    %v5434 = vsel %vm5402, %v5386, %v5418
    %v5435 = vsel %vm5403, %v5387, %v5419
    %v5436 = vsel %vm5404, %v5388, %v5420
    %v5437 = vsel %vm5405, %v5389, %v5421
    %v5438 = vsel %vm5406, %v5390, %v5422
    %v5439 = vsel %vm5407, %v5391, %v5423
    %v5440 = vsel %vm5408, %v5392, %v5424
    %v5441 = vsel %vm5409, %v5393, %v5425
    %v5442 = vsel %vm5410, %v5394, %v5426
    %v5443 = vsel %vm5411, %v5395, %v5427
    %v5444 = vsel %vm5412, %v5396, %v5428
    %v5445 = vsel %vm5413, %v5397, %v5429
    %v5446 = vsel %vm5414, %v5398, %v5430
    %v5447 = vsel %vm5415, %v5399, %v5431
    %v5448 = vld [vmem:[#allocation7] sm:$0x1]
    %v5450 = vlaneseq
    %v5451 = vshrl.u32 %v5450, 7
    %v5452 = vsub.s32 0, %v5451
    %v5453 = vrot.slane %v5448, %v5452
    %v5455 = vmul.f32 %v5432, %v5453
    %v5456 = vmul.f32 %v5433, %v5453
    %v5457 = vmul.f32 %v5434, %v5453
    %v5458 = vmul.f32 %v5435, %v5453
    %v5459 = vmul.f32 %v5436, %v5453
    %v5460 = vmul.f32 %v5437, %v5453
    %v5461 = vmul.f32 %v5438, %v5453
    %v5462 = vmul.f32 %v5439, %v5453
    %v5463 = vmul.f32 %v5440, %v5453
    %v5464 = vmul.f32 %v5441, %v5453
    %v5465 = vmul.f32 %v5442, %v5453
    %v5466 = vmul.f32 %v5443, %v5453
    %v5467 = vmul.f32 %v5444, %v5453
    %v5468 = vmul.f32 %v5445, %v5453
    %v5469 = vmul.f32 %v5446, %v5453
    %v5470 = vmul.f32 %v5447, %v5453
    %v5471 = vld [vmem:[#allocation9] sm:$0x1]
    %v5473 = vlaneseq
    %v5474 = vshrl.u32 %v5473, 7
    %v5475 = vsub.s32 0, %v5474
    %v5476 = vrot.slane %v5471, %v5475
    %v5478 = vadd.f32 %v5455, %v5476
    %v5479 = vadd.f32 %v5456, %v5476
    %v5480 = vadd.f32 %v5457, %v5476
    %v5481 = vadd.f32 %v5458, %v5476
    %v5482 = vadd.f32 %v5459, %v5476
    %v5483 = vadd.f32 %v5460, %v5476
    %v5484 = vadd.f32 %v5461, %v5476
    %v5485 = vadd.f32 %v5462, %v5476
    %v5486 = vadd.f32 %v5463, %v5476
    %v5487 = vadd.f32 %v5464, %v5476
    %v5488 = vadd.f32 %v5465, %v5476
    %v5489 = vadd.f32 %v5466, %v5476
    %v5490 = vadd.f32 %v5467, %v5476
    %v5491 = vadd.f32 %v5468, %v5476
    %v5492 = vadd.f32 %v5469, %v5476
    %v5493 = vadd.f32 %v5470, %v5476
    %v5494 = vpack.c.bf16 %v5479, %v5478
    %v5495 = vpack.c.bf16 %v5481, %v5480
    %v5496 = vpack.c.bf16 %v5483, %v5482
    %v5497 = vpack.c.bf16 %v5485, %v5484
    %v5498 = vpack.c.bf16 %v5487, %v5486
    %v5499 = vpack.c.bf16 %v5489, %v5488
    %v5500 = vpack.c.bf16 %v5491, %v5490
    %v5501 = vpack.c.bf16 %v5493, %v5492
    %v5502 = vld [vmem:[#allocation10] sm:$0xf]
    %v5503 = vld [vmem:[#allocation10 + $0x4] sm:$0xf]
    %v5504 = vld [vmem:[#allocation10 + $0x8] sm:$0xf]
    %v5505 = vld [vmem:[#allocation10 + $0xc] sm:$0xf]
    %v5510 = vunpack.c.l.b16 %v5502
    %v5511 = vunpack.c.l.b16 %v5503
    %v5512 = vunpack.c.l.b16 %v5504
    %v5513 = vunpack.c.l.b16 %v5505
    %v5514 = vpack.c.b16 %v5511, %v5510
    %v5515 = vpack.c.b16 %v5513, %v5512
    %5518 = vmatprep.subr.bf16.mxu0 0
    %5519 = vmatpush1.bf16.msra.mxu0 %v5501
    %5520 = vmatprep.subr.bf16.mxu0 0
    %5521 = vmatpush1.bf16.msra.mxu0 %v5500
    %5522 = vmatprep.subr.bf16.mxu0 0
    %5523 = vmatpush1.bf16.msra.mxu0 %v5499
    %5524 = vmatprep.subr.bf16.mxu0 0
    %5525 = vmatpush1.bf16.msra.mxu0 %v5498
    %5526 = vmatprep.subr.bf16.mxu0 0
    %5527 = vmatpush1.bf16.msra.mxu0 %v5497
    %5528 = vmatprep.subr.bf16.mxu0 0
    %5529 = vmatpush1.bf16.msra.mxu0 %v5496
    %5530 = vmatprep.subr.bf16.mxu0 0
    %5531 = vmatpush1.bf16.msra.mxu0 %v5495
    %5532 = vmatprep.subr.bf16.mxu0 0
    %5533 = vmatpush1.bf16.msra.mxu0 %v5494
    %5534 = vmatprep.subr.bf16.mxu0 0
    %5535 = vmatpush2.bf16.msra.mxu0 0
    %5536 = vmatprep.subr.bf16.mxu0 0
    %5537 = vmatpush2.bf16.msra.mxu0 0
    %5538 = vmatprep.subr.bf16.mxu0 0
    %5539 = vmatpush2.bf16.msra.mxu0 0
    %5540 = vmatprep.subr.bf16.mxu0 0
    %5541 = vmatpush2.bf16.msra.mxu0 0
    %5542 = vmatprep.subr.bf16.mxu0 0
    %5543 = vmatpush2.bf16.msra.mxu0 0
    %5544 = vmatprep.subr.bf16.mxu0 0
    %5545 = vmatpush2.bf16.msra.mxu0 0
    %5546 = vmatprep.subr.bf16.mxu0 0
    %5547 = vmatpush2.bf16.msra.mxu0 0
    %5548 = vmatprep.subr.bf16.mxu0 0
    %5549 = vmatpush2.bf16.msra.mxu0 0
    %5550 = vmatprep.mubr.bf16.mxu0 0
    %5551 = vmatmul.mubr.bf16.gmra.mxu0 %v5514
    %v5552 = vpop.f32.mrf.mxu0
    %v5553 = vadd.f32 0.0, %v5552
    %v5554 = vpop.f32.mrf.mxu0
    %v5555 = vpop.f32.mrf.mxu0
    %v5556 = vadd.f32 0.0, %v5555
    %v5557 = vpop.f32.mrf.mxu0
    %5558 = vmatprep.mubr.bf16.mxu0 0
    %5559 = vmatmul.mubr.bf16.gmra.mxu0 %v5515
    %v5560 = vpop.f32.mrf.mxu0
    %v5561 = vadd.f32 0.0, %v5560
    %v5562 = vpop.f32.mrf.mxu0
    %v5563 = vpop.f32.mrf.mxu0
    %v5564 = vadd.f32 0.0, %v5563
    %v5565 = vpop.f32.mrf.mxu0
    %5566 = vdwg.mxu0
    %v5567 = vpack.c.bf16 %v5556, %v5553
    %v5568 = vpack.c.bf16 %v5564, %v5561
    %v5569 = vld [vmem:[#allocation12] sm:$0xf]
    %v5570 = vld [vmem:[#allocation12 + $0x4] sm:$0xf]
    %s5571 = scalar_lea.vmem [#allocation10], 16
    %v5572 = vld [vmem:[%s5571] sm:$0xf]
    %v5573 = vld [vmem:[%s5571 + $0x4] sm:$0xf]
    %v5574 = vld [vmem:[%s5571 + $0x8] sm:$0xf]
    %v5575 = vld [vmem:[%s5571 + $0xc] sm:$0xf]
    %v5580 = vunpack.c.l.b16 %v5572
    %v5581 = vunpack.c.l.b16 %v5573
    %v5582 = vunpack.c.l.b16 %v5574
    %v5583 = vunpack.c.l.b16 %v5575
    %v5584 = vpack.c.b16 %v5581, %v5580
    %v5585 = vpack.c.b16 %v5583, %v5582
    %5588 = vmatprep.subr.bf16.mxu0 0
    %5589 = vmatpush1.bf16.msra.mxu0 %v5501
    %5590 = vmatprep.subr.bf16.mxu0 0
    %5591 = vmatpush1.bf16.msra.mxu0 %v5500
    %5592 = vmatprep.subr.bf16.mxu0 0
    %5593 = vmatpush1.bf16.msra.mxu0 %v5499
    %5594 = vmatprep.subr.bf16.mxu0 0
    %5595 = vmatpush1.bf16.msra.mxu0 %v5498
    %5596 = vmatprep.subr.bf16.mxu0 0
    %5597 = vmatpush1.bf16.msra.mxu0 %v5497
    %5598 = vmatprep.subr.bf16.mxu0 0
    %5599 = vmatpush1.bf16.msra.mxu0 %v5496
    %5600 = vmatprep.subr.bf16.mxu0 0
    %5601 = vmatpush1.bf16.msra.mxu0 %v5495
    %5602 = vmatprep.subr.bf16.mxu0 0
    %5603 = vmatpush1.bf16.msra.mxu0 %v5494
    %5604 = vmatprep.subr.bf16.mxu0 0
    %5605 = vmatpush2.bf16.msra.mxu0 0
    %5606 = vmatprep.subr.bf16.mxu0 0
    %5607 = vmatpush2.bf16.msra.mxu0 0
    %5608 = vmatprep.subr.bf16.mxu0 0
    %5609 = vmatpush2.bf16.msra.mxu0 0
    %5610 = vmatprep.subr.bf16.mxu0 0
    %5611 = vmatpush2.bf16.msra.mxu0 0
    %5612 = vmatprep.subr.bf16.mxu0 0
    %5613 = vmatpush2.bf16.msra.mxu0 0
    %5614 = vmatprep.subr.bf16.mxu0 0
    %5615 = vmatpush2.bf16.msra.mxu0 0
    %5616 = vmatprep.subr.bf16.mxu0 0
    %5617 = vmatpush2.bf16.msra.mxu0 0
    %5618 = vmatprep.subr.bf16.mxu0 0
    %5619 = vmatpush2.bf16.msra.mxu0 0
    %5620 = vmatprep.mubr.bf16.mxu0 0
    %5621 = vmatmul.mubr.bf16.gmra.mxu0 %v5584
    %v5622 = vpop.f32.mrf.mxu0
    %v5623 = vadd.f32 0.0, %v5622
    %v5624 = vpop.f32.mrf.mxu0
    %v5625 = vpop.f32.mrf.mxu0
    %v5626 = vadd.f32 0.0, %v5625
    %v5627 = vpop.f32.mrf.mxu0
    %5628 = vmatprep.mubr.bf16.mxu0 0
    %5629 = vmatmul.mubr.bf16.gmra.mxu0 %v5585
    %v5630 = vpop.f32.mrf.mxu0
    %v5631 = vadd.f32 0.0, %v5630
    %v5632 = vpop.f32.mrf.mxu0
    %v5633 = vpop.f32.mrf.mxu0
    %v5634 = vadd.f32 0.0, %v5633
    %v5635 = vpop.f32.mrf.mxu0
    %5636 = vdwg.mxu0
    %v5637 = vpack.c.bf16 %v5626, %v5623
    %v5638 = vpack.c.bf16 %v5634, %v5631
    %s5639 = scalar_lea.vmem [#allocation12], 8
    %v5640 = vld [vmem:[%s5639] sm:$0xf]
    %v5641 = vld [vmem:[%s5639 + $0x4] sm:$0xf]
    %v5644 = vunpack.c.l.b16 %v5640
    %v5645 = vunpack.c.l.b16 %v5641
    %v5646 = vpack.c.b16 %v5645, %v5644
    %vm5648 = vcmask 130048
    %v5650 = vsel %vm5648, %v5637, 0
    %v5653 = vsel %vm5648, %v5638, 0
    %5655 = vmatprep.subr.bf16.mxu0 0
    %5656 = vmatpush1.bf16.msra.mxu0 0
    %5657 = vmatprep.subr.bf16.mxu0 0
    %5658 = vmatpush1.bf16.msra.mxu0 0
    %5659 = vmatprep.subr.bf16.mxu0 0
    %5660 = vmatpush1.bf16.msra.mxu0 0
    %5661 = vmatprep.subr.bf16.mxu0 0
    %5662 = vmatpush1.bf16.msra.mxu0 0
    %5663 = vmatprep.subr.bf16.mxu0 0
    %5664 = vmatpush1.bf16.msra.mxu0 0
    %5665 = vmatprep.subr.bf16.mxu0 0
    %5666 = vmatpush1.bf16.msra.mxu0 0
    %5667 = vmatprep.subr.bf16.mxu0 0
    %5668 = vmatpush1.bf16.msra.mxu0 0
    %5669 = vmatprep.subr.bf16.mxu0 0
    %5670 = vmatpush1.bf16.msra.mxu0 %v5646
    %5671 = vmatprep.subr.bf16.mxu0 0
    %5672 = vmatpush2.bf16.msra.mxu0 0
    %5673 = vmatprep.subr.bf16.mxu0 0
    %5674 = vmatpush2.bf16.msra.mxu0 0
    %5675 = vmatprep.subr.bf16.mxu0 0
    %5676 = vmatpush2.bf16.msra.mxu0 0
    %5677 = vmatprep.subr.bf16.mxu0 0
    %5678 = vmatpush2.bf16.msra.mxu0 0
    %5679 = vmatprep.subr.bf16.mxu0 0
    %5680 = vmatpush2.bf16.msra.mxu0 0
    %5681 = vmatprep.subr.bf16.mxu0 0
    %5682 = vmatpush2.bf16.msra.mxu0 0
    %5683 = vmatprep.subr.bf16.mxu0 0
    %5684 = vmatpush2.bf16.msra.mxu0 0
    %5685 = vmatprep.subr.bf16.mxu0 0
    %5686 = vmatpush2.bf16.msra.mxu0 0
    %5687 = vmatprep.mubr.bf16.mxu0 0
    %5688 = vmatmul.mubr.bf16.gmra.mxu0 %v5650
    %v5689 = vpop.f32.mrf.mxu0
    %v5690 = vadd.f32 0.0, %v5689
    %v5691 = vpop.f32.mrf.mxu0
    %v5692 = vpop.f32.mrf.mxu0
    %v5693 = vadd.f32 0.0, %v5692
    %v5694 = vpop.f32.mrf.mxu0
    %5695 = vmatprep.mubr.bf16.mxu0 0
    %5696 = vmatmul.mubr.bf16.gmra.mxu0 %v5653
    %v5697 = vpop.f32.mrf.mxu0
    %v5698 = vadd.f32 0.0, %v5697
    %v5699 = vpop.f32.mrf.mxu0
    %v5700 = vpop.f32.mrf.mxu0
    %v5701 = vadd.f32 0.0, %v5700
    %v5702 = vpop.f32.mrf.mxu0
    %5703 = vdwg.mxu0
    %v5706 = vunpack.c.l.b16 %v5569
    %v5707 = vunpack.c.l.b16 %v5570
    %v5708 = vpack.c.b16 %v5707, %v5706
    %v5711 = vsel %vm5648, %v5567, 0
    %v5714 = vsel %vm5648, %v5568, 0
    %5716 = vmatprep.subr.bf16.mxu0 0
    %5717 = vmatpush1.bf16.msra.mxu0 0
    %5718 = vmatprep.subr.bf16.mxu0 0
    %5719 = vmatpush1.bf16.msra.mxu0 0
    %5720 = vmatprep.subr.bf16.mxu0 0
    %5721 = vmatpush1.bf16.msra.mxu0 0
    %5722 = vmatprep.subr.bf16.mxu0 0
    %5723 = vmatpush1.bf16.msra.mxu0 0
    %5724 = vmatprep.subr.bf16.mxu0 0
    %5725 = vmatpush1.bf16.msra.mxu0 0
    %5726 = vmatprep.subr.bf16.mxu0 0
    %5727 = vmatpush1.bf16.msra.mxu0 0
    %5728 = vmatprep.subr.bf16.mxu0 0
    %5729 = vmatpush1.bf16.msra.mxu0 0
    %5730 = vmatprep.subr.bf16.mxu0 0
    %5731 = vmatpush1.bf16.msra.mxu0 %v5708
    %5732 = vmatprep.subr.bf16.mxu0 0
    %5733 = vmatpush2.bf16.msra.mxu0 0
    %5734 = vmatprep.subr.bf16.mxu0 0
    %5735 = vmatpush2.bf16.msra.mxu0 0
    %5736 = vmatprep.subr.bf16.mxu0 0
    %5737 = vmatpush2.bf16.msra.mxu0 0
    %5738 = vmatprep.subr.bf16.mxu0 0
    %5739 = vmatpush2.bf16.msra.mxu0 0
    %5740 = vmatprep.subr.bf16.mxu0 0
    %5741 = vmatpush2.bf16.msra.mxu0 0
    %5742 = vmatprep.subr.bf16.mxu0 0
    %5743 = vmatpush2.bf16.msra.mxu0 0
    %5744 = vmatprep.subr.bf16.mxu0 0
    %5745 = vmatpush2.bf16.msra.mxu0 0
    %5746 = vmatprep.subr.bf16.mxu0 0
    %5747 = vmatpush2.bf16.msra.mxu0 0
    %5748 = vmatprep.mubr.bf16.mxu0 0
    %5749 = vmatmul.mubr.bf16.gmra.mxu0 %v5711
    %v5750 = vpop.f32.mrf.mxu0
    %v5751 = vadd.f32 %v5690, %v5750
    %v5752 = vpop.f32.mrf.mxu0
    %v5753 = vpop.f32.mrf.mxu0
    %v5754 = vadd.f32 %v5693, %v5753
    %v5755 = vpop.f32.mrf.mxu0
    %5756 = vmatprep.mubr.bf16.mxu0 0
    %5757 = vmatmul.mubr.bf16.gmra.mxu0 %v5714
    %v5758 = vpop.f32.mrf.mxu0
    %v5759 = vadd.f32 %v5698, %v5758
    %v5760 = vpop.f32.mrf.mxu0
    %v5761 = vpop.f32.mrf.mxu0
    %v5762 = vadd.f32 %v5701, %v5761
    %v5763 = vpop.f32.mrf.mxu0
    %5764 = vdwg.mxu0
    %s5765 = scalar_lea.vmem [#allocation10], 32
    %v5766 = vld [vmem:[%s5765] sm:$0xf]
    %v5767 = vld [vmem:[%s5765 + $0x4] sm:$0xf]
    %v5768 = vld [vmem:[%s5765 + $0x8] sm:$0xf]
    %v5769 = vld [vmem:[%s5765 + $0xc] sm:$0xf]
    %v5774 = vunpack.c.l.b16 %v5766
    %v5775 = vunpack.c.l.b16 %v5767
    %v5776 = vunpack.c.l.b16 %v5768
    %v5777 = vunpack.c.l.b16 %v5769
    %v5778 = vpack.c.b16 %v5775, %v5774
    %v5779 = vpack.c.b16 %v5777, %v5776
    %5782 = vmatprep.subr.bf16.mxu0 0
    %5783 = vmatpush1.bf16.msra.mxu0 %v5501
    %5784 = vmatprep.subr.bf16.mxu0 0
    %5785 = vmatpush1.bf16.msra.mxu0 %v5500
    %5786 = vmatprep.subr.bf16.mxu0 0
    %5787 = vmatpush1.bf16.msra.mxu0 %v5499
    %5788 = vmatprep.subr.bf16.mxu0 0
    %5789 = vmatpush1.bf16.msra.mxu0 %v5498
    %5790 = vmatprep.subr.bf16.mxu0 0
    %5791 = vmatpush1.bf16.msra.mxu0 %v5497
    %5792 = vmatprep.subr.bf16.mxu0 0
    %5793 = vmatpush1.bf16.msra.mxu0 %v5496
    %5794 = vmatprep.subr.bf16.mxu0 0
    %5795 = vmatpush1.bf16.msra.mxu0 %v5495
    %5796 = vmatprep.subr.bf16.mxu0 0
    %5797 = vmatpush1.bf16.msra.mxu0 %v5494
    %5798 = vmatprep.subr.bf16.mxu0 0
    %5799 = vmatpush2.bf16.msra.mxu0 0
    %5800 = vmatprep.subr.bf16.mxu0 0
    %5801 = vmatpush2.bf16.msra.mxu0 0
    %5802 = vmatprep.subr.bf16.mxu0 0
    %5803 = vmatpush2.bf16.msra.mxu0 0
    %5804 = vmatprep.subr.bf16.mxu0 0
    %5805 = vmatpush2.bf16.msra.mxu0 0
    %5806 = vmatprep.subr.bf16.mxu0 0
    %5807 = vmatpush2.bf16.msra.mxu0 0
    %5808 = vmatprep.subr.bf16.mxu0 0
    %5809 = vmatpush2.bf16.msra.mxu0 0
    %5810 = vmatprep.subr.bf16.mxu0 0
    %5811 = vmatpush2.bf16.msra.mxu0 0
    %5812 = vmatprep.subr.bf16.mxu0 0
    %5813 = vmatpush2.bf16.msra.mxu0 0
    %5814 = vmatprep.mubr.bf16.mxu0 0
    %5815 = vmatmul.mubr.bf16.gmra.mxu0 %v5778
    %v5816 = vpop.f32.mrf.mxu0
    %v5817 = vadd.f32 0.0, %v5816
    %v5818 = vpop.f32.mrf.mxu0
    %v5819 = vpop.f32.mrf.mxu0
    %v5820 = vadd.f32 0.0, %v5819
    %v5821 = vpop.f32.mrf.mxu0
    %5822 = vmatprep.mubr.bf16.mxu0 0
    %5823 = vmatmul.mubr.bf16.gmra.mxu0 %v5779
    %v5824 = vpop.f32.mrf.mxu0
    %v5825 = vadd.f32 0.0, %v5824
    %v5826 = vpop.f32.mrf.mxu0
    %v5827 = vpop.f32.mrf.mxu0
    %v5828 = vadd.f32 0.0, %v5827
    %v5829 = vpop.f32.mrf.mxu0
    %5830 = vdwg.mxu0
    %v5831 = vpack.c.bf16 %v5820, %v5817
    %v5832 = vpack.c.bf16 %v5828, %v5825
    %s5833 = scalar_lea.vmem [#allocation12], 16
    %v5834 = vld [vmem:[%s5833] sm:$0xf]
    %v5835 = vld [vmem:[%s5833 + $0x4] sm:$0xf]
    %v5838 = vunpack.c.l.b16 %v5834
    %v5839 = vunpack.c.l.b16 %v5835
    %v5840 = vpack.c.b16 %v5839, %v5838
    %v5843 = vsel %vm5648, %v5831, 0
    %v5846 = vsel %vm5648, %v5832, 0
    %5848 = vmatprep.subr.bf16.mxu0 0
    %5849 = vmatpush1.bf16.msra.mxu0 0
    %5850 = vmatprep.subr.bf16.mxu0 0
    %5851 = vmatpush1.bf16.msra.mxu0 0
    %5852 = vmatprep.subr.bf16.mxu0 0
    %5853 = vmatpush1.bf16.msra.mxu0 0
    %5854 = vmatprep.subr.bf16.mxu0 0
    %5855 = vmatpush1.bf16.msra.mxu0 0
    %5856 = vmatprep.subr.bf16.mxu0 0
    %5857 = vmatpush1.bf16.msra.mxu0 0
    %5858 = vmatprep.subr.bf16.mxu0 0
    %5859 = vmatpush1.bf16.msra.mxu0 0
    %5860 = vmatprep.subr.bf16.mxu0 0
    %5861 = vmatpush1.bf16.msra.mxu0 0
    %5862 = vmatprep.subr.bf16.mxu0 0
    %5863 = vmatpush1.bf16.msra.mxu0 %v5840
    %5864 = vmatprep.subr.bf16.mxu0 0
    %5865 = vmatpush2.bf16.msra.mxu0 0
    %5866 = vmatprep.subr.bf16.mxu0 0
    %5867 = vmatpush2.bf16.msra.mxu0 0
    %5868 = vmatprep.subr.bf16.mxu0 0
    %5869 = vmatpush2.bf16.msra.mxu0 0
    %5870 = vmatprep.subr.bf16.mxu0 0
    %5871 = vmatpush2.bf16.msra.mxu0 0
    %5872 = vmatprep.subr.bf16.mxu0 0
    %5873 = vmatpush2.bf16.msra.mxu0 0
    %5874 = vmatprep.subr.bf16.mxu0 0
    %5875 = vmatpush2.bf16.msra.mxu0 0
    %5876 = vmatprep.subr.bf16.mxu0 0
    %5877 = vmatpush2.bf16.msra.mxu0 0
    %5878 = vmatprep.subr.bf16.mxu0 0
    %5879 = vmatpush2.bf16.msra.mxu0 0
    %5880 = vmatprep.mubr.bf16.mxu0 0
    %5881 = vmatmul.mubr.bf16.gmra.mxu0 %v5843
    %v5882 = vpop.f32.mrf.mxu0
    %v5883 = vadd.f32 0.0, %v5882
    %v5884 = vpop.f32.mrf.mxu0
    %v5885 = vpop.f32.mrf.mxu0
    %v5886 = vadd.f32 0.0, %v5885
    %v5887 = vpop.f32.mrf.mxu0
    %5888 = vmatprep.mubr.bf16.mxu0 0
    %5889 = vmatmul.mubr.bf16.gmra.mxu0 %v5846
    %v5890 = vpop.f32.mrf.mxu0
    %v5891 = vadd.f32 0.0, %v5890
    %v5892 = vpop.f32.mrf.mxu0
    %v5893 = vpop.f32.mrf.mxu0
    %v5894 = vadd.f32 0.0, %v5893
    %v5895 = vpop.f32.mrf.mxu0
    %5896 = vdwg.mxu0
    %v5897 = vadd.f32 %v5751, %v5883
    %v5898 = vadd.f32 %v5754, %v5886
    %v5899 = vadd.f32 %v5759, %v5891
    %v5900 = vadd.f32 %v5762, %v5894
    %s5901 = scalar_lea.vmem [#allocation10], 48
    %v5902 = vld [vmem:[%s5901] sm:$0xf]
    %v5903 = vld [vmem:[%s5901 + $0x4] sm:$0xf]
    %v5904 = vld [vmem:[%s5901 + $0x8] sm:$0xf]
    %v5905 = vld [vmem:[%s5901 + $0xc] sm:$0xf]
    %v5910 = vunpack.c.l.b16 %v5902
    %v5911 = vunpack.c.l.b16 %v5903
    %v5912 = vunpack.c.l.b16 %v5904
    %v5913 = vunpack.c.l.b16 %v5905
    %v5914 = vpack.c.b16 %v5911, %v5910
    %v5915 = vpack.c.b16 %v5913, %v5912
    %5918 = vmatprep.subr.bf16.mxu0 0
    %5919 = vmatpush1.bf16.msra.mxu0 %v5501
    %5920 = vmatprep.subr.bf16.mxu0 0
    %5921 = vmatpush1.bf16.msra.mxu0 %v5500
    %5922 = vmatprep.subr.bf16.mxu0 0
    %5923 = vmatpush1.bf16.msra.mxu0 %v5499
    %5924 = vmatprep.subr.bf16.mxu0 0
    %5925 = vmatpush1.bf16.msra.mxu0 %v5498
    %5926 = vmatprep.subr.bf16.mxu0 0
    %5927 = vmatpush1.bf16.msra.mxu0 %v5497
    %5928 = vmatprep.subr.bf16.mxu0 0
    %5929 = vmatpush1.bf16.msra.mxu0 %v5496
    %5930 = vmatprep.subr.bf16.mxu0 0
    %5931 = vmatpush1.bf16.msra.mxu0 %v5495
    %5932 = vmatprep.subr.bf16.mxu0 0
    %5933 = vmatpush1.bf16.msra.mxu0 %v5494
    %5934 = vmatprep.subr.bf16.mxu0 0
    %5935 = vmatpush2.bf16.msra.mxu0 0
    %5936 = vmatprep.subr.bf16.mxu0 0
    %5937 = vmatpush2.bf16.msra.mxu0 0
    %5938 = vmatprep.subr.bf16.mxu0 0
    %5939 = vmatpush2.bf16.msra.mxu0 0
    %5940 = vmatprep.subr.bf16.mxu0 0
    %5941 = vmatpush2.bf16.msra.mxu0 0
    %5942 = vmatprep.subr.bf16.mxu0 0
    %5943 = vmatpush2.bf16.msra.mxu0 0
    %5944 = vmatprep.subr.bf16.mxu0 0
    %5945 = vmatpush2.bf16.msra.mxu0 0
    %5946 = vmatprep.subr.bf16.mxu0 0
    %5947 = vmatpush2.bf16.msra.mxu0 0
    %5948 = vmatprep.subr.bf16.mxu0 0
    %5949 = vmatpush2.bf16.msra.mxu0 0
    %5950 = vmatprep.mubr.bf16.mxu0 0
    %5951 = vmatmul.mubr.bf16.gmra.mxu0 %v5914
    %v5952 = vpop.f32.mrf.mxu0
    %v5953 = vadd.f32 0.0, %v5952
    %v5954 = vpop.f32.mrf.mxu0
    %v5955 = vpop.f32.mrf.mxu0
    %v5956 = vadd.f32 0.0, %v5955
    %v5957 = vpop.f32.mrf.mxu0
    %5958 = vmatprep.mubr.bf16.mxu0 0
    %5959 = vmatmul.mubr.bf16.gmra.mxu0 %v5915
    %v5960 = vpop.f32.mrf.mxu0
    %v5961 = vadd.f32 0.0, %v5960
    %v5962 = vpop.f32.mrf.mxu0
    %v5963 = vpop.f32.mrf.mxu0
    %v5964 = vadd.f32 0.0, %v5963
    %v5965 = vpop.f32.mrf.mxu0
    %5966 = vdwg.mxu0
    %v5967 = vpack.c.bf16 %v5956, %v5953
    %v5968 = vpack.c.bf16 %v5964, %v5961
    %s5969 = scalar_lea.vmem [#allocation12], 24
    %v5970 = vld [vmem:[%s5969] sm:$0xf]
    %v5971 = vld [vmem:[%s5969 + $0x4] sm:$0xf]
    %v5974 = vunpack.c.l.b16 %v5970
    %v5975 = vunpack.c.l.b16 %v5971
    %v5976 = vpack.c.b16 %v5975, %v5974
    %v5979 = vsel %vm5648, %v5967, 0
    %v5982 = vsel %vm5648, %v5968, 0
    %5984 = vmatprep.subr.bf16.mxu0 0
    %5985 = vmatpush1.bf16.msra.mxu0 0
    %5986 = vmatprep.subr.bf16.mxu0 0
    %5987 = vmatpush1.bf16.msra.mxu0 0
    %5988 = vmatprep.subr.bf16.mxu0 0
    %5989 = vmatpush1.bf16.msra.mxu0 0
    %5990 = vmatprep.subr.bf16.mxu0 0
    %5991 = vmatpush1.bf16.msra.mxu0 0
    %5992 = vmatprep.subr.bf16.mxu0 0
    %5993 = vmatpush1.bf16.msra.mxu0 0
    %5994 = vmatprep.subr.bf16.mxu0 0
    %5995 = vmatpush1.bf16.msra.mxu0 0
    %5996 = vmatprep.subr.bf16.mxu0 0
    %5997 = vmatpush1.bf16.msra.mxu0 0
    %5998 = vmatprep.subr.bf16.mxu0 0
    %5999 = vmatpush1.bf16.msra.mxu0 %v5976
    %6000 = vmatprep.subr.bf16.mxu0 0
    %6001 = vmatpush2.bf16.msra.mxu0 0
    %6002 = vmatprep.subr.bf16.mxu0 0
    %6003 = vmatpush2.bf16.msra.mxu0 0
    %6004 = vmatprep.subr.bf16.mxu0 0
    %6005 = vmatpush2.bf16.msra.mxu0 0
    %6006 = vmatprep.subr.bf16.mxu0 0
    %6007 = vmatpush2.bf16.msra.mxu0 0
    %6008 = vmatprep.subr.bf16.mxu0 0
    %6009 = vmatpush2.bf16.msra.mxu0 0
    %6010 = vmatprep.subr.bf16.mxu0 0
    %6011 = vmatpush2.bf16.msra.mxu0 0
    %6012 = vmatprep.subr.bf16.mxu0 0
    %6013 = vmatpush2.bf16.msra.mxu0 0
    %6014 = vmatprep.subr.bf16.mxu0 0
    %6015 = vmatpush2.bf16.msra.mxu0 0
    %6016 = vmatprep.mubr.bf16.mxu0 0
    %6017 = vmatmul.mubr.bf16.gmra.mxu0 %v5979
    %v6018 = vpop.f32.mrf.mxu0
    %v6019 = vadd.f32 0.0, %v6018
    %v6020 = vpop.f32.mrf.mxu0
    %v6021 = vpop.f32.mrf.mxu0
    %v6022 = vadd.f32 0.0, %v6021
    %v6023 = vpop.f32.mrf.mxu0
    %6024 = vmatprep.mubr.bf16.mxu0 0
    %6025 = vmatmul.mubr.bf16.gmra.mxu0 %v5982
    %v6026 = vpop.f32.mrf.mxu0
    %v6027 = vadd.f32 0.0, %v6026
    %v6028 = vpop.f32.mrf.mxu0
    %v6029 = vpop.f32.mrf.mxu0
    %v6030 = vadd.f32 0.0, %v6029
    %v6031 = vpop.f32.mrf.mxu0
    %6032 = vdwg.mxu0
    %v6033 = vadd.f32 %v5897, %v6019
    %v6034 = vadd.f32 %v5898, %v6022
    %v6035 = vadd.f32 %v5899, %v6027
    %v6036 = vadd.f32 %v5900, %v6030
    %s6037 = scalar_lea.vmem [#allocation10], 64
    %v6038 = vld [vmem:[%s6037] sm:$0xf]
    %v6039 = vld [vmem:[%s6037 + $0x4] sm:$0xf]
    %v6040 = vld [vmem:[%s6037 + $0x8] sm:$0xf]
    %v6041 = vld [vmem:[%s6037 + $0xc] sm:$0xf]
    %v6046 = vunpack.c.l.b16 %v6038
    %v6047 = vunpack.c.l.b16 %v6039
    %v6048 = vunpack.c.l.b16 %v6040
    %v6049 = vunpack.c.l.b16 %v6041
    %v6050 = vpack.c.b16 %v6047, %v6046
    %v6051 = vpack.c.b16 %v6049, %v6048
    %6054 = vmatprep.subr.bf16.mxu0 0
    %6055 = vmatpush1.bf16.msra.mxu0 %v5501
    %6056 = vmatprep.subr.bf16.mxu0 0
    %6057 = vmatpush1.bf16.msra.mxu0 %v5500
    %6058 = vmatprep.subr.bf16.mxu0 0
    %6059 = vmatpush1.bf16.msra.mxu0 %v5499
    %6060 = vmatprep.subr.bf16.mxu0 0
    %6061 = vmatpush1.bf16.msra.mxu0 %v5498
    %6062 = vmatprep.subr.bf16.mxu0 0
    %6063 = vmatpush1.bf16.msra.mxu0 %v5497
    %6064 = vmatprep.subr.bf16.mxu0 0
    %6065 = vmatpush1.bf16.msra.mxu0 %v5496
    %6066 = vmatprep.subr.bf16.mxu0 0
    %6067 = vmatpush1.bf16.msra.mxu0 %v5495
    %6068 = vmatprep.subr.bf16.mxu0 0
    %6069 = vmatpush1.bf16.msra.mxu0 %v5494
    %6070 = vmatprep.subr.bf16.mxu0 0
    %6071 = vmatpush2.bf16.msra.mxu0 0
    %6072 = vmatprep.subr.bf16.mxu0 0
    %6073 = vmatpush2.bf16.msra.mxu0 0
    %6074 = vmatprep.subr.bf16.mxu0 0
    %6075 = vmatpush2.bf16.msra.mxu0 0
    %6076 = vmatprep.subr.bf16.mxu0 0
    %6077 = vmatpush2.bf16.msra.mxu0 0
    %6078 = vmatprep.subr.bf16.mxu0 0
    %6079 = vmatpush2.bf16.msra.mxu0 0
    %6080 = vmatprep.subr.bf16.mxu0 0
    %6081 = vmatpush2.bf16.msra.mxu0 0
    %6082 = vmatprep.subr.bf16.mxu0 0
    %6083 = vmatpush2.bf16.msra.mxu0 0
    %6084 = vmatprep.subr.bf16.mxu0 0
    %6085 = vmatpush2.bf16.msra.mxu0 0
    %6086 = vmatprep.mubr.bf16.mxu0 0
    %6087 = vmatmul.mubr.bf16.gmra.mxu0 %v6050
    %v6088 = vpop.f32.mrf.mxu0
    %v6089 = vadd.f32 0.0, %v6088
    %v6090 = vpop.f32.mrf.mxu0
    %v6091 = vpop.f32.mrf.mxu0
    %v6092 = vadd.f32 0.0, %v6091
    %v6093 = vpop.f32.mrf.mxu0
    %6094 = vmatprep.mubr.bf16.mxu0 0
    %6095 = vmatmul.mubr.bf16.gmra.mxu0 %v6051
    %v6096 = vpop.f32.mrf.mxu0
    %v6097 = vadd.f32 0.0, %v6096
    %v6098 = vpop.f32.mrf.mxu0
    %v6099 = vpop.f32.mrf.mxu0
    %v6100 = vadd.f32 0.0, %v6099
    %v6101 = vpop.f32.mrf.mxu0
    %6102 = vdwg.mxu0
    %v6103 = vpack.c.bf16 %v6092, %v6089
    %v6104 = vpack.c.bf16 %v6100, %v6097
    %s6105 = scalar_lea.vmem [#allocation12], 32
    %v6106 = vld [vmem:[%s6105] sm:$0xf]
    %v6107 = vld [vmem:[%s6105 + $0x4] sm:$0xf]
    %v6110 = vunpack.c.l.b16 %v6106
    %v6111 = vunpack.c.l.b16 %v6107
    %v6112 = vpack.c.b16 %v6111, %v6110
    %v6115 = vsel %vm5648, %v6103, 0
    %v6118 = vsel %vm5648, %v6104, 0
    %6120 = vmatprep.subr.bf16.mxu0 0
    %6121 = vmatpush1.bf16.msra.mxu0 0
    %6122 = vmatprep.subr.bf16.mxu0 0
    %6123 = vmatpush1.bf16.msra.mxu0 0
    %6124 = vmatprep.subr.bf16.mxu0 0
    %6125 = vmatpush1.bf16.msra.mxu0 0
    %6126 = vmatprep.subr.bf16.mxu0 0
    %6127 = vmatpush1.bf16.msra.mxu0 0
    %6128 = vmatprep.subr.bf16.mxu0 0
    %6129 = vmatpush1.bf16.msra.mxu0 0
    %6130 = vmatprep.subr.bf16.mxu0 0
    %6131 = vmatpush1.bf16.msra.mxu0 0
    %6132 = vmatprep.subr.bf16.mxu0 0
    %6133 = vmatpush1.bf16.msra.mxu0 0
    %6134 = vmatprep.subr.bf16.mxu0 0
    %6135 = vmatpush1.bf16.msra.mxu0 %v6112
    %6136 = vmatprep.subr.bf16.mxu0 0
    %6137 = vmatpush2.bf16.msra.mxu0 0
    %6138 = vmatprep.subr.bf16.mxu0 0
    %6139 = vmatpush2.bf16.msra.mxu0 0
    %6140 = vmatprep.subr.bf16.mxu0 0
    %6141 = vmatpush2.bf16.msra.mxu0 0
    %6142 = vmatprep.subr.bf16.mxu0 0
    %6143 = vmatpush2.bf16.msra.mxu0 0
    %6144 = vmatprep.subr.bf16.mxu0 0
    %6145 = vmatpush2.bf16.msra.mxu0 0
    %6146 = vmatprep.subr.bf16.mxu0 0
    %6147 = vmatpush2.bf16.msra.mxu0 0
    %6148 = vmatprep.subr.bf16.mxu0 0
    %6149 = vmatpush2.bf16.msra.mxu0 0
    %6150 = vmatprep.subr.bf16.mxu0 0
    %6151 = vmatpush2.bf16.msra.mxu0 0
    %6152 = vmatprep.mubr.bf16.mxu0 0
    %6153 = vmatmul.mubr.bf16.gmra.mxu0 %v6115
    %v6154 = vpop.f32.mrf.mxu0
    %v6155 = vadd.f32 0.0, %v6154
    %v6156 = vpop.f32.mrf.mxu0
    %v6157 = vpop.f32.mrf.mxu0
    %v6158 = vadd.f32 0.0, %v6157
    %v6159 = vpop.f32.mrf.mxu0
    %6160 = vmatprep.mubr.bf16.mxu0 0
    %6161 = vmatmul.mubr.bf16.gmra.mxu0 %v6118
    %v6162 = vpop.f32.mrf.mxu0
    %v6163 = vadd.f32 0.0, %v6162
    %v6164 = vpop.f32.mrf.mxu0
    %v6165 = vpop.f32.mrf.mxu0
    %v6166 = vadd.f32 0.0, %v6165
    %v6167 = vpop.f32.mrf.mxu0
    %6168 = vdwg.mxu0
    %v6169 = vadd.f32 %v6033, %v6155
    %v6170 = vadd.f32 %v6034, %v6158
    %v6171 = vadd.f32 %v6035, %v6163
    %v6172 = vadd.f32 %v6036, %v6166
    %s6173 = scalar_lea.vmem [#allocation10], 80
    %v6174 = vld [vmem:[%s6173] sm:$0xf]
    %v6175 = vld [vmem:[%s6173 + $0x4] sm:$0xf]
    %v6176 = vld [vmem:[%s6173 + $0x8] sm:$0xf]
    %v6177 = vld [vmem:[%s6173 + $0xc] sm:$0xf]
    %v6182 = vunpack.c.l.b16 %v6174
    %v6183 = vunpack.c.l.b16 %v6175
    %v6184 = vunpack.c.l.b16 %v6176
    %v6185 = vunpack.c.l.b16 %v6177
    %v6186 = vpack.c.b16 %v6183, %v6182
    %v6187 = vpack.c.b16 %v6185, %v6184
    %6190 = vmatprep.subr.bf16.mxu0 0
    %6191 = vmatpush1.bf16.msra.mxu0 %v5501
    %6192 = vmatprep.subr.bf16.mxu0 0
    %6193 = vmatpush1.bf16.msra.mxu0 %v5500
    %6194 = vmatprep.subr.bf16.mxu0 0
    %6195 = vmatpush1.bf16.msra.mxu0 %v5499
    %6196 = vmatprep.subr.bf16.mxu0 0
    %6197 = vmatpush1.bf16.msra.mxu0 %v5498
    %6198 = vmatprep.subr.bf16.mxu0 0
    %6199 = vmatpush1.bf16.msra.mxu0 %v5497
    %6200 = vmatprep.subr.bf16.mxu0 0
    %6201 = vmatpush1.bf16.msra.mxu0 %v5496
    %6202 = vmatprep.subr.bf16.mxu0 0
    %6203 = vmatpush1.bf16.msra.mxu0 %v5495
    %6204 = vmatprep.subr.bf16.mxu0 0
    %6205 = vmatpush1.bf16.msra.mxu0 %v5494
    %6206 = vmatprep.subr.bf16.mxu0 0
    %6207 = vmatpush2.bf16.msra.mxu0 0
    %6208 = vmatprep.subr.bf16.mxu0 0
    %6209 = vmatpush2.bf16.msra.mxu0 0
    %6210 = vmatprep.subr.bf16.mxu0 0
    %6211 = vmatpush2.bf16.msra.mxu0 0
    %6212 = vmatprep.subr.bf16.mxu0 0
    %6213 = vmatpush2.bf16.msra.mxu0 0
    %6214 = vmatprep.subr.bf16.mxu0 0
    %6215 = vmatpush2.bf16.msra.mxu0 0
    %6216 = vmatprep.subr.bf16.mxu0 0
    %6217 = vmatpush2.bf16.msra.mxu0 0
    %6218 = vmatprep.subr.bf16.mxu0 0
    %6219 = vmatpush2.bf16.msra.mxu0 0
    %6220 = vmatprep.subr.bf16.mxu0 0
    %6221 = vmatpush2.bf16.msra.mxu0 0
    %6222 = vmatprep.mubr.bf16.mxu0 0
    %6223 = vmatmul.mubr.bf16.gmra.mxu0 %v6186
    %v6224 = vpop.f32.mrf.mxu0
    %v6225 = vadd.f32 0.0, %v6224
    %v6226 = vpop.f32.mrf.mxu0
    %v6227 = vpop.f32.mrf.mxu0
    %v6228 = vadd.f32 0.0, %v6227
    %v6229 = vpop.f32.mrf.mxu0
    %6230 = vmatprep.mubr.bf16.mxu0 0
    %6231 = vmatmul.mubr.bf16.gmra.mxu0 %v6187
    %v6232 = vpop.f32.mrf.mxu0
    %v6233 = vadd.f32 0.0, %v6232
    %v6234 = vpop.f32.mrf.mxu0
    %v6235 = vpop.f32.mrf.mxu0
    %v6236 = vadd.f32 0.0, %v6235
    %v6237 = vpop.f32.mrf.mxu0
    %6238 = vdwg.mxu0
    %v6239 = vpack.c.bf16 %v6228, %v6225
    %v6240 = vpack.c.bf16 %v6236, %v6233
    %s6241 = scalar_lea.vmem [#allocation12], 40
    %v6242 = vld [vmem:[%s6241] sm:$0xf]
    %v6243 = vld [vmem:[%s6241 + $0x4] sm:$0xf]
    %v6246 = vunpack.c.l.b16 %v6242
    %v6247 = vunpack.c.l.b16 %v6243
    %v6248 = vpack.c.b16 %v6247, %v6246
    %v6251 = vsel %vm5648, %v6239, 0
    %v6254 = vsel %vm5648, %v6240, 0
    %6256 = vmatprep.subr.bf16.mxu0 0
    %6257 = vmatpush1.bf16.msra.mxu0 0
    %6258 = vmatprep.subr.bf16.mxu0 0
    %6259 = vmatpush1.bf16.msra.mxu0 0
    %6260 = vmatprep.subr.bf16.mxu0 0
    %6261 = vmatpush1.bf16.msra.mxu0 0
    %6262 = vmatprep.subr.bf16.mxu0 0
    %6263 = vmatpush1.bf16.msra.mxu0 0
    %6264 = vmatprep.subr.bf16.mxu0 0
    %6265 = vmatpush1.bf16.msra.mxu0 0
    %6266 = vmatprep.subr.bf16.mxu0 0
    %6267 = vmatpush1.bf16.msra.mxu0 0
    %6268 = vmatprep.subr.bf16.mxu0 0
    %6269 = vmatpush1.bf16.msra.mxu0 0
    %6270 = vmatprep.subr.bf16.mxu0 0
    %6271 = vmatpush1.bf16.msra.mxu0 %v6248
    %6272 = vmatprep.subr.bf16.mxu0 0
    %6273 = vmatpush2.bf16.msra.mxu0 0
    %6274 = vmatprep.subr.bf16.mxu0 0
    %6275 = vmatpush2.bf16.msra.mxu0 0
    %6276 = vmatprep.subr.bf16.mxu0 0
    %6277 = vmatpush2.bf16.msra.mxu0 0
    %6278 = vmatprep.subr.bf16.mxu0 0
    %6279 = vmatpush2.bf16.msra.mxu0 0
    %6280 = vmatprep.subr.bf16.mxu0 0
    %6281 = vmatpush2.bf16.msra.mxu0 0
    %6282 = vmatprep.subr.bf16.mxu0 0
    %6283 = vmatpush2.bf16.msra.mxu0 0
    %6284 = vmatprep.subr.bf16.mxu0 0
    %6285 = vmatpush2.bf16.msra.mxu0 0
    %6286 = vmatprep.subr.bf16.mxu0 0
    %6287 = vmatpush2.bf16.msra.mxu0 0
    %6288 = vmatprep.mubr.bf16.mxu0 0
    %6289 = vmatmul.mubr.bf16.gmra.mxu0 %v6251
    %v6290 = vpop.f32.mrf.mxu0
    %v6291 = vadd.f32 0.0, %v6290
    %v6292 = vpop.f32.mrf.mxu0
    %v6293 = vpop.f32.mrf.mxu0
    %v6294 = vadd.f32 0.0, %v6293
    %v6295 = vpop.f32.mrf.mxu0
    %6296 = vmatprep.mubr.bf16.mxu0 0
    %6297 = vmatmul.mubr.bf16.gmra.mxu0 %v6254
    %v6298 = vpop.f32.mrf.mxu0
    %v6299 = vadd.f32 0.0, %v6298
    %v6300 = vpop.f32.mrf.mxu0
    %v6301 = vpop.f32.mrf.mxu0
    %v6302 = vadd.f32 0.0, %v6301
    %v6303 = vpop.f32.mrf.mxu0
    %6304 = vdwg.mxu0
    %v6305 = vadd.f32 %v6169, %v6291
    %v6306 = vadd.f32 %v6170, %v6294
    %v6307 = vadd.f32 %v6171, %v6299
    %v6308 = vadd.f32 %v6172, %v6302
    %s6309 = scalar_lea.vmem [#allocation10], 96
    %v6310 = vld [vmem:[%s6309] sm:$0xf]
    %v6311 = vld [vmem:[%s6309 + $0x4] sm:$0xf]
    %v6312 = vld [vmem:[%s6309 + $0x8] sm:$0xf]
    %v6313 = vld [vmem:[%s6309 + $0xc] sm:$0xf]
    %v6318 = vunpack.c.l.b16 %v6310
    %v6319 = vunpack.c.l.b16 %v6311
    %v6320 = vunpack.c.l.b16 %v6312
    %v6321 = vunpack.c.l.b16 %v6313
    %v6322 = vpack.c.b16 %v6319, %v6318
    %v6323 = vpack.c.b16 %v6321, %v6320
    %6326 = vmatprep.subr.bf16.mxu0 0
    %6327 = vmatpush1.bf16.msra.mxu0 %v5501
    %6328 = vmatprep.subr.bf16.mxu0 0
    %6329 = vmatpush1.bf16.msra.mxu0 %v5500
    %6330 = vmatprep.subr.bf16.mxu0 0
    %6331 = vmatpush1.bf16.msra.mxu0 %v5499
    %6332 = vmatprep.subr.bf16.mxu0 0
    %6333 = vmatpush1.bf16.msra.mxu0 %v5498
    %6334 = vmatprep.subr.bf16.mxu0 0
    %6335 = vmatpush1.bf16.msra.mxu0 %v5497
    %6336 = vmatprep.subr.bf16.mxu0 0
    %6337 = vmatpush1.bf16.msra.mxu0 %v5496
    %6338 = vmatprep.subr.bf16.mxu0 0
    %6339 = vmatpush1.bf16.msra.mxu0 %v5495
    %6340 = vmatprep.subr.bf16.mxu0 0
    %6341 = vmatpush1.bf16.msra.mxu0 %v5494
    %6342 = vmatprep.subr.bf16.mxu0 0
    %6343 = vmatpush2.bf16.msra.mxu0 0
    %6344 = vmatprep.subr.bf16.mxu0 0
    %6345 = vmatpush2.bf16.msra.mxu0 0
    %6346 = vmatprep.subr.bf16.mxu0 0
    %6347 = vmatpush2.bf16.msra.mxu0 0
    %6348 = vmatprep.subr.bf16.mxu0 0
    %6349 = vmatpush2.bf16.msra.mxu0 0
    %6350 = vmatprep.subr.bf16.mxu0 0
    %6351 = vmatpush2.bf16.msra.mxu0 0
    %6352 = vmatprep.subr.bf16.mxu0 0
    %6353 = vmatpush2.bf16.msra.mxu0 0
    %6354 = vmatprep.subr.bf16.mxu0 0
    %6355 = vmatpush2.bf16.msra.mxu0 0
    %6356 = vmatprep.subr.bf16.mxu0 0
    %6357 = vmatpush2.bf16.msra.mxu0 0
    %6358 = vmatprep.mubr.bf16.mxu0 0
    %6359 = vmatmul.mubr.bf16.gmra.mxu0 %v6322
    %v6360 = vpop.f32.mrf.mxu0
    %v6361 = vadd.f32 0.0, %v6360
    %v6362 = vpop.f32.mrf.mxu0
    %v6363 = vpop.f32.mrf.mxu0
    %v6364 = vadd.f32 0.0, %v6363
    %v6365 = vpop.f32.mrf.mxu0
    %6366 = vmatprep.mubr.bf16.mxu0 0
    %6367 = vmatmul.mubr.bf16.gmra.mxu0 %v6323
    %v6368 = vpop.f32.mrf.mxu0
    %v6369 = vadd.f32 0.0, %v6368
    %v6370 = vpop.f32.mrf.mxu0
    %v6371 = vpop.f32.mrf.mxu0
    %v6372 = vadd.f32 0.0, %v6371
    %v6373 = vpop.f32.mrf.mxu0
    %6374 = vdwg.mxu0
    %v6375 = vpack.c.bf16 %v6364, %v6361
    %v6376 = vpack.c.bf16 %v6372, %v6369
    %s6377 = scalar_lea.vmem [#allocation12], 48
    %v6378 = vld [vmem:[%s6377] sm:$0xf]
    %v6379 = vld [vmem:[%s6377 + $0x4] sm:$0xf]
    %v6382 = vunpack.c.l.b16 %v6378
    %v6383 = vunpack.c.l.b16 %v6379
    %v6384 = vpack.c.b16 %v6383, %v6382
    %v6387 = vsel %vm5648, %v6375, 0
    %v6390 = vsel %vm5648, %v6376, 0
    %6392 = vmatprep.subr.bf16.mxu0 0
    %6393 = vmatpush1.bf16.msra.mxu0 0
    %6394 = vmatprep.subr.bf16.mxu0 0
    %6395 = vmatpush1.bf16.msra.mxu0 0
    %6396 = vmatprep.subr.bf16.mxu0 0
    %6397 = vmatpush1.bf16.msra.mxu0 0
    %6398 = vmatprep.subr.bf16.mxu0 0
    %6399 = vmatpush1.bf16.msra.mxu0 0
    %6400 = vmatprep.subr.bf16.mxu0 0
    %6401 = vmatpush1.bf16.msra.mxu0 0
    %6402 = vmatprep.subr.bf16.mxu0 0
    %6403 = vmatpush1.bf16.msra.mxu0 0
    %6404 = vmatprep.subr.bf16.mxu0 0
    %6405 = vmatpush1.bf16.msra.mxu0 0
    %6406 = vmatprep.subr.bf16.mxu0 0
    %6407 = vmatpush1.bf16.msra.mxu0 %v6384
    %6408 = vmatprep.subr.bf16.mxu0 0
    %6409 = vmatpush2.bf16.msra.mxu0 0
    %6410 = vmatprep.subr.bf16.mxu0 0
    %6411 = vmatpush2.bf16.msra.mxu0 0
    %6412 = vmatprep.subr.bf16.mxu0 0
    %6413 = vmatpush2.bf16.msra.mxu0 0
    %6414 = vmatprep.subr.bf16.mxu0 0
    %6415 = vmatpush2.bf16.msra.mxu0 0
    %6416 = vmatprep.subr.bf16.mxu0 0
    %6417 = vmatpush2.bf16.msra.mxu0 0
    %6418 = vmatprep.subr.bf16.mxu0 0
    %6419 = vmatpush2.bf16.msra.mxu0 0
    %6420 = vmatprep.subr.bf16.mxu0 0
    %6421 = vmatpush2.bf16.msra.mxu0 0
    %6422 = vmatprep.subr.bf16.mxu0 0
    %6423 = vmatpush2.bf16.msra.mxu0 0
    %6424 = vmatprep.mubr.bf16.mxu0 0
    %6425 = vmatmul.mubr.bf16.gmra.mxu0 %v6387
    %v6426 = vpop.f32.mrf.mxu0
    %v6427 = vadd.f32 0.0, %v6426
    %v6428 = vpop.f32.mrf.mxu0
    %v6429 = vpop.f32.mrf.mxu0
    %v6430 = vadd.f32 0.0, %v6429
    %v6431 = vpop.f32.mrf.mxu0
    %6432 = vmatprep.mubr.bf16.mxu0 0
    %6433 = vmatmul.mubr.bf16.gmra.mxu0 %v6390
    %v6434 = vpop.f32.mrf.mxu0
    %v6435 = vadd.f32 0.0, %v6434
    %v6436 = vpop.f32.mrf.mxu0
    %v6437 = vpop.f32.mrf.mxu0
    %v6438 = vadd.f32 0.0, %v6437
    %v6439 = vpop.f32.mrf.mxu0
    %6440 = vdwg.mxu0
    %v6441 = vadd.f32 %v6305, %v6427
    %v6442 = vadd.f32 %v6306, %v6430
    %v6443 = vadd.f32 %v6307, %v6435
    %v6444 = vadd.f32 %v6308, %v6438
    %s6445 = scalar_lea.vmem [#allocation10], 112
    %v6446 = vld [vmem:[%s6445] sm:$0xf]
    %v6447 = vld [vmem:[%s6445 + $0x4] sm:$0xf]
    %v6448 = vld [vmem:[%s6445 + $0x8] sm:$0xf]
    %v6449 = vld [vmem:[%s6445 + $0xc] sm:$0xf]
    %v6454 = vunpack.c.l.b16 %v6446
    %v6455 = vunpack.c.l.b16 %v6447
    %v6456 = vunpack.c.l.b16 %v6448
    %v6457 = vunpack.c.l.b16 %v6449
    %v6458 = vpack.c.b16 %v6455, %v6454
    %v6459 = vpack.c.b16 %v6457, %v6456
    %6462 = vmatprep.subr.bf16.mxu0 0
    %6463 = vmatpush1.bf16.msra.mxu0 %v5501
    %6464 = vmatprep.subr.bf16.mxu0 0
    %6465 = vmatpush1.bf16.msra.mxu0 %v5500
    %6466 = vmatprep.subr.bf16.mxu0 0
    %6467 = vmatpush1.bf16.msra.mxu0 %v5499
    %6468 = vmatprep.subr.bf16.mxu0 0
    %6469 = vmatpush1.bf16.msra.mxu0 %v5498
    %6470 = vmatprep.subr.bf16.mxu0 0
    %6471 = vmatpush1.bf16.msra.mxu0 %v5497
    %6472 = vmatprep.subr.bf16.mxu0 0
    %6473 = vmatpush1.bf16.msra.mxu0 %v5496
    %6474 = vmatprep.subr.bf16.mxu0 0
    %6475 = vmatpush1.bf16.msra.mxu0 %v5495
    %6476 = vmatprep.subr.bf16.mxu0 0
    %6477 = vmatpush1.bf16.msra.mxu0 %v5494
    %6478 = vmatprep.subr.bf16.mxu0 0
    %6479 = vmatpush2.bf16.msra.mxu0 0
    %6480 = vmatprep.subr.bf16.mxu0 0
    %6481 = vmatpush2.bf16.msra.mxu0 0
    %6482 = vmatprep.subr.bf16.mxu0 0
    %6483 = vmatpush2.bf16.msra.mxu0 0
    %6484 = vmatprep.subr.bf16.mxu0 0
    %6485 = vmatpush2.bf16.msra.mxu0 0
    %6486 = vmatprep.subr.bf16.mxu0 0
    %6487 = vmatpush2.bf16.msra.mxu0 0
    %6488 = vmatprep.subr.bf16.mxu0 0
    %6489 = vmatpush2.bf16.msra.mxu0 0
    %6490 = vmatprep.subr.bf16.mxu0 0
    %6491 = vmatpush2.bf16.msra.mxu0 0
    %6492 = vmatprep.subr.bf16.mxu0 0
    %6493 = vmatpush2.bf16.msra.mxu0 0
    %6494 = vmatprep.mubr.bf16.mxu0 0
    %6495 = vmatmul.mubr.bf16.gmra.mxu0 %v6458
    %v6496 = vpop.f32.mrf.mxu0
    %v6497 = vadd.f32 0.0, %v6496
    %v6498 = vpop.f32.mrf.mxu0
    %v6499 = vpop.f32.mrf.mxu0
    %v6500 = vadd.f32 0.0, %v6499
    %v6501 = vpop.f32.mrf.mxu0
    %6502 = vmatprep.mubr.bf16.mxu0 0
    %6503 = vmatmul.mubr.bf16.gmra.mxu0 %v6459
    %v6504 = vpop.f32.mrf.mxu0
    %v6505 = vadd.f32 0.0, %v6504
    %v6506 = vpop.f32.mrf.mxu0
    %v6507 = vpop.f32.mrf.mxu0
    %v6508 = vadd.f32 0.0, %v6507
    %v6509 = vpop.f32.mrf.mxu0
    %6510 = vdwg.mxu0
    %v6511 = vpack.c.bf16 %v6500, %v6497
    %v6512 = vpack.c.bf16 %v6508, %v6505
    %s6513 = scalar_lea.vmem [#allocation12], 56
    %v6514 = vld [vmem:[%s6513] sm:$0xf]
    %v6515 = vld [vmem:[%s6513 + $0x4] sm:$0xf]
    %v6518 = vunpack.c.l.b16 %v6514
    %v6519 = vunpack.c.l.b16 %v6515
    %v6520 = vpack.c.b16 %v6519, %v6518
    %v6523 = vsel %vm5648, %v6511, 0
    %v6526 = vsel %vm5648, %v6512, 0
    %6528 = vmatprep.subr.bf16.mxu0 0
    %6529 = vmatpush1.bf16.msra.mxu0 0
    %6530 = vmatprep.subr.bf16.mxu0 0
    %6531 = vmatpush1.bf16.msra.mxu0 0
    %6532 = vmatprep.subr.bf16.mxu0 0
    %6533 = vmatpush1.bf16.msra.mxu0 0
    %6534 = vmatprep.subr.bf16.mxu0 0
    %6535 = vmatpush1.bf16.msra.mxu0 0
    %6536 = vmatprep.subr.bf16.mxu0 0
    %6537 = vmatpush1.bf16.msra.mxu0 0
    %6538 = vmatprep.subr.bf16.mxu0 0
    %6539 = vmatpush1.bf16.msra.mxu0 0
    %6540 = vmatprep.subr.bf16.mxu0 0
    %6541 = vmatpush1.bf16.msra.mxu0 0
    %6542 = vmatprep.subr.bf16.mxu0 0
    %6543 = vmatpush1.bf16.msra.mxu0 %v6520
    %6544 = vmatprep.subr.bf16.mxu0 0
    %6545 = vmatpush2.bf16.msra.mxu0 0
    %6546 = vmatprep.subr.bf16.mxu0 0
    %6547 = vmatpush2.bf16.msra.mxu0 0
    %6548 = vmatprep.subr.bf16.mxu0 0
    %6549 = vmatpush2.bf16.msra.mxu0 0
    %6550 = vmatprep.subr.bf16.mxu0 0
    %6551 = vmatpush2.bf16.msra.mxu0 0
    %6552 = vmatprep.subr.bf16.mxu0 0
    %6553 = vmatpush2.bf16.msra.mxu0 0
    %6554 = vmatprep.subr.bf16.mxu0 0
    %6555 = vmatpush2.bf16.msra.mxu0 0
    %6556 = vmatprep.subr.bf16.mxu0 0
    %6557 = vmatpush2.bf16.msra.mxu0 0
    %6558 = vmatprep.subr.bf16.mxu0 0
    %6559 = vmatpush2.bf16.msra.mxu0 0
    %6560 = vmatprep.mubr.bf16.mxu0 0
    %6561 = vmatmul.mubr.bf16.gmra.mxu0 %v6523
    %v6562 = vpop.f32.mrf.mxu0
    %v6563 = vadd.f32 0.0, %v6562
    %v6564 = vpop.f32.mrf.mxu0
    %v6565 = vpop.f32.mrf.mxu0
    %v6566 = vadd.f32 0.0, %v6565
    %v6567 = vpop.f32.mrf.mxu0
    %6568 = vmatprep.mubr.bf16.mxu0 0
    %6569 = vmatmul.mubr.bf16.gmra.mxu0 %v6526
    %v6570 = vpop.f32.mrf.mxu0
    %v6571 = vadd.f32 0.0, %v6570
    %v6572 = vpop.f32.mrf.mxu0
    %v6573 = vpop.f32.mrf.mxu0
    %v6574 = vadd.f32 0.0, %v6573
    %v6575 = vpop.f32.mrf.mxu0
    %6576 = vdwg.mxu0
    %v6577 = vadd.f32 %v6441, %v6563
    %v6578 = vadd.f32 %v6442, %v6566
    %v6579 = vadd.f32 %v6443, %v6571
    %v6580 = vadd.f32 %v6444, %v6574
    %s6581 = scalar_lea.vmem [#allocation10], 128
    %v6582 = vld [vmem:[%s6581] sm:$0xf]
    %v6583 = vld [vmem:[%s6581 + $0x4] sm:$0xf]
    %v6584 = vld [vmem:[%s6581 + $0x8] sm:$0xf]
    %v6585 = vld [vmem:[%s6581 + $0xc] sm:$0xf]
    %v6590 = vunpack.c.l.b16 %v6582
    %v6591 = vunpack.c.l.b16 %v6583
    %v6592 = vunpack.c.l.b16 %v6584
    %v6593 = vunpack.c.l.b16 %v6585
    %v6594 = vpack.c.b16 %v6591, %v6590
    %v6595 = vpack.c.b16 %v6593, %v6592
    %6598 = vmatprep.subr.bf16.mxu0 0
    %6599 = vmatpush1.bf16.msra.mxu0 %v5501
    %6600 = vmatprep.subr.bf16.mxu0 0
    %6601 = vmatpush1.bf16.msra.mxu0 %v5500
    %6602 = vmatprep.subr.bf16.mxu0 0
    %6603 = vmatpush1.bf16.msra.mxu0 %v5499
    %6604 = vmatprep.subr.bf16.mxu0 0
    %6605 = vmatpush1.bf16.msra.mxu0 %v5498
    %6606 = vmatprep.subr.bf16.mxu0 0
    %6607 = vmatpush1.bf16.msra.mxu0 %v5497
    %6608 = vmatprep.subr.bf16.mxu0 0
    %6609 = vmatpush1.bf16.msra.mxu0 %v5496
    %6610 = vmatprep.subr.bf16.mxu0 0
    %6611 = vmatpush1.bf16.msra.mxu0 %v5495
    %6612 = vmatprep.subr.bf16.mxu0 0
    %6613 = vmatpush1.bf16.msra.mxu0 %v5494
    %6614 = vmatprep.subr.bf16.mxu0 0
    %6615 = vmatpush2.bf16.msra.mxu0 0
    %6616 = vmatprep.subr.bf16.mxu0 0
    %6617 = vmatpush2.bf16.msra.mxu0 0
    %6618 = vmatprep.subr.bf16.mxu0 0
    %6619 = vmatpush2.bf16.msra.mxu0 0
    %6620 = vmatprep.subr.bf16.mxu0 0
    %6621 = vmatpush2.bf16.msra.mxu0 0
    %6622 = vmatprep.subr.bf16.mxu0 0
    %6623 = vmatpush2.bf16.msra.mxu0 0
    %6624 = vmatprep.subr.bf16.mxu0 0
    %6625 = vmatpush2.bf16.msra.mxu0 0
    %6626 = vmatprep.subr.bf16.mxu0 0
    %6627 = vmatpush2.bf16.msra.mxu0 0
    %6628 = vmatprep.subr.bf16.mxu0 0
    %6629 = vmatpush2.bf16.msra.mxu0 0
    %6630 = vmatprep.mubr.bf16.mxu0 0
    %6631 = vmatmul.mubr.bf16.gmra.mxu0 %v6594
    %v6632 = vpop.f32.mrf.mxu0
    %v6633 = vadd.f32 0.0, %v6632
    %v6634 = vpop.f32.mrf.mxu0
    %v6635 = vpop.f32.mrf.mxu0
    %v6636 = vadd.f32 0.0, %v6635
    %v6637 = vpop.f32.mrf.mxu0
    %6638 = vmatprep.mubr.bf16.mxu0 0
    %6639 = vmatmul.mubr.bf16.gmra.mxu0 %v6595
    %v6640 = vpop.f32.mrf.mxu0
    %v6641 = vadd.f32 0.0, %v6640
    %v6642 = vpop.f32.mrf.mxu0
    %v6643 = vpop.f32.mrf.mxu0
    %v6644 = vadd.f32 0.0, %v6643
    %v6645 = vpop.f32.mrf.mxu0
    %6646 = vdwg.mxu0
    %v6647 = vpack.c.bf16 %v6636, %v6633
    %v6648 = vpack.c.bf16 %v6644, %v6641
    %s6649 = scalar_lea.vmem [#allocation12], 64
    %v6650 = vld [vmem:[%s6649] sm:$0xf]
    %v6651 = vld [vmem:[%s6649 + $0x4] sm:$0xf]
    %v6654 = vunpack.c.l.b16 %v6650
    %v6655 = vunpack.c.l.b16 %v6651
    %v6656 = vpack.c.b16 %v6655, %v6654
    %v6659 = vsel %vm5648, %v6647, 0
    %v6662 = vsel %vm5648, %v6648, 0
    %6664 = vmatprep.subr.bf16.mxu0 0
    %6665 = vmatpush1.bf16.msra.mxu0 0
    %6666 = vmatprep.subr.bf16.mxu0 0
    %6667 = vmatpush1.bf16.msra.mxu0 0
    %6668 = vmatprep.subr.bf16.mxu0 0
    %6669 = vmatpush1.bf16.msra.mxu0 0
    %6670 = vmatprep.subr.bf16.mxu0 0
    %6671 = vmatpush1.bf16.msra.mxu0 0
    %6672 = vmatprep.subr.bf16.mxu0 0
    %6673 = vmatpush1.bf16.msra.mxu0 0
    %6674 = vmatprep.subr.bf16.mxu0 0
    %6675 = vmatpush1.bf16.msra.mxu0 0
    %6676 = vmatprep.subr.bf16.mxu0 0
    %6677 = vmatpush1.bf16.msra.mxu0 0
    %6678 = vmatprep.subr.bf16.mxu0 0
    %6679 = vmatpush1.bf16.msra.mxu0 %v6656
    %6680 = vmatprep.subr.bf16.mxu0 0
    %6681 = vmatpush2.bf16.msra.mxu0 0
    %6682 = vmatprep.subr.bf16.mxu0 0
    %6683 = vmatpush2.bf16.msra.mxu0 0
    %6684 = vmatprep.subr.bf16.mxu0 0
    %6685 = vmatpush2.bf16.msra.mxu0 0
    %6686 = vmatprep.subr.bf16.mxu0 0
    %6687 = vmatpush2.bf16.msra.mxu0 0
    %6688 = vmatprep.subr.bf16.mxu0 0
    %6689 = vmatpush2.bf16.msra.mxu0 0
    %6690 = vmatprep.subr.bf16.mxu0 0
    %6691 = vmatpush2.bf16.msra.mxu0 0
    %6692 = vmatprep.subr.bf16.mxu0 0
    %6693 = vmatpush2.bf16.msra.mxu0 0
    %6694 = vmatprep.subr.bf16.mxu0 0
    %6695 = vmatpush2.bf16.msra.mxu0 0
    %6696 = vmatprep.mubr.bf16.mxu0 0
    %6697 = vmatmul.mubr.bf16.gmra.mxu0 %v6659
    %v6698 = vpop.f32.mrf.mxu0
    %v6699 = vadd.f32 0.0, %v6698
    %v6700 = vpop.f32.mrf.mxu0
    %v6701 = vpop.f32.mrf.mxu0
    %v6702 = vadd.f32 0.0, %v6701
    %v6703 = vpop.f32.mrf.mxu0
    %6704 = vmatprep.mubr.bf16.mxu0 0
    %6705 = vmatmul.mubr.bf16.gmra.mxu0 %v6662
    %v6706 = vpop.f32.mrf.mxu0
    %v6707 = vadd.f32 0.0, %v6706
    %v6708 = vpop.f32.mrf.mxu0
    %v6709 = vpop.f32.mrf.mxu0
    %v6710 = vadd.f32 0.0, %v6709
    %v6711 = vpop.f32.mrf.mxu0
    %6712 = vdwg.mxu0
    %v6713 = vadd.f32 %v6577, %v6699
    %v6714 = vadd.f32 %v6578, %v6702
    %v6715 = vadd.f32 %v6579, %v6707
    %v6716 = vadd.f32 %v6580, %v6710
    %v6717 = vld [vmem:[#allocation13] sm:$0x1]
    %v6719 = vlaneseq
    %v6720 = vshrl.u32 %v6719, 7
    %v6721 = vsub.s32 0, %v6720
    %v6722 = vrot.slane %v6717, %v6721
    %v6724 = vadd.f32 %v6713, %v6722
    %v6725 = vadd.f32 %v6714, %v6722
    %v6726 = vadd.f32 %v6715, %v6722
    %v6727 = vadd.f32 %v6716, %v6722
    %vm6728 = vcmp.gt.f32.partialorder %v6724, 0.0
    %vm6729 = vcmp.gt.f32.partialorder %v6725, 0.0
    %vm6730 = vcmp.gt.f32.partialorder %v6726, 0.0
    %vm6731 = vcmp.gt.f32.partialorder %v6727, 0.0
    %v6732 = vmul.f32 %v6724, 0.2
    %v6733 = vmul.f32 %v6725, 0.2
    %v6734 = vmul.f32 %v6726, 0.2
    %v6735 = vmul.f32 %v6727, 0.2
    %v6736 = vsel %vm6728, %v6724, %v6732
    %v6737 = vsel %vm6729, %v6725, %v6733
    %v6738 = vsel %vm6730, %v6726, %v6734
    %v6739 = vsel %vm6731, %v6727, %v6735
    %v6740 = vld [vmem:[#allocation15] sm:$0x1]
    %v6742 = vlaneseq
    %v6743 = vshrl.u32 %v6742, 7
    %v6744 = vsub.s32 0, %v6743
    %v6745 = vrot.slane %v6740, %v6744
    %v6747 = vmul.f32 %v6736, %v6745
    %v6748 = vmul.f32 %v6737, %v6745
    %v6749 = vmul.f32 %v6738, %v6745
    %v6750 = vmul.f32 %v6739, %v6745
    %v6751 = vld [vmem:[#allocation16] sm:$0x1]
    %v6753 = vlaneseq
    %v6754 = vshrl.u32 %v6753, 7
    %v6755 = vsub.s32 0, %v6754
    %v6756 = vrot.slane %v6751, %v6755
    %v6758 = vadd.f32 %v6747, %v6756
    %v6759 = vadd.f32 %v6748, %v6756
    %v6760 = vadd.f32 %v6749, %v6756
    %v6761 = vadd.f32 %v6750, %v6756
    %v6762 = vpack.c.bf16 %v6759, %v6758
    %v6763 = vpack.c.bf16 %v6761, %v6760
    %v6764 = vld [vmem:[#allocation18] sm:$0xf]
    %vm6765 = vcmask 261120
    %v6767 = vsel %vm6765, %v6764, 0
    %6769 = vmatprep.subr.bf16.mxu0 0
    %6770 = vmatpush1.bf16.msra.mxu0 0
    %6771 = vmatprep.subr.bf16.mxu0 0
    %6772 = vmatpush1.bf16.msra.mxu0 0
    %6773 = vmatprep.subr.bf16.mxu0 0
    %6774 = vmatpush1.bf16.msra.mxu0 0
    %6775 = vmatprep.subr.bf16.mxu0 0
    %6776 = vmatpush1.bf16.msra.mxu0 0
    %6777 = vmatprep.subr.bf16.mxu0 0
    %6778 = vmatpush1.bf16.msra.mxu0 0
    %6779 = vmatprep.subr.bf16.mxu0 0
    %6780 = vmatpush1.bf16.msra.mxu0 0
    %6781 = vmatprep.subr.bf16.mxu0 0
    %6782 = vmatpush1.bf16.msra.mxu0 %v6763
    %6783 = vmatprep.subr.bf16.mxu0 0
    %6784 = vmatpush1.bf16.msra.mxu0 %v6762
    %6785 = vmatprep.subr.bf16.mxu0 0
    %6786 = vmatpush2.bf16.msra.mxu0 0
    %6787 = vmatprep.subr.bf16.mxu0 0
    %6788 = vmatpush2.bf16.msra.mxu0 0
    %6789 = vmatprep.subr.bf16.mxu0 0
    %6790 = vmatpush2.bf16.msra.mxu0 0
    %6791 = vmatprep.subr.bf16.mxu0 0
    %6792 = vmatpush2.bf16.msra.mxu0 0
    %6793 = vmatprep.subr.bf16.mxu0 0
    %6794 = vmatpush2.bf16.msra.mxu0 0
    %6795 = vmatprep.subr.bf16.mxu0 0
    %6796 = vmatpush2.bf16.msra.mxu0 0
    %6797 = vmatprep.subr.bf16.mxu0 0
    %6798 = vmatpush2.bf16.msra.mxu0 0
    %6799 = vmatprep.subr.bf16.mxu0 0
    %6800 = vmatpush2.bf16.msra.mxu0 0
    %6801 = vmatprep.mubr.bf16.mxu0 0
    %6802 = vmatmul.mubr.bf16.gmra.mxu0 %v6767
    %v6803 = vpop.f32.mrf.mxu0
    %v6804 = vadd.f32 0.0, %v6803
    %v6805 = vpop.f32.mrf.mxu0
    %v6806 = vpop.f32.mrf.mxu0
    %v6807 = vpop.f32.mrf.mxu0
    %6808 = vdwg.mxu0
    %v6809 = vpack.c.bf16 %v6804, %v6804
    %v6810 = vld [vmem:[#allocation19] sm:$0xf]
    %v6811 = vld [vmem:[#allocation19 + $0x4] sm:$0xf]
    %v6812 = vld [vmem:[#allocation19 + $0x8] sm:$0xf]
    %v6813 = vld [vmem:[#allocation19 + $0xc] sm:$0xf]
    %s6814 = scalar_lea.vmem [#allocation18], 4
    %v6815 = vld [vmem:[%s6814] sm:$0xf]
    %v6817 = vsel %vm6765, %v6815, 0
    %6819 = vmatprep.subr.bf16.mxu0 0
    %6820 = vmatpush1.bf16.msra.mxu0 0
    %6821 = vmatprep.subr.bf16.mxu0 0
    %6822 = vmatpush1.bf16.msra.mxu0 0
    %6823 = vmatprep.subr.bf16.mxu0 0
    %6824 = vmatpush1.bf16.msra.mxu0 0
    %6825 = vmatprep.subr.bf16.mxu0 0
    %6826 = vmatpush1.bf16.msra.mxu0 0
    %6827 = vmatprep.subr.bf16.mxu0 0
    %6828 = vmatpush1.bf16.msra.mxu0 0
    %6829 = vmatprep.subr.bf16.mxu0 0
    %6830 = vmatpush1.bf16.msra.mxu0 0
    %6831 = vmatprep.subr.bf16.mxu0 0
    %6832 = vmatpush1.bf16.msra.mxu0 %v6763
    %6833 = vmatprep.subr.bf16.mxu0 0
    %6834 = vmatpush1.bf16.msra.mxu0 %v6762
    %6835 = vmatprep.subr.bf16.mxu0 0
    %6836 = vmatpush2.bf16.msra.mxu0 0
    %6837 = vmatprep.subr.bf16.mxu0 0
    %6838 = vmatpush2.bf16.msra.mxu0 0
    %6839 = vmatprep.subr.bf16.mxu0 0
    %6840 = vmatpush2.bf16.msra.mxu0 0
    %6841 = vmatprep.subr.bf16.mxu0 0
    %6842 = vmatpush2.bf16.msra.mxu0 0
    %6843 = vmatprep.subr.bf16.mxu0 0
    %6844 = vmatpush2.bf16.msra.mxu0 0
    %6845 = vmatprep.subr.bf16.mxu0 0
    %6846 = vmatpush2.bf16.msra.mxu0 0
    %6847 = vmatprep.subr.bf16.mxu0 0
    %6848 = vmatpush2.bf16.msra.mxu0 0
    %6849 = vmatprep.subr.bf16.mxu0 0
    %6850 = vmatpush2.bf16.msra.mxu0 0
    %6851 = vmatprep.mubr.bf16.mxu0 0
    %6852 = vmatmul.mubr.bf16.gmra.mxu0 %v6817
    %v6853 = vpop.f32.mrf.mxu0
    %v6854 = vadd.f32 0.0, %v6853
    %v6855 = vpop.f32.mrf.mxu0
    %v6856 = vpop.f32.mrf.mxu0
    %v6857 = vpop.f32.mrf.mxu0
    %6858 = vdwg.mxu0
    %v6859 = vpack.c.bf16 %v6854, %v6854
    %s6860 = scalar_lea.vmem [#allocation19], 16
    %v6861 = vld [vmem:[%s6860] sm:$0xf]
    %v6862 = vld [vmem:[%s6860 + $0x4] sm:$0xf]
    %v6863 = vld [vmem:[%s6860 + $0x8] sm:$0xf]
    %v6864 = vld [vmem:[%s6860 + $0xc] sm:$0xf]
    %v6869 = vunpack.c.l.b16 %v6861
    %v6870 = vunpack.c.l.b16 %v6862
    %v6871 = vunpack.c.l.b16 %v6863
    %v6872 = vunpack.c.l.b16 %v6864
    %v6873 = vpack.c.b16 %v6870, %v6869
    %v6874 = vpack.c.b16 %v6872, %v6871
    %v6878 = vsel %vm6765, %v6859, 0
    %6880 = vmatprep.subr.bf16.mxu0 0
    %6881 = vmatpush1.bf16.msra.mxu0 0
    %6882 = vmatprep.subr.bf16.mxu0 0
    %6883 = vmatpush1.bf16.msra.mxu0 0
    %6884 = vmatprep.subr.bf16.mxu0 0
    %6885 = vmatpush1.bf16.msra.mxu0 0
    %6886 = vmatprep.subr.bf16.mxu0 0
    %6887 = vmatpush1.bf16.msra.mxu0 0
    %6888 = vmatprep.subr.bf16.mxu0 0
    %6889 = vmatpush1.bf16.msra.mxu0 0
    %6890 = vmatprep.subr.bf16.mxu0 0
    %6891 = vmatpush1.bf16.msra.mxu0 0
    %6892 = vmatprep.subr.bf16.mxu0 0
    %6893 = vmatpush1.bf16.msra.mxu0 %v6874
    %6894 = vmatprep.subr.bf16.mxu0 0
    %6895 = vmatpush1.bf16.msra.mxu0 %v6873
    %6896 = vmatprep.subr.bf16.mxu0 0
    %6897 = vmatpush2.bf16.msra.mxu0 0
    %6898 = vmatprep.subr.bf16.mxu0 0
    %6899 = vmatpush2.bf16.msra.mxu0 0
    %6900 = vmatprep.subr.bf16.mxu0 0
    %6901 = vmatpush2.bf16.msra.mxu0 0
    %6902 = vmatprep.subr.bf16.mxu0 0
    %6903 = vmatpush2.bf16.msra.mxu0 0
    %6904 = vmatprep.subr.bf16.mxu0 0
    %6905 = vmatpush2.bf16.msra.mxu0 0
    %6906 = vmatprep.subr.bf16.mxu0 0
    %6907 = vmatpush2.bf16.msra.mxu0 0
    %6908 = vmatprep.subr.bf16.mxu0 0
    %6909 = vmatpush2.bf16.msra.mxu0 0
    %6910 = vmatprep.subr.bf16.mxu0 0
    %6911 = vmatpush2.bf16.msra.mxu0 0
    %6912 = vmatprep.mubr.bf16.mxu0 0
    %6913 = vmatmul.mubr.bf16.gmra.mxu0 %v6878
    %v6914 = vpop.f32.mrf.mxu0
    %v6915 = vadd.f32 0.0, %v6914
    %v6916 = vpop.f32.mrf.mxu0
    %v6917 = vpop.f32.mrf.mxu0
    %v6918 = vpop.f32.mrf.mxu0
    %6919 = vdwg.mxu0
    %v6924 = vunpack.c.l.b16 %v6810
    %v6925 = vunpack.c.l.b16 %v6811
    %v6926 = vunpack.c.l.b16 %v6812
    %v6927 = vunpack.c.l.b16 %v6813
    %v6928 = vpack.c.b16 %v6925, %v6924
    %v6929 = vpack.c.b16 %v6927, %v6926
    %v6933 = vsel %vm6765, %v6809, 0
    %6935 = vmatprep.subr.bf16.mxu0 0
    %6936 = vmatpush1.bf16.msra.mxu0 0
    %6937 = vmatprep.subr.bf16.mxu0 0
    %6938 = vmatpush1.bf16.msra.mxu0 0
    %6939 = vmatprep.subr.bf16.mxu0 0
    %6940 = vmatpush1.bf16.msra.mxu0 0
    %6941 = vmatprep.subr.bf16.mxu0 0
    %6942 = vmatpush1.bf16.msra.mxu0 0
    %6943 = vmatprep.subr.bf16.mxu0 0
    %6944 = vmatpush1.bf16.msra.mxu0 0
    %6945 = vmatprep.subr.bf16.mxu0 0
    %6946 = vmatpush1.bf16.msra.mxu0 0
    %6947 = vmatprep.subr.bf16.mxu0 0
    %6948 = vmatpush1.bf16.msra.mxu0 %v6929
    %6949 = vmatprep.subr.bf16.mxu0 0
    %6950 = vmatpush1.bf16.msra.mxu0 %v6928
    %6951 = vmatprep.subr.bf16.mxu0 0
    %6952 = vmatpush2.bf16.msra.mxu0 0
    %6953 = vmatprep.subr.bf16.mxu0 0
    %6954 = vmatpush2.bf16.msra.mxu0 0
    %6955 = vmatprep.subr.bf16.mxu0 0
    %6956 = vmatpush2.bf16.msra.mxu0 0
    %6957 = vmatprep.subr.bf16.mxu0 0
    %6958 = vmatpush2.bf16.msra.mxu0 0
    %6959 = vmatprep.subr.bf16.mxu0 0
    %6960 = vmatpush2.bf16.msra.mxu0 0
    %6961 = vmatprep.subr.bf16.mxu0 0
    %6962 = vmatpush2.bf16.msra.mxu0 0
    %6963 = vmatprep.subr.bf16.mxu0 0
    %6964 = vmatpush2.bf16.msra.mxu0 0
    %6965 = vmatprep.subr.bf16.mxu0 0
    %6966 = vmatpush2.bf16.msra.mxu0 0
    %6967 = vmatprep.mubr.bf16.mxu0 0
    %6968 = vmatmul.mubr.bf16.gmra.mxu0 %v6933
    %v6969 = vpop.f32.mrf.mxu0
    %v6970 = vadd.f32 %v6915, %v6969
    %v6971 = vpop.f32.mrf.mxu0
    %v6972 = vpop.f32.mrf.mxu0
    %v6973 = vpop.f32.mrf.mxu0
    %6974 = vdwg.mxu0
    %s6975 = scalar_lea.vmem [#allocation18], 8
    %v6976 = vld [vmem:[%s6975] sm:$0xf]
    %v6978 = vsel %vm6765, %v6976, 0
    %6980 = vmatprep.subr.bf16.mxu0 0
    %6981 = vmatpush1.bf16.msra.mxu0 0
    %6982 = vmatprep.subr.bf16.mxu0 0
    %6983 = vmatpush1.bf16.msra.mxu0 0
    %6984 = vmatprep.subr.bf16.mxu0 0
    %6985 = vmatpush1.bf16.msra.mxu0 0
    %6986 = vmatprep.subr.bf16.mxu0 0
    %6987 = vmatpush1.bf16.msra.mxu0 0
    %6988 = vmatprep.subr.bf16.mxu0 0
    %6989 = vmatpush1.bf16.msra.mxu0 0
    %6990 = vmatprep.subr.bf16.mxu0 0
    %6991 = vmatpush1.bf16.msra.mxu0 0
    %6992 = vmatprep.subr.bf16.mxu0 0
    %6993 = vmatpush1.bf16.msra.mxu0 %v6763
    %6994 = vmatprep.subr.bf16.mxu0 0
    %6995 = vmatpush1.bf16.msra.mxu0 %v6762
    %6996 = vmatprep.subr.bf16.mxu0 0
    %6997 = vmatpush2.bf16.msra.mxu0 0
    %6998 = vmatprep.subr.bf16.mxu0 0
    %6999 = vmatpush2.bf16.msra.mxu0 0
    %7000 = vmatprep.subr.bf16.mxu0 0
    %7001 = vmatpush2.bf16.msra.mxu0 0
    %7002 = vmatprep.subr.bf16.mxu0 0
    %7003 = vmatpush2.bf16.msra.mxu0 0
    %7004 = vmatprep.subr.bf16.mxu0 0
    %7005 = vmatpush2.bf16.msra.mxu0 0
    %7006 = vmatprep.subr.bf16.mxu0 0
    %7007 = vmatpush2.bf16.msra.mxu0 0
    %7008 = vmatprep.subr.bf16.mxu0 0
    %7009 = vmatpush2.bf16.msra.mxu0 0
    %7010 = vmatprep.subr.bf16.mxu0 0
    %7011 = vmatpush2.bf16.msra.mxu0 0
    %7012 = vmatprep.mubr.bf16.mxu0 0
    %7013 = vmatmul.mubr.bf16.gmra.mxu0 %v6978
    %v7014 = vpop.f32.mrf.mxu0
    %v7015 = vadd.f32 0.0, %v7014
    %v7016 = vpop.f32.mrf.mxu0
    %v7017 = vpop.f32.mrf.mxu0
    %v7018 = vpop.f32.mrf.mxu0
    %7019 = vdwg.mxu0
    %v7020 = vpack.c.bf16 %v7015, %v7015
    %s7021 = scalar_lea.vmem [#allocation19], 32
    %v7022 = vld [vmem:[%s7021] sm:$0xf]
    %v7023 = vld [vmem:[%s7021 + $0x4] sm:$0xf]
    %v7024 = vld [vmem:[%s7021 + $0x8] sm:$0xf]
    %v7025 = vld [vmem:[%s7021 + $0xc] sm:$0xf]
    %v7030 = vunpack.c.l.b16 %v7022
    %v7031 = vunpack.c.l.b16 %v7023
    %v7032 = vunpack.c.l.b16 %v7024
    %v7033 = vunpack.c.l.b16 %v7025
    %v7034 = vpack.c.b16 %v7031, %v7030
    %v7035 = vpack.c.b16 %v7033, %v7032
    %v7039 = vsel %vm6765, %v7020, 0
    %7041 = vmatprep.subr.bf16.mxu0 0
    %7042 = vmatpush1.bf16.msra.mxu0 0
    %7043 = vmatprep.subr.bf16.mxu0 0
    %7044 = vmatpush1.bf16.msra.mxu0 0
    %7045 = vmatprep.subr.bf16.mxu0 0
    %7046 = vmatpush1.bf16.msra.mxu0 0
    %7047 = vmatprep.subr.bf16.mxu0 0
    %7048 = vmatpush1.bf16.msra.mxu0 0
    %7049 = vmatprep.subr.bf16.mxu0 0
    %7050 = vmatpush1.bf16.msra.mxu0 0
    %7051 = vmatprep.subr.bf16.mxu0 0
    %7052 = vmatpush1.bf16.msra.mxu0 0
    %7053 = vmatprep.subr.bf16.mxu0 0
    %7054 = vmatpush1.bf16.msra.mxu0 %v7035
    %7055 = vmatprep.subr.bf16.mxu0 0
    %7056 = vmatpush1.bf16.msra.mxu0 %v7034
    %7057 = vmatprep.subr.bf16.mxu0 0
    %7058 = vmatpush2.bf16.msra.mxu0 0
    %7059 = vmatprep.subr.bf16.mxu0 0
    %7060 = vmatpush2.bf16.msra.mxu0 0
    %7061 = vmatprep.subr.bf16.mxu0 0
    %7062 = vmatpush2.bf16.msra.mxu0 0
    %7063 = vmatprep.subr.bf16.mxu0 0
    %7064 = vmatpush2.bf16.msra.mxu0 0
    %7065 = vmatprep.subr.bf16.mxu0 0
    %7066 = vmatpush2.bf16.msra.mxu0 0
    %7067 = vmatprep.subr.bf16.mxu0 0
    %7068 = vmatpush2.bf16.msra.mxu0 0
    %7069 = vmatprep.subr.bf16.mxu0 0
    %7070 = vmatpush2.bf16.msra.mxu0 0
    %7071 = vmatprep.subr.bf16.mxu0 0
    %7072 = vmatpush2.bf16.msra.mxu0 0
    %7073 = vmatprep.mubr.bf16.mxu0 0
    %7074 = vmatmul.mubr.bf16.gmra.mxu0 %v7039
    %v7075 = vpop.f32.mrf.mxu0
    %v7076 = vadd.f32 0.0, %v7075
    %v7077 = vpop.f32.mrf.mxu0
    %v7078 = vpop.f32.mrf.mxu0
    %v7079 = vpop.f32.mrf.mxu0
    %7080 = vdwg.mxu0
    %v7081 = vadd.f32 %v6970, %v7076
    %s7082 = scalar_lea.vmem [#allocation18], 12
    %v7083 = vld [vmem:[%s7082] sm:$0xf]
    %v7085 = vsel %vm6765, %v7083, 0
    %7087 = vmatprep.subr.bf16.mxu0 0
    %7088 = vmatpush1.bf16.msra.mxu0 0
    %7089 = vmatprep.subr.bf16.mxu0 0
    %7090 = vmatpush1.bf16.msra.mxu0 0
    %7091 = vmatprep.subr.bf16.mxu0 0
    %7092 = vmatpush1.bf16.msra.mxu0 0
    %7093 = vmatprep.subr.bf16.mxu0 0
    %7094 = vmatpush1.bf16.msra.mxu0 0
    %7095 = vmatprep.subr.bf16.mxu0 0
    %7096 = vmatpush1.bf16.msra.mxu0 0
    %7097 = vmatprep.subr.bf16.mxu0 0
    %7098 = vmatpush1.bf16.msra.mxu0 0
    %7099 = vmatprep.subr.bf16.mxu0 0
    %7100 = vmatpush1.bf16.msra.mxu0 %v6763
    %7101 = vmatprep.subr.bf16.mxu0 0
    %7102 = vmatpush1.bf16.msra.mxu0 %v6762
    %7103 = vmatprep.subr.bf16.mxu0 0
    %7104 = vmatpush2.bf16.msra.mxu0 0
    %7105 = vmatprep.subr.bf16.mxu0 0
    %7106 = vmatpush2.bf16.msra.mxu0 0
    %7107 = vmatprep.subr.bf16.mxu0 0
    %7108 = vmatpush2.bf16.msra.mxu0 0
    %7109 = vmatprep.subr.bf16.mxu0 0
    %7110 = vmatpush2.bf16.msra.mxu0 0
    %7111 = vmatprep.subr.bf16.mxu0 0
    %7112 = vmatpush2.bf16.msra.mxu0 0
    %7113 = vmatprep.subr.bf16.mxu0 0
    %7114 = vmatpush2.bf16.msra.mxu0 0
    %7115 = vmatprep.subr.bf16.mxu0 0
    %7116 = vmatpush2.bf16.msra.mxu0 0
    %7117 = vmatprep.subr.bf16.mxu0 0
    %7118 = vmatpush2.bf16.msra.mxu0 0
    %7119 = vmatprep.mubr.bf16.mxu0 0
    %7120 = vmatmul.mubr.bf16.gmra.mxu0 %v7085
    %v7121 = vpop.f32.mrf.mxu0
    %v7122 = vadd.f32 0.0, %v7121
    %v7123 = vpop.f32.mrf.mxu0
    %v7124 = vpop.f32.mrf.mxu0
    %v7125 = vpop.f32.mrf.mxu0
    %7126 = vdwg.mxu0
    %v7127 = vpack.c.bf16 %v7122, %v7122
    %s7128 = scalar_lea.vmem [#allocation19], 48
    %v7129 = vld [vmem:[%s7128] sm:$0xf]
    %v7130 = vld [vmem:[%s7128 + $0x4] sm:$0xf]
    %v7131 = vld [vmem:[%s7128 + $0x8] sm:$0xf]
    %v7132 = vld [vmem:[%s7128 + $0xc] sm:$0xf]
    %v7137 = vunpack.c.l.b16 %v7129
    %v7138 = vunpack.c.l.b16 %v7130
    %v7139 = vunpack.c.l.b16 %v7131
    %v7140 = vunpack.c.l.b16 %v7132
    %v7141 = vpack.c.b16 %v7138, %v7137
    %v7142 = vpack.c.b16 %v7140, %v7139
    %v7146 = vsel %vm6765, %v7127, 0
    %7148 = vmatprep.subr.bf16.mxu0 0
    %7149 = vmatpush1.bf16.msra.mxu0 0
    %7150 = vmatprep.subr.bf16.mxu0 0
    %7151 = vmatpush1.bf16.msra.mxu0 0
    %7152 = vmatprep.subr.bf16.mxu0 0
    %7153 = vmatpush1.bf16.msra.mxu0 0
    %7154 = vmatprep.subr.bf16.mxu0 0
    %7155 = vmatpush1.bf16.msra.mxu0 0
    %7156 = vmatprep.subr.bf16.mxu0 0
    %7157 = vmatpush1.bf16.msra.mxu0 0
    %7158 = vmatprep.subr.bf16.mxu0 0
    %7159 = vmatpush1.bf16.msra.mxu0 0
    %7160 = vmatprep.subr.bf16.mxu0 0
    %7161 = vmatpush1.bf16.msra.mxu0 %v7142
    %7162 = vmatprep.subr.bf16.mxu0 0
    %7163 = vmatpush1.bf16.msra.mxu0 %v7141
    %7164 = vmatprep.subr.bf16.mxu0 0
    %7165 = vmatpush2.bf16.msra.mxu0 0
    %7166 = vmatprep.subr.bf16.mxu0 0
    %7167 = vmatpush2.bf16.msra.mxu0 0
    %7168 = vmatprep.subr.bf16.mxu0 0
    %7169 = vmatpush2.bf16.msra.mxu0 0
    %7170 = vmatprep.subr.bf16.mxu0 0
    %7171 = vmatpush2.bf16.msra.mxu0 0
    %7172 = vmatprep.subr.bf16.mxu0 0
    %7173 = vmatpush2.bf16.msra.mxu0 0
    %7174 = vmatprep.subr.bf16.mxu0 0
    %7175 = vmatpush2.bf16.msra.mxu0 0
    %7176 = vmatprep.subr.bf16.mxu0 0
    %7177 = vmatpush2.bf16.msra.mxu0 0
    %7178 = vmatprep.subr.bf16.mxu0 0
    %7179 = vmatpush2.bf16.msra.mxu0 0
    %7180 = vmatprep.mubr.bf16.mxu0 0
    %7181 = vmatmul.mubr.bf16.gmra.mxu0 %v7146
    %v7182 = vpop.f32.mrf.mxu0
    %v7183 = vadd.f32 0.0, %v7182
    %v7184 = vpop.f32.mrf.mxu0
    %v7185 = vpop.f32.mrf.mxu0
    %v7186 = vpop.f32.mrf.mxu0
    %7187 = vdwg.mxu0
    %v7188 = vadd.f32 %v7081, %v7183
    %s7189 = scalar_lea.vmem [#allocation18], 16
    %v7190 = vld [vmem:[%s7189] sm:$0xf]
    %v7192 = vsel %vm6765, %v7190, 0
    %7194 = vmatprep.subr.bf16.mxu0 0
    %7195 = vmatpush1.bf16.msra.mxu0 0
    %7196 = vmatprep.subr.bf16.mxu0 0
    %7197 = vmatpush1.bf16.msra.mxu0 0
    %7198 = vmatprep.subr.bf16.mxu0 0
    %7199 = vmatpush1.bf16.msra.mxu0 0
    %7200 = vmatprep.subr.bf16.mxu0 0
    %7201 = vmatpush1.bf16.msra.mxu0 0
    %7202 = vmatprep.subr.bf16.mxu0 0
    %7203 = vmatpush1.bf16.msra.mxu0 0
    %7204 = vmatprep.subr.bf16.mxu0 0
    %7205 = vmatpush1.bf16.msra.mxu0 0
    %7206 = vmatprep.subr.bf16.mxu0 0
    %7207 = vmatpush1.bf16.msra.mxu0 %v6763
    %7208 = vmatprep.subr.bf16.mxu0 0
    %7209 = vmatpush1.bf16.msra.mxu0 %v6762
    %7210 = vmatprep.subr.bf16.mxu0 0
    %7211 = vmatpush2.bf16.msra.mxu0 0
    %7212 = vmatprep.subr.bf16.mxu0 0
    %7213 = vmatpush2.bf16.msra.mxu0 0
    %7214 = vmatprep.subr.bf16.mxu0 0
    %7215 = vmatpush2.bf16.msra.mxu0 0
    %7216 = vmatprep.subr.bf16.mxu0 0
    %7217 = vmatpush2.bf16.msra.mxu0 0
    %7218 = vmatprep.subr.bf16.mxu0 0
    %7219 = vmatpush2.bf16.msra.mxu0 0
    %7220 = vmatprep.subr.bf16.mxu0 0
    %7221 = vmatpush2.bf16.msra.mxu0 0
    %7222 = vmatprep.subr.bf16.mxu0 0
    %7223 = vmatpush2.bf16.msra.mxu0 0
    %7224 = vmatprep.subr.bf16.mxu0 0
    %7225 = vmatpush2.bf16.msra.mxu0 0
    %7226 = vmatprep.mubr.bf16.mxu0 0
    %7227 = vmatmul.mubr.bf16.gmra.mxu0 %v7192
    %v7228 = vpop.f32.mrf.mxu0
    %v7229 = vadd.f32 0.0, %v7228
    %v7230 = vpop.f32.mrf.mxu0
    %v7231 = vpop.f32.mrf.mxu0
    %v7232 = vpop.f32.mrf.mxu0
    %7233 = vdwg.mxu0
    %v7234 = vpack.c.bf16 %v7229, %v7229
    %s7235 = scalar_lea.vmem [#allocation19], 64
    %v7236 = vld [vmem:[%s7235] sm:$0xf]
    %v7237 = vld [vmem:[%s7235 + $0x4] sm:$0xf]
    %v7238 = vld [vmem:[%s7235 + $0x8] sm:$0xf]
    %v7239 = vld [vmem:[%s7235 + $0xc] sm:$0xf]
    %v7244 = vunpack.c.l.b16 %v7236
    %v7245 = vunpack.c.l.b16 %v7237
    %v7246 = vunpack.c.l.b16 %v7238
    %v7247 = vunpack.c.l.b16 %v7239
    %v7248 = vpack.c.b16 %v7245, %v7244
    %v7249 = vpack.c.b16 %v7247, %v7246
    %v7253 = vsel %vm6765, %v7234, 0
    %7255 = vmatprep.subr.bf16.mxu0 0
    %7256 = vmatpush1.bf16.msra.mxu0 0
    %7257 = vmatprep.subr.bf16.mxu0 0
    %7258 = vmatpush1.bf16.msra.mxu0 0
    %7259 = vmatprep.subr.bf16.mxu0 0
    %7260 = vmatpush1.bf16.msra.mxu0 0
    %7261 = vmatprep.subr.bf16.mxu0 0
    %7262 = vmatpush1.bf16.msra.mxu0 0
    %7263 = vmatprep.subr.bf16.mxu0 0
    %7264 = vmatpush1.bf16.msra.mxu0 0
    %7265 = vmatprep.subr.bf16.mxu0 0
    %7266 = vmatpush1.bf16.msra.mxu0 0
    %7267 = vmatprep.subr.bf16.mxu0 0
    %7268 = vmatpush1.bf16.msra.mxu0 %v7249
    %7269 = vmatprep.subr.bf16.mxu0 0
    %7270 = vmatpush1.bf16.msra.mxu0 %v7248
    %7271 = vmatprep.subr.bf16.mxu0 0
    %7272 = vmatpush2.bf16.msra.mxu0 0
    %7273 = vmatprep.subr.bf16.mxu0 0
    %7274 = vmatpush2.bf16.msra.mxu0 0
    %7275 = vmatprep.subr.bf16.mxu0 0
    %7276 = vmatpush2.bf16.msra.mxu0 0
    %7277 = vmatprep.subr.bf16.mxu0 0
    %7278 = vmatpush2.bf16.msra.mxu0 0
    %7279 = vmatprep.subr.bf16.mxu0 0
    %7280 = vmatpush2.bf16.msra.mxu0 0
    %7281 = vmatprep.subr.bf16.mxu0 0
    %7282 = vmatpush2.bf16.msra.mxu0 0
    %7283 = vmatprep.subr.bf16.mxu0 0
    %7284 = vmatpush2.bf16.msra.mxu0 0
    %7285 = vmatprep.subr.bf16.mxu0 0
    %7286 = vmatpush2.bf16.msra.mxu0 0
    %7287 = vmatprep.mubr.bf16.mxu0 0
    %7288 = vmatmul.mubr.bf16.gmra.mxu0 %v7253
    %v7289 = vpop.f32.mrf.mxu0
    %v7290 = vadd.f32 0.0, %v7289
    %v7291 = vpop.f32.mrf.mxu0
    %v7292 = vpop.f32.mrf.mxu0
    %v7293 = vpop.f32.mrf.mxu0
    %7294 = vdwg.mxu0
    %v7295 = vadd.f32 %v7188, %v7290
    %s7296 = scalar_lea.vmem [#allocation18], 20
    %v7297 = vld [vmem:[%s7296] sm:$0xf]
    %v7299 = vsel %vm6765, %v7297, 0
    %7301 = vmatprep.subr.bf16.mxu0 0
    %7302 = vmatpush1.bf16.msra.mxu0 0
    %7303 = vmatprep.subr.bf16.mxu0 0
    %7304 = vmatpush1.bf16.msra.mxu0 0
    %7305 = vmatprep.subr.bf16.mxu0 0
    %7306 = vmatpush1.bf16.msra.mxu0 0
    %7307 = vmatprep.subr.bf16.mxu0 0
    %7308 = vmatpush1.bf16.msra.mxu0 0
    %7309 = vmatprep.subr.bf16.mxu0 0
    %7310 = vmatpush1.bf16.msra.mxu0 0
    %7311 = vmatprep.subr.bf16.mxu0 0
    %7312 = vmatpush1.bf16.msra.mxu0 0
    %7313 = vmatprep.subr.bf16.mxu0 0
    %7314 = vmatpush1.bf16.msra.mxu0 %v6763
    %7315 = vmatprep.subr.bf16.mxu0 0
    %7316 = vmatpush1.bf16.msra.mxu0 %v6762
    %7317 = vmatprep.subr.bf16.mxu0 0
    %7318 = vmatpush2.bf16.msra.mxu0 0
    %7319 = vmatprep.subr.bf16.mxu0 0
    %7320 = vmatpush2.bf16.msra.mxu0 0
    %7321 = vmatprep.subr.bf16.mxu0 0
    %7322 = vmatpush2.bf16.msra.mxu0 0
    %7323 = vmatprep.subr.bf16.mxu0 0
    %7324 = vmatpush2.bf16.msra.mxu0 0
    %7325 = vmatprep.subr.bf16.mxu0 0
    %7326 = vmatpush2.bf16.msra.mxu0 0
    %7327 = vmatprep.subr.bf16.mxu0 0
    %7328 = vmatpush2.bf16.msra.mxu0 0
    %7329 = vmatprep.subr.bf16.mxu0 0
    %7330 = vmatpush2.bf16.msra.mxu0 0
    %7331 = vmatprep.subr.bf16.mxu0 0
    %7332 = vmatpush2.bf16.msra.mxu0 0
    %7333 = vmatprep.mubr.bf16.mxu0 0
    %7334 = vmatmul.mubr.bf16.gmra.mxu0 %v7299
    %v7335 = vpop.f32.mrf.mxu0
    %v7336 = vadd.f32 0.0, %v7335
    %v7337 = vpop.f32.mrf.mxu0
    %v7338 = vpop.f32.mrf.mxu0
    %v7339 = vpop.f32.mrf.mxu0
    %7340 = vdwg.mxu0
    %v7341 = vpack.c.bf16 %v7336, %v7336
    %s7342 = scalar_lea.vmem [#allocation19], 80
    %v7343 = vld [vmem:[%s7342] sm:$0xf]
    %v7344 = vld [vmem:[%s7342 + $0x4] sm:$0xf]
    %v7345 = vld [vmem:[%s7342 + $0x8] sm:$0xf]
    %v7346 = vld [vmem:[%s7342 + $0xc] sm:$0xf]
    %v7351 = vunpack.c.l.b16 %v7343
    %v7352 = vunpack.c.l.b16 %v7344
    %v7353 = vunpack.c.l.b16 %v7345
    %v7354 = vunpack.c.l.b16 %v7346
    %v7355 = vpack.c.b16 %v7352, %v7351
    %v7356 = vpack.c.b16 %v7354, %v7353
    %v7360 = vsel %vm6765, %v7341, 0
    %7362 = vmatprep.subr.bf16.mxu0 0
    %7363 = vmatpush1.bf16.msra.mxu0 0
    %7364 = vmatprep.subr.bf16.mxu0 0
    %7365 = vmatpush1.bf16.msra.mxu0 0
    %7366 = vmatprep.subr.bf16.mxu0 0
    %7367 = vmatpush1.bf16.msra.mxu0 0
    %7368 = vmatprep.subr.bf16.mxu0 0
    %7369 = vmatpush1.bf16.msra.mxu0 0
    %7370 = vmatprep.subr.bf16.mxu0 0
    %7371 = vmatpush1.bf16.msra.mxu0 0
    %7372 = vmatprep.subr.bf16.mxu0 0
    %7373 = vmatpush1.bf16.msra.mxu0 0
    %7374 = vmatprep.subr.bf16.mxu0 0
    %7375 = vmatpush1.bf16.msra.mxu0 %v7356
    %7376 = vmatprep.subr.bf16.mxu0 0
    %7377 = vmatpush1.bf16.msra.mxu0 %v7355
    %7378 = vmatprep.subr.bf16.mxu0 0
    %7379 = vmatpush2.bf16.msra.mxu0 0
    %7380 = vmatprep.subr.bf16.mxu0 0
    %7381 = vmatpush2.bf16.msra.mxu0 0
    %7382 = vmatprep.subr.bf16.mxu0 0
    %7383 = vmatpush2.bf16.msra.mxu0 0
    %7384 = vmatprep.subr.bf16.mxu0 0
    %7385 = vmatpush2.bf16.msra.mxu0 0
    %7386 = vmatprep.subr.bf16.mxu0 0
    %7387 = vmatpush2.bf16.msra.mxu0 0
    %7388 = vmatprep.subr.bf16.mxu0 0
    %7389 = vmatpush2.bf16.msra.mxu0 0
    %7390 = vmatprep.subr.bf16.mxu0 0
    %7391 = vmatpush2.bf16.msra.mxu0 0
    %7392 = vmatprep.subr.bf16.mxu0 0
    %7393 = vmatpush2.bf16.msra.mxu0 0
    %7394 = vmatprep.mubr.bf16.mxu0 0
    %7395 = vmatmul.mubr.bf16.gmra.mxu0 %v7360
    %v7396 = vpop.f32.mrf.mxu0
    %v7397 = vadd.f32 0.0, %v7396
    %v7398 = vpop.f32.mrf.mxu0
    %v7399 = vpop.f32.mrf.mxu0
    %v7400 = vpop.f32.mrf.mxu0
    %7401 = vdwg.mxu0
    %v7402 = vadd.f32 %v7295, %v7397
    %s7403 = scalar_lea.vmem [#allocation18], 24
    %v7404 = vld [vmem:[%s7403] sm:$0xf]
    %v7406 = vsel %vm6765, %v7404, 0
    %7408 = vmatprep.subr.bf16.mxu0 0
    %7409 = vmatpush1.bf16.msra.mxu0 0
    %7410 = vmatprep.subr.bf16.mxu0 0
    %7411 = vmatpush1.bf16.msra.mxu0 0
    %7412 = vmatprep.subr.bf16.mxu0 0
    %7413 = vmatpush1.bf16.msra.mxu0 0
    %7414 = vmatprep.subr.bf16.mxu0 0
    %7415 = vmatpush1.bf16.msra.mxu0 0
    %7416 = vmatprep.subr.bf16.mxu0 0
    %7417 = vmatpush1.bf16.msra.mxu0 0
    %7418 = vmatprep.subr.bf16.mxu0 0
    %7419 = vmatpush1.bf16.msra.mxu0 0
    %7420 = vmatprep.subr.bf16.mxu0 0
    %7421 = vmatpush1.bf16.msra.mxu0 %v6763
    %7422 = vmatprep.subr.bf16.mxu0 0
    %7423 = vmatpush1.bf16.msra.mxu0 %v6762
    %7424 = vmatprep.subr.bf16.mxu0 0
    %7425 = vmatpush2.bf16.msra.mxu0 0
    %7426 = vmatprep.subr.bf16.mxu0 0
    %7427 = vmatpush2.bf16.msra.mxu0 0
    %7428 = vmatprep.subr.bf16.mxu0 0
    %7429 = vmatpush2.bf16.msra.mxu0 0
    %7430 = vmatprep.subr.bf16.mxu0 0
    %7431 = vmatpush2.bf16.msra.mxu0 0
    %7432 = vmatprep.subr.bf16.mxu0 0
    %7433 = vmatpush2.bf16.msra.mxu0 0
    %7434 = vmatprep.subr.bf16.mxu0 0
    %7435 = vmatpush2.bf16.msra.mxu0 0
    %7436 = vmatprep.subr.bf16.mxu0 0
    %7437 = vmatpush2.bf16.msra.mxu0 0
    %7438 = vmatprep.subr.bf16.mxu0 0
    %7439 = vmatpush2.bf16.msra.mxu0 0
    %7440 = vmatprep.mubr.bf16.mxu0 0
    %7441 = vmatmul.mubr.bf16.gmra.mxu0 %v7406
    %v7442 = vpop.f32.mrf.mxu0
    %v7443 = vadd.f32 0.0, %v7442
    %v7444 = vpop.f32.mrf.mxu0
    %v7445 = vpop.f32.mrf.mxu0
    %v7446 = vpop.f32.mrf.mxu0
    %7447 = vdwg.mxu0
    %v7448 = vpack.c.bf16 %v7443, %v7443
    %s7449 = scalar_lea.vmem [#allocation19], 96
    %v7450 = vld [vmem:[%s7449] sm:$0xf]
    %v7451 = vld [vmem:[%s7449 + $0x4] sm:$0xf]
    %v7452 = vld [vmem:[%s7449 + $0x8] sm:$0xf]
    %v7453 = vld [vmem:[%s7449 + $0xc] sm:$0xf]
    %v7458 = vunpack.c.l.b16 %v7450
    %v7459 = vunpack.c.l.b16 %v7451
    %v7460 = vunpack.c.l.b16 %v7452
    %v7461 = vunpack.c.l.b16 %v7453
    %v7462 = vpack.c.b16 %v7459, %v7458
    %v7463 = vpack.c.b16 %v7461, %v7460
    %v7467 = vsel %vm6765, %v7448, 0
    %7469 = vmatprep.subr.bf16.mxu0 0
    %7470 = vmatpush1.bf16.msra.mxu0 0
    %7471 = vmatprep.subr.bf16.mxu0 0
    %7472 = vmatpush1.bf16.msra.mxu0 0
    %7473 = vmatprep.subr.bf16.mxu0 0
    %7474 = vmatpush1.bf16.msra.mxu0 0
    %7475 = vmatprep.subr.bf16.mxu0 0
    %7476 = vmatpush1.bf16.msra.mxu0 0
    %7477 = vmatprep.subr.bf16.mxu0 0
    %7478 = vmatpush1.bf16.msra.mxu0 0
    %7479 = vmatprep.subr.bf16.mxu0 0
    %7480 = vmatpush1.bf16.msra.mxu0 0
    %7481 = vmatprep.subr.bf16.mxu0 0
    %7482 = vmatpush1.bf16.msra.mxu0 %v7463
    %7483 = vmatprep.subr.bf16.mxu0 0
    %7484 = vmatpush1.bf16.msra.mxu0 %v7462
    %7485 = vmatprep.subr.bf16.mxu0 0
    %7486 = vmatpush2.bf16.msra.mxu0 0
    %7487 = vmatprep.subr.bf16.mxu0 0
    %7488 = vmatpush2.bf16.msra.mxu0 0
    %7489 = vmatprep.subr.bf16.mxu0 0
    %7490 = vmatpush2.bf16.msra.mxu0 0
    %7491 = vmatprep.subr.bf16.mxu0 0
    %7492 = vmatpush2.bf16.msra.mxu0 0
    %7493 = vmatprep.subr.bf16.mxu0 0
    %7494 = vmatpush2.bf16.msra.mxu0 0
    %7495 = vmatprep.subr.bf16.mxu0 0
    %7496 = vmatpush2.bf16.msra.mxu0 0
    %7497 = vmatprep.subr.bf16.mxu0 0
    %7498 = vmatpush2.bf16.msra.mxu0 0
    %7499 = vmatprep.subr.bf16.mxu0 0
    %7500 = vmatpush2.bf16.msra.mxu0 0
    %7501 = vmatprep.mubr.bf16.mxu0 0
    %7502 = vmatmul.mubr.bf16.gmra.mxu0 %v7467
    %v7503 = vpop.f32.mrf.mxu0
    %v7504 = vadd.f32 0.0, %v7503
    %v7505 = vpop.f32.mrf.mxu0
    %v7506 = vpop.f32.mrf.mxu0
    %v7507 = vpop.f32.mrf.mxu0
    %7508 = vdwg.mxu0
    %v7509 = vadd.f32 %v7402, %v7504
    %s7510 = scalar_lea.vmem [#allocation18], 28
    %v7511 = vld [vmem:[%s7510] sm:$0xf]
    %v7513 = vsel %vm6765, %v7511, 0
    %7515 = vmatprep.subr.bf16.mxu0 0
    %7516 = vmatpush1.bf16.msra.mxu0 0
    %7517 = vmatprep.subr.bf16.mxu0 0
    %7518 = vmatpush1.bf16.msra.mxu0 0
    %7519 = vmatprep.subr.bf16.mxu0 0
    %7520 = vmatpush1.bf16.msra.mxu0 0
    %7521 = vmatprep.subr.bf16.mxu0 0
    %7522 = vmatpush1.bf16.msra.mxu0 0
    %7523 = vmatprep.subr.bf16.mxu0 0
    %7524 = vmatpush1.bf16.msra.mxu0 0
    %7525 = vmatprep.subr.bf16.mxu0 0
    %7526 = vmatpush1.bf16.msra.mxu0 0
    %7527 = vmatprep.subr.bf16.mxu0 0
    %7528 = vmatpush1.bf16.msra.mxu0 %v6763
    %7529 = vmatprep.subr.bf16.mxu0 0
    %7530 = vmatpush1.bf16.msra.mxu0 %v6762
    %7531 = vmatprep.subr.bf16.mxu0 0
    %7532 = vmatpush2.bf16.msra.mxu0 0
    %7533 = vmatprep.subr.bf16.mxu0 0
    %7534 = vmatpush2.bf16.msra.mxu0 0
    %7535 = vmatprep.subr.bf16.mxu0 0
    %7536 = vmatpush2.bf16.msra.mxu0 0
    %7537 = vmatprep.subr.bf16.mxu0 0
    %7538 = vmatpush2.bf16.msra.mxu0 0
    %7539 = vmatprep.subr.bf16.mxu0 0
    %7540 = vmatpush2.bf16.msra.mxu0 0
    %7541 = vmatprep.subr.bf16.mxu0 0
    %7542 = vmatpush2.bf16.msra.mxu0 0
    %7543 = vmatprep.subr.bf16.mxu0 0
    %7544 = vmatpush2.bf16.msra.mxu0 0
    %7545 = vmatprep.subr.bf16.mxu0 0
    %7546 = vmatpush2.bf16.msra.mxu0 0
    %7547 = vmatprep.mubr.bf16.mxu0 0
    %7548 = vmatmul.mubr.bf16.gmra.mxu0 %v7513
    %v7549 = vpop.f32.mrf.mxu0
    %v7550 = vadd.f32 0.0, %v7549
    %v7551 = vpop.f32.mrf.mxu0
    %v7552 = vpop.f32.mrf.mxu0
    %v7553 = vpop.f32.mrf.mxu0
    %7554 = vdwg.mxu0
    %v7555 = vpack.c.bf16 %v7550, %v7550
    %s7556 = scalar_lea.vmem [#allocation19], 112
    %v7557 = vld [vmem:[%s7556] sm:$0xf]
    %v7558 = vld [vmem:[%s7556 + $0x4] sm:$0xf]
    %v7559 = vld [vmem:[%s7556 + $0x8] sm:$0xf]
    %v7560 = vld [vmem:[%s7556 + $0xc] sm:$0xf]
    %v7565 = vunpack.c.l.b16 %v7557
    %v7566 = vunpack.c.l.b16 %v7558
    %v7567 = vunpack.c.l.b16 %v7559
    %v7568 = vunpack.c.l.b16 %v7560
    %v7569 = vpack.c.b16 %v7566, %v7565
    %v7570 = vpack.c.b16 %v7568, %v7567
    %v7574 = vsel %vm6765, %v7555, 0
    %7576 = vmatprep.subr.bf16.mxu0 0
    %7577 = vmatpush1.bf16.msra.mxu0 0
    %7578 = vmatprep.subr.bf16.mxu0 0
    %7579 = vmatpush1.bf16.msra.mxu0 0
    %7580 = vmatprep.subr.bf16.mxu0 0
    %7581 = vmatpush1.bf16.msra.mxu0 0
    %7582 = vmatprep.subr.bf16.mxu0 0
    %7583 = vmatpush1.bf16.msra.mxu0 0
    %7584 = vmatprep.subr.bf16.mxu0 0
    %7585 = vmatpush1.bf16.msra.mxu0 0
    %7586 = vmatprep.subr.bf16.mxu0 0
    %7587 = vmatpush1.bf16.msra.mxu0 0
    %7588 = vmatprep.subr.bf16.mxu0 0
    %7589 = vmatpush1.bf16.msra.mxu0 %v7570
    %7590 = vmatprep.subr.bf16.mxu0 0
    %7591 = vmatpush1.bf16.msra.mxu0 %v7569
    %7592 = vmatprep.subr.bf16.mxu0 0
    %7593 = vmatpush2.bf16.msra.mxu0 0
    %7594 = vmatprep.subr.bf16.mxu0 0
    %7595 = vmatpush2.bf16.msra.mxu0 0
    %7596 = vmatprep.subr.bf16.mxu0 0
    %7597 = vmatpush2.bf16.msra.mxu0 0
    %7598 = vmatprep.subr.bf16.mxu0 0
    %7599 = vmatpush2.bf16.msra.mxu0 0
    %7600 = vmatprep.subr.bf16.mxu0 0
    %7601 = vmatpush2.bf16.msra.mxu0 0
    %7602 = vmatprep.subr.bf16.mxu0 0
    %7603 = vmatpush2.bf16.msra.mxu0 0
    %7604 = vmatprep.subr.bf16.mxu0 0
    %7605 = vmatpush2.bf16.msra.mxu0 0
    %7606 = vmatprep.subr.bf16.mxu0 0
    %7607 = vmatpush2.bf16.msra.mxu0 0
    %7608 = vmatprep.mubr.bf16.mxu0 0
    %7609 = vmatmul.mubr.bf16.gmra.mxu0 %v7574
    %v7610 = vpop.f32.mrf.mxu0
    %v7611 = vadd.f32 0.0, %v7610
    %v7612 = vpop.f32.mrf.mxu0
    %v7613 = vpop.f32.mrf.mxu0
    %v7614 = vpop.f32.mrf.mxu0
    %7615 = vdwg.mxu0
    %v7616 = vadd.f32 %v7509, %v7611
    %s7617 = scalar_lea.vmem [#allocation18], 32
    %v7618 = vld [vmem:[%s7617] sm:$0xf]
    %v7620 = vsel %vm6765, %v7618, 0
    %7622 = vmatprep.subr.bf16.mxu0 0
    %7623 = vmatpush1.bf16.msra.mxu0 0
    %7624 = vmatprep.subr.bf16.mxu0 0
    %7625 = vmatpush1.bf16.msra.mxu0 0
    %7626 = vmatprep.subr.bf16.mxu0 0
    %7627 = vmatpush1.bf16.msra.mxu0 0
    %7628 = vmatprep.subr.bf16.mxu0 0
    %7629 = vmatpush1.bf16.msra.mxu0 0
    %7630 = vmatprep.subr.bf16.mxu0 0
    %7631 = vmatpush1.bf16.msra.mxu0 0
    %7632 = vmatprep.subr.bf16.mxu0 0
    %7633 = vmatpush1.bf16.msra.mxu0 0
    %7634 = vmatprep.subr.bf16.mxu0 0
    %7635 = vmatpush1.bf16.msra.mxu0 %v6763
    %7636 = vmatprep.subr.bf16.mxu0 0
    %7637 = vmatpush1.bf16.msra.mxu0 %v6762
    %7638 = vmatprep.subr.bf16.mxu0 0
    %7639 = vmatpush2.bf16.msra.mxu0 0
    %7640 = vmatprep.subr.bf16.mxu0 0
    %7641 = vmatpush2.bf16.msra.mxu0 0
    %7642 = vmatprep.subr.bf16.mxu0 0
    %7643 = vmatpush2.bf16.msra.mxu0 0
    %7644 = vmatprep.subr.bf16.mxu0 0
    %7645 = vmatpush2.bf16.msra.mxu0 0
    %7646 = vmatprep.subr.bf16.mxu0 0
    %7647 = vmatpush2.bf16.msra.mxu0 0
    %7648 = vmatprep.subr.bf16.mxu0 0
    %7649 = vmatpush2.bf16.msra.mxu0 0
    %7650 = vmatprep.subr.bf16.mxu0 0
    %7651 = vmatpush2.bf16.msra.mxu0 0
    %7652 = vmatprep.subr.bf16.mxu0 0
    %7653 = vmatpush2.bf16.msra.mxu0 0
    %7654 = vmatprep.mubr.bf16.mxu0 0
    %7655 = vmatmul.mubr.bf16.gmra.mxu0 %v7620
    %v7656 = vpop.f32.mrf.mxu0
    %v7657 = vadd.f32 0.0, %v7656
    %v7658 = vpop.f32.mrf.mxu0
    %v7659 = vpop.f32.mrf.mxu0
    %v7660 = vpop.f32.mrf.mxu0
    %7661 = vdwg.mxu0
    %v7662 = vpack.c.bf16 %v7657, %v7657
    %s7663 = scalar_lea.vmem [#allocation19], 128
    %v7664 = vld [vmem:[%s7663] sm:$0xf]
    %v7665 = vld [vmem:[%s7663 + $0x4] sm:$0xf]
    %v7666 = vld [vmem:[%s7663 + $0x8] sm:$0xf]
    %v7667 = vld [vmem:[%s7663 + $0xc] sm:$0xf]
    %v7672 = vunpack.c.l.b16 %v7664
    %v7673 = vunpack.c.l.b16 %v7665
    %v7674 = vunpack.c.l.b16 %v7666
    %v7675 = vunpack.c.l.b16 %v7667
    %v7676 = vpack.c.b16 %v7673, %v7672
    %v7677 = vpack.c.b16 %v7675, %v7674
    %v7681 = vsel %vm6765, %v7662, 0
    %7683 = vmatprep.subr.bf16.mxu0 0
    %7684 = vmatpush1.bf16.msra.mxu0 0
    %7685 = vmatprep.subr.bf16.mxu0 0
    %7686 = vmatpush1.bf16.msra.mxu0 0
    %7687 = vmatprep.subr.bf16.mxu0 0
    %7688 = vmatpush1.bf16.msra.mxu0 0
    %7689 = vmatprep.subr.bf16.mxu0 0
    %7690 = vmatpush1.bf16.msra.mxu0 0
    %7691 = vmatprep.subr.bf16.mxu0 0
    %7692 = vmatpush1.bf16.msra.mxu0 0
    %7693 = vmatprep.subr.bf16.mxu0 0
    %7694 = vmatpush1.bf16.msra.mxu0 0
    %7695 = vmatprep.subr.bf16.mxu0 0
    %7696 = vmatpush1.bf16.msra.mxu0 %v7677
    %7697 = vmatprep.subr.bf16.mxu0 0
    %7698 = vmatpush1.bf16.msra.mxu0 %v7676
    %7699 = vmatprep.subr.bf16.mxu0 0
    %7700 = vmatpush2.bf16.msra.mxu0 0
    %7701 = vmatprep.subr.bf16.mxu0 0
    %7702 = vmatpush2.bf16.msra.mxu0 0
    %7703 = vmatprep.subr.bf16.mxu0 0
    %7704 = vmatpush2.bf16.msra.mxu0 0
    %7705 = vmatprep.subr.bf16.mxu0 0
    %7706 = vmatpush2.bf16.msra.mxu0 0
    %7707 = vmatprep.subr.bf16.mxu0 0
    %7708 = vmatpush2.bf16.msra.mxu0 0
    %7709 = vmatprep.subr.bf16.mxu0 0
    %7710 = vmatpush2.bf16.msra.mxu0 0
    %7711 = vmatprep.subr.bf16.mxu0 0
    %7712 = vmatpush2.bf16.msra.mxu0 0
    %7713 = vmatprep.subr.bf16.mxu0 0
    %7714 = vmatpush2.bf16.msra.mxu0 0
    %7715 = vmatprep.mubr.bf16.mxu0 0
    %7716 = vmatmul.mubr.bf16.gmra.mxu0 %v7681
    %v7717 = vpop.f32.mrf.mxu0
    %v7718 = vadd.f32 0.0, %v7717
    %v7719 = vpop.f32.mrf.mxu0
    %v7720 = vpop.f32.mrf.mxu0
    %v7721 = vpop.f32.mrf.mxu0
    %7722 = vdwg.mxu0
    %v7723 = vadd.f32 %v7616, %v7718
    %v7724 = vld [vmem:[#allocation21] sm:$0x1]
    %v7726 = vlaneseq
    %v7727 = vshrl.u32 %v7726, 7
    %v7728 = vsub.s32 0, %v7727
    %v7729 = vrot.slane %v7724, %v7728
    %v7731 = vadd.f32 %v7723, %v7729
    %vm7732 = vcmp.gt.f32.partialorder %v7731, 0.0
    %v7733 = vmul.f32 %v7731, 0.2
    %v7734 = vsel %vm7732, %v7731, %v7733
    %v7735 = vld [vmem:[#allocation22] sm:$0x1]
    %v7737 = vlaneseq
    %v7738 = vshrl.u32 %v7737, 7
    %v7739 = vsub.s32 0, %v7738
    %v7740 = vrot.slane %v7735, %v7739
    %v7742 = vmul.f32 %v7734, %v7740
    %v7743 = vld [vmem:[#allocation24] sm:$0x1]
    %v7745 = vlaneseq
    %v7746 = vshrl.u32 %v7745, 7
    %v7747 = vsub.s32 0, %v7746
    %v7748 = vrot.slane %v7743, %v7747
    %v7750 = vadd.f32 %v7742, %v7748
    %v7751 = vpack.c.bf16 %v7750, %v7750
    %v7752 = vld [vmem:[%s16] sm:$0x1]
    %vm7753 = vcmask 64512
    %v7755 = vsel %vm7753, %v7752, 0
    %vm7757 = vcmask 1043456
    %v7759 = vsel %vm7757, %v7751, 0
    %7761 = vmatprep.subr.bf16.mxu0 0
    %7762 = vmatpush1.bf16.msra.mxu0 0
    %7763 = vmatprep.subr.bf16.mxu0 0
    %7764 = vmatpush1.bf16.msra.mxu0 0
    %7765 = vmatprep.subr.bf16.mxu0 0
    %7766 = vmatpush1.bf16.msra.mxu0 0
    %7767 = vmatprep.subr.bf16.mxu0 0
    %7768 = vmatpush1.bf16.msra.mxu0 0
    %7769 = vmatprep.subr.bf16.mxu0 0
    %7770 = vmatpush1.bf16.msra.mxu0 0
    %7771 = vmatprep.subr.bf16.mxu0 0
    %7772 = vmatpush1.bf16.msra.mxu0 0
    %7773 = vmatprep.subr.bf16.mxu0 0
    %7774 = vmatpush1.bf16.msra.mxu0 0
    %7775 = vmatprep.subr.bf16.mxu0 0
    %7776 = vmatpush1.bf16.msra.mxu0 %v7759
    %7777 = vmatprep.subr.bf16.mxu0 0
    %7778 = vmatpush2.bf16.msra.mxu0 0
    %7779 = vmatprep.subr.bf16.mxu0 0
    %7780 = vmatpush2.bf16.msra.mxu0 0
    %7781 = vmatprep.subr.bf16.mxu0 0
    %7782 = vmatpush2.bf16.msra.mxu0 0
    %7783 = vmatprep.subr.bf16.mxu0 0
    %7784 = vmatpush2.bf16.msra.mxu0 0
    %7785 = vmatprep.subr.bf16.mxu0 0
    %7786 = vmatpush2.bf16.msra.mxu0 0
    %7787 = vmatprep.subr.bf16.mxu0 0
    %7788 = vmatpush2.bf16.msra.mxu0 0
    %7789 = vmatprep.subr.bf16.mxu0 0
    %7790 = vmatpush2.bf16.msra.mxu0 0
    %7791 = vmatprep.subr.bf16.mxu0 0
    %7792 = vmatpush2.bf16.msra.mxu0 0
    %7793 = vmatprep.mubr.bf16.mxu0 0
    %7794 = vmatmul.mubr.bf16.gmra.mxu0 %v7755
    %v7795 = vpop.f32.mrf.mxu0
    %v7796 = vadd.f32 0.0, %v7795
    %v7797 = vpop.f32.mrf.mxu0
    %v7798 = vpop.f32.mrf.mxu0
    %v7799 = vpop.f32.mrf.mxu0
    %7800 = vdwg.mxu0
    %v7801 = vpack.c.bf16 %v7796, %v7796
    %v7802 = vld [vmem:[#allocation25] sm:$0xf]
    %v7803 = vld [vmem:[#allocation25 + $0x4] sm:$0xf]
    %v7804 = vld [vmem:[#allocation25 + $0x8] sm:$0xf]
    %v7805 = vld [vmem:[#allocation25 + $0xc] sm:$0xf]
    %v7806 = vld [vmem:[#allocation25 + $0x10] sm:$0xf]
    %v7807 = vld [vmem:[#allocation25 + $0x14] sm:$0xf]
    %v7808 = vld [vmem:[#allocation25 + $0x18] sm:$0xf]
    %v7809 = vld [vmem:[#allocation25 + $0x1c] sm:$0xf]
    %s7810 = scalar_lea.vmem %s16, 1
    %v7811 = vld [vmem:[%s7810] sm:$0x1]
    %v7813 = vsel %vm7753, %v7811, 0
    %7815 = vmatprep.subr.bf16.mxu0 0
    %7816 = vmatpush1.bf16.msra.mxu0 0
    %7817 = vmatprep.subr.bf16.mxu0 0
    %7818 = vmatpush1.bf16.msra.mxu0 0
    %7819 = vmatprep.subr.bf16.mxu0 0
    %7820 = vmatpush1.bf16.msra.mxu0 0
    %7821 = vmatprep.subr.bf16.mxu0 0
    %7822 = vmatpush1.bf16.msra.mxu0 0
    %7823 = vmatprep.subr.bf16.mxu0 0
    %7824 = vmatpush1.bf16.msra.mxu0 0
    %7825 = vmatprep.subr.bf16.mxu0 0
    %7826 = vmatpush1.bf16.msra.mxu0 0
    %7827 = vmatprep.subr.bf16.mxu0 0
    %7828 = vmatpush1.bf16.msra.mxu0 0
    %7829 = vmatprep.subr.bf16.mxu0 0
    %7830 = vmatpush1.bf16.msra.mxu0 %v7759
    %7831 = vmatprep.subr.bf16.mxu0 0
    %7832 = vmatpush2.bf16.msra.mxu0 0
    %7833 = vmatprep.subr.bf16.mxu0 0
    %7834 = vmatpush2.bf16.msra.mxu0 0
    %7835 = vmatprep.subr.bf16.mxu0 0
    %7836 = vmatpush2.bf16.msra.mxu0 0
    %7837 = vmatprep.subr.bf16.mxu0 0
    %7838 = vmatpush2.bf16.msra.mxu0 0
    %7839 = vmatprep.subr.bf16.mxu0 0
    %7840 = vmatpush2.bf16.msra.mxu0 0
    %7841 = vmatprep.subr.bf16.mxu0 0
    %7842 = vmatpush2.bf16.msra.mxu0 0
    %7843 = vmatprep.subr.bf16.mxu0 0
    %7844 = vmatpush2.bf16.msra.mxu0 0
    %7845 = vmatprep.subr.bf16.mxu0 0
    %7846 = vmatpush2.bf16.msra.mxu0 0
    %7847 = vmatprep.mubr.bf16.mxu0 0
    %7848 = vmatmul.mubr.bf16.gmra.mxu0 %v7813
    %v7849 = vpop.f32.mrf.mxu0
    %v7850 = vadd.f32 0.0, %v7849
    %v7851 = vpop.f32.mrf.mxu0
    %v7852 = vpop.f32.mrf.mxu0
    %v7853 = vpop.f32.mrf.mxu0
    %7854 = vdwg.mxu0
    %v7855 = vpack.c.bf16 %v7850, %v7850
    %s7856 = scalar_lea.vmem [#allocation25], 32
    %v7857 = vld [vmem:[%s7856] sm:$0xf]
    %v7858 = vld [vmem:[%s7856 + $0x4] sm:$0xf]
    %v7859 = vld [vmem:[%s7856 + $0x8] sm:$0xf]
    %v7860 = vld [vmem:[%s7856 + $0xc] sm:$0xf]
    %v7861 = vld [vmem:[%s7856 + $0x10] sm:$0xf]
    %v7862 = vld [vmem:[%s7856 + $0x14] sm:$0xf]
    %v7863 = vld [vmem:[%s7856 + $0x18] sm:$0xf]
    %v7864 = vld [vmem:[%s7856 + $0x1c] sm:$0xf]
    %v7873 = vunpack.c.l.b16 %v7857
    %v7874 = vunpack.c.l.b16 %v7858
    %v7875 = vunpack.c.l.b16 %v7859
    %v7876 = vunpack.c.l.b16 %v7860
    %v7877 = vunpack.c.l.b16 %v7861
    %v7878 = vunpack.c.l.b16 %v7862
    %v7879 = vunpack.c.l.b16 %v7863
    %v7880 = vunpack.c.l.b16 %v7864
    %v7881 = vpack.c.b16 %v7874, %v7873
    %v7882 = vpack.c.b16 %v7876, %v7875
    %v7883 = vpack.c.b16 %v7878, %v7877
    %v7884 = vpack.c.b16 %v7880, %v7879
    %vm7889 = vcmask 523264
    %v7891 = vsel %vm7889, %v7855, 0
    %7893 = vmatprep.subr.bf16.mxu0 0
    %7894 = vmatpush1.bf16.msra.mxu0 0
    %7895 = vmatprep.subr.bf16.mxu0 0
    %7896 = vmatpush1.bf16.msra.mxu0 0
    %7897 = vmatprep.subr.bf16.mxu0 0
    %7898 = vmatpush1.bf16.msra.mxu0 0
    %7899 = vmatprep.subr.bf16.mxu0 0
    %7900 = vmatpush1.bf16.msra.mxu0 0
    %7901 = vmatprep.subr.bf16.mxu0 0
    %7902 = vmatpush1.bf16.msra.mxu0 %v7884
    %7903 = vmatprep.subr.bf16.mxu0 0
    %7904 = vmatpush1.bf16.msra.mxu0 %v7883
    %7905 = vmatprep.subr.bf16.mxu0 0
    %7906 = vmatpush1.bf16.msra.mxu0 %v7882
    %7907 = vmatprep.subr.bf16.mxu0 0
    %7908 = vmatpush1.bf16.msra.mxu0 %v7881
    %7909 = vmatprep.subr.bf16.mxu0 0
    %7910 = vmatpush2.bf16.msra.mxu0 0
    %7911 = vmatprep.subr.bf16.mxu0 0
    %7912 = vmatpush2.bf16.msra.mxu0 0
    %7913 = vmatprep.subr.bf16.mxu0 0
    %7914 = vmatpush2.bf16.msra.mxu0 0
    %7915 = vmatprep.subr.bf16.mxu0 0
    %7916 = vmatpush2.bf16.msra.mxu0 0
    %7917 = vmatprep.subr.bf16.mxu0 0
    %7918 = vmatpush2.bf16.msra.mxu0 0
    %7919 = vmatprep.subr.bf16.mxu0 0
    %7920 = vmatpush2.bf16.msra.mxu0 0
    %7921 = vmatprep.subr.bf16.mxu0 0
    %7922 = vmatpush2.bf16.msra.mxu0 0
    %7923 = vmatprep.subr.bf16.mxu0 0
    %7924 = vmatpush2.bf16.msra.mxu0 0
    %7925 = vmatprep.mubr.bf16.mxu0 0
    %7926 = vmatmul.mubr.bf16.gmra.mxu0 %v7891
    %v7927 = vpop.f32.mrf.mxu0
    %v7928 = vadd.f32 0.0, %v7927
    %v7929 = vpop.f32.mrf.mxu0
    %v7930 = vpop.f32.mrf.mxu0
    %v7931 = vpop.f32.mrf.mxu0
    %7932 = vdwg.mxu0
    %v7941 = vunpack.c.l.b16 %v7802
    %v7942 = vunpack.c.l.b16 %v7803
    %v7943 = vunpack.c.l.b16 %v7804
    %v7944 = vunpack.c.l.b16 %v7805
    %v7945 = vunpack.c.l.b16 %v7806
    %v7946 = vunpack.c.l.b16 %v7807
    %v7947 = vunpack.c.l.b16 %v7808
    %v7948 = vunpack.c.l.b16 %v7809
    %v7949 = vpack.c.b16 %v7942, %v7941
    %v7950 = vpack.c.b16 %v7944, %v7943
    %v7951 = vpack.c.b16 %v7946, %v7945
    %v7952 = vpack.c.b16 %v7948, %v7947
    %v7958 = vsel %vm7889, %v7801, 0
    %7960 = vmatprep.subr.bf16.mxu0 0
    %7961 = vmatpush1.bf16.msra.mxu0 0
    %7962 = vmatprep.subr.bf16.mxu0 0
    %7963 = vmatpush1.bf16.msra.mxu0 0
    %7964 = vmatprep.subr.bf16.mxu0 0
    %7965 = vmatpush1.bf16.msra.mxu0 0
    %7966 = vmatprep.subr.bf16.mxu0 0
    %7967 = vmatpush1.bf16.msra.mxu0 0
    %7968 = vmatprep.subr.bf16.mxu0 0
    %7969 = vmatpush1.bf16.msra.mxu0 %v7952
    %7970 = vmatprep.subr.bf16.mxu0 0
    %7971 = vmatpush1.bf16.msra.mxu0 %v7951
    %7972 = vmatprep.subr.bf16.mxu0 0
    %7973 = vmatpush1.bf16.msra.mxu0 %v7950
    %7974 = vmatprep.subr.bf16.mxu0 0
    %7975 = vmatpush1.bf16.msra.mxu0 %v7949
    %7976 = vmatprep.subr.bf16.mxu0 0
    %7977 = vmatpush2.bf16.msra.mxu0 0
    %7978 = vmatprep.subr.bf16.mxu0 0
    %7979 = vmatpush2.bf16.msra.mxu0 0
    %7980 = vmatprep.subr.bf16.mxu0 0
    %7981 = vmatpush2.bf16.msra.mxu0 0
    %7982 = vmatprep.subr.bf16.mxu0 0
    %7983 = vmatpush2.bf16.msra.mxu0 0
    %7984 = vmatprep.subr.bf16.mxu0 0
    %7985 = vmatpush2.bf16.msra.mxu0 0
    %7986 = vmatprep.subr.bf16.mxu0 0
    %7987 = vmatpush2.bf16.msra.mxu0 0
    %7988 = vmatprep.subr.bf16.mxu0 0
    %7989 = vmatpush2.bf16.msra.mxu0 0
    %7990 = vmatprep.subr.bf16.mxu0 0
    %7991 = vmatpush2.bf16.msra.mxu0 0
    %7992 = vmatprep.mubr.bf16.mxu0 0
    %7993 = vmatmul.mubr.bf16.gmra.mxu0 %v7958
    %v7994 = vpop.f32.mrf.mxu0
    %v7995 = vadd.f32 %v7928, %v7994
    %v7996 = vpop.f32.mrf.mxu0
    %v7997 = vpop.f32.mrf.mxu0
    %v7998 = vpop.f32.mrf.mxu0
    %7999 = vdwg.mxu0
    %s8000 = scalar_lea.vmem %s16, 2
    %v8001 = vld [vmem:[%s8000] sm:$0x1]
    %v8003 = vsel %vm7753, %v8001, 0
    %8005 = vmatprep.subr.bf16.mxu0 0
    %8006 = vmatpush1.bf16.msra.mxu0 0
    %8007 = vmatprep.subr.bf16.mxu0 0
    %8008 = vmatpush1.bf16.msra.mxu0 0
    %8009 = vmatprep.subr.bf16.mxu0 0
    %8010 = vmatpush1.bf16.msra.mxu0 0
    %8011 = vmatprep.subr.bf16.mxu0 0
    %8012 = vmatpush1.bf16.msra.mxu0 0
    %8013 = vmatprep.subr.bf16.mxu0 0
    %8014 = vmatpush1.bf16.msra.mxu0 0
    %8015 = vmatprep.subr.bf16.mxu0 0
    %8016 = vmatpush1.bf16.msra.mxu0 0
    %8017 = vmatprep.subr.bf16.mxu0 0
    %8018 = vmatpush1.bf16.msra.mxu0 0
    %8019 = vmatprep.subr.bf16.mxu0 0
    %8020 = vmatpush1.bf16.msra.mxu0 %v7759
    %8021 = vmatprep.subr.bf16.mxu0 0
    %8022 = vmatpush2.bf16.msra.mxu0 0
    %8023 = vmatprep.subr.bf16.mxu0 0
    %8024 = vmatpush2.bf16.msra.mxu0 0
    %8025 = vmatprep.subr.bf16.mxu0 0
    %8026 = vmatpush2.bf16.msra.mxu0 0
    %8027 = vmatprep.subr.bf16.mxu0 0
    %8028 = vmatpush2.bf16.msra.mxu0 0
    %8029 = vmatprep.subr.bf16.mxu0 0
    %8030 = vmatpush2.bf16.msra.mxu0 0
    %8031 = vmatprep.subr.bf16.mxu0 0
    %8032 = vmatpush2.bf16.msra.mxu0 0
    %8033 = vmatprep.subr.bf16.mxu0 0
    %8034 = vmatpush2.bf16.msra.mxu0 0
    %8035 = vmatprep.subr.bf16.mxu0 0
    %8036 = vmatpush2.bf16.msra.mxu0 0
    %8037 = vmatprep.mubr.bf16.mxu0 0
    %8038 = vmatmul.mubr.bf16.gmra.mxu0 %v8003
    %v8039 = vpop.f32.mrf.mxu0
    %v8040 = vadd.f32 0.0, %v8039
    %v8041 = vpop.f32.mrf.mxu0
    %v8042 = vpop.f32.mrf.mxu0
    %v8043 = vpop.f32.mrf.mxu0
    %8044 = vdwg.mxu0
    %v8045 = vpack.c.bf16 %v8040, %v8040
    %s8046 = scalar_lea.vmem [#allocation25], 64
    %v8047 = vld [vmem:[%s8046] sm:$0xf]
    %v8048 = vld [vmem:[%s8046 + $0x4] sm:$0xf]
    %v8049 = vld [vmem:[%s8046 + $0x8] sm:$0xf]
    %v8050 = vld [vmem:[%s8046 + $0xc] sm:$0xf]
    %v8051 = vld [vmem:[%s8046 + $0x10] sm:$0xf]
    %v8052 = vld [vmem:[%s8046 + $0x14] sm:$0xf]
    %v8053 = vld [vmem:[%s8046 + $0x18] sm:$0xf]
    %v8054 = vld [vmem:[%s8046 + $0x1c] sm:$0xf]
    %v8063 = vunpack.c.l.b16 %v8047
    %v8064 = vunpack.c.l.b16 %v8048
    %v8065 = vunpack.c.l.b16 %v8049
    %v8066 = vunpack.c.l.b16 %v8050
    %v8067 = vunpack.c.l.b16 %v8051
    %v8068 = vunpack.c.l.b16 %v8052
    %v8069 = vunpack.c.l.b16 %v8053
    %v8070 = vunpack.c.l.b16 %v8054
    %v8071 = vpack.c.b16 %v8064, %v8063
    %v8072 = vpack.c.b16 %v8066, %v8065
    %v8073 = vpack.c.b16 %v8068, %v8067
    %v8074 = vpack.c.b16 %v8070, %v8069
    %v8080 = vsel %vm7889, %v8045, 0
    %8082 = vmatprep.subr.bf16.mxu0 0
    %8083 = vmatpush1.bf16.msra.mxu0 0
    %8084 = vmatprep.subr.bf16.mxu0 0
    %8085 = vmatpush1.bf16.msra.mxu0 0
    %8086 = vmatprep.subr.bf16.mxu0 0
    %8087 = vmatpush1.bf16.msra.mxu0 0
    %8088 = vmatprep.subr.bf16.mxu0 0
    %8089 = vmatpush1.bf16.msra.mxu0 0
    %8090 = vmatprep.subr.bf16.mxu0 0
    %8091 = vmatpush1.bf16.msra.mxu0 %v8074
    %8092 = vmatprep.subr.bf16.mxu0 0
    %8093 = vmatpush1.bf16.msra.mxu0 %v8073
    %8094 = vmatprep.subr.bf16.mxu0 0
    %8095 = vmatpush1.bf16.msra.mxu0 %v8072
    %8096 = vmatprep.subr.bf16.mxu0 0
    %8097 = vmatpush1.bf16.msra.mxu0 %v8071
    %8098 = vmatprep.subr.bf16.mxu0 0
    %8099 = vmatpush2.bf16.msra.mxu0 0
    %8100 = vmatprep.subr.bf16.mxu0 0
    %8101 = vmatpush2.bf16.msra.mxu0 0
    %8102 = vmatprep.subr.bf16.mxu0 0
    %8103 = vmatpush2.bf16.msra.mxu0 0
    %8104 = vmatprep.subr.bf16.mxu0 0
    %8105 = vmatpush2.bf16.msra.mxu0 0
    %8106 = vmatprep.subr.bf16.mxu0 0
    %8107 = vmatpush2.bf16.msra.mxu0 0
    %8108 = vmatprep.subr.bf16.mxu0 0
    %8109 = vmatpush2.bf16.msra.mxu0 0
    %8110 = vmatprep.subr.bf16.mxu0 0
    %8111 = vmatpush2.bf16.msra.mxu0 0
    %8112 = vmatprep.subr.bf16.mxu0 0
    %8113 = vmatpush2.bf16.msra.mxu0 0
    %8114 = vmatprep.mubr.bf16.mxu0 0
    %8115 = vmatmul.mubr.bf16.gmra.mxu0 %v8080
    %v8116 = vpop.f32.mrf.mxu0
    %v8117 = vadd.f32 0.0, %v8116
    %v8118 = vpop.f32.mrf.mxu0
    %v8119 = vpop.f32.mrf.mxu0
    %v8120 = vpop.f32.mrf.mxu0
    %8121 = vdwg.mxu0
    %v8122 = vadd.f32 %v7995, %v8117
    %s8123 = scalar_lea.vmem %s16, 3
    %v8124 = vld [vmem:[%s8123] sm:$0x1]
    %v8126 = vsel %vm7753, %v8124, 0
    %8128 = vmatprep.subr.bf16.mxu0 0
    %8129 = vmatpush1.bf16.msra.mxu0 0
    %8130 = vmatprep.subr.bf16.mxu0 0
    %8131 = vmatpush1.bf16.msra.mxu0 0
    %8132 = vmatprep.subr.bf16.mxu0 0
    %8133 = vmatpush1.bf16.msra.mxu0 0
    %8134 = vmatprep.subr.bf16.mxu0 0
    %8135 = vmatpush1.bf16.msra.mxu0 0
    %8136 = vmatprep.subr.bf16.mxu0 0
    %8137 = vmatpush1.bf16.msra.mxu0 0
    %8138 = vmatprep.subr.bf16.mxu0 0
    %8139 = vmatpush1.bf16.msra.mxu0 0
    %8140 = vmatprep.subr.bf16.mxu0 0
    %8141 = vmatpush1.bf16.msra.mxu0 0
    %8142 = vmatprep.subr.bf16.mxu0 0
    %8143 = vmatpush1.bf16.msra.mxu0 %v7759
    %8144 = vmatprep.subr.bf16.mxu0 0
    %8145 = vmatpush2.bf16.msra.mxu0 0
    %8146 = vmatprep.subr.bf16.mxu0 0
    %8147 = vmatpush2.bf16.msra.mxu0 0
    %8148 = vmatprep.subr.bf16.mxu0 0
    %8149 = vmatpush2.bf16.msra.mxu0 0
    %8150 = vmatprep.subr.bf16.mxu0 0
    %8151 = vmatpush2.bf16.msra.mxu0 0
    %8152 = vmatprep.subr.bf16.mxu0 0
    %8153 = vmatpush2.bf16.msra.mxu0 0
    %8154 = vmatprep.subr.bf16.mxu0 0
    %8155 = vmatpush2.bf16.msra.mxu0 0
    %8156 = vmatprep.subr.bf16.mxu0 0
    %8157 = vmatpush2.bf16.msra.mxu0 0
    %8158 = vmatprep.subr.bf16.mxu0 0
    %8159 = vmatpush2.bf16.msra.mxu0 0
    %8160 = vmatprep.mubr.bf16.mxu0 0
    %8161 = vmatmul.mubr.bf16.gmra.mxu0 %v8126
    %v8162 = vpop.f32.mrf.mxu0
    %v8163 = vadd.f32 0.0, %v8162
    %v8164 = vpop.f32.mrf.mxu0
    %v8165 = vpop.f32.mrf.mxu0
    %v8166 = vpop.f32.mrf.mxu0
    %8167 = vdwg.mxu0
    %v8168 = vpack.c.bf16 %v8163, %v8163
    %s8169 = scalar_lea.vmem [#allocation25], 96
    %v8170 = vld [vmem:[%s8169] sm:$0xf]
    %v8171 = vld [vmem:[%s8169 + $0x4] sm:$0xf]
    %v8172 = vld [vmem:[%s8169 + $0x8] sm:$0xf]
    %v8173 = vld [vmem:[%s8169 + $0xc] sm:$0xf]
    %v8174 = vld [vmem:[%s8169 + $0x10] sm:$0xf]
    %v8175 = vld [vmem:[%s8169 + $0x14] sm:$0xf]
    %v8176 = vld [vmem:[%s8169 + $0x18] sm:$0xf]
    %v8177 = vld [vmem:[%s8169 + $0x1c] sm:$0xf]
    %v8186 = vunpack.c.l.b16 %v8170
    %v8187 = vunpack.c.l.b16 %v8171
    %v8188 = vunpack.c.l.b16 %v8172
    %v8189 = vunpack.c.l.b16 %v8173
    %v8190 = vunpack.c.l.b16 %v8174
    %v8191 = vunpack.c.l.b16 %v8175
    %v8192 = vunpack.c.l.b16 %v8176
    %v8193 = vunpack.c.l.b16 %v8177
    %v8194 = vpack.c.b16 %v8187, %v8186
    %v8195 = vpack.c.b16 %v8189, %v8188
    %v8196 = vpack.c.b16 %v8191, %v8190
    %v8197 = vpack.c.b16 %v8193, %v8192
    %v8203 = vsel %vm7889, %v8168, 0
    %8205 = vmatprep.subr.bf16.mxu0 0
    %8206 = vmatpush1.bf16.msra.mxu0 0
    %8207 = vmatprep.subr.bf16.mxu0 0
    %8208 = vmatpush1.bf16.msra.mxu0 0
    %8209 = vmatprep.subr.bf16.mxu0 0
    %8210 = vmatpush1.bf16.msra.mxu0 0
    %8211 = vmatprep.subr.bf16.mxu0 0
    %8212 = vmatpush1.bf16.msra.mxu0 0
    %8213 = vmatprep.subr.bf16.mxu0 0
    %8214 = vmatpush1.bf16.msra.mxu0 %v8197
    %8215 = vmatprep.subr.bf16.mxu0 0
    %8216 = vmatpush1.bf16.msra.mxu0 %v8196
    %8217 = vmatprep.subr.bf16.mxu0 0
    %8218 = vmatpush1.bf16.msra.mxu0 %v8195
    %8219 = vmatprep.subr.bf16.mxu0 0
    %8220 = vmatpush1.bf16.msra.mxu0 %v8194
    %8221 = vmatprep.subr.bf16.mxu0 0
    %8222 = vmatpush2.bf16.msra.mxu0 0
    %8223 = vmatprep.subr.bf16.mxu0 0
    %8224 = vmatpush2.bf16.msra.mxu0 0
    %8225 = vmatprep.subr.bf16.mxu0 0
    %8226 = vmatpush2.bf16.msra.mxu0 0
    %8227 = vmatprep.subr.bf16.mxu0 0
    %8228 = vmatpush2.bf16.msra.mxu0 0
    %8229 = vmatprep.subr.bf16.mxu0 0
    %8230 = vmatpush2.bf16.msra.mxu0 0
    %8231 = vmatprep.subr.bf16.mxu0 0
    %8232 = vmatpush2.bf16.msra.mxu0 0
    %8233 = vmatprep.subr.bf16.mxu0 0
    %8234 = vmatpush2.bf16.msra.mxu0 0
    %8235 = vmatprep.subr.bf16.mxu0 0
    %8236 = vmatpush2.bf16.msra.mxu0 0
    %8237 = vmatprep.mubr.bf16.mxu0 0
    %8238 = vmatmul.mubr.bf16.gmra.mxu0 %v8203
    %v8239 = vpop.f32.mrf.mxu0
    %v8240 = vadd.f32 0.0, %v8239
    %v8241 = vpop.f32.mrf.mxu0
    %v8242 = vpop.f32.mrf.mxu0
    %v8243 = vpop.f32.mrf.mxu0
    %8244 = vdwg.mxu0
    %v8245 = vadd.f32 %v8122, %v8240
    %s8246 = scalar_lea.vmem %s16, 4
    %v8247 = vld [vmem:[%s8246] sm:$0x1]
    %v8249 = vsel %vm7753, %v8247, 0
    %8251 = vmatprep.subr.bf16.mxu0 0
    %8252 = vmatpush1.bf16.msra.mxu0 0
    %8253 = vmatprep.subr.bf16.mxu0 0
    %8254 = vmatpush1.bf16.msra.mxu0 0
    %8255 = vmatprep.subr.bf16.mxu0 0
    %8256 = vmatpush1.bf16.msra.mxu0 0
    %8257 = vmatprep.subr.bf16.mxu0 0
    %8258 = vmatpush1.bf16.msra.mxu0 0
    %8259 = vmatprep.subr.bf16.mxu0 0
    %8260 = vmatpush1.bf16.msra.mxu0 0
    %8261 = vmatprep.subr.bf16.mxu0 0
    %8262 = vmatpush1.bf16.msra.mxu0 0
    %8263 = vmatprep.subr.bf16.mxu0 0
    %8264 = vmatpush1.bf16.msra.mxu0 0
    %8265 = vmatprep.subr.bf16.mxu0 0
    %8266 = vmatpush1.bf16.msra.mxu0 %v7759
    %8267 = vmatprep.subr.bf16.mxu0 0
    %8268 = vmatpush2.bf16.msra.mxu0 0
    %8269 = vmatprep.subr.bf16.mxu0 0
    %8270 = vmatpush2.bf16.msra.mxu0 0
    %8271 = vmatprep.subr.bf16.mxu0 0
    %8272 = vmatpush2.bf16.msra.mxu0 0
    %8273 = vmatprep.subr.bf16.mxu0 0
    %8274 = vmatpush2.bf16.msra.mxu0 0
    %8275 = vmatprep.subr.bf16.mxu0 0
    %8276 = vmatpush2.bf16.msra.mxu0 0
    %8277 = vmatprep.subr.bf16.mxu0 0
    %8278 = vmatpush2.bf16.msra.mxu0 0
    %8279 = vmatprep.subr.bf16.mxu0 0
    %8280 = vmatpush2.bf16.msra.mxu0 0
    %8281 = vmatprep.subr.bf16.mxu0 0
    %8282 = vmatpush2.bf16.msra.mxu0 0
    %8283 = vmatprep.mubr.bf16.mxu0 0
    %8284 = vmatmul.mubr.bf16.gmra.mxu0 %v8249
    %v8285 = vpop.f32.mrf.mxu0
    %v8286 = vadd.f32 0.0, %v8285
    %v8287 = vpop.f32.mrf.mxu0
    %v8288 = vpop.f32.mrf.mxu0
    %v8289 = vpop.f32.mrf.mxu0
    %8290 = vdwg.mxu0
    %v8291 = vpack.c.bf16 %v8286, %v8286
    %s8292 = scalar_lea.vmem [#allocation25], 128
    %v8293 = vld [vmem:[%s8292] sm:$0xf]
    %v8294 = vld [vmem:[%s8292 + $0x4] sm:$0xf]
    %v8295 = vld [vmem:[%s8292 + $0x8] sm:$0xf]
    %v8296 = vld [vmem:[%s8292 + $0xc] sm:$0xf]
    %v8297 = vld [vmem:[%s8292 + $0x10] sm:$0xf]
    %v8298 = vld [vmem:[%s8292 + $0x14] sm:$0xf]
    %v8299 = vld [vmem:[%s8292 + $0x18] sm:$0xf]
    %v8300 = vld [vmem:[%s8292 + $0x1c] sm:$0xf]
    %v8309 = vunpack.c.l.b16 %v8293
    %v8310 = vunpack.c.l.b16 %v8294
    %v8311 = vunpack.c.l.b16 %v8295
    %v8312 = vunpack.c.l.b16 %v8296
    %v8313 = vunpack.c.l.b16 %v8297
    %v8314 = vunpack.c.l.b16 %v8298
    %v8315 = vunpack.c.l.b16 %v8299
    %v8316 = vunpack.c.l.b16 %v8300
    %v8317 = vpack.c.b16 %v8310, %v8309
    %v8318 = vpack.c.b16 %v8312, %v8311
    %v8319 = vpack.c.b16 %v8314, %v8313
    %v8320 = vpack.c.b16 %v8316, %v8315
    %v8326 = vsel %vm7889, %v8291, 0
    %8328 = vmatprep.subr.bf16.mxu0 0
    %8329 = vmatpush1.bf16.msra.mxu0 0
    %8330 = vmatprep.subr.bf16.mxu0 0
    %8331 = vmatpush1.bf16.msra.mxu0 0
    %8332 = vmatprep.subr.bf16.mxu0 0
    %8333 = vmatpush1.bf16.msra.mxu0 0
    %8334 = vmatprep.subr.bf16.mxu0 0
    %8335 = vmatpush1.bf16.msra.mxu0 0
    %8336 = vmatprep.subr.bf16.mxu0 0
    %8337 = vmatpush1.bf16.msra.mxu0 %v8320
    %8338 = vmatprep.subr.bf16.mxu0 0
    %8339 = vmatpush1.bf16.msra.mxu0 %v8319
    %8340 = vmatprep.subr.bf16.mxu0 0
    %8341 = vmatpush1.bf16.msra.mxu0 %v8318
    %8342 = vmatprep.subr.bf16.mxu0 0
    %8343 = vmatpush1.bf16.msra.mxu0 %v8317
    %8344 = vmatprep.subr.bf16.mxu0 0
    %8345 = vmatpush2.bf16.msra.mxu0 0
    %8346 = vmatprep.subr.bf16.mxu0 0
    %8347 = vmatpush2.bf16.msra.mxu0 0
    %8348 = vmatprep.subr.bf16.mxu0 0
    %8349 = vmatpush2.bf16.msra.mxu0 0
    %8350 = vmatprep.subr.bf16.mxu0 0
    %8351 = vmatpush2.bf16.msra.mxu0 0
    %8352 = vmatprep.subr.bf16.mxu0 0
    %8353 = vmatpush2.bf16.msra.mxu0 0
    %8354 = vmatprep.subr.bf16.mxu0 0
    %8355 = vmatpush2.bf16.msra.mxu0 0
    %8356 = vmatprep.subr.bf16.mxu0 0
    %8357 = vmatpush2.bf16.msra.mxu0 0
    %8358 = vmatprep.subr.bf16.mxu0 0
    %8359 = vmatpush2.bf16.msra.mxu0 0
    %8360 = vmatprep.mubr.bf16.mxu0 0
    %8361 = vmatmul.mubr.bf16.gmra.mxu0 %v8326
    %v8362 = vpop.f32.mrf.mxu0
    %v8363 = vadd.f32 0.0, %v8362
    %v8364 = vpop.f32.mrf.mxu0
    %v8365 = vpop.f32.mrf.mxu0
    %v8366 = vpop.f32.mrf.mxu0
    %8367 = vdwg.mxu0
    %v8368 = vadd.f32 %v8245, %v8363
    %s8369 = scalar_lea.vmem %s16, 5
    %v8370 = vld [vmem:[%s8369] sm:$0x1]
    %v8372 = vsel %vm7753, %v8370, 0
    %8374 = vmatprep.subr.bf16.mxu0 0
    %8375 = vmatpush1.bf16.msra.mxu0 0
    %8376 = vmatprep.subr.bf16.mxu0 0
    %8377 = vmatpush1.bf16.msra.mxu0 0
    %8378 = vmatprep.subr.bf16.mxu0 0
    %8379 = vmatpush1.bf16.msra.mxu0 0
    %8380 = vmatprep.subr.bf16.mxu0 0
    %8381 = vmatpush1.bf16.msra.mxu0 0
    %8382 = vmatprep.subr.bf16.mxu0 0
    %8383 = vmatpush1.bf16.msra.mxu0 0
    %8384 = vmatprep.subr.bf16.mxu0 0
    %8385 = vmatpush1.bf16.msra.mxu0 0
    %8386 = vmatprep.subr.bf16.mxu0 0
    %8387 = vmatpush1.bf16.msra.mxu0 0
    %8388 = vmatprep.subr.bf16.mxu0 0
    %8389 = vmatpush1.bf16.msra.mxu0 %v7759
    %8390 = vmatprep.subr.bf16.mxu0 0
    %8391 = vmatpush2.bf16.msra.mxu0 0
    %8392 = vmatprep.subr.bf16.mxu0 0
    %8393 = vmatpush2.bf16.msra.mxu0 0
    %8394 = vmatprep.subr.bf16.mxu0 0
    %8395 = vmatpush2.bf16.msra.mxu0 0
    %8396 = vmatprep.subr.bf16.mxu0 0
    %8397 = vmatpush2.bf16.msra.mxu0 0
    %8398 = vmatprep.subr.bf16.mxu0 0
    %8399 = vmatpush2.bf16.msra.mxu0 0
    %8400 = vmatprep.subr.bf16.mxu0 0
    %8401 = vmatpush2.bf16.msra.mxu0 0
    %8402 = vmatprep.subr.bf16.mxu0 0
    %8403 = vmatpush2.bf16.msra.mxu0 0
    %8404 = vmatprep.subr.bf16.mxu0 0
    %8405 = vmatpush2.bf16.msra.mxu0 0
    %8406 = vmatprep.mubr.bf16.mxu0 0
    %8407 = vmatmul.mubr.bf16.gmra.mxu0 %v8372
    %v8408 = vpop.f32.mrf.mxu0
    %v8409 = vadd.f32 0.0, %v8408
    %v8410 = vpop.f32.mrf.mxu0
    %v8411 = vpop.f32.mrf.mxu0
    %v8412 = vpop.f32.mrf.mxu0
    %8413 = vdwg.mxu0
    %v8414 = vpack.c.bf16 %v8409, %v8409
    %s8415 = scalar_lea.vmem [#allocation25], 160
    %v8416 = vld [vmem:[%s8415] sm:$0xf]
    %v8417 = vld [vmem:[%s8415 + $0x4] sm:$0xf]
    %v8418 = vld [vmem:[%s8415 + $0x8] sm:$0xf]
    %v8419 = vld [vmem:[%s8415 + $0xc] sm:$0xf]
    %v8420 = vld [vmem:[%s8415 + $0x10] sm:$0xf]
    %v8421 = vld [vmem:[%s8415 + $0x14] sm:$0xf]
    %v8422 = vld [vmem:[%s8415 + $0x18] sm:$0xf]
    %v8423 = vld [vmem:[%s8415 + $0x1c] sm:$0xf]
    %v8432 = vunpack.c.l.b16 %v8416
    %v8433 = vunpack.c.l.b16 %v8417
    %v8434 = vunpack.c.l.b16 %v8418
    %v8435 = vunpack.c.l.b16 %v8419
    %v8436 = vunpack.c.l.b16 %v8420
    %v8437 = vunpack.c.l.b16 %v8421
    %v8438 = vunpack.c.l.b16 %v8422
    %v8439 = vunpack.c.l.b16 %v8423
    %v8440 = vpack.c.b16 %v8433, %v8432
    %v8441 = vpack.c.b16 %v8435, %v8434
    %v8442 = vpack.c.b16 %v8437, %v8436
    %v8443 = vpack.c.b16 %v8439, %v8438
    %v8449 = vsel %vm7889, %v8414, 0
    %8451 = vmatprep.subr.bf16.mxu0 0
    %8452 = vmatpush1.bf16.msra.mxu0 0
    %8453 = vmatprep.subr.bf16.mxu0 0
    %8454 = vmatpush1.bf16.msra.mxu0 0
    %8455 = vmatprep.subr.bf16.mxu0 0
    %8456 = vmatpush1.bf16.msra.mxu0 0
    %8457 = vmatprep.subr.bf16.mxu0 0
    %8458 = vmatpush1.bf16.msra.mxu0 0
    %8459 = vmatprep.subr.bf16.mxu0 0
    %8460 = vmatpush1.bf16.msra.mxu0 %v8443
    %8461 = vmatprep.subr.bf16.mxu0 0
    %8462 = vmatpush1.bf16.msra.mxu0 %v8442
    %8463 = vmatprep.subr.bf16.mxu0 0
    %8464 = vmatpush1.bf16.msra.mxu0 %v8441
    %8465 = vmatprep.subr.bf16.mxu0 0
    %8466 = vmatpush1.bf16.msra.mxu0 %v8440
    %8467 = vmatprep.subr.bf16.mxu0 0
    %8468 = vmatpush2.bf16.msra.mxu0 0
    %8469 = vmatprep.subr.bf16.mxu0 0
    %8470 = vmatpush2.bf16.msra.mxu0 0
    %8471 = vmatprep.subr.bf16.mxu0 0
    %8472 = vmatpush2.bf16.msra.mxu0 0
    %8473 = vmatprep.subr.bf16.mxu0 0
    %8474 = vmatpush2.bf16.msra.mxu0 0
    %8475 = vmatprep.subr.bf16.mxu0 0
    %8476 = vmatpush2.bf16.msra.mxu0 0
    %8477 = vmatprep.subr.bf16.mxu0 0
    %8478 = vmatpush2.bf16.msra.mxu0 0
    %8479 = vmatprep.subr.bf16.mxu0 0
    %8480 = vmatpush2.bf16.msra.mxu0 0
    %8481 = vmatprep.subr.bf16.mxu0 0
    %8482 = vmatpush2.bf16.msra.mxu0 0
    %8483 = vmatprep.mubr.bf16.mxu0 0
    %8484 = vmatmul.mubr.bf16.gmra.mxu0 %v8449
    %v8485 = vpop.f32.mrf.mxu0
    %v8486 = vadd.f32 0.0, %v8485
    %v8487 = vpop.f32.mrf.mxu0
    %v8488 = vpop.f32.mrf.mxu0
    %v8489 = vpop.f32.mrf.mxu0
    %8490 = vdwg.mxu0
    %v8491 = vadd.f32 %v8368, %v8486
    %s8492 = scalar_lea.vmem %s16, 6
    %v8493 = vld [vmem:[%s8492] sm:$0x1]
    %v8495 = vsel %vm7753, %v8493, 0
    %8497 = vmatprep.subr.bf16.mxu0 0
    %8498 = vmatpush1.bf16.msra.mxu0 0
    %8499 = vmatprep.subr.bf16.mxu0 0
    %8500 = vmatpush1.bf16.msra.mxu0 0
    %8501 = vmatprep.subr.bf16.mxu0 0
    %8502 = vmatpush1.bf16.msra.mxu0 0
    %8503 = vmatprep.subr.bf16.mxu0 0
    %8504 = vmatpush1.bf16.msra.mxu0 0
    %8505 = vmatprep.subr.bf16.mxu0 0
    %8506 = vmatpush1.bf16.msra.mxu0 0
    %8507 = vmatprep.subr.bf16.mxu0 0
    %8508 = vmatpush1.bf16.msra.mxu0 0
    %8509 = vmatprep.subr.bf16.mxu0 0
    %8510 = vmatpush1.bf16.msra.mxu0 0
    %8511 = vmatprep.subr.bf16.mxu0 0
    %8512 = vmatpush1.bf16.msra.mxu0 %v7759
    %8513 = vmatprep.subr.bf16.mxu0 0
    %8514 = vmatpush2.bf16.msra.mxu0 0
    %8515 = vmatprep.subr.bf16.mxu0 0
    %8516 = vmatpush2.bf16.msra.mxu0 0
    %8517 = vmatprep.subr.bf16.mxu0 0
    %8518 = vmatpush2.bf16.msra.mxu0 0
    %8519 = vmatprep.subr.bf16.mxu0 0
    %8520 = vmatpush2.bf16.msra.mxu0 0
    %8521 = vmatprep.subr.bf16.mxu0 0
    %8522 = vmatpush2.bf16.msra.mxu0 0
    %8523 = vmatprep.subr.bf16.mxu0 0
    %8524 = vmatpush2.bf16.msra.mxu0 0
    %8525 = vmatprep.subr.bf16.mxu0 0
    %8526 = vmatpush2.bf16.msra.mxu0 0
    %8527 = vmatprep.subr.bf16.mxu0 0
    %8528 = vmatpush2.bf16.msra.mxu0 0
    %8529 = vmatprep.mubr.bf16.mxu0 0
    %8530 = vmatmul.mubr.bf16.gmra.mxu0 %v8495
    %v8531 = vpop.f32.mrf.mxu0
    %v8532 = vadd.f32 0.0, %v8531
    %v8533 = vpop.f32.mrf.mxu0
    %v8534 = vpop.f32.mrf.mxu0
    %v8535 = vpop.f32.mrf.mxu0
    %8536 = vdwg.mxu0
    %v8537 = vpack.c.bf16 %v8532, %v8532
    %s8538 = scalar_lea.vmem [#allocation25], 192
    %v8539 = vld [vmem:[%s8538] sm:$0xf]
    %v8540 = vld [vmem:[%s8538 + $0x4] sm:$0xf]
    %v8541 = vld [vmem:[%s8538 + $0x8] sm:$0xf]
    %v8542 = vld [vmem:[%s8538 + $0xc] sm:$0xf]
    %v8543 = vld [vmem:[%s8538 + $0x10] sm:$0xf]
    %v8544 = vld [vmem:[%s8538 + $0x14] sm:$0xf]
    %v8545 = vld [vmem:[%s8538 + $0x18] sm:$0xf]
    %v8546 = vld [vmem:[%s8538 + $0x1c] sm:$0xf]
    %v8555 = vunpack.c.l.b16 %v8539
    %v8556 = vunpack.c.l.b16 %v8540
    %v8557 = vunpack.c.l.b16 %v8541
    %v8558 = vunpack.c.l.b16 %v8542
    %v8559 = vunpack.c.l.b16 %v8543
    %v8560 = vunpack.c.l.b16 %v8544
    %v8561 = vunpack.c.l.b16 %v8545
    %v8562 = vunpack.c.l.b16 %v8546
    %v8563 = vpack.c.b16 %v8556, %v8555
    %v8564 = vpack.c.b16 %v8558, %v8557
    %v8565 = vpack.c.b16 %v8560, %v8559
    %v8566 = vpack.c.b16 %v8562, %v8561
    %v8572 = vsel %vm7889, %v8537, 0
    %8574 = vmatprep.subr.bf16.mxu0 0
    %8575 = vmatpush1.bf16.msra.mxu0 0
    %8576 = vmatprep.subr.bf16.mxu0 0
    %8577 = vmatpush1.bf16.msra.mxu0 0
    %8578 = vmatprep.subr.bf16.mxu0 0
    %8579 = vmatpush1.bf16.msra.mxu0 0
    %8580 = vmatprep.subr.bf16.mxu0 0
    %8581 = vmatpush1.bf16.msra.mxu0 0
    %8582 = vmatprep.subr.bf16.mxu0 0
    %8583 = vmatpush1.bf16.msra.mxu0 %v8566
    %8584 = vmatprep.subr.bf16.mxu0 0
    %8585 = vmatpush1.bf16.msra.mxu0 %v8565
    %8586 = vmatprep.subr.bf16.mxu0 0
    %8587 = vmatpush1.bf16.msra.mxu0 %v8564
    %8588 = vmatprep.subr.bf16.mxu0 0
    %8589 = vmatpush1.bf16.msra.mxu0 %v8563
    %8590 = vmatprep.subr.bf16.mxu0 0
    %8591 = vmatpush2.bf16.msra.mxu0 0
    %8592 = vmatprep.subr.bf16.mxu0 0
    %8593 = vmatpush2.bf16.msra.mxu0 0
    %8594 = vmatprep.subr.bf16.mxu0 0
    %8595 = vmatpush2.bf16.msra.mxu0 0
    %8596 = vmatprep.subr.bf16.mxu0 0
    %8597 = vmatpush2.bf16.msra.mxu0 0
    %8598 = vmatprep.subr.bf16.mxu0 0
    %8599 = vmatpush2.bf16.msra.mxu0 0
    %8600 = vmatprep.subr.bf16.mxu0 0
    %8601 = vmatpush2.bf16.msra.mxu0 0
    %8602 = vmatprep.subr.bf16.mxu0 0
    %8603 = vmatpush2.bf16.msra.mxu0 0
    %8604 = vmatprep.subr.bf16.mxu0 0
    %8605 = vmatpush2.bf16.msra.mxu0 0
    %8606 = vmatprep.mubr.bf16.mxu0 0
    %8607 = vmatmul.mubr.bf16.gmra.mxu0 %v8572
    %v8608 = vpop.f32.mrf.mxu0
    %v8609 = vadd.f32 0.0, %v8608
    %v8610 = vpop.f32.mrf.mxu0
    %v8611 = vpop.f32.mrf.mxu0
    %v8612 = vpop.f32.mrf.mxu0
    %8613 = vdwg.mxu0
    %v8614 = vadd.f32 %v8491, %v8609
    %s8615 = scalar_lea.vmem %s16, 7
    %v8616 = vld [vmem:[%s8615] sm:$0x1]
    %v8618 = vsel %vm7753, %v8616, 0
    %8620 = vmatprep.subr.bf16.mxu0 0
    %8621 = vmatpush1.bf16.msra.mxu0 0
    %8622 = vmatprep.subr.bf16.mxu0 0
    %8623 = vmatpush1.bf16.msra.mxu0 0
    %8624 = vmatprep.subr.bf16.mxu0 0
    %8625 = vmatpush1.bf16.msra.mxu0 0
    %8626 = vmatprep.subr.bf16.mxu0 0
    %8627 = vmatpush1.bf16.msra.mxu0 0
    %8628 = vmatprep.subr.bf16.mxu0 0
    %8629 = vmatpush1.bf16.msra.mxu0 0
    %8630 = vmatprep.subr.bf16.mxu0 0
    %8631 = vmatpush1.bf16.msra.mxu0 0
    %8632 = vmatprep.subr.bf16.mxu0 0
    %8633 = vmatpush1.bf16.msra.mxu0 0
    %8634 = vmatprep.subr.bf16.mxu0 0
    %8635 = vmatpush1.bf16.msra.mxu0 %v7759
    %8636 = vmatprep.subr.bf16.mxu0 0
    %8637 = vmatpush2.bf16.msra.mxu0 0
    %8638 = vmatprep.subr.bf16.mxu0 0
    %8639 = vmatpush2.bf16.msra.mxu0 0
    %8640 = vmatprep.subr.bf16.mxu0 0
    %8641 = vmatpush2.bf16.msra.mxu0 0
    %8642 = vmatprep.subr.bf16.mxu0 0
    %8643 = vmatpush2.bf16.msra.mxu0 0
    %8644 = vmatprep.subr.bf16.mxu0 0
    %8645 = vmatpush2.bf16.msra.mxu0 0
    %8646 = vmatprep.subr.bf16.mxu0 0
    %8647 = vmatpush2.bf16.msra.mxu0 0
    %8648 = vmatprep.subr.bf16.mxu0 0
    %8649 = vmatpush2.bf16.msra.mxu0 0
    %8650 = vmatprep.subr.bf16.mxu0 0
    %8651 = vmatpush2.bf16.msra.mxu0 0
    %8652 = vmatprep.mubr.bf16.mxu0 0
    %8653 = vmatmul.mubr.bf16.gmra.mxu0 %v8618
    %v8654 = vpop.f32.mrf.mxu0
    %v8655 = vadd.f32 0.0, %v8654
    %v8656 = vpop.f32.mrf.mxu0
    %v8657 = vpop.f32.mrf.mxu0
    %v8658 = vpop.f32.mrf.mxu0
    %8659 = vdwg.mxu0
    %v8660 = vpack.c.bf16 %v8655, %v8655
    %s8661 = scalar_lea.vmem [#allocation25], 224
    %v8662 = vld [vmem:[%s8661] sm:$0xf]
    %v8663 = vld [vmem:[%s8661 + $0x4] sm:$0xf]
    %v8664 = vld [vmem:[%s8661 + $0x8] sm:$0xf]
    %v8665 = vld [vmem:[%s8661 + $0xc] sm:$0xf]
    %v8666 = vld [vmem:[%s8661 + $0x10] sm:$0xf]
    %v8667 = vld [vmem:[%s8661 + $0x14] sm:$0xf]
    %v8668 = vld [vmem:[%s8661 + $0x18] sm:$0xf]
    %v8669 = vld [vmem:[%s8661 + $0x1c] sm:$0xf]
    %v8678 = vunpack.c.l.b16 %v8662
    %v8679 = vunpack.c.l.b16 %v8663
    %v8680 = vunpack.c.l.b16 %v8664
    %v8681 = vunpack.c.l.b16 %v8665
    %v8682 = vunpack.c.l.b16 %v8666
    %v8683 = vunpack.c.l.b16 %v8667
    %v8684 = vunpack.c.l.b16 %v8668
    %v8685 = vunpack.c.l.b16 %v8669
    %v8686 = vpack.c.b16 %v8679, %v8678
    %v8687 = vpack.c.b16 %v8681, %v8680
    %v8688 = vpack.c.b16 %v8683, %v8682
    %v8689 = vpack.c.b16 %v8685, %v8684
    %v8695 = vsel %vm7889, %v8660, 0
    %8697 = vmatprep.subr.bf16.mxu0 0
    %8698 = vmatpush1.bf16.msra.mxu0 0
    %8699 = vmatprep.subr.bf16.mxu0 0
    %8700 = vmatpush1.bf16.msra.mxu0 0
    %8701 = vmatprep.subr.bf16.mxu0 0
    %8702 = vmatpush1.bf16.msra.mxu0 0
    %8703 = vmatprep.subr.bf16.mxu0 0
    %8704 = vmatpush1.bf16.msra.mxu0 0
    %8705 = vmatprep.subr.bf16.mxu0 0
    %8706 = vmatpush1.bf16.msra.mxu0 %v8689
    %8707 = vmatprep.subr.bf16.mxu0 0
    %8708 = vmatpush1.bf16.msra.mxu0 %v8688
    %8709 = vmatprep.subr.bf16.mxu0 0
    %8710 = vmatpush1.bf16.msra.mxu0 %v8687
    %8711 = vmatprep.subr.bf16.mxu0 0
    %8712 = vmatpush1.bf16.msra.mxu0 %v8686
    %8713 = vmatprep.subr.bf16.mxu0 0
    %8714 = vmatpush2.bf16.msra.mxu0 0
    %8715 = vmatprep.subr.bf16.mxu0 0
    %8716 = vmatpush2.bf16.msra.mxu0 0
    %8717 = vmatprep.subr.bf16.mxu0 0
    %8718 = vmatpush2.bf16.msra.mxu0 0
    %8719 = vmatprep.subr.bf16.mxu0 0
    %8720 = vmatpush2.bf16.msra.mxu0 0
    %8721 = vmatprep.subr.bf16.mxu0 0
    %8722 = vmatpush2.bf16.msra.mxu0 0
    %8723 = vmatprep.subr.bf16.mxu0 0
    %8724 = vmatpush2.bf16.msra.mxu0 0
    %8725 = vmatprep.subr.bf16.mxu0 0
    %8726 = vmatpush2.bf16.msra.mxu0 0
    %8727 = vmatprep.subr.bf16.mxu0 0
    %8728 = vmatpush2.bf16.msra.mxu0 0
    %8729 = vmatprep.mubr.bf16.mxu0 0
    %8730 = vmatmul.mubr.bf16.gmra.mxu0 %v8695
    %v8731 = vpop.f32.mrf.mxu0
    %v8732 = vadd.f32 0.0, %v8731
    %v8733 = vpop.f32.mrf.mxu0
    %v8734 = vpop.f32.mrf.mxu0
    %v8735 = vpop.f32.mrf.mxu0
    %8736 = vdwg.mxu0
    %v8737 = vadd.f32 %v8614, %v8732
    %s8738 = scalar_lea.vmem %s16, 8
    %v8739 = vld [vmem:[%s8738] sm:$0x1]
    %v8741 = vsel %vm7753, %v8739, 0
    %8743 = vmatprep.subr.bf16.mxu0 0
    %8744 = vmatpush1.bf16.msra.mxu0 0
    %8745 = vmatprep.subr.bf16.mxu0 0
    %8746 = vmatpush1.bf16.msra.mxu0 0
    %8747 = vmatprep.subr.bf16.mxu0 0
    %8748 = vmatpush1.bf16.msra.mxu0 0
    %8749 = vmatprep.subr.bf16.mxu0 0
    %8750 = vmatpush1.bf16.msra.mxu0 0
    %8751 = vmatprep.subr.bf16.mxu0 0
    %8752 = vmatpush1.bf16.msra.mxu0 0
    %8753 = vmatprep.subr.bf16.mxu0 0
    %8754 = vmatpush1.bf16.msra.mxu0 0
    %8755 = vmatprep.subr.bf16.mxu0 0
    %8756 = vmatpush1.bf16.msra.mxu0 0
    %8757 = vmatprep.subr.bf16.mxu0 0
    %8758 = vmatpush1.bf16.msra.mxu0 %v7759
    %8759 = vmatprep.subr.bf16.mxu0 0
    %8760 = vmatpush2.bf16.msra.mxu0 0
    %8761 = vmatprep.subr.bf16.mxu0 0
    %8762 = vmatpush2.bf16.msra.mxu0 0
    %8763 = vmatprep.subr.bf16.mxu0 0
    %8764 = vmatpush2.bf16.msra.mxu0 0
    %8765 = vmatprep.subr.bf16.mxu0 0
    %8766 = vmatpush2.bf16.msra.mxu0 0
    %8767 = vmatprep.subr.bf16.mxu0 0
    %8768 = vmatpush2.bf16.msra.mxu0 0
    %8769 = vmatprep.subr.bf16.mxu0 0
    %8770 = vmatpush2.bf16.msra.mxu0 0
    %8771 = vmatprep.subr.bf16.mxu0 0
    %8772 = vmatpush2.bf16.msra.mxu0 0
    %8773 = vmatprep.subr.bf16.mxu0 0
    %8774 = vmatpush2.bf16.msra.mxu0 0
    %8775 = vmatprep.mubr.bf16.mxu0 0
    %8776 = vmatmul.mubr.bf16.gmra.mxu0 %v8741
    %v8777 = vpop.f32.mrf.mxu0
    %v8778 = vadd.f32 0.0, %v8777
    %v8779 = vpop.f32.mrf.mxu0
    %v8780 = vpop.f32.mrf.mxu0
    %v8781 = vpop.f32.mrf.mxu0
    %8782 = vdwg.mxu0
    %v8783 = vpack.c.bf16 %v8778, %v8778
    %s8784 = scalar_lea.vmem [#allocation25], 256
    %v8785 = vld [vmem:[%s8784] sm:$0xf]
    %v8786 = vld [vmem:[%s8784 + $0x4] sm:$0xf]
    %v8787 = vld [vmem:[%s8784 + $0x8] sm:$0xf]
    %v8788 = vld [vmem:[%s8784 + $0xc] sm:$0xf]
    %v8789 = vld [vmem:[%s8784 + $0x10] sm:$0xf]
    %v8790 = vld [vmem:[%s8784 + $0x14] sm:$0xf]
    %v8791 = vld [vmem:[%s8784 + $0x18] sm:$0xf]
    %v8792 = vld [vmem:[%s8784 + $0x1c] sm:$0xf]
    %v8801 = vunpack.c.l.b16 %v8785
    %v8802 = vunpack.c.l.b16 %v8786
    %v8803 = vunpack.c.l.b16 %v8787
    %v8804 = vunpack.c.l.b16 %v8788
    %v8805 = vunpack.c.l.b16 %v8789
    %v8806 = vunpack.c.l.b16 %v8790
    %v8807 = vunpack.c.l.b16 %v8791
    %v8808 = vunpack.c.l.b16 %v8792
    %v8809 = vpack.c.b16 %v8802, %v8801
    %v8810 = vpack.c.b16 %v8804, %v8803
    %v8811 = vpack.c.b16 %v8806, %v8805
    %v8812 = vpack.c.b16 %v8808, %v8807
    %v8818 = vsel %vm7889, %v8783, 0
    %8820 = vmatprep.subr.bf16.mxu0 0
    %8821 = vmatpush1.bf16.msra.mxu0 0
    %8822 = vmatprep.subr.bf16.mxu0 0
    %8823 = vmatpush1.bf16.msra.mxu0 0
    %8824 = vmatprep.subr.bf16.mxu0 0
    %8825 = vmatpush1.bf16.msra.mxu0 0
    %8826 = vmatprep.subr.bf16.mxu0 0
    %8827 = vmatpush1.bf16.msra.mxu0 0
    %8828 = vmatprep.subr.bf16.mxu0 0
    %8829 = vmatpush1.bf16.msra.mxu0 %v8812
    %8830 = vmatprep.subr.bf16.mxu0 0
    %8831 = vmatpush1.bf16.msra.mxu0 %v8811
    %8832 = vmatprep.subr.bf16.mxu0 0
    %8833 = vmatpush1.bf16.msra.mxu0 %v8810
    %8834 = vmatprep.subr.bf16.mxu0 0
    %8835 = vmatpush1.bf16.msra.mxu0 %v8809
    %8836 = vmatprep.subr.bf16.mxu0 0
    %8837 = vmatpush2.bf16.msra.mxu0 0
    %8838 = vmatprep.subr.bf16.mxu0 0
    %8839 = vmatpush2.bf16.msra.mxu0 0
    %8840 = vmatprep.subr.bf16.mxu0 0
    %8841 = vmatpush2.bf16.msra.mxu0 0
    %8842 = vmatprep.subr.bf16.mxu0 0
    %8843 = vmatpush2.bf16.msra.mxu0 0
    %8844 = vmatprep.subr.bf16.mxu0 0
    %8845 = vmatpush2.bf16.msra.mxu0 0
    %8846 = vmatprep.subr.bf16.mxu0 0
    %8847 = vmatpush2.bf16.msra.mxu0 0
    %8848 = vmatprep.subr.bf16.mxu0 0
    %8849 = vmatpush2.bf16.msra.mxu0 0
    %8850 = vmatprep.subr.bf16.mxu0 0
    %8851 = vmatpush2.bf16.msra.mxu0 0
    %8852 = vmatprep.mubr.bf16.mxu0 0
    %8853 = vmatmul.mubr.bf16.gmra.mxu0 %v8818
    %v8854 = vpop.f32.mrf.mxu0
    %v8855 = vadd.f32 0.0, %v8854
    %v8856 = vpop.f32.mrf.mxu0
    %v8857 = vpop.f32.mrf.mxu0
    %v8858 = vpop.f32.mrf.mxu0
    %8859 = vdwg.mxu0
    %v8860 = vadd.f32 %v8737, %v8855
    %v8861 = vld [vmem:[#allocation27] sm:$0x1]
    %v8863 = vlaneseq
    %v8864 = vshrl.u32 %v8863, 7
    %v8865 = vsub.s32 0, %v8864
    %v8866 = vrot.slane %v8861, %v8865
    %v8868 = vadd.f32 %v8860, %v8866
    %vm8869 = vcmp.gt.f32.partialorder %v8868, 0.0
    %v8870 = vmul.f32 %v8868, 0.2
    %v8871 = vsel %vm8869, %v8868, %v8870
    %v8872 = vld [vmem:[#allocation28] sm:$0x1]
    %v8874 = vlaneseq
    %v8875 = vshrl.u32 %v8874, 7
    %v8876 = vsub.s32 0, %v8875
    %v8877 = vrot.slane %v8872, %v8876
    %v8879 = vmul.f32 %v8871, %v8877
    %v8880 = vld [vmem:[#allocation30] sm:$0x1]
    %v8882 = vlaneseq
    %v8883 = vshrl.u32 %v8882, 7
    %v8884 = vsub.s32 0, %v8883
    %v8885 = vrot.slane %v8880, %v8884
    %v8887 = vadd.f32 %v8879, %v8885
    %v8888 = vpack.c.bf16 %v8887, %v8887
    %v8889 = vld [vmem:[#allocation31] sm:$0x1]
    %v8890 = vld [vmem:[%s21] sm:$0xf]
    %v8891 = vld [vmem:[%s21 + $0x4] sm:$0xf]
    %v8892 = vld [vmem:[%s21 + $0x8] sm:$0xf]
    %v8893 = vld [vmem:[%s21 + $0xc] sm:$0xf]
    %v8894 = vld [vmem:[%s21 + $0x10] sm:$0xf]
    %v8895 = vld [vmem:[%s21 + $0x14] sm:$0xf]
    %v8896 = vld [vmem:[%s21 + $0x18] sm:$0xf]
    %v8897 = vld [vmem:[%s21 + $0x1c] sm:$0xf]
    %v8898 = vld [vmem:[%s21 + $0x20] sm:$0xf]
    %v8899 = vld [vmem:[%s21 + $0x24] sm:$0xf]
    %v8900 = vld [vmem:[%s21 + $0x28] sm:$0xf]
    %v8901 = vld [vmem:[%s21 + $0x2c] sm:$0xf]
    %v8902 = vld [vmem:[%s21 + $0x30] sm:$0xf]
    %v8903 = vld [vmem:[%s21 + $0x34] sm:$0xf]
    %v8904 = vld [vmem:[%s21 + $0x38] sm:$0xf]
    %v8905 = vld [vmem:[%s21 + $0x3c] sm:$0xf]
    %v8907 = vlaneseq
    %v8908 = vshrl.u32 %v8907, 7
    %v8909 = vsub.s32 0, %v8908
    %v8910 = vrot.slane %v8889, %v8909
    %v8928 = vunpack.c.l.b16 %v8890
    %v8929 = vunpack.c.l.b16 %v8891
    %v8930 = vunpack.c.l.b16 %v8892
    %v8931 = vunpack.c.l.b16 %v8893
    %v8932 = vunpack.c.l.b16 %v8894
    %v8933 = vunpack.c.l.b16 %v8895
    %v8934 = vunpack.c.l.b16 %v8896
    %v8935 = vunpack.c.l.b16 %v8897
    %v8936 = vunpack.c.l.b16 %v8898
    %v8937 = vunpack.c.l.b16 %v8899
    %v8938 = vunpack.c.l.b16 %v8900
    %v8939 = vunpack.c.l.b16 %v8901
    %v8940 = vunpack.c.l.b16 %v8902
    %v8941 = vunpack.c.l.b16 %v8903
    %v8942 = vunpack.c.l.b16 %v8904
    %v8943 = vunpack.c.l.b16 %v8905
    %v8944 = vpack.c.b16 %v8929, %v8928
    %v8945 = vpack.c.b16 %v8931, %v8930
    %v8946 = vpack.c.b16 %v8933, %v8932
    %v8947 = vpack.c.b16 %v8935, %v8934
    %v8948 = vpack.c.b16 %v8937, %v8936
    %v8949 = vpack.c.b16 %v8939, %v8938
    %v8950 = vpack.c.b16 %v8941, %v8940
    %v8951 = vpack.c.b16 %v8943, %v8942
    %8960 = vmatprep.subr.bf16.mxu0 0
    %8961 = vmatpush1.bf16.msra.mxu0 %v8951
    %8962 = vmatprep.subr.bf16.mxu0 0
    %8963 = vmatpush1.bf16.msra.mxu0 %v8950
    %8964 = vmatprep.subr.bf16.mxu0 0
    %8965 = vmatpush1.bf16.msra.mxu0 %v8949
    %8966 = vmatprep.subr.bf16.mxu0 0
    %8967 = vmatpush1.bf16.msra.mxu0 %v8948
    %8968 = vmatprep.subr.bf16.mxu0 0
    %8969 = vmatpush1.bf16.msra.mxu0 %v8947
    %8970 = vmatprep.subr.bf16.mxu0 0
    %8971 = vmatpush1.bf16.msra.mxu0 %v8946
    %8972 = vmatprep.subr.bf16.mxu0 0
    %8973 = vmatpush1.bf16.msra.mxu0 %v8945
    %8974 = vmatprep.subr.bf16.mxu0 0
    %8975 = vmatpush1.bf16.msra.mxu0 %v8944
    %8976 = vmatprep.subr.bf16.mxu0 0
    %8977 = vmatpush2.bf16.msra.mxu0 0
    %8978 = vmatprep.subr.bf16.mxu0 0
    %8979 = vmatpush2.bf16.msra.mxu0 0
    %8980 = vmatprep.subr.bf16.mxu0 0
    %8981 = vmatpush2.bf16.msra.mxu0 0
    %8982 = vmatprep.subr.bf16.mxu0 0
    %8983 = vmatpush2.bf16.msra.mxu0 0
    %8984 = vmatprep.subr.bf16.mxu0 0
    %8985 = vmatpush2.bf16.msra.mxu0 0
    %8986 = vmatprep.subr.bf16.mxu0 0
    %8987 = vmatpush2.bf16.msra.mxu0 0
    %8988 = vmatprep.subr.bf16.mxu0 0
    %8989 = vmatpush2.bf16.msra.mxu0 0
    %8990 = vmatprep.subr.bf16.mxu0 0
    %8991 = vmatpush2.bf16.msra.mxu0 0
    %8992 = vmatprep.mubr.bf16.mxu0 0
    %8993 = vmatmul.mubr.bf16.gmra.mxu0 %v8888
    %v8994 = vpop.f32.mrf.mxu0
    %v8995 = vadd.f32 %v8910, %v8994
    %v8996 = vpop.f32.mrf.mxu0
    %v8997 = vpop.f32.mrf.mxu0
    %v8998 = vpop.f32.mrf.mxu0
    %8999 = vdwg.mxu0
    %v9000 = vlaneseq
    %v9001 = vand.u32 %v9000, 127
    %v9002 = vmul.f32 %v8995, 0.5
    %v9003 = vtanh.pop %v9002
    %v9004 = vadd.f32 %v9003, 1.0
    %v9005 = vmul.f32 %v9004, 0.5
    %vm9006 = vcmp.ge.s32.totalorder %v9001, 1
    %v9007 = vsel %vm9006, %v8995, -inf
    %vm9008 = vcmask 82944
    %v9009 = vsel %vm9008, %v9007, -inf
    %9010 = vmax.xlane.f32.xlu0 %v9009
    %v9011 = vpop.xlane.xlu0 %9010
    %v9012 = vsub.f32 %v9007, %v9011
    %v9013 = vmul.f32 %v9012, 1.442695
    %v9014 = vpow.pop %v9013
    %v9015 = vsel %vm9008, %v9014, 0.0
    %9016 = vadd.xlane.f32.xlu0 %v9015
    %v9017 = vpop.xlane.xlu0 %9016
    %v9018 = vrcp.pop %v9017
    %v9019 = vmul.f32 %v9014, %v9018
    %vm9020 = vcmp.eq.s32.totalorder %v9001, 0
    %v9021 = vsel %vm9020, %v9005, %v9019
    %9022 = vst.msk [vmem:[%s23] sm:$0x3] %vm9008, %v9021
    // Predicated region
    $region174: #{discriminator_forward.1} parent=1 // pred_check
      _
    $region175: #{discriminator_forward.1} parent=1 // pred_check_branch
      %9024 = sbr.rel (0) target = $region177
    $region176: #{discriminator_forward.1} parent=1 // pred_region
      _
    $region177: #{discriminator_forward.1} parent=1 // pred_fallthru
      _
    // Predicated region
    $region178: #{discriminator_forward.1} parent=1 // pred_check
      _
    $region179: #{discriminator_forward.1} parent=1 // pred_check_branch
      %9026 = sbr.rel (0) target = $region181
    $region180: #{discriminator_forward.1} parent=1 // pred_region
      _
    $region181: #{discriminator_forward.1} parent=1 // pred_fallthru
      _
    %9027 = vsyncpa [#allocation3], 1
    %9028 = vsyncpa [#allocation5], 1
    %9029 = vsyncpa [#allocation8], 1
    %9030 = vsyncpa [#allocation11], 1
    %9031 = vsyncpa [#allocation14], 1
    %9032 = vsyncpa [#allocation17], 1
    %9033 = vsyncpa [#allocation20], 1
    %9034 = vsyncpa [#allocation23], 1
    %9035 = vsyncpa [#allocation26], 1
    %9036 = vsyncpa [#allocation29], 1
    %9037 = vsyncpa [#allocation32], 1

</llo_original>
